<compile_context>
chip_gen: v6e
topology: v6e:2x2x1
jax: 0.10.0
libtpu: 0.0.40
codegen_flags: <defaults>
</compile_context>

<pallas_src>
import jax
import jax.numpy as jnp
from jax import lax
from jax.experimental import pallas as pl
from jax.experimental.pallas import tpu as pltpu

N_DEC_STEPS = 20
START_TOKEN = 3
_UNROLL_LIMIT = 64   # fully unroll fixed-trip loops up to this many iterations


def _unrolled_or_fori(n, body, carry):
    """Python-unroll short static loops (static indices -> static ref slices);
    fall back to a rolled fori_loop only for long trip counts."""
    if n <= _UNROLL_LIMIT:
        for i in range(n):
            carry = body(i, carry)
        return carry
    return lax.fori_loop(0, n, body, carry)


# --------------------------------------------------------------------------
# Pallas kernel: encoder RNN, hidden projection, 20-step greedy decoder with
# argmax feedback — one batch block per grid point, everything in VMEM.
# --------------------------------------------------------------------------
def make_dynamic_rnn_kernel(cfg, B_blk, T):
    n_enc, enc_dim = cfg["n_enc"], cfg["enc_dim"]
    n_dec, dec_dim = cfg["n_dec"], cfg["dec_dim"]
    dec_vocab, linear_dim = cfg["dec_vocab"], cfg["linear_dim"]
    needs_proj = (n_dec != n_enc)
    f32 = jnp.float32

    def kernel(*refs):
        it = iter(refs)
        x_ref = next(it)                                  # (T, B_blk, E_enc)
        enc_wih0 = next(it)[...]                          # (E_enc, H)
        enc_whh0 = next(it)[...]                          # (H, H)
        enc_b0 = next(it)[...]                            # (1, H)  bih+bhh
        enc_wR_ref = next(it) if n_enc > 1 else None      # (n_enc-1, 2H, H)
        enc_bR_ref = next(it) if n_enc > 1 else None      # (n_enc-1, 1, H)
        dec_w0 = next(it)[...]                            # (dec_vocab+Hd, Hd) emb/ih/bias folded
        dec_wR_ref = next(it) if n_dec > 1 else None      # (n_dec-1, 2Hd, Hd)
        dec_bR_ref = next(it) if n_dec > 1 else None      # (n_dec-1, 1, Hd)
        proj_wT = next(it)[...] if needs_proj else None   # (n_enc*H, n_dec*Hd)
        proj_b = next(it)[...] if needs_proj else None    # (1, n_dec*Hd)
        fc1_wT = next(it)[...]                            # (Hd, linear_dim)
        fc1_b = next(it)[...]                             # (1, linear_dim)
        out_ref = next(it)                                # (N_DEC_STEPS, B_blk, linear_dim)
        pre_ref = next(it)                                # scratch (T, B_blk, H)

        # ---- hoist loop-invariant weight loads and bias broadcasts ----------
        enc_wR = [enc_wR_ref[l] for l in range(n_enc - 1)]
        enc_bR = [jnp.broadcast_to(enc_bR_ref[l], (B_blk, enc_dim))
                  for l in range(n_enc - 1)]
        dec_wR = [dec_wR_ref[l] for l in range(n_dec - 1)]
        dec_bR = [jnp.broadcast_to(dec_bR_ref[l], (B_blk, dec_dim))
                  for l in range(n_dec - 1)]
        enc_b0_bc = jnp.broadcast_to(enc_b0, (B_blk, enc_dim))
        fc1_b_bc = jnp.broadcast_to(fc1_b, (B_blk, linear_dim))

        # ---- encoder layer-0 ih contribution for ALL timesteps (off the
        #      serial chain: independent matmuls pipeline through the MXU) ----
        def pre_step(t, carry):
            pre_ref[t] = jnp.dot(x_ref[t], enc_wih0,
                                 preferred_element_type=f32) + enc_b0_bc
            return carry
        _unrolled_or_fori(T, pre_step, 0)

        # ---- encoder: single serial loop over time --------------------------
        def enc_step(t, hs):
            h = jnp.tanh(pre_ref[t] +
                         jnp.dot(hs[0], enc_whh0, preferred_element_type=f32))
            new_hs = [h]
            inp = h
            for l in range(1, n_enc):
                h = jnp.tanh(
                    jnp.dot(jnp.concatenate([inp, hs[l]], axis=-1),
                            enc_wR[l - 1], preferred_element_type=f32)
                    + enc_bR[l - 1])
                new_hs.append(h)
                inp = h
            return tuple(new_hs)

        h0 = tuple(jnp.zeros((B_blk, enc_dim), f32) for _ in range(n_enc))
        enc_h = _unrolled_or_fori(T, enc_step, h0)

        # ---- encoder hidden -> decoder hidden (Linear projection) -----------
        if needs_proj:
            cat = enc_h[0] if n_enc == 1 else jnp.concatenate(enc_h, axis=-1)
            proj = jnp.dot(cat, proj_wT, preferred_element_type=f32) + proj_b
            dec_h0 = tuple(proj[:, l * dec_dim:(l + 1) * dec_dim]
                           for l in range(n_dec))
        else:
            dec_h0 = enc_h

        # ---- greedy decoder loop (20 steps, fully unrolled) ------------------
        vocab_iota = lax.broadcasted_iota(jnp.int32, (B_blk, dec_vocab), 1)
        lin_iota = lax.broadcasted_iota(jnp.int32, (B_blk, linear_dim), 1)

        def dec_step(step, carry):
            hs, idx = carry
            onehot = (vocab_iota == idx).astype(f32)      # (B, dec_vocab)
            # layer 0: embedding lookup + ih matmul + biases folded in dec_w0
            h = jnp.tanh(jnp.dot(jnp.concatenate([onehot, hs[0]], axis=-1),
                                 dec_w0, preferred_element_type=f32))
            new_hs = [h]
            inp = h
            for l in range(1, n_dec):
                h = jnp.tanh(
                    jnp.dot(jnp.concatenate([inp, hs[l]], axis=-1),
                            dec_wR[l - 1], preferred_element_type=f32)
                    + dec_bR[l - 1])
                new_hs.append(h)
                inp = h
            logits = jnp.dot(inp, fc1_wT, preferred_element_type=f32) + fc1_b_bc
            out_ref[step] = logits                        # per-step store
            # argmax (first maximal index), kept 2-D for TPU
            maxv = jnp.max(logits, axis=-1, keepdims=True)
            new_idx = jnp.min(
                jnp.where(logits == maxv, lin_iota, jnp.int32(linear_dim)),
                axis=-1, keepdims=True)
            return (tuple(new_hs), new_idx)

        idx0 = jnp.full((B_blk, 1), START_TOKEN, jnp.int32)
        _unrolled_or_fori(N_DEC_STEPS, dec_step, (dec_h0, idx0))

    return kernel


# --------------------------------------------------------------------------
# Wrapper: embedding gather, weight fusion/packing, pallas_call with batch grid
# --------------------------------------------------------------------------
def _num_batch_blocks(B):
    # Dual-TensorCore (v7x-class) chips: split the batch in exactly 2 equal,
    # (8,·)-aligned blocks so 'parallel' semantics shards across both TCs.
    # Single-TC chips (v5e/v6e): one big block (grid=1) — grid steps are serial.
    try:
        kind = jax.devices()[0].device_kind.lower()
    except Exception:
        kind = ""
    if "v7" in kind and B % 16 == 0:
        return 2
    return 1


def dynamic_rnn_forward(params, x, cfg):
    B, T = x.shape
    assert cfg["linear_dim"] <= cfg["dec_vocab"], \
        "argmax feedback indices must be valid decoder-embedding rows"
    n_enc, n_dec = cfg["n_enc"], cfg["n_dec"]
    needs_proj = (n_dec != n_enc)
    if not needs_proj:
        assert cfg["enc_dim"] == cfg["dec_dim"], \
            "n_dec == n_enc requires enc_dim == dec_dim (hidden passes through)"

    n_blocks = _num_batch_blocks(B)
    B_blk = B // n_blocks

    # Glue: encoder embedding lookup (static gather), time-major (T, B, E)
    x_emb = jnp.take(params["enc_emb"], x, axis=0).astype(jnp.float32)
    x_emb = jnp.transpose(x_emb, (1, 0, 2))

    def fuse(wih, whh, bih, bhh):
        return (jnp.concatenate([wih.T, whh.T], axis=0),
                (bih + bhh).reshape(1, -1))

    ins = [x_emb]
    in_specs = [pl.BlockSpec((T, B_blk, cfg["enc_emb"]), lambda b: (0, b, 0))]

    def add_whole(arr):
        arr = jnp.asarray(arr, jnp.float32)
        nd = arr.ndim
        ins.append(arr)
        in_specs.append(pl.BlockSpec(arr.shape, lambda b, _nd=nd: (0,) * _nd))

    # encoder layer 0: ih and hh kept separate so the ih part can be batched
    # over all timesteps inside the kernel (off the serial recurrence chain)
    wih0, whh0, bih0, bhh0 = params["enc_layers"][0]
    add_whole(wih0.T)
    add_whole(whh0.T)
    add_whole((bih0 + bhh0).reshape(1, -1))
    if n_enc > 1:
        wR, bR = zip(*(fuse(*lyr) for lyr in params["enc_layers"][1:]))
        add_whole(jnp.stack(wR)); add_whole(jnp.stack(bR))

    # decoder layer 0: fold embedding table + ih weight + both biases into one matrix
    dwih, dwhh, dbih, dbhh = params["dec_layers"][0]
    dec_tab0 = params["dec_emb"].astype(jnp.float32) @ dwih.T + dbih + dbhh
    add_whole(jnp.concatenate([dec_tab0, dwhh.T], axis=0))
    if n_dec > 1:
        wR, bR = zip(*(fuse(*lyr) for lyr in params["dec_layers"][1:]))
        add_whole(jnp.stack(wR)); add_whole(jnp.stack(bR))

    if needs_proj:
        add_whole(params["proj_w"].T); add_whole(params["proj_b"].reshape(1, -1))

    add_whole(params["fc1_w"].T); add_whole(params["fc1_b"].reshape(1, -1))

    kernel = make_dynamic_rnn_kernel(cfg, B_blk, T)
    out_tm = pl.pallas_call(
        kernel,
        grid=(n_blocks,),
        out_shape=jax.ShapeDtypeStruct((N_DEC_STEPS, B, cfg["linear_dim"]),
                                       jnp.float32),
        in_specs=in_specs,
        out_specs=pl.BlockSpec((N_DEC_STEPS, B_blk, cfg["linear_dim"]),
                               lambda b: (0, b, 0)),
        scratch_shapes=[pltpu.VMEM((T, B_blk, cfg["enc_dim"]), jnp.float32)],
        compiler_params=pltpu.CompilerParams(
            dimension_semantics=("parallel",),
            vmem_limit_bytes=64 * 1024 * 1024),
    )(*ins)
    return jnp.transpose(out_tm, (1, 0, 2))               # (B, 20, linear_dim)


# --------------------------------------------------------------------------
# Pure-JAX reference (same math, layer-by-layer like torch) for validation
# --------------------------------------------------------------------------
def dynamic_rnn_reference(params, x, cfg):
    f32 = jnp.float32
    B, T = x.shape
    seq = jnp.take(params["enc_emb"], x, axis=0).astype(f32)
    enc_last_h = []
    for (wih, whh, bih, bhh) in params["enc_layers"]:
        h = jnp.zeros((B, cfg["enc_dim"]), f32)
        outs = []
        for t in range(T):
            h = jnp.tanh(seq[:, t, :] @ wih.T + bih + h @ whh.T + bhh)
            outs.append(h)
        seq = jnp.stack(outs, axis=1)
        enc_last_h.append(h)
    if cfg["n_dec"] == cfg["n_enc"]:
        dec_h = list(enc_last_h)
    else:
        cat = jnp.concatenate(enc_last_h, axis=-1)
        proj = cat @ params["proj_w"].T + params["proj_b"]
        dec_h = [proj[:, l * cfg["dec_dim"]:(l + 1) * cfg["dec_dim"]]
                 for l in range(cfg["n_dec"])]
    dec_idx = jnp.full((B,), START_TOKEN, jnp.int32)
    outputs = []
    for _ in range(N_DEC_STEPS):
        inp = jnp.take(params["dec_emb"], dec_idx, axis=0)
        new_h = []
        for l, (wih, whh, bih, bhh) in enumerate(params["dec_layers"]):
            hl = jnp.tanh(inp @ wih.T + bih + dec_h[l] @ whh.T + bhh)
            new_h.append(hl)
            inp = hl
        dec_h = new_h
        logits = dec_h[-1] @ params["fc1_w"].T + params["fc1_b"]
        outputs.append(logits)
        dec_idx = jnp.argmax(logits, axis=-1).astype(jnp.int32)
    return jnp.stack(outputs, axis=1)


# --------------------------------------------------------------------------
# Deterministic parameter init (PyTorch-style uniform(-1/sqrt(fan), +))
# --------------------------------------------------------------------------
def init_params(key, cfg):
    def unif(k, shape, bound):
        return jax.random.uniform(k, shape, jnp.float32, -bound, bound)

    keys = iter(jax.random.split(key, 64))
    p = {}
    p["enc_emb"] = jax.random.normal(next(keys),
                                     (cfg["enc_vocab"], cfg["enc_emb"]), jnp.float32)
    p["dec_emb"] = jax.random.normal(next(keys),
                                     (cfg["dec_vocab"], cfg["dec_emb"]), jnp.float32)

    def rnn_layers(n_layers, in_dim, hid):
        k = 1.0 / jnp.sqrt(hid)
        layers = []
        for l in range(n_layers):
            d_in = in_dim if l == 0 else hid
            layers.append((unif(next(keys), (hid, d_in), k),
                           unif(next(keys), (hid, hid), k),
                           unif(next(keys), (hid,), k),
                           unif(next(keys), (hid,), k)))
        return layers

    p["enc_layers"] = rnn_layers(cfg["n_enc"], cfg["enc_emb"], cfg["enc_dim"])
    p["dec_layers"] = rnn_layers(cfg["n_dec"], cfg["dec_emb"], cfg["dec_dim"])

    proj_in = cfg["n_enc"] * cfg["enc_dim"]
    proj_out = cfg["n_dec"] * cfg["dec_dim"]
    kp = 1.0 / jnp.sqrt(proj_in)
    p["proj_w"] = unif(next(keys), (proj_out, proj_in), kp)
    p["proj_b"] = unif(next(keys), (proj_out,), kp)

    kf = 1.0 / jnp.sqrt(cfg["dec_dim"])
    p["fc1_w"] = unif(next(keys), (cfg["linear_dim"], cfg["dec_dim"]), kf)
    p["fc1_b"] = unif(next(keys), (cfg["linear_dim"],), kf)
    # TODO(synk): fc2 and dropout_rate exist in the PyTorch __init__ but are unused in forward.
    return p


if __name__ == "__main__":
    cfg = dict(enc_vocab=16, enc_emb=32, enc_dim=32, n_enc=1,
               dec_vocab=32, dec_emb=32, dec_dim=32, n_dec=2,
               linear_dim=16)   # linear_dim <= dec_vocab so argmax feedback is valid

    key = jax.random.PRNGKey(0)
    pkey, xkey = jax.random.split(key)
    params = init_params(pkey, cfg)

    B, T = 2, 8
    x = jax.random.randint(xkey, (B, T), 0, cfg["enc_vocab"], dtype=jnp.int32)

    out = dynamic_rnn_forward(params, x, cfg)
    out = jax.block_until_ready(out)

    ref = dynamic_rnn_reference(params, x, cfg)
    assert out.shape == (B, N_DEC_STEPS, cfg["linear_dim"])
    assert bool(jnp.all(jnp.isfinite(out)))
    assert bool(jnp.allclose(out, ref, atol=1e-4, rtol=1e-4)), \
        f"max abs err {jnp.max(jnp.abs(out - ref))}"

    print("KERNEL_OK")
</pallas_src>

<mosaic_0001>
module attributes {stable_mosaic.version = 11 : i64} {
  func.func @kernel(%arg0: i32, %arg1: memref<8x2x32xf32, #tpu.memory_space<vmem>>, %arg2: memref<32x32xf32, #tpu.memory_space<vmem>>, %arg3: memref<32x32xf32, #tpu.memory_space<vmem>>, %arg4: memref<1x32xf32, #tpu.memory_space<vmem>>, %arg5: memref<64x32xf32, #tpu.memory_space<vmem>>, %arg6: memref<1x64x32xf32, #tpu.memory_space<vmem>>, %arg7: memref<1x1x32xf32, #tpu.memory_space<vmem>>, %arg8: memref<32x64xf32, #tpu.memory_space<vmem>>, %arg9: memref<1x64xf32, #tpu.memory_space<vmem>>, %arg10: memref<32x16xf32, #tpu.memory_space<vmem>>, %arg11: memref<1x16xf32, #tpu.memory_space<vmem>>, %arg12: memref<20x2x16xf32, #tpu.memory_space<vmem>>, %arg13: memref<8x2x32xf32, #tpu.memory_space<vmem>>) attributes {dimension_semantics = [#tpu.dimension_semantics<parallel>], iteration_bounds = array<i64: 1>, scalar_prefetch = 0 : i64, scratch_operands = 1 : i64, tpu.core_type = #tpu.core_type<tc>, window_params = [{transform_indices = @transform_0, window_bounds = array<i64: 8, 2, 32>}, {pipeline_mode = #tpu.pipeline_mode<synchronous>, transform_indices = @transform_1, window_bounds = array<i64: 32, 32>}, {pipeline_mode = #tpu.pipeline_mode<synchronous>, transform_indices = @transform_2, window_bounds = array<i64: 32, 32>}, {pipeline_mode = #tpu.pipeline_mode<synchronous>, transform_indices = @transform_3, window_bounds = array<i64: 1, 32>}, {pipeline_mode = #tpu.pipeline_mode<synchronous>, transform_indices = @transform_4, window_bounds = array<i64: 64, 32>}, {pipeline_mode = #tpu.pipeline_mode<synchronous>, transform_indices = @transform_5, window_bounds = array<i64: 1, 64, 32>}, {pipeline_mode = #tpu.pipeline_mode<synchronous>, transform_indices = @transform_6, window_bounds = array<i64: 1, 1, 32>}, {pipeline_mode = #tpu.pipeline_mode<synchronous>, transform_indices = @transform_7, window_bounds = array<i64: 32, 64>}, {pipeline_mode = #tpu.pipeline_mode<synchronous>, transform_indices = @transform_8, window_bounds = array<i64: 1, 64>}, {pipeline_mode = #tpu.pipeline_mode<synchronous>, transform_indices = @transform_9, window_bounds = array<i64: 32, 16>}, {pipeline_mode = #tpu.pipeline_mode<synchronous>, transform_indices = @transform_10, window_bounds = array<i64: 1, 16>}, {transform_indices = @transform_11, window_bounds = array<i64: 20, 2, 16>}]} {
    %c0 = arith.constant 0 : index
    %c0_0 = arith.constant 0 : index
    %0 = vector.load %arg2[%c0, %c0_0] : memref<32x32xf32, #tpu.memory_space<vmem>>, vector<32x32xf32>
    %c0_1 = arith.constant 0 : index
    %c0_2 = arith.constant 0 : index
    %1 = vector.load %arg3[%c0_1, %c0_2] : memref<32x32xf32, #tpu.memory_space<vmem>>, vector<32x32xf32>
    %c0_3 = arith.constant 0 : index
    %c0_4 = arith.constant 0 : index
    %2 = vector.load %arg4[%c0_3, %c0_4] : memref<1x32xf32, #tpu.memory_space<vmem>>, vector<1x32xf32>
    %c0_5 = arith.constant 0 : index
    %c0_6 = arith.constant 0 : index
    %3 = vector.load %arg5[%c0_5, %c0_6] : memref<64x32xf32, #tpu.memory_space<vmem>>, vector<64x32xf32>
    %c0_7 = arith.constant 0 : index
    %c0_8 = arith.constant 0 : index
    %4 = vector.load %arg8[%c0_7, %c0_8] : memref<32x64xf32, #tpu.memory_space<vmem>>, vector<32x64xf32>
    %c0_9 = arith.constant 0 : index
    %c0_10 = arith.constant 0 : index
    %5 = vector.load %arg9[%c0_9, %c0_10] : memref<1x64xf32, #tpu.memory_space<vmem>>, vector<1x64xf32>
    %c0_11 = arith.constant 0 : index
    %c0_12 = arith.constant 0 : index
    %6 = vector.load %arg10[%c0_11, %c0_12] : memref<32x16xf32, #tpu.memory_space<vmem>>, vector<32x16xf32>
    %c0_13 = arith.constant 0 : index
    %c0_14 = arith.constant 0 : index
    %7 = vector.load %arg11[%c0_13, %c0_14] : memref<1x16xf32, #tpu.memory_space<vmem>>, vector<1x16xf32>
    %c0_15 = arith.constant 0 : index
    %c0_16 = arith.constant 0 : index
    %c0_17 = arith.constant 0 : index
    %8 = vector.load %arg6[%c0_15, %c0_16, %c0_17] : memref<1x64x32xf32, #tpu.memory_space<vmem>>, vector<1x64x32xf32>
    %9 = vector.shape_cast %8 : vector<1x64x32xf32> to vector<64x32xf32>
    %c0_18 = arith.constant 0 : index
    %c0_19 = arith.constant 0 : index
    %c0_20 = arith.constant 0 : index
    %10 = vector.load %arg7[%c0_18, %c0_19, %c0_20] : memref<1x1x32xf32, #tpu.memory_space<vmem>>, vector<1x1x32xf32>
    %11 = vector.shape_cast %10 : vector<1x1x32xf32> to vector<1x32xf32>
    %12 = vector.shape_cast %11 : vector<1x32xf32> to vector<1x32xf32>
    %13 = vector.broadcast %12 : vector<1x32xf32> to vector<2x32xf32>
    %14 = vector.shape_cast %2 : vector<1x32xf32> to vector<1x32xf32>
    %15 = vector.broadcast %14 : vector<1x32xf32> to vector<2x32xf32>
    %16 = vector.shape_cast %7 : vector<1x16xf32> to vector<1x16xf32>
    %17 = vector.broadcast %16 : vector<1x16xf32> to vector<2x16xf32>
    %c0_21 = arith.constant 0 : index
    %c0_22 = arith.constant 0 : index
    %c0_23 = arith.constant 0 : index
    %18 = vector.load %arg1[%c0_21, %c0_22, %c0_23] : memref<8x2x32xf32, #tpu.memory_space<vmem>>, vector<1x2x32xf32>
    %19 = vector.shape_cast %18 : vector<1x2x32xf32> to vector<2x32xf32>
    %cst = arith.constant dense<0.000000e+00> : vector<2x32xf32>
    %20 = tpu.matmul %19, %0, %cst {dimension_numbers = #tpu.dot_dimension_numbers<[1], [0], [0], [1], [0, 0, 1, 1], [], []>} : vector<2x32xf32>, vector<32x32xf32>, vector<2x32xf32> -> vector<2x32xf32>
    %21 = arith.addf %20, %15 : vector<2x32xf32>
    %c0_24 = arith.constant 0 : index
    %c0_25 = arith.constant 0 : index
    %c0_26 = arith.constant 0 : index
    %22 = vector.load %arg13[%c0_24, %c0_25, %c0_26] : memref<8x2x32xf32, #tpu.memory_space<vmem>>, vector<1x2x32xf32>
    %23 = vector.shape_cast %22 : vector<1x2x32xf32> to vector<2x32xf32>
    %24 = vector.shape_cast %21 : vector<2x32xf32> to vector<1x2x32xf32>
    tpu.vector_store %arg13[%c0_24, %c0_25, %c0_26], %24 {strides = array<i32>} : memref<8x2x32xf32, #tpu.memory_space<vmem>>, vector<1x2x32xf32>,
    %c1 = arith.constant 1 : index
    %c0_27 = arith.constant 0 : index
    %c0_28 = arith.constant 0 : index
    %25 = vector.load %arg1[%c1, %c0_27, %c0_28] : memref<8x2x32xf32, #tpu.memory_space<vmem>>, vector<1x2x32xf32>
    %26 = vector.shape_cast %25 : vector<1x2x32xf32> to vector<2x32xf32>
    %cst_29 = arith.constant dense<0.000000e+00> : vector<2x32xf32>
    %27 = tpu.matmul %26, %0, %cst_29 {dimension_numbers = #tpu.dot_dimension_numbers<[1], [0], [0], [1], [0, 0, 1, 1], [], []>} : vector<2x32xf32>, vector<32x32xf32>, vector<2x32xf32> -> vector<2x32xf32>
    %28 = arith.addf %27, %15 : vector<2x32xf32>
    %c1_30 = arith.constant 1 : index
    %c0_31 = arith.constant 0 : index
    %c0_32 = arith.constant 0 : index
    %29 = vector.load %arg13[%c1_30, %c0_31, %c0_32] : memref<8x2x32xf32, #tpu.memory_space<vmem>>, vector<1x2x32xf32>
    %30 = vector.shape_cast %29 : vector<1x2x32xf32> to vector<2x32xf32>
    %31 = vector.shape_cast %28 : vector<2x32xf32> to vector<1x2x32xf32>
    tpu.vector_store %arg13[%c1_30, %c0_31, %c0_32], %31 {strides = array<i32>} : memref<8x2x32xf32, #tpu.memory_space<vmem>>, vector<1x2x32xf32>,
    %c2 = arith.constant 2 : index
    %c0_33 = arith.constant 0 : index
    %c0_34 = arith.constant 0 : index
    %32 = vector.load %arg1[%c2, %c0_33, %c0_34] : memref<8x2x32xf32, #tpu.memory_space<vmem>>, vector<1x2x32xf32>
    %33 = vector.shape_cast %32 : vector<1x2x32xf32> to vector<2x32xf32>
    %cst_35 = arith.constant dense<0.000000e+00> : vector<2x32xf32>
    %34 = tpu.matmul %33, %0, %cst_35 {dimension_numbers = #tpu.dot_dimension_numbers<[1], [0], [0], [1], [0, 0, 1, 1], [], []>} : vector<2x32xf32>, vector<32x32xf32>, vector<2x32xf32> -> vector<2x32xf32>
    %35 = arith.addf %34, %15 : vector<2x32xf32>
    %c2_36 = arith.constant 2 : index
    %c0_37 = arith.constant 0 : index
    %c0_38 = arith.constant 0 : index
    %36 = vector.load %arg13[%c2_36, %c0_37, %c0_38] : memref<8x2x32xf32, #tpu.memory_space<vmem>>, vector<1x2x32xf32>
    %37 = vector.shape_cast %36 : vector<1x2x32xf32> to vector<2x32xf32>
    %38 = vector.shape_cast %35 : vector<2x32xf32> to vector<1x2x32xf32>
    tpu.vector_store %arg13[%c2_36, %c0_37, %c0_38], %38 {strides = array<i32>} : memref<8x2x32xf32, #tpu.memory_space<vmem>>, vector<1x2x32xf32>,
    %c3 = arith.constant 3 : index
    %c0_39 = arith.constant 0 : index
    %c0_40 = arith.constant 0 : index
    %39 = vector.load %arg1[%c3, %c0_39, %c0_40] : memref<8x2x32xf32, #tpu.memory_space<vmem>>, vector<1x2x32xf32>
    %40 = vector.shape_cast %39 : vector<1x2x32xf32> to vector<2x32xf32>
    %cst_41 = arith.constant dense<0.000000e+00> : vector<2x32xf32>
    %41 = tpu.matmul %40, %0, %cst_41 {dimension_numbers = #tpu.dot_dimension_numbers<[1], [0], [0], [1], [0, 0, 1, 1], [], []>} : vector<2x32xf32>, vector<32x32xf32>, vector<2x32xf32> -> vector<2x32xf32>
    %42 = arith.addf %41, %15 : vector<2x32xf32>
    %c3_42 = arith.constant 3 : index
    %c0_43 = arith.constant 0 : index
    %c0_44 = arith.constant 0 : index
    %43 = vector.load %arg13[%c3_42, %c0_43, %c0_44] : memref<8x2x32xf32, #tpu.memory_space<vmem>>, vector<1x2x32xf32>
    %44 = vector.shape_cast %43 : vector<1x2x32xf32> to vector<2x32xf32>
    %45 = vector.shape_cast %42 : vector<2x32xf32> to vector<1x2x32xf32>
    tpu.vector_store %arg13[%c3_42, %c0_43, %c0_44], %45 {strides = array<i32>} : memref<8x2x32xf32, #tpu.memory_space<vmem>>, vector<1x2x32xf32>,
    %c4 = arith.constant 4 : index
    %c0_45 = arith.constant 0 : index
    %c0_46 = arith.constant 0 : index
    %46 = vector.load %arg1[%c4, %c0_45, %c0_46] : memref<8x2x32xf32, #tpu.memory_space<vmem>>, vector<1x2x32xf32>
    %47 = vector.shape_cast %46 : vector<1x2x32xf32> to vector<2x32xf32>
    %cst_47 = arith.constant dense<0.000000e+00> : vector<2x32xf32>
    %48 = tpu.matmul %47, %0, %cst_47 {dimension_numbers = #tpu.dot_dimension_numbers<[1], [0], [0], [1], [0, 0, 1, 1], [], []>} : vector<2x32xf32>, vector<32x32xf32>, vector<2x32xf32> -> vector<2x32xf32>
    %49 = arith.addf %48, %15 : vector<2x32xf32>
    %c4_48 = arith.constant 4 : index
    %c0_49 = arith.constant 0 : index
    %c0_50 = arith.constant 0 : index
    %50 = vector.load %arg13[%c4_48, %c0_49, %c0_50] : memref<8x2x32xf32, #tpu.memory_space<vmem>>, vector<1x2x32xf32>
    %51 = vector.shape_cast %50 : vector<1x2x32xf32> to vector<2x32xf32>
    %52 = vector.shape_cast %49 : vector<2x32xf32> to vector<1x2x32xf32>
    tpu.vector_store %arg13[%c4_48, %c0_49, %c0_50], %52 {strides = array<i32>} : memref<8x2x32xf32, #tpu.memory_space<vmem>>, vector<1x2x32xf32>,
    %c5 = arith.constant 5 : index
    %c0_51 = arith.constant 0 : index
    %c0_52 = arith.constant 0 : index
    %53 = vector.load %arg1[%c5, %c0_51, %c0_52] : memref<8x2x32xf32, #tpu.memory_space<vmem>>, vector<1x2x32xf32>
    %54 = vector.shape_cast %53 : vector<1x2x32xf32> to vector<2x32xf32>
    %cst_53 = arith.constant dense<0.000000e+00> : vector<2x32xf32>
    %55 = tpu.matmul %54, %0, %cst_53 {dimension_numbers = #tpu.dot_dimension_numbers<[1], [0], [0], [1], [0, 0, 1, 1], [], []>} : vector<2x32xf32>, vector<32x32xf32>, vector<2x32xf32> -> vector<2x32xf32>
    %56 = arith.addf %55, %15 : vector<2x32xf32>
    %c5_54 = arith.constant 5 : index
    %c0_55 = arith.constant 0 : index
    %c0_56 = arith.constant 0 : index
    %57 = vector.load %arg13[%c5_54, %c0_55, %c0_56] : memref<8x2x32xf32, #tpu.memory_space<vmem>>, vector<1x2x32xf32>
    %58 = vector.shape_cast %57 : vector<1x2x32xf32> to vector<2x32xf32>
    %59 = vector.shape_cast %56 : vector<2x32xf32> to vector<1x2x32xf32>
    tpu.vector_store %arg13[%c5_54, %c0_55, %c0_56], %59 {strides = array<i32>} : memref<8x2x32xf32, #tpu.memory_space<vmem>>, vector<1x2x32xf32>,
    %c6 = arith.constant 6 : index
    %c0_57 = arith.constant 0 : index
    %c0_58 = arith.constant 0 : index
    %60 = vector.load %arg1[%c6, %c0_57, %c0_58] : memref<8x2x32xf32, #tpu.memory_space<vmem>>, vector<1x2x32xf32>
    %61 = vector.shape_cast %60 : vector<1x2x32xf32> to vector<2x32xf32>
    %cst_59 = arith.constant dense<0.000000e+00> : vector<2x32xf32>
    %62 = tpu.matmul %61, %0, %cst_59 {dimension_numbers = #tpu.dot_dimension_numbers<[1], [0], [0], [1], [0, 0, 1, 1], [], []>} : vector<2x32xf32>, vector<32x32xf32>, vector<2x32xf32> -> vector<2x32xf32>
    %63 = arith.addf %62, %15 : vector<2x32xf32>
    %c6_60 = arith.constant 6 : index
    %c0_61 = arith.constant 0 : index
    %c0_62 = arith.constant 0 : index
    %64 = vector.load %arg13[%c6_60, %c0_61, %c0_62] : memref<8x2x32xf32, #tpu.memory_space<vmem>>, vector<1x2x32xf32>
    %65 = vector.shape_cast %64 : vector<1x2x32xf32> to vector<2x32xf32>
    %66 = vector.shape_cast %63 : vector<2x32xf32> to vector<1x2x32xf32>
    tpu.vector_store %arg13[%c6_60, %c0_61, %c0_62], %66 {strides = array<i32>} : memref<8x2x32xf32, #tpu.memory_space<vmem>>, vector<1x2x32xf32>,
    %c7 = arith.constant 7 : index
    %c0_63 = arith.constant 0 : index
    %c0_64 = arith.constant 0 : index
    %67 = vector.load %arg1[%c7, %c0_63, %c0_64] : memref<8x2x32xf32, #tpu.memory_space<vmem>>, vector<1x2x32xf32>
    %68 = vector.shape_cast %67 : vector<1x2x32xf32> to vector<2x32xf32>
    %cst_65 = arith.constant dense<0.000000e+00> : vector<2x32xf32>
    %69 = tpu.matmul %68, %0, %cst_65 {dimension_numbers = #tpu.dot_dimension_numbers<[1], [0], [0], [1], [0, 0, 1, 1], [], []>} : vector<2x32xf32>, vector<32x32xf32>, vector<2x32xf32> -> vector<2x32xf32>
    %70 = arith.addf %69, %15 : vector<2x32xf32>
    %c7_66 = arith.constant 7 : index
    %c0_67 = arith.constant 0 : index
    %c0_68 = arith.constant 0 : index
    %71 = vector.load %arg13[%c7_66, %c0_67, %c0_68] : memref<8x2x32xf32, #tpu.memory_space<vmem>>, vector<1x2x32xf32>
    %72 = vector.shape_cast %71 : vector<1x2x32xf32> to vector<2x32xf32>
    %73 = vector.shape_cast %70 : vector<2x32xf32> to vector<1x2x32xf32>
    tpu.vector_store %arg13[%c7_66, %c0_67, %c0_68], %73 {strides = array<i32>} : memref<8x2x32xf32, #tpu.memory_space<vmem>>, vector<1x2x32xf32>,
    %cst_69 = arith.constant 0.000000e+00 : f32
    %74 = vector.broadcast %cst_69 : f32 to vector<2x32xf32>
    %c0_70 = arith.constant 0 : index
    %c0_71 = arith.constant 0 : index
    %c0_72 = arith.constant 0 : index
    %75 = vector.load %arg13[%c0_70, %c0_71, %c0_72] : memref<8x2x32xf32, #tpu.memory_space<vmem>>, vector<1x2x32xf32>
    %76 = vector.shape_cast %75 : vector<1x2x32xf32> to vector<2x32xf32>
    %cst_73 = arith.constant dense<0.000000e+00> : vector<2x32xf32>
    %77 = tpu.matmul %74, %1, %cst_73 {dimension_numbers = #tpu.dot_dimension_numbers<[1], [0], [0], [1], [0, 0, 1, 1], [], []>} : vector<2x32xf32>, vector<32x32xf32>, vector<2x32xf32> -> vector<2x32xf32>
    %78 = arith.addf %76, %77 : vector<2x32xf32>
    %79 = math.tanh %78 : vector<2x32xf32>
    %c1_74 = arith.constant 1 : index
    %c0_75 = arith.constant 0 : index
    %c0_76 = arith.constant 0 : index
    %80 = vector.load %arg13[%c1_74, %c0_75, %c0_76] : memref<8x2x32xf32, #tpu.memory_space<vmem>>, vector<1x2x32xf32>
    %81 = vector.shape_cast %80 : vector<1x2x32xf32> to vector<2x32xf32>
    %cst_77 = arith.constant dense<0.000000e+00> : vector<2x32xf32>
    %82 = tpu.matmul %79, %1, %cst_77 {dimension_numbers = #tpu.dot_dimension_numbers<[1], [0], [0], [1], [0, 0, 1, 1], [], []>} : vector<2x32xf32>, vector<32x32xf32>, vector<2x32xf32> -> vector<2x32xf32>
    %83 = arith.addf %81, %82 : vector<2x32xf32>
    %84 = math.tanh %83 : vector<2x32xf32>
    %c2_78 = arith.constant 2 : index
    %c0_79 = arith.constant 0 : index
    %c0_80 = arith.constant 0 : index
    %85 = vector.load %arg13[%c2_78, %c0_79, %c0_80] : memref<8x2x32xf32, #tpu.memory_space<vmem>>, vector<1x2x32xf32>
    %86 = vector.shape_cast %85 : vector<1x2x32xf32> to vector<2x32xf32>
    %cst_81 = arith.constant dense<0.000000e+00> : vector<2x32xf32>
    %87 = tpu.matmul %84, %1, %cst_81 {dimension_numbers = #tpu.dot_dimension_numbers<[1], [0], [0], [1], [0, 0, 1, 1], [], []>} : vector<2x32xf32>, vector<32x32xf32>, vector<2x32xf32> -> vector<2x32xf32>
    %88 = arith.addf %86, %87 : vector<2x32xf32>
    %89 = math.tanh %88 : vector<2x32xf32>
    %c3_82 = arith.constant 3 : index
    %c0_83 = arith.constant 0 : index
    %c0_84 = arith.constant 0 : index
    %90 = vector.load %arg13[%c3_82, %c0_83, %c0_84] : memref<8x2x32xf32, #tpu.memory_space<vmem>>, vector<1x2x32xf32>
    %91 = vector.shape_cast %90 : vector<1x2x32xf32> to vector<2x32xf32>
    %cst_85 = arith.constant dense<0.000000e+00> : vector<2x32xf32>
    %92 = tpu.matmul %89, %1, %cst_85 {dimension_numbers = #tpu.dot_dimension_numbers<[1], [0], [0], [1], [0, 0, 1, 1], [], []>} : vector<2x32xf32>, vector<32x32xf32>, vector<2x32xf32> -> vector<2x32xf32>
    %93 = arith.addf %91, %92 : vector<2x32xf32>
    %94 = math.tanh %93 : vector<2x32xf32>
    %c4_86 = arith.constant 4 : index
    %c0_87 = arith.constant 0 : index
    %c0_88 = arith.constant 0 : index
    %95 = vector.load %arg13[%c4_86, %c0_87, %c0_88] : memref<8x2x32xf32, #tpu.memory_space<vmem>>, vector<1x2x32xf32>
    %96 = vector.shape_cast %95 : vector<1x2x32xf32> to vector<2x32xf32>
    %cst_89 = arith.constant dense<0.000000e+00> : vector<2x32xf32>
    %97 = tpu.matmul %94, %1, %cst_89 {dimension_numbers = #tpu.dot_dimension_numbers<[1], [0], [0], [1], [0, 0, 1, 1], [], []>} : vector<2x32xf32>, vector<32x32xf32>, vector<2x32xf32> -> vector<2x32xf32>
    %98 = arith.addf %96, %97 : vector<2x32xf32>
    %99 = math.tanh %98 : vector<2x32xf32>
    %c5_90 = arith.constant 5 : index
    %c0_91 = arith.constant 0 : index
    %c0_92 = arith.constant 0 : index
    %100 = vector.load %arg13[%c5_90, %c0_91, %c0_92] : memref<8x2x32xf32, #tpu.memory_space<vmem>>, vector<1x2x32xf32>
    %101 = vector.shape_cast %100 : vector<1x2x32xf32> to vector<2x32xf32>
    %cst_93 = arith.constant dense<0.000000e+00> : vector<2x32xf32>
    %102 = tpu.matmul %99, %1, %cst_93 {dimension_numbers = #tpu.dot_dimension_numbers<[1], [0], [0], [1], [0, 0, 1, 1], [], []>} : vector<2x32xf32>, vector<32x32xf32>, vector<2x32xf32> -> vector<2x32xf32>
    %103 = arith.addf %101, %102 : vector<2x32xf32>
    %104 = math.tanh %103 : vector<2x32xf32>
    %c6_94 = arith.constant 6 : index
    %c0_95 = arith.constant 0 : index
    %c0_96 = arith.constant 0 : index
    %105 = vector.load %arg13[%c6_94, %c0_95, %c0_96] : memref<8x2x32xf32, #tpu.memory_space<vmem>>, vector<1x2x32xf32>
    %106 = vector.shape_cast %105 : vector<1x2x32xf32> to vector<2x32xf32>
    %cst_97 = arith.constant dense<0.000000e+00> : vector<2x32xf32>
    %107 = tpu.matmul %104, %1, %cst_97 {dimension_numbers = #tpu.dot_dimension_numbers<[1], [0], [0], [1], [0, 0, 1, 1], [], []>} : vector<2x32xf32>, vector<32x32xf32>, vector<2x32xf32> -> vector<2x32xf32>
    %108 = arith.addf %106, %107 : vector<2x32xf32>
    %109 = math.tanh %108 : vector<2x32xf32>
    %c7_98 = arith.constant 7 : index
    %c0_99 = arith.constant 0 : index
    %c0_100 = arith.constant 0 : index
    %110 = vector.load %arg13[%c7_98, %c0_99, %c0_100] : memref<8x2x32xf32, #tpu.memory_space<vmem>>, vector<1x2x32xf32>
    %111 = vector.shape_cast %110 : vector<1x2x32xf32> to vector<2x32xf32>
    %cst_101 = arith.constant dense<0.000000e+00> : vector<2x32xf32>
    %112 = tpu.matmul %109, %1, %cst_101 {dimension_numbers = #tpu.dot_dimension_numbers<[1], [0], [0], [1], [0, 0, 1, 1], [], []>} : vector<2x32xf32>, vector<32x32xf32>, vector<2x32xf32> -> vector<2x32xf32>
    %113 = arith.addf %111, %112 : vector<2x32xf32>
    %114 = math.tanh %113 : vector<2x32xf32>
    %cst_102 = arith.constant dense<0.000000e+00> : vector<2x64xf32>
    %115 = tpu.matmul %114, %4, %cst_102 {dimension_numbers = #tpu.dot_dimension_numbers<[1], [0], [0], [1], [0, 0, 1, 1], [], []>} : vector<2x32xf32>, vector<32x64xf32>, vector<2x64xf32> -> vector<2x64xf32>
    %116 = vector.broadcast %5 : vector<1x64xf32> to vector<2x64xf32>
    %117 = arith.addf %115, %116 : vector<2x64xf32>
    %118 = vector.extract_strided_slice %117 {offsets = [0, 0], sizes = [2, 32], strides = [1, 1]} : vector<2x64xf32> to vector<2x32xf32>
    %119 = vector.extract_strided_slice %117 {offsets = [0, 32], sizes = [2, 32], strides = [1, 1]} : vector<2x64xf32> to vector<2x32xf32>
    %120 = tpu.iota {dimensions = array<i32: 1>} : vector<2x32xi32>
    %121 = tpu.iota {dimensions = array<i32: 1>} : vector<2x16xi32>
    %c3_i32 = arith.constant 3 : i32
    %122 = vector.broadcast %c3_i32 : i32 to vector<2x1xi32>
    %123 = vector.broadcast %122 : vector<2x1xi32> to vector<2x32xi32>
    %124 = arith.cmpi eq, %120, %123 : vector<2x32xi32>
    %125 = arith.extui %124 : vector<2x32xi1> to vector<2x32xi32>
    %126 = arith.sitofp %125 : vector<2x32xi32> to vector<2x32xf32>
    %127 = tpu.concatenate %126, %118 in 1 : vector<2x32xf32>, vector<2x32xf32> -> vector<2x64xf32>
    %cst_103 = arith.constant dense<0.000000e+00> : vector<2x32xf32>
    %128 = tpu.matmul %127, %3, %cst_103 {dimension_numbers = #tpu.dot_dimension_numbers<[1], [0], [0], [1], [0, 0, 1, 1], [], []>} : vector<2x64xf32>, vector<64x32xf32>, vector<2x32xf32> -> vector<2x32xf32>
    %129 = math.tanh %128 : vector<2x32xf32>
    %130 = tpu.concatenate %129, %119 in 1 : vector<2x32xf32>, vector<2x32xf32> -> vector<2x64xf32>
    %cst_104 = arith.constant dense<0.000000e+00> : vector<2x32xf32>
    %131 = tpu.matmul %130, %9, %cst_104 {dimension_numbers = #tpu.dot_dimension_numbers<[1], [0], [0], [1], [0, 0, 1, 1], [], []>} : vector<2x64xf32>, vector<64x32xf32>, vector<2x32xf32> -> vector<2x32xf32>
    %132 = arith.addf %131, %13 : vector<2x32xf32>
    %133 = math.tanh %132 : vector<2x32xf32>
    %cst_105 = arith.constant dense<0.000000e+00> : vector<2x16xf32>
    %134 = tpu.matmul %133, %6, %cst_105 {dimension_numbers = #tpu.dot_dimension_numbers<[1], [0], [0], [1], [0, 0, 1, 1], [], []>} : vector<2x32xf32>, vector<32x16xf32>, vector<2x16xf32> -> vector<2x16xf32>
    %135 = arith.addf %134, %17 : vector<2x16xf32>
    %c0_106 = arith.constant 0 : index
    %c0_107 = arith.constant 0 : index
    %c0_108 = arith.constant 0 : index
    %136 = vector.load %arg12[%c0_106, %c0_107, %c0_108] : memref<20x2x16xf32, #tpu.memory_space<vmem>>, vector<1x2x16xf32>
    %137 = vector.shape_cast %136 : vector<1x2x16xf32> to vector<2x16xf32>
    %138 = vector.shape_cast %135 : vector<2x16xf32> to vector<1x2x16xf32>
    tpu.vector_store %arg12[%c0_106, %c0_107, %c0_108], %138 {strides = array<i32>} : memref<20x2x16xf32, #tpu.memory_space<vmem>>, vector<1x2x16xf32>,
    %cst_109 = arith.constant dense<0xFF800000> : vector<2xf32>
    %139 = vector.multi_reduction <maximumf>, %135, %cst_109 [1] : vector<2x16xf32> to vector<2xf32>
    %140 = vector.shape_cast %139 : vector<2xf32> to vector<2x1xf32>
    %141 = vector.broadcast %140 : vector<2x1xf32> to vector<2x16xf32>
    %142 = arith.cmpf oeq, %135, %141 : vector<2x16xf32>
    %c16_i32 = arith.constant 16 : i32
    %143 = vector.broadcast %c16_i32 : i32 to vector<2x16xi32>
    %144 = arith.select %142, %121, %143 : vector<2x16xi1>, vector<2x16xi32>
    %cst_110 = arith.constant dense<2147483647> : vector<2xi32>
    %145 = vector.multi_reduction <minsi>, %144, %cst_110 [1] : vector<2x16xi32> to vector<2xi32>
    %146 = vector.shape_cast %145 : vector<2xi32> to vector<2x1xi32>
    %147 = vector.broadcast %146 : vector<2x1xi32> to vector<2x32xi32>
    %148 = arith.cmpi eq, %120, %147 : vector<2x32xi32>
    %149 = arith.extui %148 : vector<2x32xi1> to vector<2x32xi32>
    %150 = arith.sitofp %149 : vector<2x32xi32> to vector<2x32xf32>
    %151 = tpu.concatenate %150, %129 in 1 : vector<2x32xf32>, vector<2x32xf32> -> vector<2x64xf32>
    %cst_111 = arith.constant dense<0.000000e+00> : vector<2x32xf32>
    %152 = tpu.matmul %151, %3, %cst_111 {dimension_numbers = #tpu.dot_dimension_numbers<[1], [0], [0], [1], [0, 0, 1, 1], [], []>} : vector<2x64xf32>, vector<64x32xf32>, vector<2x32xf32> -> vector<2x32xf32>
    %153 = math.tanh %152 : vector<2x32xf32>
    %154 = tpu.concatenate %153, %133 in 1 : vector<2x32xf32>, vector<2x32xf32> -> vector<2x64xf32>
    %cst_112 = arith.constant dense<0.000000e+00> : vector<2x32xf32>
    %155 = tpu.matmul %154, %9, %cst_112 {dimension_numbers = #tpu.dot_dimension_numbers<[1], [0], [0], [1], [0, 0, 1, 1], [], []>} : vector<2x64xf32>, vector<64x32xf32>, vector<2x32xf32> -> vector<2x32xf32>
    %156 = arith.addf %155, %13 : vector<2x32xf32>
    %157 = math.tanh %156 : vector<2x32xf32>
    %cst_113 = arith.constant dense<0.000000e+00> : vector<2x16xf32>
    %158 = tpu.matmul %157, %6, %cst_113 {dimension_numbers = #tpu.dot_dimension_numbers<[1], [0], [0], [1], [0, 0, 1, 1], [], []>} : vector<2x32xf32>, vector<32x16xf32>, vector<2x16xf32> -> vector<2x16xf32>
    %159 = arith.addf %158, %17 : vector<2x16xf32>
    %c1_114 = arith.constant 1 : index
    %c0_115 = arith.constant 0 : index
    %c0_116 = arith.constant 0 : index
    %160 = vector.load %arg12[%c1_114, %c0_115, %c0_116] : memref<20x2x16xf32, #tpu.memory_space<vmem>>, vector<1x2x16xf32>
    %161 = vector.shape_cast %160 : vector<1x2x16xf32> to vector<2x16xf32>
    %162 = vector.shape_cast %159 : vector<2x16xf32> to vector<1x2x16xf32>
    tpu.vector_store %arg12[%c1_114, %c0_115, %c0_116], %162 {strides = array<i32>} : memref<20x2x16xf32, #tpu.memory_space<vmem>>, vector<1x2x16xf32>,
    %cst_117 = arith.constant dense<0xFF800000> : vector<2xf32>
    %163 = vector.multi_reduction <maximumf>, %159, %cst_117 [1] : vector<2x16xf32> to vector<2xf32>
    %164 = vector.shape_cast %163 : vector<2xf32> to vector<2x1xf32>
    %165 = vector.broadcast %164 : vector<2x1xf32> to vector<2x16xf32>
    %166 = arith.cmpf oeq, %159, %165 : vector<2x16xf32>
    %c16_i32_118 = arith.constant 16 : i32
    %167 = vector.broadcast %c16_i32_118 : i32 to vector<2x16xi32>
    %168 = arith.select %166, %121, %167 : vector<2x16xi1>, vector<2x16xi32>
    %cst_119 = arith.constant dense<2147483647> : vector<2xi32>
    %169 = vector.multi_reduction <minsi>, %168, %cst_119 [1] : vector<2x16xi32> to vector<2xi32>
    %170 = vector.shape_cast %169 : vector<2xi32> to vector<2x1xi32>
    %171 = vector.broadcast %170 : vector<2x1xi32> to vector<2x32xi32>
    %172 = arith.cmpi eq, %120, %171 : vector<2x32xi32>
    %173 = arith.extui %172 : vector<2x32xi1> to vector<2x32xi32>
    %174 = arith.sitofp %173 : vector<2x32xi32> to vector<2x32xf32>
    %175 = tpu.concatenate %174, %153 in 1 : vector<2x32xf32>, vector<2x32xf32> -> vector<2x64xf32>
    %cst_120 = arith.constant dense<0.000000e+00> : vector<2x32xf32>
    %176 = tpu.matmul %175, %3, %cst_120 {dimension_numbers = #tpu.dot_dimension_numbers<[1], [0], [0], [1], [0, 0, 1, 1], [], []>} : vector<2x64xf32>, vector<64x32xf32>, vector<2x32xf32> -> vector<2x32xf32>
    %177 = math.tanh %176 : vector<2x32xf32>
    %178 = tpu.concatenate %177, %157 in 1 : vector<2x32xf32>, vector<2x32xf32> -> vector<2x64xf32>
    %cst_121 = arith.constant dense<0.000000e+00> : vector<2x32xf32>
    %179 = tpu.matmul %178, %9, %cst_121 {dimension_numbers = #tpu.dot_dimension_numbers<[1], [0], [0], [1], [0, 0, 1, 1], [], []>} : vector<2x64xf32>, vector<64x32xf32>, vector<2x32xf32> -> vector<2x32xf32>
    %180 = arith.addf %179, %13 : vector<2x32xf32>
    %181 = math.tanh %180 : vector<2x32xf32>
    %cst_122 = arith.constant dense<0.000000e+00> : vector<2x16xf32>
    %182 = tpu.matmul %181, %6, %cst_122 {dimension_numbers = #tpu.dot_dimension_numbers<[1], [0], [0], [1], [0, 0, 1, 1], [], []>} : vector<2x32xf32>, vector<32x16xf32>, vector<2x16xf32> -> vector<2x16xf32>
    %183 = arith.addf %182, %17 : vector<2x16xf32>
    %c2_123 = arith.constant 2 : index
    %c0_124 = arith.constant 0 : index
    %c0_125 = arith.constant 0 : index
    %184 = vector.load %arg12[%c2_123, %c0_124, %c0_125] : memref<20x2x16xf32, #tpu.memory_space<vmem>>, vector<1x2x16xf32>
    %185 = vector.shape_cast %184 : vector<1x2x16xf32> to vector<2x16xf32>
    %186 = vector.shape_cast %183 : vector<2x16xf32> to vector<1x2x16xf32>
    tpu.vector_store %arg12[%c2_123, %c0_124, %c0_125], %186 {strides = array<i32>} : memref<20x2x16xf32, #tpu.memory_space<vmem>>, vector<1x2x16xf32>,
    %cst_126 = arith.constant dense<0xFF800000> : vector<2xf32>
    %187 = vector.multi_reduction <maximumf>, %183, %cst_126 [1] : vector<2x16xf32> to vector<2xf32>
    %188 = vector.shape_cast %187 : vector<2xf32> to vector<2x1xf32>
    %189 = vector.broadcast %188 : vector<2x1xf32> to vector<2x16xf32>
    %190 = arith.cmpf oeq, %183, %189 : vector<2x16xf32>
    %c16_i32_127 = arith.constant 16 : i32
    %191 = vector.broadcast %c16_i32_127 : i32 to vector<2x16xi32>
    %192 = arith.select %190, %121, %191 : vector<2x16xi1>, vector<2x16xi32>
    %cst_128 = arith.constant dense<2147483647> : vector<2xi32>
    %193 = vector.multi_reduction <minsi>, %192, %cst_128 [1] : vector<2x16xi32> to vector<2xi32>
    %194 = vector.shape_cast %193 : vector<2xi32> to vector<2x1xi32>
    %195 = vector.broadcast %194 : vector<2x1xi32> to vector<2x32xi32>
    %196 = arith.cmpi eq, %120, %195 : vector<2x32xi32>
    %197 = arith.extui %196 : vector<2x32xi1> to vector<2x32xi32>
    %198 = arith.sitofp %197 : vector<2x32xi32> to vector<2x32xf32>
    %199 = tpu.concatenate %198, %177 in 1 : vector<2x32xf32>, vector<2x32xf32> -> vector<2x64xf32>
    %cst_129 = arith.constant dense<0.000000e+00> : vector<2x32xf32>
    %200 = tpu.matmul %199, %3, %cst_129 {dimension_numbers = #tpu.dot_dimension_numbers<[1], [0], [0], [1], [0, 0, 1, 1], [], []>} : vector<2x64xf32>, vector<64x32xf32>, vector<2x32xf32> -> vector<2x32xf32>
    %201 = math.tanh %200 : vector<2x32xf32>
    %202 = tpu.concatenate %201, %181 in 1 : vector<2x32xf32>, vector<2x32xf32> -> vector<2x64xf32>
    %cst_130 = arith.constant dense<0.000000e+00> : vector<2x32xf32>
    %203 = tpu.matmul %202, %9, %cst_130 {dimension_numbers = #tpu.dot_dimension_numbers<[1], [0], [0], [1], [0, 0, 1, 1], [], []>} : vector<2x64xf32>, vector<64x32xf32>, vector<2x32xf32> -> vector<2x32xf32>
    %204 = arith.addf %203, %13 : vector<2x32xf32>
    %205 = math.tanh %204 : vector<2x32xf32>
    %cst_131 = arith.constant dense<0.000000e+00> : vector<2x16xf32>
    %206 = tpu.matmul %205, %6, %cst_131 {dimension_numbers = #tpu.dot_dimension_numbers<[1], [0], [0], [1], [0, 0, 1, 1], [], []>} : vector<2x32xf32>, vector<32x16xf32>, vector<2x16xf32> -> vector<2x16xf32>
    %207 = arith.addf %206, %17 : vector<2x16xf32>
    %c3_132 = arith.constant 3 : index
    %c0_133 = arith.constant 0 : index
    %c0_134 = arith.constant 0 : index
    %208 = vector.load %arg12[%c3_132, %c0_133, %c0_134] : memref<20x2x16xf32, #tpu.memory_space<vmem>>, vector<1x2x16xf32>
    %209 = vector.shape_cast %208 : vector<1x2x16xf32> to vector<2x16xf32>
    %210 = vector.shape_cast %207 : vector<2x16xf32> to vector<1x2x16xf32>
    tpu.vector_store %arg12[%c3_132, %c0_133, %c0_134], %210 {strides = array<i32>} : memref<20x2x16xf32, #tpu.memory_space<vmem>>, vector<1x2x16xf32>,
    %cst_135 = arith.constant dense<0xFF800000> : vector<2xf32>
    %211 = vector.multi_reduction <maximumf>, %207, %cst_135 [1] : vector<2x16xf32> to vector<2xf32>
    %212 = vector.shape_cast %211 : vector<2xf32> to vector<2x1xf32>
    %213 = vector.broadcast %212 : vector<2x1xf32> to vector<2x16xf32>
    %214 = arith.cmpf oeq, %207, %213 : vector<2x16xf32>
    %c16_i32_136 = arith.constant 16 : i32
    %215 = vector.broadcast %c16_i32_136 : i32 to vector<2x16xi32>
    %216 = arith.select %214, %121, %215 : vector<2x16xi1>, vector<2x16xi32>
    %cst_137 = arith.constant dense<2147483647> : vector<2xi32>
    %217 = vector.multi_reduction <minsi>, %216, %cst_137 [1] : vector<2x16xi32> to vector<2xi32>
    %218 = vector.shape_cast %217 : vector<2xi32> to vector<2x1xi32>
    %219 = vector.broadcast %218 : vector<2x1xi32> to vector<2x32xi32>
    %220 = arith.cmpi eq, %120, %219 : vector<2x32xi32>
    %221 = arith.extui %220 : vector<2x32xi1> to vector<2x32xi32>
    %222 = arith.sitofp %221 : vector<2x32xi32> to vector<2x32xf32>
    %223 = tpu.concatenate %222, %201 in 1 : vector<2x32xf32>, vector<2x32xf32> -> vector<2x64xf32>
    %cst_138 = arith.constant dense<0.000000e+00> : vector<2x32xf32>
    %224 = tpu.matmul %223, %3, %cst_138 {dimension_numbers = #tpu.dot_dimension_numbers<[1], [0], [0], [1], [0, 0, 1, 1], [], []>} : vector<2x64xf32>, vector<64x32xf32>, vector<2x32xf32> -> vector<2x32xf32>
    %225 = math.tanh %224 : vector<2x32xf32>
    %226 = tpu.concatenate %225, %205 in 1 : vector<2x32xf32>, vector<2x32xf32> -> vector<2x64xf32>
    %cst_139 = arith.constant dense<0.000000e+00> : vector<2x32xf32>
    %227 = tpu.matmul %226, %9, %cst_139 {dimension_numbers = #tpu.dot_dimension_numbers<[1], [0], [0], [1], [0, 0, 1, 1], [], []>} : vector<2x64xf32>, vector<64x32xf32>, vector<2x32xf32> -> vector<2x32xf32>
    %228 = arith.addf %227, %13 : vector<2x32xf32>
    %229 = math.tanh %228 : vector<2x32xf32>
    %cst_140 = arith.constant dense<0.000000e+00> : vector<2x16xf32>
    %230 = tpu.matmul %229, %6, %cst_140 {dimension_numbers = #tpu.dot_dimension_numbers<[1], [0], [0], [1], [0, 0, 1, 1], [], []>} : vector<2x32xf32>, vector<32x16xf32>, vector<2x16xf32> -> vector<2x16xf32>
    %231 = arith.addf %230, %17 : vector<2x16xf32>
    %c4_141 = arith.constant 4 : index
    %c0_142 = arith.constant 0 : index
    %c0_143 = arith.constant 0 : index
    %232 = vector.load %arg12[%c4_141, %c0_142, %c0_143] : memref<20x2x16xf32, #tpu.memory_space<vmem>>, vector<1x2x16xf32>
    %233 = vector.shape_cast %232 : vector<1x2x16xf32> to vector<2x16xf32>
    %234 = vector.shape_cast %231 : vector<2x16xf32> to vector<1x2x16xf32>
    tpu.vector_store %arg12[%c4_141, %c0_142, %c0_143], %234 {strides = array<i32>} : memref<20x2x16xf32, #tpu.memory_space<vmem>>, vector<1x2x16xf32>,
    %cst_144 = arith.constant dense<0xFF800000> : vector<2xf32>
    %235 = vector.multi_reduction <maximumf>, %231, %cst_144 [1] : vector<2x16xf32> to vector<2xf32>
    %236 = vector.shape_cast %235 : vector<2xf32> to vector<2x1xf32>
    %237 = vector.broadcast %236 : vector<2x1xf32> to vector<2x16xf32>
    %238 = arith.cmpf oeq, %231, %237 : vector<2x16xf32>
    %c16_i32_145 = arith.constant 16 : i32
    %239 = vector.broadcast %c16_i32_145 : i32 to vector<2x16xi32>
    %240 = arith.select %238, %121, %239 : vector<2x16xi1>, vector<2x16xi32>
    %cst_146 = arith.constant dense<2147483647> : vector<2xi32>
    %241 = vector.multi_reduction <minsi>, %240, %cst_146 [1] : vector<2x16xi32> to vector<2xi32>
    %242 = vector.shape_cast %241 : vector<2xi32> to vector<2x1xi32>
    %243 = vector.broadcast %242 : vector<2x1xi32> to vector<2x32xi32>
    %244 = arith.cmpi eq, %120, %243 : vector<2x32xi32>
    %245 = arith.extui %244 : vector<2x32xi1> to vector<2x32xi32>
    %246 = arith.sitofp %245 : vector<2x32xi32> to vector<2x32xf32>
    %247 = tpu.concatenate %246, %225 in 1 : vector<2x32xf32>, vector<2x32xf32> -> vector<2x64xf32>
    %cst_147 = arith.constant dense<0.000000e+00> : vector<2x32xf32>
    %248 = tpu.matmul %247, %3, %cst_147 {dimension_numbers = #tpu.dot_dimension_numbers<[1], [0], [0], [1], [0, 0, 1, 1], [], []>} : vector<2x64xf32>, vector<64x32xf32>, vector<2x32xf32> -> vector<2x32xf32>
    %249 = math.tanh %248 : vector<2x32xf32>
    %250 = tpu.concatenate %249, %229 in 1 : vector<2x32xf32>, vector<2x32xf32> -> vector<2x64xf32>
    %cst_148 = arith.constant dense<0.000000e+00> : vector<2x32xf32>
    %251 = tpu.matmul %250, %9, %cst_148 {dimension_numbers = #tpu.dot_dimension_numbers<[1], [0], [0], [1], [0, 0, 1, 1], [], []>} : vector<2x64xf32>, vector<64x32xf32>, vector<2x32xf32> -> vector<2x32xf32>
    %252 = arith.addf %251, %13 : vector<2x32xf32>
    %253 = math.tanh %252 : vector<2x32xf32>
    %cst_149 = arith.constant dense<0.000000e+00> : vector<2x16xf32>
    %254 = tpu.matmul %253, %6, %cst_149 {dimension_numbers = #tpu.dot_dimension_numbers<[1], [0], [0], [1], [0, 0, 1, 1], [], []>} : vector<2x32xf32>, vector<32x16xf32>, vector<2x16xf32> -> vector<2x16xf32>
    %255 = arith.addf %254, %17 : vector<2x16xf32>
    %c5_150 = arith.constant 5 : index
    %c0_151 = arith.constant 0 : index
    %c0_152 = arith.constant 0 : index
    %256 = vector.load %arg12[%c5_150, %c0_151, %c0_152] : memref<20x2x16xf32, #tpu.memory_space<vmem>>, vector<1x2x16xf32>
    %257 = vector.shape_cast %256 : vector<1x2x16xf32> to vector<2x16xf32>
    %258 = vector.shape_cast %255 : vector<2x16xf32> to vector<1x2x16xf32>
    tpu.vector_store %arg12[%c5_150, %c0_151, %c0_152], %258 {strides = array<i32>} : memref<20x2x16xf32, #tpu.memory_space<vmem>>, vector<1x2x16xf32>,
    %cst_153 = arith.constant dense<0xFF800000> : vector<2xf32>
    %259 = vector.multi_reduction <maximumf>, %255, %cst_153 [1] : vector<2x16xf32> to vector<2xf32>
    %260 = vector.shape_cast %259 : vector<2xf32> to vector<2x1xf32>
    %261 = vector.broadcast %260 : vector<2x1xf32> to vector<2x16xf32>
    %262 = arith.cmpf oeq, %255, %261 : vector<2x16xf32>
    %c16_i32_154 = arith.constant 16 : i32
    %263 = vector.broadcast %c16_i32_154 : i32 to vector<2x16xi32>
    %264 = arith.select %262, %121, %263 : vector<2x16xi1>, vector<2x16xi32>
    %cst_155 = arith.constant dense<2147483647> : vector<2xi32>
    %265 = vector.multi_reduction <minsi>, %264, %cst_155 [1] : vector<2x16xi32> to vector<2xi32>
    %266 = vector.shape_cast %265 : vector<2xi32> to vector<2x1xi32>
    %267 = vector.broadcast %266 : vector<2x1xi32> to vector<2x32xi32>
    %268 = arith.cmpi eq, %120, %267 : vector<2x32xi32>
    %269 = arith.extui %268 : vector<2x32xi1> to vector<2x32xi32>
    %270 = arith.sitofp %269 : vector<2x32xi32> to vector<2x32xf32>
    %271 = tpu.concatenate %270, %249 in 1 : vector<2x32xf32>, vector<2x32xf32> -> vector<2x64xf32>
    %cst_156 = arith.constant dense<0.000000e+00> : vector<2x32xf32>
    %272 = tpu.matmul %271, %3, %cst_156 {dimension_numbers = #tpu.dot_dimension_numbers<[1], [0], [0], [1], [0, 0, 1, 1], [], []>} : vector<2x64xf32>, vector<64x32xf32>, vector<2x32xf32> -> vector<2x32xf32>
    %273 = math.tanh %272 : vector<2x32xf32>
    %274 = tpu.concatenate %273, %253 in 1 : vector<2x32xf32>, vector<2x32xf32> -> vector<2x64xf32>
    %cst_157 = arith.constant dense<0.000000e+00> : vector<2x32xf32>
    %275 = tpu.matmul %274, %9, %cst_157 {dimension_numbers = #tpu.dot_dimension_numbers<[1], [0], [0], [1], [0, 0, 1, 1], [], []>} : vector<2x64xf32>, vector<64x32xf32>, vector<2x32xf32> -> vector<2x32xf32>
    %276 = arith.addf %275, %13 : vector<2x32xf32>
    %277 = math.tanh %276 : vector<2x32xf32>
    %cst_158 = arith.constant dense<0.000000e+00> : vector<2x16xf32>
    %278 = tpu.matmul %277, %6, %cst_158 {dimension_numbers = #tpu.dot_dimension_numbers<[1], [0], [0], [1], [0, 0, 1, 1], [], []>} : vector<2x32xf32>, vector<32x16xf32>, vector<2x16xf32> -> vector<2x16xf32>
    %279 = arith.addf %278, %17 : vector<2x16xf32>
    %c6_159 = arith.constant 6 : index
    %c0_160 = arith.constant 0 : index
    %c0_161 = arith.constant 0 : index
    %280 = vector.load %arg12[%c6_159, %c0_160, %c0_161] : memref<20x2x16xf32, #tpu.memory_space<vmem>>, vector<1x2x16xf32>
    %281 = vector.shape_cast %280 : vector<1x2x16xf32> to vector<2x16xf32>
    %282 = vector.shape_cast %279 : vector<2x16xf32> to vector<1x2x16xf32>
    tpu.vector_store %arg12[%c6_159, %c0_160, %c0_161], %282 {strides = array<i32>} : memref<20x2x16xf32, #tpu.memory_space<vmem>>, vector<1x2x16xf32>,
    %cst_162 = arith.constant dense<0xFF800000> : vector<2xf32>
    %283 = vector.multi_reduction <maximumf>, %279, %cst_162 [1] : vector<2x16xf32> to vector<2xf32>
    %284 = vector.shape_cast %283 : vector<2xf32> to vector<2x1xf32>
    %285 = vector.broadcast %284 : vector<2x1xf32> to vector<2x16xf32>
    %286 = arith.cmpf oeq, %279, %285 : vector<2x16xf32>
    %c16_i32_163 = arith.constant 16 : i32
    %287 = vector.broadcast %c16_i32_163 : i32 to vector<2x16xi32>
    %288 = arith.select %286, %121, %287 : vector<2x16xi1>, vector<2x16xi32>
    %cst_164 = arith.constant dense<2147483647> : vector<2xi32>
    %289 = vector.multi_reduction <minsi>, %288, %cst_164 [1] : vector<2x16xi32> to vector<2xi32>
    %290 = vector.shape_cast %289 : vector<2xi32> to vector<2x1xi32>
    %291 = vector.broadcast %290 : vector<2x1xi32> to vector<2x32xi32>
    %292 = arith.cmpi eq, %120, %291 : vector<2x32xi32>
    %293 = arith.extui %292 : vector<2x32xi1> to vector<2x32xi32>
    %294 = arith.sitofp %293 : vector<2x32xi32> to vector<2x32xf32>
    %295 = tpu.concatenate %294, %273 in 1 : vector<2x32xf32>, vector<2x32xf32> -> vector<2x64xf32>
    %cst_165 = arith.constant dense<0.000000e+00> : vector<2x32xf32>
    %296 = tpu.matmul %295, %3, %cst_165 {dimension_numbers = #tpu.dot_dimension_numbers<[1], [0], [0], [1], [0, 0, 1, 1], [], []>} : vector<2x64xf32>, vector<64x32xf32>, vector<2x32xf32> -> vector<2x32xf32>
    %297 = math.tanh %296 : vector<2x32xf32>
    %298 = tpu.concatenate %297, %277 in 1 : vector<2x32xf32>, vector<2x32xf32> -> vector<2x64xf32>
    %cst_166 = arith.constant dense<0.000000e+00> : vector<2x32xf32>
    %299 = tpu.matmul %298, %9, %cst_166 {dimension_numbers = #tpu.dot_dimension_numbers<[1], [0], [0], [1], [0, 0, 1, 1], [], []>} : vector<2x64xf32>, vector<64x32xf32>, vector<2x32xf32> -> vector<2x32xf32>
    %300 = arith.addf %299, %13 : vector<2x32xf32>
    %301 = math.tanh %300 : vector<2x32xf32>
    %cst_167 = arith.constant dense<0.000000e+00> : vector<2x16xf32>
    %302 = tpu.matmul %301, %6, %cst_167 {dimension_numbers = #tpu.dot_dimension_numbers<[1], [0], [0], [1], [0, 0, 1, 1], [], []>} : vector<2x32xf32>, vector<32x16xf32>, vector<2x16xf32> -> vector<2x16xf32>
    %303 = arith.addf %302, %17 : vector<2x16xf32>
    %c7_168 = arith.constant 7 : index
    %c0_169 = arith.constant 0 : index
    %c0_170 = arith.constant 0 : index
    %304 = vector.load %arg12[%c7_168, %c0_169, %c0_170] : memref<20x2x16xf32, #tpu.memory_space<vmem>>, vector<1x2x16xf32>
    %305 = vector.shape_cast %304 : vector<1x2x16xf32> to vector<2x16xf32>
    %306 = vector.shape_cast %303 : vector<2x16xf32> to vector<1x2x16xf32>
    tpu.vector_store %arg12[%c7_168, %c0_169, %c0_170], %306 {strides = array<i32>} : memref<20x2x16xf32, #tpu.memory_space<vmem>>, vector<1x2x16xf32>,
    %cst_171 = arith.constant dense<0xFF800000> : vector<2xf32>
    %307 = vector.multi_reduction <maximumf>, %303, %cst_171 [1] : vector<2x16xf32> to vector<2xf32>
    %308 = vector.shape_cast %307 : vector<2xf32> to vector<2x1xf32>
    %309 = vector.broadcast %308 : vector<2x1xf32> to vector<2x16xf32>
    %310 = arith.cmpf oeq, %303, %309 : vector<2x16xf32>
    %c16_i32_172 = arith.constant 16 : i32
    %311 = vector.broadcast %c16_i32_172 : i32 to vector<2x16xi32>
    %312 = arith.select %310, %121, %311 : vector<2x16xi1>, vector<2x16xi32>
    %cst_173 = arith.constant dense<2147483647> : vector<2xi32>
    %313 = vector.multi_reduction <minsi>, %312, %cst_173 [1] : vector<2x16xi32> to vector<2xi32>
    %314 = vector.shape_cast %313 : vector<2xi32> to vector<2x1xi32>
    %315 = vector.broadcast %314 : vector<2x1xi32> to vector<2x32xi32>
    %316 = arith.cmpi eq, %120, %315 : vector<2x32xi32>
    %317 = arith.extui %316 : vector<2x32xi1> to vector<2x32xi32>
    %318 = arith.sitofp %317 : vector<2x32xi32> to vector<2x32xf32>
    %319 = tpu.concatenate %318, %297 in 1 : vector<2x32xf32>, vector<2x32xf32> -> vector<2x64xf32>
    %cst_174 = arith.constant dense<0.000000e+00> : vector<2x32xf32>
    %320 = tpu.matmul %319, %3, %cst_174 {dimension_numbers = #tpu.dot_dimension_numbers<[1], [0], [0], [1], [0, 0, 1, 1], [], []>} : vector<2x64xf32>, vector<64x32xf32>, vector<2x32xf32> -> vector<2x32xf32>
    %321 = math.tanh %320 : vector<2x32xf32>
    %322 = tpu.concatenate %321, %301 in 1 : vector<2x32xf32>, vector<2x32xf32> -> vector<2x64xf32>
    %cst_175 = arith.constant dense<0.000000e+00> : vector<2x32xf32>
    %323 = tpu.matmul %322, %9, %cst_175 {dimension_numbers = #tpu.dot_dimension_numbers<[1], [0], [0], [1], [0, 0, 1, 1], [], []>} : vector<2x64xf32>, vector<64x32xf32>, vector<2x32xf32> -> vector<2x32xf32>
    %324 = arith.addf %323, %13 : vector<2x32xf32>
    %325 = math.tanh %324 : vector<2x32xf32>
    %cst_176 = arith.constant dense<0.000000e+00> : vector<2x16xf32>
    %326 = tpu.matmul %325, %6, %cst_176 {dimension_numbers = #tpu.dot_dimension_numbers<[1], [0], [0], [1], [0, 0, 1, 1], [], []>} : vector<2x32xf32>, vector<32x16xf32>, vector<2x16xf32> -> vector<2x16xf32>
    %327 = arith.addf %326, %17 : vector<2x16xf32>
    %c8 = arith.constant 8 : index
    %c0_177 = arith.constant 0 : index
    %c0_178 = arith.constant 0 : index
    %328 = vector.load %arg12[%c8, %c0_177, %c0_178] : memref<20x2x16xf32, #tpu.memory_space<vmem>>, vector<1x2x16xf32>
    %329 = vector.shape_cast %328 : vector<1x2x16xf32> to vector<2x16xf32>
    %330 = vector.shape_cast %327 : vector<2x16xf32> to vector<1x2x16xf32>
    tpu.vector_store %arg12[%c8, %c0_177, %c0_178], %330 {strides = array<i32>} : memref<20x2x16xf32, #tpu.memory_space<vmem>>, vector<1x2x16xf32>,
    %cst_179 = arith.constant dense<0xFF800000> : vector<2xf32>
    %331 = vector.multi_reduction <maximumf>, %327, %cst_179 [1] : vector<2x16xf32> to vector<2xf32>
    %332 = vector.shape_cast %331 : vector<2xf32> to vector<2x1xf32>
    %333 = vector.broadcast %332 : vector<2x1xf32> to vector<2x16xf32>
    %334 = arith.cmpf oeq, %327, %333 : vector<2x16xf32>
    %c16_i32_180 = arith.constant 16 : i32
    %335 = vector.broadcast %c16_i32_180 : i32 to vector<2x16xi32>
    %336 = arith.select %334, %121, %335 : vector<2x16xi1>, vector<2x16xi32>
    %cst_181 = arith.constant dense<2147483647> : vector<2xi32>
    %337 = vector.multi_reduction <minsi>, %336, %cst_181 [1] : vector<2x16xi32> to vector<2xi32>
    %338 = vector.shape_cast %337 : vector<2xi32> to vector<2x1xi32>
    %339 = vector.broadcast %338 : vector<2x1xi32> to vector<2x32xi32>
    %340 = arith.cmpi eq, %120, %339 : vector<2x32xi32>
    %341 = arith.extui %340 : vector<2x32xi1> to vector<2x32xi32>
    %342 = arith.sitofp %341 : vector<2x32xi32> to vector<2x32xf32>
    %343 = tpu.concatenate %342, %321 in 1 : vector<2x32xf32>, vector<2x32xf32> -> vector<2x64xf32>
    %cst_182 = arith.constant dense<0.000000e+00> : vector<2x32xf32>
    %344 = tpu.matmul %343, %3, %cst_182 {dimension_numbers = #tpu.dot_dimension_numbers<[1], [0], [0], [1], [0, 0, 1, 1], [], []>} : vector<2x64xf32>, vector<64x32xf32>, vector<2x32xf32> -> vector<2x32xf32>
    %345 = math.tanh %344 : vector<2x32xf32>
    %346 = tpu.concatenate %345, %325 in 1 : vector<2x32xf32>, vector<2x32xf32> -> vector<2x64xf32>
    %cst_183 = arith.constant dense<0.000000e+00> : vector<2x32xf32>
    %347 = tpu.matmul %346, %9, %cst_183 {dimension_numbers = #tpu.dot_dimension_numbers<[1], [0], [0], [1], [0, 0, 1, 1], [], []>} : vector<2x64xf32>, vector<64x32xf32>, vector<2x32xf32> -> vector<2x32xf32>
    %348 = arith.addf %347, %13 : vector<2x32xf32>
    %349 = math.tanh %348 : vector<2x32xf32>
    %cst_184 = arith.constant dense<0.000000e+00> : vector<2x16xf32>
    %350 = tpu.matmul %349, %6, %cst_184 {dimension_numbers = #tpu.dot_dimension_numbers<[1], [0], [0], [1], [0, 0, 1, 1], [], []>} : vector<2x32xf32>, vector<32x16xf32>, vector<2x16xf32> -> vector<2x16xf32>
    %351 = arith.addf %350, %17 : vector<2x16xf32>
    %c9 = arith.constant 9 : index
    %c0_185 = arith.constant 0 : index
    %c0_186 = arith.constant 0 : index
    %352 = vector.load %arg12[%c9, %c0_185, %c0_186] : memref<20x2x16xf32, #tpu.memory_space<vmem>>, vector<1x2x16xf32>
    %353 = vector.shape_cast %352 : vector<1x2x16xf32> to vector<2x16xf32>
    %354 = vector.shape_cast %351 : vector<2x16xf32> to vector<1x2x16xf32>
    tpu.vector_store %arg12[%c9, %c0_185, %c0_186], %354 {strides = array<i32>} : memref<20x2x16xf32, #tpu.memory_space<vmem>>, vector<1x2x16xf32>,
    %cst_187 = arith.constant dense<0xFF800000> : vector<2xf32>
    %355 = vector.multi_reduction <maximumf>, %351, %cst_187 [1] : vector<2x16xf32> to vector<2xf32>
    %356 = vector.shape_cast %355 : vector<2xf32> to vector<2x1xf32>
    %357 = vector.broadcast %356 : vector<2x1xf32> to vector<2x16xf32>
    %358 = arith.cmpf oeq, %351, %357 : vector<2x16xf32>
    %c16_i32_188 = arith.constant 16 : i32
    %359 = vector.broadcast %c16_i32_188 : i32 to vector<2x16xi32>
    %360 = arith.select %358, %121, %359 : vector<2x16xi1>, vector<2x16xi32>
    %cst_189 = arith.constant dense<2147483647> : vector<2xi32>
    %361 = vector.multi_reduction <minsi>, %360, %cst_189 [1] : vector<2x16xi32> to vector<2xi32>
    %362 = vector.shape_cast %361 : vector<2xi32> to vector<2x1xi32>
    %363 = vector.broadcast %362 : vector<2x1xi32> to vector<2x32xi32>
    %364 = arith.cmpi eq, %120, %363 : vector<2x32xi32>
    %365 = arith.extui %364 : vector<2x32xi1> to vector<2x32xi32>
    %366 = arith.sitofp %365 : vector<2x32xi32> to vector<2x32xf32>
    %367 = tpu.concatenate %366, %345 in 1 : vector<2x32xf32>, vector<2x32xf32> -> vector<2x64xf32>
    %cst_190 = arith.constant dense<0.000000e+00> : vector<2x32xf32>
    %368 = tpu.matmul %367, %3, %cst_190 {dimension_numbers = #tpu.dot_dimension_numbers<[1], [0], [0], [1], [0, 0, 1, 1], [], []>} : vector<2x64xf32>, vector<64x32xf32>, vector<2x32xf32> -> vector<2x32xf32>
    %369 = math.tanh %368 : vector<2x32xf32>
    %370 = tpu.concatenate %369, %349 in 1 : vector<2x32xf32>, vector<2x32xf32> -> vector<2x64xf32>
    %cst_191 = arith.constant dense<0.000000e+00> : vector<2x32xf32>
    %371 = tpu.matmul %370, %9, %cst_191 {dimension_numbers = #tpu.dot_dimension_numbers<[1], [0], [0], [1], [0, 0, 1, 1], [], []>} : vector<2x64xf32>, vector<64x32xf32>, vector<2x32xf32> -> vector<2x32xf32>
    %372 = arith.addf %371, %13 : vector<2x32xf32>
    %373 = math.tanh %372 : vector<2x32xf32>
    %cst_192 = arith.constant dense<0.000000e+00> : vector<2x16xf32>
    %374 = tpu.matmul %373, %6, %cst_192 {dimension_numbers = #tpu.dot_dimension_numbers<[1], [0], [0], [1], [0, 0, 1, 1], [], []>} : vector<2x32xf32>, vector<32x16xf32>, vector<2x16xf32> -> vector<2x16xf32>
    %375 = arith.addf %374, %17 : vector<2x16xf32>
    %c10 = arith.constant 10 : index
    %c0_193 = arith.constant 0 : index
    %c0_194 = arith.constant 0 : index
    %376 = vector.load %arg12[%c10, %c0_193, %c0_194] : memref<20x2x16xf32, #tpu.memory_space<vmem>>, vector<1x2x16xf32>
    %377 = vector.shape_cast %376 : vector<1x2x16xf32> to vector<2x16xf32>
    %378 = vector.shape_cast %375 : vector<2x16xf32> to vector<1x2x16xf32>
    tpu.vector_store %arg12[%c10, %c0_193, %c0_194], %378 {strides = array<i32>} : memref<20x2x16xf32, #tpu.memory_space<vmem>>, vector<1x2x16xf32>,
    %cst_195 = arith.constant dense<0xFF800000> : vector<2xf32>
    %379 = vector.multi_reduction <maximumf>, %375, %cst_195 [1] : vector<2x16xf32> to vector<2xf32>
    %380 = vector.shape_cast %379 : vector<2xf32> to vector<2x1xf32>
    %381 = vector.broadcast %380 : vector<2x1xf32> to vector<2x16xf32>
    %382 = arith.cmpf oeq, %375, %381 : vector<2x16xf32>
    %c16_i32_196 = arith.constant 16 : i32
    %383 = vector.broadcast %c16_i32_196 : i32 to vector<2x16xi32>
    %384 = arith.select %382, %121, %383 : vector<2x16xi1>, vector<2x16xi32>
    %cst_197 = arith.constant dense<2147483647> : vector<2xi32>
    %385 = vector.multi_reduction <minsi>, %384, %cst_197 [1] : vector<2x16xi32> to vector<2xi32>
    %386 = vector.shape_cast %385 : vector<2xi32> to vector<2x1xi32>
    %387 = vector.broadcast %386 : vector<2x1xi32> to vector<2x32xi32>
    %388 = arith.cmpi eq, %120, %387 : vector<2x32xi32>
    %389 = arith.extui %388 : vector<2x32xi1> to vector<2x32xi32>
    %390 = arith.sitofp %389 : vector<2x32xi32> to vector<2x32xf32>
    %391 = tpu.concatenate %390, %369 in 1 : vector<2x32xf32>, vector<2x32xf32> -> vector<2x64xf32>
    %cst_198 = arith.constant dense<0.000000e+00> : vector<2x32xf32>
    %392 = tpu.matmul %391, %3, %cst_198 {dimension_numbers = #tpu.dot_dimension_numbers<[1], [0], [0], [1], [0, 0, 1, 1], [], []>} : vector<2x64xf32>, vector<64x32xf32>, vector<2x32xf32> -> vector<2x32xf32>
    %393 = math.tanh %392 : vector<2x32xf32>
    %394 = tpu.concatenate %393, %373 in 1 : vector<2x32xf32>, vector<2x32xf32> -> vector<2x64xf32>
    %cst_199 = arith.constant dense<0.000000e+00> : vector<2x32xf32>
    %395 = tpu.matmul %394, %9, %cst_199 {dimension_numbers = #tpu.dot_dimension_numbers<[1], [0], [0], [1], [0, 0, 1, 1], [], []>} : vector<2x64xf32>, vector<64x32xf32>, vector<2x32xf32> -> vector<2x32xf32>
    %396 = arith.addf %395, %13 : vector<2x32xf32>
    %397 = math.tanh %396 : vector<2x32xf32>
    %cst_200 = arith.constant dense<0.000000e+00> : vector<2x16xf32>
    %398 = tpu.matmul %397, %6, %cst_200 {dimension_numbers = #tpu.dot_dimension_numbers<[1], [0], [0], [1], [0, 0, 1, 1], [], []>} : vector<2x32xf32>, vector<32x16xf32>, vector<2x16xf32> -> vector<2x16xf32>
    %399 = arith.addf %398, %17 : vector<2x16xf32>
    %c11 = arith.constant 11 : index
    %c0_201 = arith.constant 0 : index
    %c0_202 = arith.constant 0 : index
    %400 = vector.load %arg12[%c11, %c0_201, %c0_202] : memref<20x2x16xf32, #tpu.memory_space<vmem>>, vector<1x2x16xf32>
    %401 = vector.shape_cast %400 : vector<1x2x16xf32> to vector<2x16xf32>
    %402 = vector.shape_cast %399 : vector<2x16xf32> to vector<1x2x16xf32>
    tpu.vector_store %arg12[%c11, %c0_201, %c0_202], %402 {strides = array<i32>} : memref<20x2x16xf32, #tpu.memory_space<vmem>>, vector<1x2x16xf32>,
    %cst_203 = arith.constant dense<0xFF800000> : vector<2xf32>
    %403 = vector.multi_reduction <maximumf>, %399, %cst_203 [1] : vector<2x16xf32> to vector<2xf32>
    %404 = vector.shape_cast %403 : vector<2xf32> to vector<2x1xf32>
    %405 = vector.broadcast %404 : vector<2x1xf32> to vector<2x16xf32>
    %406 = arith.cmpf oeq, %399, %405 : vector<2x16xf32>
    %c16_i32_204 = arith.constant 16 : i32
    %407 = vector.broadcast %c16_i32_204 : i32 to vector<2x16xi32>
    %408 = arith.select %406, %121, %407 : vector<2x16xi1>, vector<2x16xi32>
    %cst_205 = arith.constant dense<2147483647> : vector<2xi32>
    %409 = vector.multi_reduction <minsi>, %408, %cst_205 [1] : vector<2x16xi32> to vector<2xi32>
    %410 = vector.shape_cast %409 : vector<2xi32> to vector<2x1xi32>
    %411 = vector.broadcast %410 : vector<2x1xi32> to vector<2x32xi32>
    %412 = arith.cmpi eq, %120, %411 : vector<2x32xi32>
    %413 = arith.extui %412 : vector<2x32xi1> to vector<2x32xi32>
    %414 = arith.sitofp %413 : vector<2x32xi32> to vector<2x32xf32>
    %415 = tpu.concatenate %414, %393 in 1 : vector<2x32xf32>, vector<2x32xf32> -> vector<2x64xf32>
    %cst_206 = arith.constant dense<0.000000e+00> : vector<2x32xf32>
    %416 = tpu.matmul %415, %3, %cst_206 {dimension_numbers = #tpu.dot_dimension_numbers<[1], [0], [0], [1], [0, 0, 1, 1], [], []>} : vector<2x64xf32>, vector<64x32xf32>, vector<2x32xf32> -> vector<2x32xf32>
    %417 = math.tanh %416 : vector<2x32xf32>
    %418 = tpu.concatenate %417, %397 in 1 : vector<2x32xf32>, vector<2x32xf32> -> vector<2x64xf32>
    %cst_207 = arith.constant dense<0.000000e+00> : vector<2x32xf32>
    %419 = tpu.matmul %418, %9, %cst_207 {dimension_numbers = #tpu.dot_dimension_numbers<[1], [0], [0], [1], [0, 0, 1, 1], [], []>} : vector<2x64xf32>, vector<64x32xf32>, vector<2x32xf32> -> vector<2x32xf32>
    %420 = arith.addf %419, %13 : vector<2x32xf32>
    %421 = math.tanh %420 : vector<2x32xf32>
    %cst_208 = arith.constant dense<0.000000e+00> : vector<2x16xf32>
    %422 = tpu.matmul %421, %6, %cst_208 {dimension_numbers = #tpu.dot_dimension_numbers<[1], [0], [0], [1], [0, 0, 1, 1], [], []>} : vector<2x32xf32>, vector<32x16xf32>, vector<2x16xf32> -> vector<2x16xf32>
    %423 = arith.addf %422, %17 : vector<2x16xf32>
    %c12 = arith.constant 12 : index
    %c0_209 = arith.constant 0 : index
    %c0_210 = arith.constant 0 : index
    %424 = vector.load %arg12[%c12, %c0_209, %c0_210] : memref<20x2x16xf32, #tpu.memory_space<vmem>>, vector<1x2x16xf32>
    %425 = vector.shape_cast %424 : vector<1x2x16xf32> to vector<2x16xf32>
    %426 = vector.shape_cast %423 : vector<2x16xf32> to vector<1x2x16xf32>
    tpu.vector_store %arg12[%c12, %c0_209, %c0_210], %426 {strides = array<i32>} : memref<20x2x16xf32, #tpu.memory_space<vmem>>, vector<1x2x16xf32>,
    %cst_211 = arith.constant dense<0xFF800000> : vector<2xf32>
    %427 = vector.multi_reduction <maximumf>, %423, %cst_211 [1] : vector<2x16xf32> to vector<2xf32>
    %428 = vector.shape_cast %427 : vector<2xf32> to vector<2x1xf32>
    %429 = vector.broadcast %428 : vector<2x1xf32> to vector<2x16xf32>
    %430 = arith.cmpf oeq, %423, %429 : vector<2x16xf32>
    %c16_i32_212 = arith.constant 16 : i32
    %431 = vector.broadcast %c16_i32_212 : i32 to vector<2x16xi32>
    %432 = arith.select %430, %121, %431 : vector<2x16xi1>, vector<2x16xi32>
    %cst_213 = arith.constant dense<2147483647> : vector<2xi32>
    %433 = vector.multi_reduction <minsi>, %432, %cst_213 [1] : vector<2x16xi32> to vector<2xi32>
    %434 = vector.shape_cast %433 : vector<2xi32> to vector<2x1xi32>
    %435 = vector.broadcast %434 : vector<2x1xi32> to vector<2x32xi32>
    %436 = arith.cmpi eq, %120, %435 : vector<2x32xi32>
    %437 = arith.extui %436 : vector<2x32xi1> to vector<2x32xi32>
    %438 = arith.sitofp %437 : vector<2x32xi32> to vector<2x32xf32>
    %439 = tpu.concatenate %438, %417 in 1 : vector<2x32xf32>, vector<2x32xf32> -> vector<2x64xf32>
    %cst_214 = arith.constant dense<0.000000e+00> : vector<2x32xf32>
    %440 = tpu.matmul %439, %3, %cst_214 {dimension_numbers = #tpu.dot_dimension_numbers<[1], [0], [0], [1], [0, 0, 1, 1], [], []>} : vector<2x64xf32>, vector<64x32xf32>, vector<2x32xf32> -> vector<2x32xf32>
    %441 = math.tanh %440 : vector<2x32xf32>
    %442 = tpu.concatenate %441, %421 in 1 : vector<2x32xf32>, vector<2x32xf32> -> vector<2x64xf32>
    %cst_215 = arith.constant dense<0.000000e+00> : vector<2x32xf32>
    %443 = tpu.matmul %442, %9, %cst_215 {dimension_numbers = #tpu.dot_dimension_numbers<[1], [0], [0], [1], [0, 0, 1, 1], [], []>} : vector<2x64xf32>, vector<64x32xf32>, vector<2x32xf32> -> vector<2x32xf32>
    %444 = arith.addf %443, %13 : vector<2x32xf32>
    %445 = math.tanh %444 : vector<2x32xf32>
    %cst_216 = arith.constant dense<0.000000e+00> : vector<2x16xf32>
    %446 = tpu.matmul %445, %6, %cst_216 {dimension_numbers = #tpu.dot_dimension_numbers<[1], [0], [0], [1], [0, 0, 1, 1], [], []>} : vector<2x32xf32>, vector<32x16xf32>, vector<2x16xf32> -> vector<2x16xf32>
    %447 = arith.addf %446, %17 : vector<2x16xf32>
    %c13 = arith.constant 13 : index
    %c0_217 = arith.constant 0 : index
    %c0_218 = arith.constant 0 : index
    %448 = vector.load %arg12[%c13, %c0_217, %c0_218] : memref<20x2x16xf32, #tpu.memory_space<vmem>>, vector<1x2x16xf32>
    %449 = vector.shape_cast %448 : vector<1x2x16xf32> to vector<2x16xf32>
    %450 = vector.shape_cast %447 : vector<2x16xf32> to vector<1x2x16xf32>
    tpu.vector_store %arg12[%c13, %c0_217, %c0_218], %450 {strides = array<i32>} : memref<20x2x16xf32, #tpu.memory_space<vmem>>, vector<1x2x16xf32>,
    %cst_219 = arith.constant dense<0xFF800000> : vector<2xf32>
    %451 = vector.multi_reduction <maximumf>, %447, %cst_219 [1] : vector<2x16xf32> to vector<2xf32>
    %452 = vector.shape_cast %451 : vector<2xf32> to vector<2x1xf32>
    %453 = vector.broadcast %452 : vector<2x1xf32> to vector<2x16xf32>
    %454 = arith.cmpf oeq, %447, %453 : vector<2x16xf32>
    %c16_i32_220 = arith.constant 16 : i32
    %455 = vector.broadcast %c16_i32_220 : i32 to vector<2x16xi32>
    %456 = arith.select %454, %121, %455 : vector<2x16xi1>, vector<2x16xi32>
    %cst_221 = arith.constant dense<2147483647> : vector<2xi32>
    %457 = vector.multi_reduction <minsi>, %456, %cst_221 [1] : vector<2x16xi32> to vector<2xi32>
    %458 = vector.shape_cast %457 : vector<2xi32> to vector<2x1xi32>
    %459 = vector.broadcast %458 : vector<2x1xi32> to vector<2x32xi32>
    %460 = arith.cmpi eq, %120, %459 : vector<2x32xi32>
    %461 = arith.extui %460 : vector<2x32xi1> to vector<2x32xi32>
    %462 = arith.sitofp %461 : vector<2x32xi32> to vector<2x32xf32>
    %463 = tpu.concatenate %462, %441 in 1 : vector<2x32xf32>, vector<2x32xf32> -> vector<2x64xf32>
    %cst_222 = arith.constant dense<0.000000e+00> : vector<2x32xf32>
    %464 = tpu.matmul %463, %3, %cst_222 {dimension_numbers = #tpu.dot_dimension_numbers<[1], [0], [0], [1], [0, 0, 1, 1], [], []>} : vector<2x64xf32>, vector<64x32xf32>, vector<2x32xf32> -> vector<2x32xf32>
    %465 = math.tanh %464 : vector<2x32xf32>
    %466 = tpu.concatenate %465, %445 in 1 : vector<2x32xf32>, vector<2x32xf32> -> vector<2x64xf32>
    %cst_223 = arith.constant dense<0.000000e+00> : vector<2x32xf32>
    %467 = tpu.matmul %466, %9, %cst_223 {dimension_numbers = #tpu.dot_dimension_numbers<[1], [0], [0], [1], [0, 0, 1, 1], [], []>} : vector<2x64xf32>, vector<64x32xf32>, vector<2x32xf32> -> vector<2x32xf32>
    %468 = arith.addf %467, %13 : vector<2x32xf32>
    %469 = math.tanh %468 : vector<2x32xf32>
    %cst_224 = arith.constant dense<0.000000e+00> : vector<2x16xf32>
    %470 = tpu.matmul %469, %6, %cst_224 {dimension_numbers = #tpu.dot_dimension_numbers<[1], [0], [0], [1], [0, 0, 1, 1], [], []>} : vector<2x32xf32>, vector<32x16xf32>, vector<2x16xf32> -> vector<2x16xf32>
    %471 = arith.addf %470, %17 : vector<2x16xf32>
    %c14 = arith.constant 14 : index
    %c0_225 = arith.constant 0 : index
    %c0_226 = arith.constant 0 : index
    %472 = vector.load %arg12[%c14, %c0_225, %c0_226] : memref<20x2x16xf32, #tpu.memory_space<vmem>>, vector<1x2x16xf32>
    %473 = vector.shape_cast %472 : vector<1x2x16xf32> to vector<2x16xf32>
    %474 = vector.shape_cast %471 : vector<2x16xf32> to vector<1x2x16xf32>
    tpu.vector_store %arg12[%c14, %c0_225, %c0_226], %474 {strides = array<i32>} : memref<20x2x16xf32, #tpu.memory_space<vmem>>, vector<1x2x16xf32>,
    %cst_227 = arith.constant dense<0xFF800000> : vector<2xf32>
    %475 = vector.multi_reduction <maximumf>, %471, %cst_227 [1] : vector<2x16xf32> to vector<2xf32>
    %476 = vector.shape_cast %475 : vector<2xf32> to vector<2x1xf32>
    %477 = vector.broadcast %476 : vector<2x1xf32> to vector<2x16xf32>
    %478 = arith.cmpf oeq, %471, %477 : vector<2x16xf32>
    %c16_i32_228 = arith.constant 16 : i32
    %479 = vector.broadcast %c16_i32_228 : i32 to vector<2x16xi32>
    %480 = arith.select %478, %121, %479 : vector<2x16xi1>, vector<2x16xi32>
    %cst_229 = arith.constant dense<2147483647> : vector<2xi32>
    %481 = vector.multi_reduction <minsi>, %480, %cst_229 [1] : vector<2x16xi32> to vector<2xi32>
    %482 = vector.shape_cast %481 : vector<2xi32> to vector<2x1xi32>
    %483 = vector.broadcast %482 : vector<2x1xi32> to vector<2x32xi32>
    %484 = arith.cmpi eq, %120, %483 : vector<2x32xi32>
    %485 = arith.extui %484 : vector<2x32xi1> to vector<2x32xi32>
    %486 = arith.sitofp %485 : vector<2x32xi32> to vector<2x32xf32>
    %487 = tpu.concatenate %486, %465 in 1 : vector<2x32xf32>, vector<2x32xf32> -> vector<2x64xf32>
    %cst_230 = arith.constant dense<0.000000e+00> : vector<2x32xf32>
    %488 = tpu.matmul %487, %3, %cst_230 {dimension_numbers = #tpu.dot_dimension_numbers<[1], [0], [0], [1], [0, 0, 1, 1], [], []>} : vector<2x64xf32>, vector<64x32xf32>, vector<2x32xf32> -> vector<2x32xf32>
    %489 = math.tanh %488 : vector<2x32xf32>
    %490 = tpu.concatenate %489, %469 in 1 : vector<2x32xf32>, vector<2x32xf32> -> vector<2x64xf32>
    %cst_231 = arith.constant dense<0.000000e+00> : vector<2x32xf32>
    %491 = tpu.matmul %490, %9, %cst_231 {dimension_numbers = #tpu.dot_dimension_numbers<[1], [0], [0], [1], [0, 0, 1, 1], [], []>} : vector<2x64xf32>, vector<64x32xf32>, vector<2x32xf32> -> vector<2x32xf32>
    %492 = arith.addf %491, %13 : vector<2x32xf32>
    %493 = math.tanh %492 : vector<2x32xf32>
    %cst_232 = arith.constant dense<0.000000e+00> : vector<2x16xf32>
    %494 = tpu.matmul %493, %6, %cst_232 {dimension_numbers = #tpu.dot_dimension_numbers<[1], [0], [0], [1], [0, 0, 1, 1], [], []>} : vector<2x32xf32>, vector<32x16xf32>, vector<2x16xf32> -> vector<2x16xf32>
    %495 = arith.addf %494, %17 : vector<2x16xf32>
    %c15 = arith.constant 15 : index
    %c0_233 = arith.constant 0 : index
    %c0_234 = arith.constant 0 : index
    %496 = vector.load %arg12[%c15, %c0_233, %c0_234] : memref<20x2x16xf32, #tpu.memory_space<vmem>>, vector<1x2x16xf32>
    %497 = vector.shape_cast %496 : vector<1x2x16xf32> to vector<2x16xf32>
    %498 = vector.shape_cast %495 : vector<2x16xf32> to vector<1x2x16xf32>
    tpu.vector_store %arg12[%c15, %c0_233, %c0_234], %498 {strides = array<i32>} : memref<20x2x16xf32, #tpu.memory_space<vmem>>, vector<1x2x16xf32>,
    %cst_235 = arith.constant dense<0xFF800000> : vector<2xf32>
    %499 = vector.multi_reduction <maximumf>, %495, %cst_235 [1] : vector<2x16xf32> to vector<2xf32>
    %500 = vector.shape_cast %499 : vector<2xf32> to vector<2x1xf32>
    %501 = vector.broadcast %500 : vector<2x1xf32> to vector<2x16xf32>
    %502 = arith.cmpf oeq, %495, %501 : vector<2x16xf32>
    %c16_i32_236 = arith.constant 16 : i32
    %503 = vector.broadcast %c16_i32_236 : i32 to vector<2x16xi32>
    %504 = arith.select %502, %121, %503 : vector<2x16xi1>, vector<2x16xi32>
    %cst_237 = arith.constant dense<2147483647> : vector<2xi32>
    %505 = vector.multi_reduction <minsi>, %504, %cst_237 [1] : vector<2x16xi32> to vector<2xi32>
    %506 = vector.shape_cast %505 : vector<2xi32> to vector<2x1xi32>
    %507 = vector.broadcast %506 : vector<2x1xi32> to vector<2x32xi32>
    %508 = arith.cmpi eq, %120, %507 : vector<2x32xi32>
    %509 = arith.extui %508 : vector<2x32xi1> to vector<2x32xi32>
    %510 = arith.sitofp %509 : vector<2x32xi32> to vector<2x32xf32>
    %511 = tpu.concatenate %510, %489 in 1 : vector<2x32xf32>, vector<2x32xf32> -> vector<2x64xf32>
    %cst_238 = arith.constant dense<0.000000e+00> : vector<2x32xf32>
    %512 = tpu.matmul %511, %3, %cst_238 {dimension_numbers = #tpu.dot_dimension_numbers<[1], [0], [0], [1], [0, 0, 1, 1], [], []>} : vector<2x64xf32>, vector<64x32xf32>, vector<2x32xf32> -> vector<2x32xf32>
    %513 = math.tanh %512 : vector<2x32xf32>
    %514 = tpu.concatenate %513, %493 in 1 : vector<2x32xf32>, vector<2x32xf32> -> vector<2x64xf32>
    %cst_239 = arith.constant dense<0.000000e+00> : vector<2x32xf32>
    %515 = tpu.matmul %514, %9, %cst_239 {dimension_numbers = #tpu.dot_dimension_numbers<[1], [0], [0], [1], [0, 0, 1, 1], [], []>} : vector<2x64xf32>, vector<64x32xf32>, vector<2x32xf32> -> vector<2x32xf32>
    %516 = arith.addf %515, %13 : vector<2x32xf32>
    %517 = math.tanh %516 : vector<2x32xf32>
    %cst_240 = arith.constant dense<0.000000e+00> : vector<2x16xf32>
    %518 = tpu.matmul %517, %6, %cst_240 {dimension_numbers = #tpu.dot_dimension_numbers<[1], [0], [0], [1], [0, 0, 1, 1], [], []>} : vector<2x32xf32>, vector<32x16xf32>, vector<2x16xf32> -> vector<2x16xf32>
    %519 = arith.addf %518, %17 : vector<2x16xf32>
    %c16 = arith.constant 16 : index
    %c0_241 = arith.constant 0 : index
    %c0_242 = arith.constant 0 : index
    %520 = vector.load %arg12[%c16, %c0_241, %c0_242] : memref<20x2x16xf32, #tpu.memory_space<vmem>>, vector<1x2x16xf32>
    %521 = vector.shape_cast %520 : vector<1x2x16xf32> to vector<2x16xf32>
    %522 = vector.shape_cast %519 : vector<2x16xf32> to vector<1x2x16xf32>
    tpu.vector_store %arg12[%c16, %c0_241, %c0_242], %522 {strides = array<i32>} : memref<20x2x16xf32, #tpu.memory_space<vmem>>, vector<1x2x16xf32>,
    %cst_243 = arith.constant dense<0xFF800000> : vector<2xf32>
    %523 = vector.multi_reduction <maximumf>, %519, %cst_243 [1] : vector<2x16xf32> to vector<2xf32>
    %524 = vector.shape_cast %523 : vector<2xf32> to vector<2x1xf32>
    %525 = vector.broadcast %524 : vector<2x1xf32> to vector<2x16xf32>
    %526 = arith.cmpf oeq, %519, %525 : vector<2x16xf32>
    %c16_i32_244 = arith.constant 16 : i32
    %527 = vector.broadcast %c16_i32_244 : i32 to vector<2x16xi32>
    %528 = arith.select %526, %121, %527 : vector<2x16xi1>, vector<2x16xi32>
    %cst_245 = arith.constant dense<2147483647> : vector<2xi32>
    %529 = vector.multi_reduction <minsi>, %528, %cst_245 [1] : vector<2x16xi32> to vector<2xi32>
    %530 = vector.shape_cast %529 : vector<2xi32> to vector<2x1xi32>
    %531 = vector.broadcast %530 : vector<2x1xi32> to vector<2x32xi32>
    %532 = arith.cmpi eq, %120, %531 : vector<2x32xi32>
    %533 = arith.extui %532 : vector<2x32xi1> to vector<2x32xi32>
    %534 = arith.sitofp %533 : vector<2x32xi32> to vector<2x32xf32>
    %535 = tpu.concatenate %534, %513 in 1 : vector<2x32xf32>, vector<2x32xf32> -> vector<2x64xf32>
    %cst_246 = arith.constant dense<0.000000e+00> : vector<2x32xf32>
    %536 = tpu.matmul %535, %3, %cst_246 {dimension_numbers = #tpu.dot_dimension_numbers<[1], [0], [0], [1], [0, 0, 1, 1], [], []>} : vector<2x64xf32>, vector<64x32xf32>, vector<2x32xf32> -> vector<2x32xf32>
    %537 = math.tanh %536 : vector<2x32xf32>
    %538 = tpu.concatenate %537, %517 in 1 : vector<2x32xf32>, vector<2x32xf32> -> vector<2x64xf32>
    %cst_247 = arith.constant dense<0.000000e+00> : vector<2x32xf32>
    %539 = tpu.matmul %538, %9, %cst_247 {dimension_numbers = #tpu.dot_dimension_numbers<[1], [0], [0], [1], [0, 0, 1, 1], [], []>} : vector<2x64xf32>, vector<64x32xf32>, vector<2x32xf32> -> vector<2x32xf32>
    %540 = arith.addf %539, %13 : vector<2x32xf32>
    %541 = math.tanh %540 : vector<2x32xf32>
    %cst_248 = arith.constant dense<0.000000e+00> : vector<2x16xf32>
    %542 = tpu.matmul %541, %6, %cst_248 {dimension_numbers = #tpu.dot_dimension_numbers<[1], [0], [0], [1], [0, 0, 1, 1], [], []>} : vector<2x32xf32>, vector<32x16xf32>, vector<2x16xf32> -> vector<2x16xf32>
    %543 = arith.addf %542, %17 : vector<2x16xf32>
    %c17 = arith.constant 17 : index
    %c0_249 = arith.constant 0 : index
    %c0_250 = arith.constant 0 : index
    %544 = vector.load %arg12[%c17, %c0_249, %c0_250] : memref<20x2x16xf32, #tpu.memory_space<vmem>>, vector<1x2x16xf32>
    %545 = vector.shape_cast %544 : vector<1x2x16xf32> to vector<2x16xf32>
    %546 = vector.shape_cast %543 : vector<2x16xf32> to vector<1x2x16xf32>
    tpu.vector_store %arg12[%c17, %c0_249, %c0_250], %546 {strides = array<i32>} : memref<20x2x16xf32, #tpu.memory_space<vmem>>, vector<1x2x16xf32>,
    %cst_251 = arith.constant dense<0xFF800000> : vector<2xf32>
    %547 = vector.multi_reduction <maximumf>, %543, %cst_251 [1] : vector<2x16xf32> to vector<2xf32>
    %548 = vector.shape_cast %547 : vector<2xf32> to vector<2x1xf32>
    %549 = vector.broadcast %548 : vector<2x1xf32> to vector<2x16xf32>
    %550 = arith.cmpf oeq, %543, %549 : vector<2x16xf32>
    %c16_i32_252 = arith.constant 16 : i32
    %551 = vector.broadcast %c16_i32_252 : i32 to vector<2x16xi32>
    %552 = arith.select %550, %121, %551 : vector<2x16xi1>, vector<2x16xi32>
    %cst_253 = arith.constant dense<2147483647> : vector<2xi32>
    %553 = vector.multi_reduction <minsi>, %552, %cst_253 [1] : vector<2x16xi32> to vector<2xi32>
    %554 = vector.shape_cast %553 : vector<2xi32> to vector<2x1xi32>
    %555 = vector.broadcast %554 : vector<2x1xi32> to vector<2x32xi32>
    %556 = arith.cmpi eq, %120, %555 : vector<2x32xi32>
    %557 = arith.extui %556 : vector<2x32xi1> to vector<2x32xi32>
    %558 = arith.sitofp %557 : vector<2x32xi32> to vector<2x32xf32>
    %559 = tpu.concatenate %558, %537 in 1 : vector<2x32xf32>, vector<2x32xf32> -> vector<2x64xf32>
    %cst_254 = arith.constant dense<0.000000e+00> : vector<2x32xf32>
    %560 = tpu.matmul %559, %3, %cst_254 {dimension_numbers = #tpu.dot_dimension_numbers<[1], [0], [0], [1], [0, 0, 1, 1], [], []>} : vector<2x64xf32>, vector<64x32xf32>, vector<2x32xf32> -> vector<2x32xf32>
    %561 = math.tanh %560 : vector<2x32xf32>
    %562 = tpu.concatenate %561, %541 in 1 : vector<2x32xf32>, vector<2x32xf32> -> vector<2x64xf32>
    %cst_255 = arith.constant dense<0.000000e+00> : vector<2x32xf32>
    %563 = tpu.matmul %562, %9, %cst_255 {dimension_numbers = #tpu.dot_dimension_numbers<[1], [0], [0], [1], [0, 0, 1, 1], [], []>} : vector<2x64xf32>, vector<64x32xf32>, vector<2x32xf32> -> vector<2x32xf32>
    %564 = arith.addf %563, %13 : vector<2x32xf32>
    %565 = math.tanh %564 : vector<2x32xf32>
    %cst_256 = arith.constant dense<0.000000e+00> : vector<2x16xf32>
    %566 = tpu.matmul %565, %6, %cst_256 {dimension_numbers = #tpu.dot_dimension_numbers<[1], [0], [0], [1], [0, 0, 1, 1], [], []>} : vector<2x32xf32>, vector<32x16xf32>, vector<2x16xf32> -> vector<2x16xf32>
    %567 = arith.addf %566, %17 : vector<2x16xf32>
    %c18 = arith.constant 18 : index
    %c0_257 = arith.constant 0 : index
    %c0_258 = arith.constant 0 : index
    %568 = vector.load %arg12[%c18, %c0_257, %c0_258] : memref<20x2x16xf32, #tpu.memory_space<vmem>>, vector<1x2x16xf32>
    %569 = vector.shape_cast %568 : vector<1x2x16xf32> to vector<2x16xf32>
    %570 = vector.shape_cast %567 : vector<2x16xf32> to vector<1x2x16xf32>
    tpu.vector_store %arg12[%c18, %c0_257, %c0_258], %570 {strides = array<i32>} : memref<20x2x16xf32, #tpu.memory_space<vmem>>, vector<1x2x16xf32>,
    %cst_259 = arith.constant dense<0xFF800000> : vector<2xf32>
    %571 = vector.multi_reduction <maximumf>, %567, %cst_259 [1] : vector<2x16xf32> to vector<2xf32>
    %572 = vector.shape_cast %571 : vector<2xf32> to vector<2x1xf32>
    %573 = vector.broadcast %572 : vector<2x1xf32> to vector<2x16xf32>
    %574 = arith.cmpf oeq, %567, %573 : vector<2x16xf32>
    %c16_i32_260 = arith.constant 16 : i32
    %575 = vector.broadcast %c16_i32_260 : i32 to vector<2x16xi32>
    %576 = arith.select %574, %121, %575 : vector<2x16xi1>, vector<2x16xi32>
    %cst_261 = arith.constant dense<2147483647> : vector<2xi32>
    %577 = vector.multi_reduction <minsi>, %576, %cst_261 [1] : vector<2x16xi32> to vector<2xi32>
    %578 = vector.shape_cast %577 : vector<2xi32> to vector<2x1xi32>
    %579 = vector.broadcast %578 : vector<2x1xi32> to vector<2x32xi32>
    %580 = arith.cmpi eq, %120, %579 : vector<2x32xi32>
    %581 = arith.extui %580 : vector<2x32xi1> to vector<2x32xi32>
    %582 = arith.sitofp %581 : vector<2x32xi32> to vector<2x32xf32>
    %583 = tpu.concatenate %582, %561 in 1 : vector<2x32xf32>, vector<2x32xf32> -> vector<2x64xf32>
    %cst_262 = arith.constant dense<0.000000e+00> : vector<2x32xf32>
    %584 = tpu.matmul %583, %3, %cst_262 {dimension_numbers = #tpu.dot_dimension_numbers<[1], [0], [0], [1], [0, 0, 1, 1], [], []>} : vector<2x64xf32>, vector<64x32xf32>, vector<2x32xf32> -> vector<2x32xf32>
    %585 = math.tanh %584 : vector<2x32xf32>
    %586 = tpu.concatenate %585, %565 in 1 : vector<2x32xf32>, vector<2x32xf32> -> vector<2x64xf32>
    %cst_263 = arith.constant dense<0.000000e+00> : vector<2x32xf32>
    %587 = tpu.matmul %586, %9, %cst_263 {dimension_numbers = #tpu.dot_dimension_numbers<[1], [0], [0], [1], [0, 0, 1, 1], [], []>} : vector<2x64xf32>, vector<64x32xf32>, vector<2x32xf32> -> vector<2x32xf32>
    %588 = arith.addf %587, %13 : vector<2x32xf32>
    %589 = math.tanh %588 : vector<2x32xf32>
    %cst_264 = arith.constant dense<0.000000e+00> : vector<2x16xf32>
    %590 = tpu.matmul %589, %6, %cst_264 {dimension_numbers = #tpu.dot_dimension_numbers<[1], [0], [0], [1], [0, 0, 1, 1], [], []>} : vector<2x32xf32>, vector<32x16xf32>, vector<2x16xf32> -> vector<2x16xf32>
    %591 = arith.addf %590, %17 : vector<2x16xf32>
    %c19 = arith.constant 19 : index
    %c0_265 = arith.constant 0 : index
    %c0_266 = arith.constant 0 : index
    %592 = vector.load %arg12[%c19, %c0_265, %c0_266] : memref<20x2x16xf32, #tpu.memory_space<vmem>>, vector<1x2x16xf32>
    %593 = vector.shape_cast %592 : vector<1x2x16xf32> to vector<2x16xf32>
    %594 = vector.shape_cast %591 : vector<2x16xf32> to vector<1x2x16xf32>
    tpu.vector_store %arg12[%c19, %c0_265, %c0_266], %594 {strides = array<i32>} : memref<20x2x16xf32, #tpu.memory_space<vmem>>, vector<1x2x16xf32>,
    return
  }
  func.func @transform_0(%arg0: i32) -> (i32, i32, i32) {
    %c0_i32 = arith.constant 0 : i32
    %c0_i32_0 = arith.constant 0 : i32
    %c0_i32_1 = arith.constant 0 : i32
    return %c0_i32, %arg0, %c0_i32_0 : i32, i32, i32
  }
  func.func @transform_1(%arg0: i32) -> (i32, i32) {
    %c0_i32 = arith.constant 0 : i32
    %c0_i32_0 = arith.constant 0 : i32
    %c0_i32_1 = arith.constant 0 : i32
    return %c0_i32, %c0_i32_0 : i32, i32
  }
  func.func @transform_2(%arg0: i32) -> (i32, i32) {
    %c0_i32 = arith.constant 0 : i32
    %c0_i32_0 = arith.constant 0 : i32
    %c0_i32_1 = arith.constant 0 : i32
    return %c0_i32, %c0_i32_0 : i32, i32
  }
  func.func @transform_3(%arg0: i32) -> (i32, i32) {
    %c0_i32 = arith.constant 0 : i32
    %c0_i32_0 = arith.constant 0 : i32
    %c0_i32_1 = arith.constant 0 : i32
    return %c0_i32, %c0_i32_0 : i32, i32
  }
  func.func @transform_4(%arg0: i32) -> (i32, i32) {
    %c0_i32 = arith.constant 0 : i32
    %c0_i32_0 = arith.constant 0 : i32
    %c0_i32_1 = arith.constant 0 : i32
    return %c0_i32, %c0_i32_0 : i32, i32
  }
  func.func @transform_5(%arg0: i32) -> (i32, i32, i32) {
    %c0_i32 = arith.constant 0 : i32
    %c0_i32_0 = arith.constant 0 : i32
    %c0_i32_1 = arith.constant 0 : i32
    %c0_i32_2 = arith.constant 0 : i32
    return %c0_i32, %c0_i32_0, %c0_i32_1 : i32, i32, i32
  }
  func.func @transform_6(%arg0: i32) -> (i32, i32, i32) {
    %c0_i32 = arith.constant 0 : i32
    %c0_i32_0 = arith.constant 0 : i32
    %c0_i32_1 = arith.constant 0 : i32
    %c0_i32_2 = arith.constant 0 : i32
    return %c0_i32, %c0_i32_0, %c0_i32_1 : i32, i32, i32
  }
  func.func @transform_7(%arg0: i32) -> (i32, i32) {
    %c0_i32 = arith.constant 0 : i32
    %c0_i32_0 = arith.constant 0 : i32
    %c0_i32_1 = arith.constant 0 : i32
    return %c0_i32, %c0_i32_0 : i32, i32
  }
  func.func @transform_8(%arg0: i32) -> (i32, i32) {
    %c0_i32 = arith.constant 0 : i32
    %c0_i32_0 = arith.constant 0 : i32
    %c0_i32_1 = arith.constant 0 : i32
    return %c0_i32, %c0_i32_0 : i32, i32
  }
  func.func @transform_9(%arg0: i32) -> (i32, i32) {
    %c0_i32 = arith.constant 0 : i32
    %c0_i32_0 = arith.constant 0 : i32
    %c0_i32_1 = arith.constant 0 : i32
    return %c0_i32, %c0_i32_0 : i32, i32
  }
  func.func @transform_10(%arg0: i32) -> (i32, i32) {
    %c0_i32 = arith.constant 0 : i32
    %c0_i32_0 = arith.constant 0 : i32
    %c0_i32_1 = arith.constant 0 : i32
    return %c0_i32, %c0_i32_0 : i32, i32
  }
  func.func @transform_11(%arg0: i32) -> (i32, i32, i32) {
    %c0_i32 = arith.constant 0 : i32
    %c0_i32_0 = arith.constant 0 : i32
    %c0_i32_1 = arith.constant 0 : i32
    return %c0_i32, %arg0, %c0_i32_0 : i32, i32, i32
  }
}

</mosaic_0001>

<llo_original>
// kernel: tpu_custom_call.1
$region0: #{tpu_custom_call.1}
  #allocation0 [shape = 'u32[]', space=smem, size = 0x4, offset = 0x4, fixed_abs, tag = 'smem constant byte address 0x4 - core index']
  #allocation1 [shape = 'u32[144,128]{1,0:T(1,128)}', space=vmem, size = 0x12000, scoped, tag = 'internal scratch']
  #allocation2 [shape = 'f32[8,2,32]{2,1,0:T(2,128)}', space=vmem, size = 0x2000, scoped, tag = 'scratch operand']
  %s0 = inlined_call_operand.vmem [shape: f32[8,2,32], index: 0, kind: input, shape index: {}]
  %s1 = inlined_call_operand.vmem [shape: f32[32,32], index: 1, kind: input, shape index: {}]
  %s2 = inlined_call_operand.vmem [shape: f32[32,32], index: 2, kind: input, shape index: {}]
  %s3 = inlined_call_operand.vmem [shape: f32[1,32], index: 3, kind: input, shape index: {}]
  %s4 = inlined_call_operand.vmem [shape: f32[64,32], index: 4, kind: input, shape index: {}]
  %s5 = inlined_call_operand.vmem [shape: f32[1,64,32], index: 5, kind: input, shape index: {}]
  %s6 = inlined_call_operand.vmem [shape: f32[1,1,32], index: 6, kind: input, shape index: {}]
  %s7 = inlined_call_operand.vmem [shape: f32[32,64], index: 7, kind: input, shape index: {}]
  %s8 = inlined_call_operand.vmem [shape: f32[1,64], index: 8, kind: input, shape index: {}]
  %s9 = inlined_call_operand.vmem [shape: f32[32,16], index: 9, kind: input, shape index: {}]
  %s10 = inlined_call_operand.vmem [shape: f32[1,16], index: 10, kind: input, shape index: {}]
  %s11 = inlined_call_operand.vmem [shape: f32[20,2,16], index: 11, kind: output, shape index: {}]
  %s12 = sld [smem:[#allocation0]]
  $region54: #{tpu_custom_call.1} parent=0
    _
  %s14 = ssub.s32 1, %s12
  %s15 = scalar_select 0, %s14, %s12
  // Predicated region
  $region2: #{tpu_custom_call.1} parent=0 // pred_check
    _
  $region3: #{tpu_custom_call.1} parent=0 // pred_check_branch
    %17 = sbr.rel (0) target = $region5
  $region4: #{tpu_custom_call.1} parent=0 // pred_region
    _
  $region5: #{tpu_custom_call.1} parent=0 // pred_fallthru
    _
  // Predicated region
  $region6: #{tpu_custom_call.1} parent=0 // pred_check
    _
  $region7: #{tpu_custom_call.1} parent=0 // pred_check_branch
    %19 = sbr.rel (0) target = $region9
  $region8: #{tpu_custom_call.1} parent=0 // pred_region
    _
  $region9: #{tpu_custom_call.1} parent=0 // pred_fallthru
    _
  // Predicated region
  $region10: #{tpu_custom_call.1} parent=0 // pred_check
    _
  $region11: #{tpu_custom_call.1} parent=0 // pred_check_branch
    %21 = sbr.rel (0) target = $region13
  $region12: #{tpu_custom_call.1} parent=0 // pred_region
    _
  $region13: #{tpu_custom_call.1} parent=0 // pred_fallthru
    _
  // Predicated region
  $region14: #{tpu_custom_call.1} parent=0 // pred_check
    _
  $region15: #{tpu_custom_call.1} parent=0 // pred_check_branch
    %23 = sbr.rel (0) target = $region17
  $region16: #{tpu_custom_call.1} parent=0 // pred_region
    _
  $region17: #{tpu_custom_call.1} parent=0 // pred_fallthru
    _
  // Predicated region
  $region18: #{tpu_custom_call.1} parent=0 // pred_check
    _
  $region19: #{tpu_custom_call.1} parent=0 // pred_check_branch
    %25 = sbr.rel (0) target = $region21
  $region20: #{tpu_custom_call.1} parent=0 // pred_region
    _
  $region21: #{tpu_custom_call.1} parent=0 // pred_fallthru
    _
  // Predicated region
  $region22: #{tpu_custom_call.1} parent=0 // pred_check
    _
  $region23: #{tpu_custom_call.1} parent=0 // pred_check_branch
    %27 = sbr.rel (0) target = $region25
  $region24: #{tpu_custom_call.1} parent=0 // pred_region
    _
  $region25: #{tpu_custom_call.1} parent=0 // pred_fallthru
    _
  // Predicated region
  $region26: #{tpu_custom_call.1} parent=0 // pred_check
    _
  $region27: #{tpu_custom_call.1} parent=0 // pred_check_branch
    %29 = sbr.rel (0) target = $region29
  $region28: #{tpu_custom_call.1} parent=0 // pred_region
    _
  $region29: #{tpu_custom_call.1} parent=0 // pred_fallthru
    _
  // Predicated region
  $region30: #{tpu_custom_call.1} parent=0 // pred_check
    _
  $region31: #{tpu_custom_call.1} parent=0 // pred_check_branch
    %31 = sbr.rel (0) target = $region33
  $region32: #{tpu_custom_call.1} parent=0 // pred_region
    _
  $region33: #{tpu_custom_call.1} parent=0 // pred_fallthru
    _
  // Predicated region
  $region34: #{tpu_custom_call.1} parent=0 // pred_check
    _
  $region35: #{tpu_custom_call.1} parent=0 // pred_check_branch
    %33 = sbr.rel (0) target = $region37
  $region36: #{tpu_custom_call.1} parent=0 // pred_region
    _
  $region37: #{tpu_custom_call.1} parent=0 // pred_fallthru
    _
  // Predicated region
  $region38: #{tpu_custom_call.1} parent=0 // pred_check
    _
  $region39: #{tpu_custom_call.1} parent=0 // pred_check_branch
    %35 = sbr.rel (0) target = $region41
  $region40: #{tpu_custom_call.1} parent=0 // pred_region
    _
  $region41: #{tpu_custom_call.1} parent=0 // pred_fallthru
    _
  // Predicated region
  $region42: #{tpu_custom_call.1} parent=0 // pred_check
    _
  $region43: #{tpu_custom_call.1} parent=0 // pred_check_branch
    %37 = sbr.rel (0) target = $region45
  $region44: #{tpu_custom_call.1} parent=0 // pred_region
    _
  $region45: #{tpu_custom_call.1} parent=0 // pred_fallthru
    _
  %v38 = vld [vmem:[%s1] sm:$0xff]
  %v39 = vld [vmem:[%s1 + $0x8] sm:$0xff]
  %v40 = vld [vmem:[%s1 + $0x10] sm:$0xff]
  %v41 = vld [vmem:[%s1 + $0x18] sm:$0xff]
  %v42 = vld [vmem:[%s2] sm:$0xff]
  %v43 = vld [vmem:[%s2 + $0x8] sm:$0xff]
  %v44 = vld [vmem:[%s2 + $0x10] sm:$0xff]
  %v45 = vld [vmem:[%s2 + $0x18] sm:$0xff]
  %v46 = vld [vmem:[%s3] sm:$0x1]
  %v47 = vld [vmem:[%s4] sm:$0xff]
  %v48 = vld [vmem:[%s4 + $0x8] sm:$0xff]
  %v49 = vld [vmem:[%s4 + $0x10] sm:$0xff]
  %v50 = vld [vmem:[%s4 + $0x18] sm:$0xff]
  %v51 = vld [vmem:[%s4 + $0x20] sm:$0xff]
  %v52 = vld [vmem:[%s4 + $0x28] sm:$0xff]
  %v53 = vld [vmem:[%s4 + $0x30] sm:$0xff]
  %v54 = vld [vmem:[%s4 + $0x38] sm:$0xff]
  %v55 = vld [vmem:[%s7] sm:$0xff]
  %v56 = vld [vmem:[%s7 + $0x8] sm:$0xff]
  %v57 = vld [vmem:[%s7 + $0x10] sm:$0xff]
  %v58 = vld [vmem:[%s7 + $0x18] sm:$0xff]
  %v59 = vld [vmem:[%s8] sm:$0x1]
  %v60 = vld [vmem:[%s9] sm:$0xff]
  %v61 = vld [vmem:[%s9 + $0x8] sm:$0xff]
  %v62 = vld [vmem:[%s9 + $0x10] sm:$0xff]
  %v63 = vld [vmem:[%s9 + $0x18] sm:$0xff]
  %v64 = vld [vmem:[%s10] sm:$0x1]
  %v65 = vld [vmem:[%s5] sm:$0xff]
  %v66 = vld [vmem:[%s5 + $0x8] sm:$0xff]
  %v67 = vld [vmem:[%s5 + $0x10] sm:$0xff]
  %v68 = vld [vmem:[%s5 + $0x18] sm:$0xff]
  %v69 = vld [vmem:[%s5 + $0x20] sm:$0xff]
  %v70 = vld [vmem:[%s5 + $0x28] sm:$0xff]
  %v71 = vld [vmem:[%s5 + $0x30] sm:$0xff]
  %v72 = vld [vmem:[%s5 + $0x38] sm:$0xff]
  %v73 = vld [vmem:[%s6] sm:$0x1]
  %v75 = vlaneseq
  %v76 = vshrl.u32 %v75, 7
  %v77 = vsub.s32 0, %v76
  %v78 = vrot.slane %v73, %v77
  %v81 = vlaneseq
  %v82 = vshrl.u32 %v81, 7
  %v83 = vsub.s32 0, %v82
  %v84 = vrot.slane %v46, %v83
  %v87 = vlaneseq
  %v88 = vshrl.u32 %v87, 7
  %v89 = vsub.s32 0, %v88
  %v90 = vrot.slane %v64, %v89
  %v92 = vld [vmem:[%s0] sm:$0x3]
  %vm93 = vcmask 261120
  %v95 = vsel %vm93, %v92, 0
  %97 = vmatprep.subr.mxu0 0.0
  %98 = vmatpush1.msra.mxu0 0.0
  %99 = vmatprep.subr.mxu0 0.0
  %100 = vmatpush1.msra.mxu0 0.0
  %101 = vmatprep.subr.mxu0 0.0
  %102 = vmatpush1.msra.mxu0 0.0
  %103 = vmatprep.subr.mxu0 0.0
  %104 = vmatpush1.msra.mxu0 0.0
  %105 = vmatprep.subr.mxu0 0.0
  %106 = vmatpush1.msra.mxu0 0.0
  %107 = vmatprep.subr.mxu0 0.0
  %108 = vmatpush1.msra.mxu0 0.0
  %109 = vmatprep.subr.mxu0 0.0
  %110 = vmatpush1.msra.mxu0 0.0
  %111 = vmatprep.subr.mxu0 0.0
  %112 = vmatpush1.msra.mxu0 0.0
  %113 = vmatprep.subr.mxu0 0.0
  %114 = vmatpush1.msra.mxu0 0.0
  %115 = vmatprep.subr.mxu0 0.0
  %116 = vmatpush1.msra.mxu0 0.0
  %117 = vmatprep.subr.mxu0 0.0
  %118 = vmatpush1.msra.mxu0 0.0
  %119 = vmatprep.subr.mxu0 0.0
  %120 = vmatpush1.msra.mxu0 0.0
  %121 = vmatprep.subr.mxu0 0.0
  %122 = vmatpush1.msra.mxu0 %v41
  %123 = vmatprep.subr.mxu0 0.0
  %124 = vmatpush1.msra.mxu0 %v40
  %125 = vmatprep.subr.mxu0 0.0
  %126 = vmatpush1.msra.mxu0 %v39
  %127 = vmatprep.subr.mxu0 0.0
  %128 = vmatpush1.msra.mxu0 %v38
  %129 = vmatprep.subr.mxu0 0.0
  %130 = vmatpush2.msra.mxu0 0.0
  %131 = vmatprep.subr.mxu0 0.0
  %132 = vmatpush2.msra.mxu0 0.0
  %133 = vmatprep.subr.mxu0 0.0
  %134 = vmatpush2.msra.mxu0 0.0
  %135 = vmatprep.subr.mxu0 0.0
  %136 = vmatpush2.msra.mxu0 0.0
  %137 = vmatprep.subr.mxu0 0.0
  %138 = vmatpush2.msra.mxu0 0.0
  %139 = vmatprep.subr.mxu0 0.0
  %140 = vmatpush2.msra.mxu0 0.0
  %141 = vmatprep.subr.mxu0 0.0
  %142 = vmatpush2.msra.mxu0 0.0
  %143 = vmatprep.subr.mxu0 0.0
  %144 = vmatpush2.msra.mxu0 0.0
  %145 = vmatprep.subr.mxu0 0.0
  %146 = vmatpush2.msra.mxu0 0.0
  %147 = vmatprep.subr.mxu0 0.0
  %148 = vmatpush2.msra.mxu0 0.0
  %149 = vmatprep.subr.mxu0 0.0
  %150 = vmatpush2.msra.mxu0 0.0
  %151 = vmatprep.subr.mxu0 0.0
  %152 = vmatpush2.msra.mxu0 0.0
  %153 = vmatprep.subr.mxu0 0.0
  %154 = vmatpush2.msra.mxu0 0.0
  %155 = vmatprep.subr.mxu0 0.0
  %156 = vmatpush2.msra.mxu0 0.0
  %157 = vmatprep.subr.mxu0 0.0
  %158 = vmatpush2.msra.mxu0 0.0
  %159 = vmatprep.subr.mxu0 0.0
  %160 = vmatpush2.msra.mxu0 0.0
  %161 = vmatprep.mubr.f32.mxu0 0.0
  %162 = vmatmul.mubr.f32.gmra.mxu0 %v95
  %v163 = vpop.f32.mrf.mxu0
  %v164 = vadd.f32 %v84, %v163
  %v165 = vpop.f32.mrf.mxu0
  %166 = vdwg.mxu0
  %vm167 = vcmask 254976
  %168 = vst.msk [vmem:[#allocation2] sm:$0x3] %vm167, %v164
  %s169 = scalar_lea.vmem %s0, 2
  %v170 = vld [vmem:[%s169] sm:$0x3]
  %v172 = vsel %vm93, %v170, 0
  %174 = vmatprep.subr.mxu0 0.0
  %175 = vmatpush1.msra.mxu0 0.0
  %176 = vmatprep.subr.mxu0 0.0
  %177 = vmatpush1.msra.mxu0 0.0
  %178 = vmatprep.subr.mxu0 0.0
  %179 = vmatpush1.msra.mxu0 0.0
  %180 = vmatprep.subr.mxu0 0.0
  %181 = vmatpush1.msra.mxu0 0.0
  %182 = vmatprep.subr.mxu0 0.0
  %183 = vmatpush1.msra.mxu0 0.0
  %184 = vmatprep.subr.mxu0 0.0
  %185 = vmatpush1.msra.mxu0 0.0
  %186 = vmatprep.subr.mxu0 0.0
  %187 = vmatpush1.msra.mxu0 0.0
  %188 = vmatprep.subr.mxu0 0.0
  %189 = vmatpush1.msra.mxu0 0.0
  %190 = vmatprep.subr.mxu0 0.0
  %191 = vmatpush1.msra.mxu0 0.0
  %192 = vmatprep.subr.mxu0 0.0
  %193 = vmatpush1.msra.mxu0 0.0
  %194 = vmatprep.subr.mxu0 0.0
  %195 = vmatpush1.msra.mxu0 0.0
  %196 = vmatprep.subr.mxu0 0.0
  %197 = vmatpush1.msra.mxu0 0.0
  %198 = vmatprep.subr.mxu0 0.0
  %199 = vmatpush1.msra.mxu0 %v41
  %200 = vmatprep.subr.mxu0 0.0
  %201 = vmatpush1.msra.mxu0 %v40
  %202 = vmatprep.subr.mxu0 0.0
  %203 = vmatpush1.msra.mxu0 %v39
  %204 = vmatprep.subr.mxu0 0.0
  %205 = vmatpush1.msra.mxu0 %v38
  %206 = vmatprep.subr.mxu0 0.0
  %207 = vmatpush2.msra.mxu0 0.0
  %208 = vmatprep.subr.mxu0 0.0
  %209 = vmatpush2.msra.mxu0 0.0
  %210 = vmatprep.subr.mxu0 0.0
  %211 = vmatpush2.msra.mxu0 0.0
  %212 = vmatprep.subr.mxu0 0.0
  %213 = vmatpush2.msra.mxu0 0.0
  %214 = vmatprep.subr.mxu0 0.0
  %215 = vmatpush2.msra.mxu0 0.0
  %216 = vmatprep.subr.mxu0 0.0
  %217 = vmatpush2.msra.mxu0 0.0
  %218 = vmatprep.subr.mxu0 0.0
  %219 = vmatpush2.msra.mxu0 0.0
  %220 = vmatprep.subr.mxu0 0.0
  %221 = vmatpush2.msra.mxu0 0.0
  %222 = vmatprep.subr.mxu0 0.0
  %223 = vmatpush2.msra.mxu0 0.0
  %224 = vmatprep.subr.mxu0 0.0
  %225 = vmatpush2.msra.mxu0 0.0
  %226 = vmatprep.subr.mxu0 0.0
  %227 = vmatpush2.msra.mxu0 0.0
  %228 = vmatprep.subr.mxu0 0.0
  %229 = vmatpush2.msra.mxu0 0.0
  %230 = vmatprep.subr.mxu0 0.0
  %231 = vmatpush2.msra.mxu0 0.0
  %232 = vmatprep.subr.mxu0 0.0
  %233 = vmatpush2.msra.mxu0 0.0
  %234 = vmatprep.subr.mxu0 0.0
  %235 = vmatpush2.msra.mxu0 0.0
  %236 = vmatprep.subr.mxu0 0.0
  %237 = vmatpush2.msra.mxu0 0.0
  %238 = vmatprep.mubr.f32.mxu0 0.0
  %239 = vmatmul.mubr.f32.gmra.mxu0 %v172
  %v240 = vpop.f32.mrf.mxu0
  %v241 = vadd.f32 %v84, %v240
  %v242 = vpop.f32.mrf.mxu0
  %243 = vdwg.mxu0
  %s244 = scalar_lea.vmem [#allocation2], 2
  %245 = vst.msk [vmem:[%s244] sm:$0x3] %vm167, %v241
  %s246 = scalar_lea.vmem %s0, 4
  %v247 = vld [vmem:[%s246] sm:$0x3]
  %v249 = vsel %vm93, %v247, 0
  %251 = vmatprep.subr.mxu0 0.0
  %252 = vmatpush1.msra.mxu0 0.0
  %253 = vmatprep.subr.mxu0 0.0
  %254 = vmatpush1.msra.mxu0 0.0
  %255 = vmatprep.subr.mxu0 0.0
  %256 = vmatpush1.msra.mxu0 0.0
  %257 = vmatprep.subr.mxu0 0.0
  %258 = vmatpush1.msra.mxu0 0.0
  %259 = vmatprep.subr.mxu0 0.0
  %260 = vmatpush1.msra.mxu0 0.0
  %261 = vmatprep.subr.mxu0 0.0
  %262 = vmatpush1.msra.mxu0 0.0
  %263 = vmatprep.subr.mxu0 0.0
  %264 = vmatpush1.msra.mxu0 0.0
  %265 = vmatprep.subr.mxu0 0.0
  %266 = vmatpush1.msra.mxu0 0.0
  %267 = vmatprep.subr.mxu0 0.0
  %268 = vmatpush1.msra.mxu0 0.0
  %269 = vmatprep.subr.mxu0 0.0
  %270 = vmatpush1.msra.mxu0 0.0
  %271 = vmatprep.subr.mxu0 0.0
  %272 = vmatpush1.msra.mxu0 0.0
  %273 = vmatprep.subr.mxu0 0.0
  %274 = vmatpush1.msra.mxu0 0.0
  %275 = vmatprep.subr.mxu0 0.0
  %276 = vmatpush1.msra.mxu0 %v41
  %277 = vmatprep.subr.mxu0 0.0
  %278 = vmatpush1.msra.mxu0 %v40
  %279 = vmatprep.subr.mxu0 0.0
  %280 = vmatpush1.msra.mxu0 %v39
  %281 = vmatprep.subr.mxu0 0.0
  %282 = vmatpush1.msra.mxu0 %v38
  %283 = vmatprep.subr.mxu0 0.0
  %284 = vmatpush2.msra.mxu0 0.0
  %285 = vmatprep.subr.mxu0 0.0
  %286 = vmatpush2.msra.mxu0 0.0
  %287 = vmatprep.subr.mxu0 0.0
  %288 = vmatpush2.msra.mxu0 0.0
  %289 = vmatprep.subr.mxu0 0.0
  %290 = vmatpush2.msra.mxu0 0.0
  %291 = vmatprep.subr.mxu0 0.0
  %292 = vmatpush2.msra.mxu0 0.0
  %293 = vmatprep.subr.mxu0 0.0
  %294 = vmatpush2.msra.mxu0 0.0
  %295 = vmatprep.subr.mxu0 0.0
  %296 = vmatpush2.msra.mxu0 0.0
  %297 = vmatprep.subr.mxu0 0.0
  %298 = vmatpush2.msra.mxu0 0.0
  %299 = vmatprep.subr.mxu0 0.0
  %300 = vmatpush2.msra.mxu0 0.0
  %301 = vmatprep.subr.mxu0 0.0
  %302 = vmatpush2.msra.mxu0 0.0
  %303 = vmatprep.subr.mxu0 0.0
  %304 = vmatpush2.msra.mxu0 0.0
  %305 = vmatprep.subr.mxu0 0.0
  %306 = vmatpush2.msra.mxu0 0.0
  %307 = vmatprep.subr.mxu0 0.0
  %308 = vmatpush2.msra.mxu0 0.0
  %309 = vmatprep.subr.mxu0 0.0
  %310 = vmatpush2.msra.mxu0 0.0
  %311 = vmatprep.subr.mxu0 0.0
  %312 = vmatpush2.msra.mxu0 0.0
  %313 = vmatprep.subr.mxu0 0.0
  %314 = vmatpush2.msra.mxu0 0.0
  %315 = vmatprep.mubr.f32.mxu0 0.0
  %316 = vmatmul.mubr.f32.gmra.mxu0 %v249
  %v317 = vpop.f32.mrf.mxu0
  %v318 = vadd.f32 %v84, %v317
  %v319 = vpop.f32.mrf.mxu0
  %320 = vdwg.mxu0
  %s321 = scalar_lea.vmem [#allocation2], 4
  %322 = vst.msk [vmem:[%s321] sm:$0x3] %vm167, %v318
  %s323 = scalar_lea.vmem %s0, 6
  %v324 = vld [vmem:[%s323] sm:$0x3]
  %v326 = vsel %vm93, %v324, 0
  %328 = vmatprep.subr.mxu0 0.0
  %329 = vmatpush1.msra.mxu0 0.0
  %330 = vmatprep.subr.mxu0 0.0
  %331 = vmatpush1.msra.mxu0 0.0
  %332 = vmatprep.subr.mxu0 0.0
  %333 = vmatpush1.msra.mxu0 0.0
  %334 = vmatprep.subr.mxu0 0.0
  %335 = vmatpush1.msra.mxu0 0.0
  %336 = vmatprep.subr.mxu0 0.0
  %337 = vmatpush1.msra.mxu0 0.0
  %338 = vmatprep.subr.mxu0 0.0
  %339 = vmatpush1.msra.mxu0 0.0
  %340 = vmatprep.subr.mxu0 0.0
  %341 = vmatpush1.msra.mxu0 0.0
  %342 = vmatprep.subr.mxu0 0.0
  %343 = vmatpush1.msra.mxu0 0.0
  %344 = vmatprep.subr.mxu0 0.0
  %345 = vmatpush1.msra.mxu0 0.0
  %346 = vmatprep.subr.mxu0 0.0
  %347 = vmatpush1.msra.mxu0 0.0
  %348 = vmatprep.subr.mxu0 0.0
  %349 = vmatpush1.msra.mxu0 0.0
  %350 = vmatprep.subr.mxu0 0.0
  %351 = vmatpush1.msra.mxu0 0.0
  %352 = vmatprep.subr.mxu0 0.0
  %353 = vmatpush1.msra.mxu0 %v41
  %354 = vmatprep.subr.mxu0 0.0
  %355 = vmatpush1.msra.mxu0 %v40
  %356 = vmatprep.subr.mxu0 0.0
  %357 = vmatpush1.msra.mxu0 %v39
  %358 = vmatprep.subr.mxu0 0.0
  %359 = vmatpush1.msra.mxu0 %v38
  %360 = vmatprep.subr.mxu0 0.0
  %361 = vmatpush2.msra.mxu0 0.0
  %362 = vmatprep.subr.mxu0 0.0
  %363 = vmatpush2.msra.mxu0 0.0
  %364 = vmatprep.subr.mxu0 0.0
  %365 = vmatpush2.msra.mxu0 0.0
  %366 = vmatprep.subr.mxu0 0.0
  %367 = vmatpush2.msra.mxu0 0.0
  %368 = vmatprep.subr.mxu0 0.0
  %369 = vmatpush2.msra.mxu0 0.0
  %370 = vmatprep.subr.mxu0 0.0
  %371 = vmatpush2.msra.mxu0 0.0
  %372 = vmatprep.subr.mxu0 0.0
  %373 = vmatpush2.msra.mxu0 0.0
  %374 = vmatprep.subr.mxu0 0.0
  %375 = vmatpush2.msra.mxu0 0.0
  %376 = vmatprep.subr.mxu0 0.0
  %377 = vmatpush2.msra.mxu0 0.0
  %378 = vmatprep.subr.mxu0 0.0
  %379 = vmatpush2.msra.mxu0 0.0
  %380 = vmatprep.subr.mxu0 0.0
  %381 = vmatpush2.msra.mxu0 0.0
  %382 = vmatprep.subr.mxu0 0.0
  %383 = vmatpush2.msra.mxu0 0.0
  %384 = vmatprep.subr.mxu0 0.0
  %385 = vmatpush2.msra.mxu0 0.0
  %386 = vmatprep.subr.mxu0 0.0
  %387 = vmatpush2.msra.mxu0 0.0
  %388 = vmatprep.subr.mxu0 0.0
  %389 = vmatpush2.msra.mxu0 0.0
  %390 = vmatprep.subr.mxu0 0.0
  %391 = vmatpush2.msra.mxu0 0.0
  %392 = vmatprep.mubr.f32.mxu0 0.0
  %393 = vmatmul.mubr.f32.gmra.mxu0 %v326
  %v394 = vpop.f32.mrf.mxu0
  %v395 = vadd.f32 %v84, %v394
  %v396 = vpop.f32.mrf.mxu0
  %397 = vdwg.mxu0
  %s398 = scalar_lea.vmem [#allocation2], 6
  %399 = vst.msk [vmem:[%s398] sm:$0x3] %vm167, %v395
  %s400 = scalar_lea.vmem %s0, 8
  %v401 = vld [vmem:[%s400] sm:$0x3]
  %v403 = vsel %vm93, %v401, 0
  %405 = vmatprep.subr.mxu0 0.0
  %406 = vmatpush1.msra.mxu0 0.0
  %407 = vmatprep.subr.mxu0 0.0
  %408 = vmatpush1.msra.mxu0 0.0
  %409 = vmatprep.subr.mxu0 0.0
  %410 = vmatpush1.msra.mxu0 0.0
  %411 = vmatprep.subr.mxu0 0.0
  %412 = vmatpush1.msra.mxu0 0.0
  %413 = vmatprep.subr.mxu0 0.0
  %414 = vmatpush1.msra.mxu0 0.0
  %415 = vmatprep.subr.mxu0 0.0
  %416 = vmatpush1.msra.mxu0 0.0
  %417 = vmatprep.subr.mxu0 0.0
  %418 = vmatpush1.msra.mxu0 0.0
  %419 = vmatprep.subr.mxu0 0.0
  %420 = vmatpush1.msra.mxu0 0.0
  %421 = vmatprep.subr.mxu0 0.0
  %422 = vmatpush1.msra.mxu0 0.0
  %423 = vmatprep.subr.mxu0 0.0
  %424 = vmatpush1.msra.mxu0 0.0
  %425 = vmatprep.subr.mxu0 0.0
  %426 = vmatpush1.msra.mxu0 0.0
  %427 = vmatprep.subr.mxu0 0.0
  %428 = vmatpush1.msra.mxu0 0.0
  %429 = vmatprep.subr.mxu0 0.0
  %430 = vmatpush1.msra.mxu0 %v41
  %431 = vmatprep.subr.mxu0 0.0
  %432 = vmatpush1.msra.mxu0 %v40
  %433 = vmatprep.subr.mxu0 0.0
  %434 = vmatpush1.msra.mxu0 %v39
  %435 = vmatprep.subr.mxu0 0.0
  %436 = vmatpush1.msra.mxu0 %v38
  %437 = vmatprep.subr.mxu0 0.0
  %438 = vmatpush2.msra.mxu0 0.0
  %439 = vmatprep.subr.mxu0 0.0
  %440 = vmatpush2.msra.mxu0 0.0
  %441 = vmatprep.subr.mxu0 0.0
  %442 = vmatpush2.msra.mxu0 0.0
  %443 = vmatprep.subr.mxu0 0.0
  %444 = vmatpush2.msra.mxu0 0.0
  %445 = vmatprep.subr.mxu0 0.0
  %446 = vmatpush2.msra.mxu0 0.0
  %447 = vmatprep.subr.mxu0 0.0
  %448 = vmatpush2.msra.mxu0 0.0
  %449 = vmatprep.subr.mxu0 0.0
  %450 = vmatpush2.msra.mxu0 0.0
  %451 = vmatprep.subr.mxu0 0.0
  %452 = vmatpush2.msra.mxu0 0.0
  %453 = vmatprep.subr.mxu0 0.0
  %454 = vmatpush2.msra.mxu0 0.0
  %455 = vmatprep.subr.mxu0 0.0
  %456 = vmatpush2.msra.mxu0 0.0
  %457 = vmatprep.subr.mxu0 0.0
  %458 = vmatpush2.msra.mxu0 0.0
  %459 = vmatprep.subr.mxu0 0.0
  %460 = vmatpush2.msra.mxu0 0.0
  %461 = vmatprep.subr.mxu0 0.0
  %462 = vmatpush2.msra.mxu0 0.0
  %463 = vmatprep.subr.mxu0 0.0
  %464 = vmatpush2.msra.mxu0 0.0
  %465 = vmatprep.subr.mxu0 0.0
  %466 = vmatpush2.msra.mxu0 0.0
  %467 = vmatprep.subr.mxu0 0.0
  %468 = vmatpush2.msra.mxu0 0.0
  %469 = vmatprep.mubr.f32.mxu0 0.0
  %470 = vmatmul.mubr.f32.gmra.mxu0 %v403
  %v471 = vpop.f32.mrf.mxu0
  %v472 = vadd.f32 %v84, %v471
  %v473 = vpop.f32.mrf.mxu0
  %474 = vdwg.mxu0
  %s475 = scalar_lea.vmem [#allocation2], 8
  %476 = vst.msk [vmem:[%s475] sm:$0x3] %vm167, %v472
  %s477 = scalar_lea.vmem %s0, 10
  %v478 = vld [vmem:[%s477] sm:$0x3]
  %v480 = vsel %vm93, %v478, 0
  %482 = vmatprep.subr.mxu0 0.0
  %483 = vmatpush1.msra.mxu0 0.0
  %484 = vmatprep.subr.mxu0 0.0
  %485 = vmatpush1.msra.mxu0 0.0
  %486 = vmatprep.subr.mxu0 0.0
  %487 = vmatpush1.msra.mxu0 0.0
  %488 = vmatprep.subr.mxu0 0.0
  %489 = vmatpush1.msra.mxu0 0.0
  %490 = vmatprep.subr.mxu0 0.0
  %491 = vmatpush1.msra.mxu0 0.0
  %492 = vmatprep.subr.mxu0 0.0
  %493 = vmatpush1.msra.mxu0 0.0
  %494 = vmatprep.subr.mxu0 0.0
  %495 = vmatpush1.msra.mxu0 0.0
  %496 = vmatprep.subr.mxu0 0.0
  %497 = vmatpush1.msra.mxu0 0.0
  %498 = vmatprep.subr.mxu0 0.0
  %499 = vmatpush1.msra.mxu0 0.0
  %500 = vmatprep.subr.mxu0 0.0
  %501 = vmatpush1.msra.mxu0 0.0
  %502 = vmatprep.subr.mxu0 0.0
  %503 = vmatpush1.msra.mxu0 0.0
  %504 = vmatprep.subr.mxu0 0.0
  %505 = vmatpush1.msra.mxu0 0.0
  %506 = vmatprep.subr.mxu0 0.0
  %507 = vmatpush1.msra.mxu0 %v41
  %508 = vmatprep.subr.mxu0 0.0
  %509 = vmatpush1.msra.mxu0 %v40
  %510 = vmatprep.subr.mxu0 0.0
  %511 = vmatpush1.msra.mxu0 %v39
  %512 = vmatprep.subr.mxu0 0.0
  %513 = vmatpush1.msra.mxu0 %v38
  %514 = vmatprep.subr.mxu0 0.0
  %515 = vmatpush2.msra.mxu0 0.0
  %516 = vmatprep.subr.mxu0 0.0
  %517 = vmatpush2.msra.mxu0 0.0
  %518 = vmatprep.subr.mxu0 0.0
  %519 = vmatpush2.msra.mxu0 0.0
  %520 = vmatprep.subr.mxu0 0.0
  %521 = vmatpush2.msra.mxu0 0.0
  %522 = vmatprep.subr.mxu0 0.0
  %523 = vmatpush2.msra.mxu0 0.0
  %524 = vmatprep.subr.mxu0 0.0
  %525 = vmatpush2.msra.mxu0 0.0
  %526 = vmatprep.subr.mxu0 0.0
  %527 = vmatpush2.msra.mxu0 0.0
  %528 = vmatprep.subr.mxu0 0.0
  %529 = vmatpush2.msra.mxu0 0.0
  %530 = vmatprep.subr.mxu0 0.0
  %531 = vmatpush2.msra.mxu0 0.0
  %532 = vmatprep.subr.mxu0 0.0
  %533 = vmatpush2.msra.mxu0 0.0
  %534 = vmatprep.subr.mxu0 0.0
  %535 = vmatpush2.msra.mxu0 0.0
  %536 = vmatprep.subr.mxu0 0.0
  %537 = vmatpush2.msra.mxu0 0.0
  %538 = vmatprep.subr.mxu0 0.0
  %539 = vmatpush2.msra.mxu0 0.0
  %540 = vmatprep.subr.mxu0 0.0
  %541 = vmatpush2.msra.mxu0 0.0
  %542 = vmatprep.subr.mxu0 0.0
  %543 = vmatpush2.msra.mxu0 0.0
  %544 = vmatprep.subr.mxu0 0.0
  %545 = vmatpush2.msra.mxu0 0.0
  %546 = vmatprep.mubr.f32.mxu0 0.0
  %547 = vmatmul.mubr.f32.gmra.mxu0 %v480
  %v548 = vpop.f32.mrf.mxu0
  %v549 = vadd.f32 %v84, %v548
  %v550 = vpop.f32.mrf.mxu0
  %551 = vdwg.mxu0
  %s552 = scalar_lea.vmem [#allocation2], 10
  %553 = vst.msk [vmem:[%s552] sm:$0x3] %vm167, %v549
  %s554 = scalar_lea.vmem %s0, 12
  %v555 = vld [vmem:[%s554] sm:$0x3]
  %v557 = vsel %vm93, %v555, 0
  %559 = vmatprep.subr.mxu0 0.0
  %560 = vmatpush1.msra.mxu0 0.0
  %561 = vmatprep.subr.mxu0 0.0
  %562 = vmatpush1.msra.mxu0 0.0
  %563 = vmatprep.subr.mxu0 0.0
  %564 = vmatpush1.msra.mxu0 0.0
  %565 = vmatprep.subr.mxu0 0.0
  %566 = vmatpush1.msra.mxu0 0.0
  %567 = vmatprep.subr.mxu0 0.0
  %568 = vmatpush1.msra.mxu0 0.0
  %569 = vmatprep.subr.mxu0 0.0
  %570 = vmatpush1.msra.mxu0 0.0
  %571 = vmatprep.subr.mxu0 0.0
  %572 = vmatpush1.msra.mxu0 0.0
  %573 = vmatprep.subr.mxu0 0.0
  %574 = vmatpush1.msra.mxu0 0.0
  %575 = vmatprep.subr.mxu0 0.0
  %576 = vmatpush1.msra.mxu0 0.0
  %577 = vmatprep.subr.mxu0 0.0
  %578 = vmatpush1.msra.mxu0 0.0
  %579 = vmatprep.subr.mxu0 0.0
  %580 = vmatpush1.msra.mxu0 0.0
  %581 = vmatprep.subr.mxu0 0.0
  %582 = vmatpush1.msra.mxu0 0.0
  %583 = vmatprep.subr.mxu0 0.0
  %584 = vmatpush1.msra.mxu0 %v41
  %585 = vmatprep.subr.mxu0 0.0
  %586 = vmatpush1.msra.mxu0 %v40
  %587 = vmatprep.subr.mxu0 0.0
  %588 = vmatpush1.msra.mxu0 %v39
  %589 = vmatprep.subr.mxu0 0.0
  %590 = vmatpush1.msra.mxu0 %v38
  %591 = vmatprep.subr.mxu0 0.0
  %592 = vmatpush2.msra.mxu0 0.0
  %593 = vmatprep.subr.mxu0 0.0
  %594 = vmatpush2.msra.mxu0 0.0
  %595 = vmatprep.subr.mxu0 0.0
  %596 = vmatpush2.msra.mxu0 0.0
  %597 = vmatprep.subr.mxu0 0.0
  %598 = vmatpush2.msra.mxu0 0.0
  %599 = vmatprep.subr.mxu0 0.0
  %600 = vmatpush2.msra.mxu0 0.0
  %601 = vmatprep.subr.mxu0 0.0
  %602 = vmatpush2.msra.mxu0 0.0
  %603 = vmatprep.subr.mxu0 0.0
  %604 = vmatpush2.msra.mxu0 0.0
  %605 = vmatprep.subr.mxu0 0.0
  %606 = vmatpush2.msra.mxu0 0.0
  %607 = vmatprep.subr.mxu0 0.0
  %608 = vmatpush2.msra.mxu0 0.0
  %609 = vmatprep.subr.mxu0 0.0
  %610 = vmatpush2.msra.mxu0 0.0
  %611 = vmatprep.subr.mxu0 0.0
  %612 = vmatpush2.msra.mxu0 0.0
  %613 = vmatprep.subr.mxu0 0.0
  %614 = vmatpush2.msra.mxu0 0.0
  %615 = vmatprep.subr.mxu0 0.0
  %616 = vmatpush2.msra.mxu0 0.0
  %617 = vmatprep.subr.mxu0 0.0
  %618 = vmatpush2.msra.mxu0 0.0
  %619 = vmatprep.subr.mxu0 0.0
  %620 = vmatpush2.msra.mxu0 0.0
  %621 = vmatprep.subr.mxu0 0.0
  %622 = vmatpush2.msra.mxu0 0.0
  %623 = vmatprep.mubr.f32.mxu0 0.0
  %624 = vmatmul.mubr.f32.gmra.mxu0 %v557
  %v625 = vpop.f32.mrf.mxu0
  %v626 = vadd.f32 %v84, %v625
  %v627 = vpop.f32.mrf.mxu0
  %628 = vdwg.mxu0
  %s629 = scalar_lea.vmem [#allocation2], 12
  %630 = vst.msk [vmem:[%s629] sm:$0x3] %vm167, %v626
  %s631 = scalar_lea.vmem %s0, 14
  %v632 = vld [vmem:[%s631] sm:$0x3]
  %v634 = vsel %vm93, %v632, 0
  %636 = vmatprep.subr.mxu0 0.0
  %637 = vmatpush1.msra.mxu0 0.0
  %638 = vmatprep.subr.mxu0 0.0
  %639 = vmatpush1.msra.mxu0 0.0
  %640 = vmatprep.subr.mxu0 0.0
  %641 = vmatpush1.msra.mxu0 0.0
  %642 = vmatprep.subr.mxu0 0.0
  %643 = vmatpush1.msra.mxu0 0.0
  %644 = vmatprep.subr.mxu0 0.0
  %645 = vmatpush1.msra.mxu0 0.0
  %646 = vmatprep.subr.mxu0 0.0
  %647 = vmatpush1.msra.mxu0 0.0
  %648 = vmatprep.subr.mxu0 0.0
  %649 = vmatpush1.msra.mxu0 0.0
  %650 = vmatprep.subr.mxu0 0.0
  %651 = vmatpush1.msra.mxu0 0.0
  %652 = vmatprep.subr.mxu0 0.0
  %653 = vmatpush1.msra.mxu0 0.0
  %654 = vmatprep.subr.mxu0 0.0
  %655 = vmatpush1.msra.mxu0 0.0
  %656 = vmatprep.subr.mxu0 0.0
  %657 = vmatpush1.msra.mxu0 0.0
  %658 = vmatprep.subr.mxu0 0.0
  %659 = vmatpush1.msra.mxu0 0.0
  %660 = vmatprep.subr.mxu0 0.0
  %661 = vmatpush1.msra.mxu0 %v41
  %662 = vmatprep.subr.mxu0 0.0
  %663 = vmatpush1.msra.mxu0 %v40
  %664 = vmatprep.subr.mxu0 0.0
  %665 = vmatpush1.msra.mxu0 %v39
  %666 = vmatprep.subr.mxu0 0.0
  %667 = vmatpush1.msra.mxu0 %v38
  %668 = vmatprep.subr.mxu0 0.0
  %669 = vmatpush2.msra.mxu0 0.0
  %670 = vmatprep.subr.mxu0 0.0
  %671 = vmatpush2.msra.mxu0 0.0
  %672 = vmatprep.subr.mxu0 0.0
  %673 = vmatpush2.msra.mxu0 0.0
  %674 = vmatprep.subr.mxu0 0.0
  %675 = vmatpush2.msra.mxu0 0.0
  %676 = vmatprep.subr.mxu0 0.0
  %677 = vmatpush2.msra.mxu0 0.0
  %678 = vmatprep.subr.mxu0 0.0
  %679 = vmatpush2.msra.mxu0 0.0
  %680 = vmatprep.subr.mxu0 0.0
  %681 = vmatpush2.msra.mxu0 0.0
  %682 = vmatprep.subr.mxu0 0.0
  %683 = vmatpush2.msra.mxu0 0.0
  %684 = vmatprep.subr.mxu0 0.0
  %685 = vmatpush2.msra.mxu0 0.0
  %686 = vmatprep.subr.mxu0 0.0
  %687 = vmatpush2.msra.mxu0 0.0
  %688 = vmatprep.subr.mxu0 0.0
  %689 = vmatpush2.msra.mxu0 0.0
  %690 = vmatprep.subr.mxu0 0.0
  %691 = vmatpush2.msra.mxu0 0.0
  %692 = vmatprep.subr.mxu0 0.0
  %693 = vmatpush2.msra.mxu0 0.0
  %694 = vmatprep.subr.mxu0 0.0
  %695 = vmatpush2.msra.mxu0 0.0
  %696 = vmatprep.subr.mxu0 0.0
  %697 = vmatpush2.msra.mxu0 0.0
  %698 = vmatprep.subr.mxu0 0.0
  %699 = vmatpush2.msra.mxu0 0.0
  %700 = vmatprep.mubr.f32.mxu0 0.0
  %701 = vmatmul.mubr.f32.gmra.mxu0 %v634
  %v702 = vpop.f32.mrf.mxu0
  %v703 = vadd.f32 %v84, %v702
  %v704 = vpop.f32.mrf.mxu0
  %705 = vdwg.mxu0
  %s706 = scalar_lea.vmem [#allocation2], 14
  %707 = vst.msk [vmem:[%s706] sm:$0x3] %vm167, %v703
  %v708 = vld [vmem:[#allocation2] sm:$0x3]
  %v710 = vsel %vm93, 0.0, 0
  %712 = vmatprep.subr.mxu0 0.0
  %713 = vmatpush1.msra.mxu0 0.0
  %714 = vmatprep.subr.mxu0 0.0
  %715 = vmatpush1.msra.mxu0 0.0
  %716 = vmatprep.subr.mxu0 0.0
  %717 = vmatpush1.msra.mxu0 0.0
  %718 = vmatprep.subr.mxu0 0.0
  %719 = vmatpush1.msra.mxu0 0.0
  %720 = vmatprep.subr.mxu0 0.0
  %721 = vmatpush1.msra.mxu0 0.0
  %722 = vmatprep.subr.mxu0 0.0
  %723 = vmatpush1.msra.mxu0 0.0
  %724 = vmatprep.subr.mxu0 0.0
  %725 = vmatpush1.msra.mxu0 0.0
  %726 = vmatprep.subr.mxu0 0.0
  %727 = vmatpush1.msra.mxu0 0.0
  %728 = vmatprep.subr.mxu0 0.0
  %729 = vmatpush1.msra.mxu0 0.0
  %730 = vmatprep.subr.mxu0 0.0
  %731 = vmatpush1.msra.mxu0 0.0
  %732 = vmatprep.subr.mxu0 0.0
  %733 = vmatpush1.msra.mxu0 0.0
  %734 = vmatprep.subr.mxu0 0.0
  %735 = vmatpush1.msra.mxu0 0.0
  %736 = vmatprep.subr.mxu0 0.0
  %737 = vmatpush1.msra.mxu0 %v45
  %738 = vmatprep.subr.mxu0 0.0
  %739 = vmatpush1.msra.mxu0 %v44
  %740 = vmatprep.subr.mxu0 0.0
  %741 = vmatpush1.msra.mxu0 %v43
  %742 = vmatprep.subr.mxu0 0.0
  %743 = vmatpush1.msra.mxu0 %v42
  %744 = vmatprep.subr.mxu0 0.0
  %745 = vmatpush2.msra.mxu0 0.0
  %746 = vmatprep.subr.mxu0 0.0
  %747 = vmatpush2.msra.mxu0 0.0
  %748 = vmatprep.subr.mxu0 0.0
  %749 = vmatpush2.msra.mxu0 0.0
  %750 = vmatprep.subr.mxu0 0.0
  %751 = vmatpush2.msra.mxu0 0.0
  %752 = vmatprep.subr.mxu0 0.0
  %753 = vmatpush2.msra.mxu0 0.0
  %754 = vmatprep.subr.mxu0 0.0
  %755 = vmatpush2.msra.mxu0 0.0
  %756 = vmatprep.subr.mxu0 0.0
  %757 = vmatpush2.msra.mxu0 0.0
  %758 = vmatprep.subr.mxu0 0.0
  %759 = vmatpush2.msra.mxu0 0.0
  %760 = vmatprep.subr.mxu0 0.0
  %761 = vmatpush2.msra.mxu0 0.0
  %762 = vmatprep.subr.mxu0 0.0
  %763 = vmatpush2.msra.mxu0 0.0
  %764 = vmatprep.subr.mxu0 0.0
  %765 = vmatpush2.msra.mxu0 0.0
  %766 = vmatprep.subr.mxu0 0.0
  %767 = vmatpush2.msra.mxu0 0.0
  %768 = vmatprep.subr.mxu0 0.0
  %769 = vmatpush2.msra.mxu0 0.0
  %770 = vmatprep.subr.mxu0 0.0
  %771 = vmatpush2.msra.mxu0 0.0
  %772 = vmatprep.subr.mxu0 0.0
  %773 = vmatpush2.msra.mxu0 0.0
  %774 = vmatprep.subr.mxu0 0.0
  %775 = vmatpush2.msra.mxu0 0.0
  %776 = vmatprep.mubr.f32.mxu0 0.0
  %777 = vmatmul.mubr.f32.gmra.mxu0 %v710
  %v778 = vpop.f32.mrf.mxu0
  %v779 = vadd.f32 0.0, %v778
  %v780 = vpop.f32.mrf.mxu0
  %781 = vdwg.mxu0
  %v782 = vadd.f32 %v708, %v779
  %v783 = vtanh.pop %v782
  %v784 = vld [vmem:[%s244] sm:$0x3]
  %v786 = vsel %vm93, %v783, 0
  %788 = vmatprep.subr.mxu0 0.0
  %789 = vmatpush1.msra.mxu0 0.0
  %790 = vmatprep.subr.mxu0 0.0
  %791 = vmatpush1.msra.mxu0 0.0
  %792 = vmatprep.subr.mxu0 0.0
  %793 = vmatpush1.msra.mxu0 0.0
  %794 = vmatprep.subr.mxu0 0.0
  %795 = vmatpush1.msra.mxu0 0.0
  %796 = vmatprep.subr.mxu0 0.0
  %797 = vmatpush1.msra.mxu0 0.0
  %798 = vmatprep.subr.mxu0 0.0
  %799 = vmatpush1.msra.mxu0 0.0
  %800 = vmatprep.subr.mxu0 0.0
  %801 = vmatpush1.msra.mxu0 0.0
  %802 = vmatprep.subr.mxu0 0.0
  %803 = vmatpush1.msra.mxu0 0.0
  %804 = vmatprep.subr.mxu0 0.0
  %805 = vmatpush1.msra.mxu0 0.0
  %806 = vmatprep.subr.mxu0 0.0
  %807 = vmatpush1.msra.mxu0 0.0
  %808 = vmatprep.subr.mxu0 0.0
  %809 = vmatpush1.msra.mxu0 0.0
  %810 = vmatprep.subr.mxu0 0.0
  %811 = vmatpush1.msra.mxu0 0.0
  %812 = vmatprep.subr.mxu0 0.0
  %813 = vmatpush1.msra.mxu0 %v45
  %814 = vmatprep.subr.mxu0 0.0
  %815 = vmatpush1.msra.mxu0 %v44
  %816 = vmatprep.subr.mxu0 0.0
  %817 = vmatpush1.msra.mxu0 %v43
  %818 = vmatprep.subr.mxu0 0.0
  %819 = vmatpush1.msra.mxu0 %v42
  %820 = vmatprep.subr.mxu0 0.0
  %821 = vmatpush2.msra.mxu0 0.0
  %822 = vmatprep.subr.mxu0 0.0
  %823 = vmatpush2.msra.mxu0 0.0
  %824 = vmatprep.subr.mxu0 0.0
  %825 = vmatpush2.msra.mxu0 0.0
  %826 = vmatprep.subr.mxu0 0.0
  %827 = vmatpush2.msra.mxu0 0.0
  %828 = vmatprep.subr.mxu0 0.0
  %829 = vmatpush2.msra.mxu0 0.0
  %830 = vmatprep.subr.mxu0 0.0
  %831 = vmatpush2.msra.mxu0 0.0
  %832 = vmatprep.subr.mxu0 0.0
  %833 = vmatpush2.msra.mxu0 0.0
  %834 = vmatprep.subr.mxu0 0.0
  %835 = vmatpush2.msra.mxu0 0.0
  %836 = vmatprep.subr.mxu0 0.0
  %837 = vmatpush2.msra.mxu0 0.0
  %838 = vmatprep.subr.mxu0 0.0
  %839 = vmatpush2.msra.mxu0 0.0
  %840 = vmatprep.subr.mxu0 0.0
  %841 = vmatpush2.msra.mxu0 0.0
  %842 = vmatprep.subr.mxu0 0.0
  %843 = vmatpush2.msra.mxu0 0.0
  %844 = vmatprep.subr.mxu0 0.0
  %845 = vmatpush2.msra.mxu0 0.0
  %846 = vmatprep.subr.mxu0 0.0
  %847 = vmatpush2.msra.mxu0 0.0
  %848 = vmatprep.subr.mxu0 0.0
  %849 = vmatpush2.msra.mxu0 0.0
  %850 = vmatprep.subr.mxu0 0.0
  %851 = vmatpush2.msra.mxu0 0.0
  %852 = vmatprep.mubr.f32.mxu0 0.0
  %853 = vmatmul.mubr.f32.gmra.mxu0 %v786
  %v854 = vpop.f32.mrf.mxu0
  %v855 = vadd.f32 0.0, %v854
  %v856 = vpop.f32.mrf.mxu0
  %857 = vdwg.mxu0
  %v858 = vadd.f32 %v784, %v855
  %v859 = vtanh.pop %v858
  %v860 = vld [vmem:[%s321] sm:$0x3]
  %v862 = vsel %vm93, %v859, 0
  %864 = vmatprep.subr.mxu0 0.0
  %865 = vmatpush1.msra.mxu0 0.0
  %866 = vmatprep.subr.mxu0 0.0
  %867 = vmatpush1.msra.mxu0 0.0
  %868 = vmatprep.subr.mxu0 0.0
  %869 = vmatpush1.msra.mxu0 0.0
  %870 = vmatprep.subr.mxu0 0.0
  %871 = vmatpush1.msra.mxu0 0.0
  %872 = vmatprep.subr.mxu0 0.0
  %873 = vmatpush1.msra.mxu0 0.0
  %874 = vmatprep.subr.mxu0 0.0
  %875 = vmatpush1.msra.mxu0 0.0
  %876 = vmatprep.subr.mxu0 0.0
  %877 = vmatpush1.msra.mxu0 0.0
  %878 = vmatprep.subr.mxu0 0.0
  %879 = vmatpush1.msra.mxu0 0.0
  %880 = vmatprep.subr.mxu0 0.0
  %881 = vmatpush1.msra.mxu0 0.0
  %882 = vmatprep.subr.mxu0 0.0
  %883 = vmatpush1.msra.mxu0 0.0
  %884 = vmatprep.subr.mxu0 0.0
  %885 = vmatpush1.msra.mxu0 0.0
  %886 = vmatprep.subr.mxu0 0.0
  %887 = vmatpush1.msra.mxu0 0.0
  %888 = vmatprep.subr.mxu0 0.0
  %889 = vmatpush1.msra.mxu0 %v45
  %890 = vmatprep.subr.mxu0 0.0
  %891 = vmatpush1.msra.mxu0 %v44
  %892 = vmatprep.subr.mxu0 0.0
  %893 = vmatpush1.msra.mxu0 %v43
  %894 = vmatprep.subr.mxu0 0.0
  %895 = vmatpush1.msra.mxu0 %v42
  %896 = vmatprep.subr.mxu0 0.0
  %897 = vmatpush2.msra.mxu0 0.0
  %898 = vmatprep.subr.mxu0 0.0
  %899 = vmatpush2.msra.mxu0 0.0
  %900 = vmatprep.subr.mxu0 0.0
  %901 = vmatpush2.msra.mxu0 0.0
  %902 = vmatprep.subr.mxu0 0.0
  %903 = vmatpush2.msra.mxu0 0.0
  %904 = vmatprep.subr.mxu0 0.0
  %905 = vmatpush2.msra.mxu0 0.0
  %906 = vmatprep.subr.mxu0 0.0
  %907 = vmatpush2.msra.mxu0 0.0
  %908 = vmatprep.subr.mxu0 0.0
  %909 = vmatpush2.msra.mxu0 0.0
  %910 = vmatprep.subr.mxu0 0.0
  %911 = vmatpush2.msra.mxu0 0.0
  %912 = vmatprep.subr.mxu0 0.0
  %913 = vmatpush2.msra.mxu0 0.0
  %914 = vmatprep.subr.mxu0 0.0
  %915 = vmatpush2.msra.mxu0 0.0
  %916 = vmatprep.subr.mxu0 0.0
  %917 = vmatpush2.msra.mxu0 0.0
  %918 = vmatprep.subr.mxu0 0.0
  %919 = vmatpush2.msra.mxu0 0.0
  %920 = vmatprep.subr.mxu0 0.0
  %921 = vmatpush2.msra.mxu0 0.0
  %922 = vmatprep.subr.mxu0 0.0
  %923 = vmatpush2.msra.mxu0 0.0
  %924 = vmatprep.subr.mxu0 0.0
  %925 = vmatpush2.msra.mxu0 0.0
  %926 = vmatprep.subr.mxu0 0.0
  %927 = vmatpush2.msra.mxu0 0.0
  %928 = vmatprep.mubr.f32.mxu0 0.0
  %929 = vmatmul.mubr.f32.gmra.mxu0 %v862
  %v930 = vpop.f32.mrf.mxu0
  %v931 = vadd.f32 0.0, %v930
  %v932 = vpop.f32.mrf.mxu0
  %933 = vdwg.mxu0
  %v934 = vadd.f32 %v860, %v931
  %v935 = vtanh.pop %v934
  %v936 = vld [vmem:[%s398] sm:$0x3]
  %v938 = vsel %vm93, %v935, 0
  %940 = vmatprep.subr.mxu0 0.0
  %941 = vmatpush1.msra.mxu0 0.0
  %942 = vmatprep.subr.mxu0 0.0
  %943 = vmatpush1.msra.mxu0 0.0
  %944 = vmatprep.subr.mxu0 0.0
  %945 = vmatpush1.msra.mxu0 0.0
  %946 = vmatprep.subr.mxu0 0.0
  %947 = vmatpush1.msra.mxu0 0.0
  %948 = vmatprep.subr.mxu0 0.0
  %949 = vmatpush1.msra.mxu0 0.0
  %950 = vmatprep.subr.mxu0 0.0
  %951 = vmatpush1.msra.mxu0 0.0
  %952 = vmatprep.subr.mxu0 0.0
  %953 = vmatpush1.msra.mxu0 0.0
  %954 = vmatprep.subr.mxu0 0.0
  %955 = vmatpush1.msra.mxu0 0.0
  %956 = vmatprep.subr.mxu0 0.0
  %957 = vmatpush1.msra.mxu0 0.0
  %958 = vmatprep.subr.mxu0 0.0
  %959 = vmatpush1.msra.mxu0 0.0
  %960 = vmatprep.subr.mxu0 0.0
  %961 = vmatpush1.msra.mxu0 0.0
  %962 = vmatprep.subr.mxu0 0.0
  %963 = vmatpush1.msra.mxu0 0.0
  %964 = vmatprep.subr.mxu0 0.0
  %965 = vmatpush1.msra.mxu0 %v45
  %966 = vmatprep.subr.mxu0 0.0
  %967 = vmatpush1.msra.mxu0 %v44
  %968 = vmatprep.subr.mxu0 0.0
  %969 = vmatpush1.msra.mxu0 %v43
  %970 = vmatprep.subr.mxu0 0.0
  %971 = vmatpush1.msra.mxu0 %v42
  %972 = vmatprep.subr.mxu0 0.0
  %973 = vmatpush2.msra.mxu0 0.0
  %974 = vmatprep.subr.mxu0 0.0
  %975 = vmatpush2.msra.mxu0 0.0
  %976 = vmatprep.subr.mxu0 0.0
  %977 = vmatpush2.msra.mxu0 0.0
  %978 = vmatprep.subr.mxu0 0.0
  %979 = vmatpush2.msra.mxu0 0.0
  %980 = vmatprep.subr.mxu0 0.0
  %981 = vmatpush2.msra.mxu0 0.0
  %982 = vmatprep.subr.mxu0 0.0
  %983 = vmatpush2.msra.mxu0 0.0
  %984 = vmatprep.subr.mxu0 0.0
  %985 = vmatpush2.msra.mxu0 0.0
  %986 = vmatprep.subr.mxu0 0.0
  %987 = vmatpush2.msra.mxu0 0.0
  %988 = vmatprep.subr.mxu0 0.0
  %989 = vmatpush2.msra.mxu0 0.0
  %990 = vmatprep.subr.mxu0 0.0
  %991 = vmatpush2.msra.mxu0 0.0
  %992 = vmatprep.subr.mxu0 0.0
  %993 = vmatpush2.msra.mxu0 0.0
  %994 = vmatprep.subr.mxu0 0.0
  %995 = vmatpush2.msra.mxu0 0.0
  %996 = vmatprep.subr.mxu0 0.0
  %997 = vmatpush2.msra.mxu0 0.0
  %998 = vmatprep.subr.mxu0 0.0
  %999 = vmatpush2.msra.mxu0 0.0
  %1000 = vmatprep.subr.mxu0 0.0
  %1001 = vmatpush2.msra.mxu0 0.0
  %1002 = vmatprep.subr.mxu0 0.0
  %1003 = vmatpush2.msra.mxu0 0.0
  %1004 = vmatprep.mubr.f32.mxu0 0.0
  %1005 = vmatmul.mubr.f32.gmra.mxu0 %v938
  %v1006 = vpop.f32.mrf.mxu0
  %v1007 = vadd.f32 0.0, %v1006
  %v1008 = vpop.f32.mrf.mxu0
  %1009 = vdwg.mxu0
  %v1010 = vadd.f32 %v936, %v1007
  %v1011 = vtanh.pop %v1010
  %v1012 = vld [vmem:[%s475] sm:$0x3]
  %v1014 = vsel %vm93, %v1011, 0
  %1016 = vmatprep.subr.mxu0 0.0
  %1017 = vmatpush1.msra.mxu0 0.0
  %1018 = vmatprep.subr.mxu0 0.0
  %1019 = vmatpush1.msra.mxu0 0.0
  %1020 = vmatprep.subr.mxu0 0.0
  %1021 = vmatpush1.msra.mxu0 0.0
  %1022 = vmatprep.subr.mxu0 0.0
  %1023 = vmatpush1.msra.mxu0 0.0
  %1024 = vmatprep.subr.mxu0 0.0
  %1025 = vmatpush1.msra.mxu0 0.0
  %1026 = vmatprep.subr.mxu0 0.0
  %1027 = vmatpush1.msra.mxu0 0.0
  %1028 = vmatprep.subr.mxu0 0.0
  %1029 = vmatpush1.msra.mxu0 0.0
  %1030 = vmatprep.subr.mxu0 0.0
  %1031 = vmatpush1.msra.mxu0 0.0
  %1032 = vmatprep.subr.mxu0 0.0
  %1033 = vmatpush1.msra.mxu0 0.0
  %1034 = vmatprep.subr.mxu0 0.0
  %1035 = vmatpush1.msra.mxu0 0.0
  %1036 = vmatprep.subr.mxu0 0.0
  %1037 = vmatpush1.msra.mxu0 0.0
  %1038 = vmatprep.subr.mxu0 0.0
  %1039 = vmatpush1.msra.mxu0 0.0
  %1040 = vmatprep.subr.mxu0 0.0
  %1041 = vmatpush1.msra.mxu0 %v45
  %1042 = vmatprep.subr.mxu0 0.0
  %1043 = vmatpush1.msra.mxu0 %v44
  %1044 = vmatprep.subr.mxu0 0.0
  %1045 = vmatpush1.msra.mxu0 %v43
  %1046 = vmatprep.subr.mxu0 0.0
  %1047 = vmatpush1.msra.mxu0 %v42
  %1048 = vmatprep.subr.mxu0 0.0
  %1049 = vmatpush2.msra.mxu0 0.0
  %1050 = vmatprep.subr.mxu0 0.0
  %1051 = vmatpush2.msra.mxu0 0.0
  %1052 = vmatprep.subr.mxu0 0.0
  %1053 = vmatpush2.msra.mxu0 0.0
  %1054 = vmatprep.subr.mxu0 0.0
  %1055 = vmatpush2.msra.mxu0 0.0
  %1056 = vmatprep.subr.mxu0 0.0
  %1057 = vmatpush2.msra.mxu0 0.0
  %1058 = vmatprep.subr.mxu0 0.0
  %1059 = vmatpush2.msra.mxu0 0.0
  %1060 = vmatprep.subr.mxu0 0.0
  %1061 = vmatpush2.msra.mxu0 0.0
  %1062 = vmatprep.subr.mxu0 0.0
  %1063 = vmatpush2.msra.mxu0 0.0
  %1064 = vmatprep.subr.mxu0 0.0
  %1065 = vmatpush2.msra.mxu0 0.0
  %1066 = vmatprep.subr.mxu0 0.0
  %1067 = vmatpush2.msra.mxu0 0.0
  %1068 = vmatprep.subr.mxu0 0.0
  %1069 = vmatpush2.msra.mxu0 0.0
  %1070 = vmatprep.subr.mxu0 0.0
  %1071 = vmatpush2.msra.mxu0 0.0
  %1072 = vmatprep.subr.mxu0 0.0
  %1073 = vmatpush2.msra.mxu0 0.0
  %1074 = vmatprep.subr.mxu0 0.0
  %1075 = vmatpush2.msra.mxu0 0.0
  %1076 = vmatprep.subr.mxu0 0.0
  %1077 = vmatpush2.msra.mxu0 0.0
  %1078 = vmatprep.subr.mxu0 0.0
  %1079 = vmatpush2.msra.mxu0 0.0
  %1080 = vmatprep.mubr.f32.mxu0 0.0
  %1081 = vmatmul.mubr.f32.gmra.mxu0 %v1014
  %v1082 = vpop.f32.mrf.mxu0
  %v1083 = vadd.f32 0.0, %v1082
  %v1084 = vpop.f32.mrf.mxu0
  %1085 = vdwg.mxu0
  %v1086 = vadd.f32 %v1012, %v1083
  %v1087 = vtanh.pop %v1086
  %v1088 = vld [vmem:[%s552] sm:$0x3]
  %v1090 = vsel %vm93, %v1087, 0
  %1092 = vmatprep.subr.mxu0 0.0
  %1093 = vmatpush1.msra.mxu0 0.0
  %1094 = vmatprep.subr.mxu0 0.0
  %1095 = vmatpush1.msra.mxu0 0.0
  %1096 = vmatprep.subr.mxu0 0.0
  %1097 = vmatpush1.msra.mxu0 0.0
  %1098 = vmatprep.subr.mxu0 0.0
  %1099 = vmatpush1.msra.mxu0 0.0
  %1100 = vmatprep.subr.mxu0 0.0
  %1101 = vmatpush1.msra.mxu0 0.0
  %1102 = vmatprep.subr.mxu0 0.0
  %1103 = vmatpush1.msra.mxu0 0.0
  %1104 = vmatprep.subr.mxu0 0.0
  %1105 = vmatpush1.msra.mxu0 0.0
  %1106 = vmatprep.subr.mxu0 0.0
  %1107 = vmatpush1.msra.mxu0 0.0
  %1108 = vmatprep.subr.mxu0 0.0
  %1109 = vmatpush1.msra.mxu0 0.0
  %1110 = vmatprep.subr.mxu0 0.0
  %1111 = vmatpush1.msra.mxu0 0.0
  %1112 = vmatprep.subr.mxu0 0.0
  %1113 = vmatpush1.msra.mxu0 0.0
  %1114 = vmatprep.subr.mxu0 0.0
  %1115 = vmatpush1.msra.mxu0 0.0
  %1116 = vmatprep.subr.mxu0 0.0
  %1117 = vmatpush1.msra.mxu0 %v45
  %1118 = vmatprep.subr.mxu0 0.0
  %1119 = vmatpush1.msra.mxu0 %v44
  %1120 = vmatprep.subr.mxu0 0.0
  %1121 = vmatpush1.msra.mxu0 %v43
  %1122 = vmatprep.subr.mxu0 0.0
  %1123 = vmatpush1.msra.mxu0 %v42
  %1124 = vmatprep.subr.mxu0 0.0
  %1125 = vmatpush2.msra.mxu0 0.0
  %1126 = vmatprep.subr.mxu0 0.0
  %1127 = vmatpush2.msra.mxu0 0.0
  %1128 = vmatprep.subr.mxu0 0.0
  %1129 = vmatpush2.msra.mxu0 0.0
  %1130 = vmatprep.subr.mxu0 0.0
  %1131 = vmatpush2.msra.mxu0 0.0
  %1132 = vmatprep.subr.mxu0 0.0
  %1133 = vmatpush2.msra.mxu0 0.0
  %1134 = vmatprep.subr.mxu0 0.0
  %1135 = vmatpush2.msra.mxu0 0.0
  %1136 = vmatprep.subr.mxu0 0.0
  %1137 = vmatpush2.msra.mxu0 0.0
  %1138 = vmatprep.subr.mxu0 0.0
  %1139 = vmatpush2.msra.mxu0 0.0
  %1140 = vmatprep.subr.mxu0 0.0
  %1141 = vmatpush2.msra.mxu0 0.0
  %1142 = vmatprep.subr.mxu0 0.0
  %1143 = vmatpush2.msra.mxu0 0.0
  %1144 = vmatprep.subr.mxu0 0.0
  %1145 = vmatpush2.msra.mxu0 0.0
  %1146 = vmatprep.subr.mxu0 0.0
  %1147 = vmatpush2.msra.mxu0 0.0
  %1148 = vmatprep.subr.mxu0 0.0
  %1149 = vmatpush2.msra.mxu0 0.0
  %1150 = vmatprep.subr.mxu0 0.0
  %1151 = vmatpush2.msra.mxu0 0.0
  %1152 = vmatprep.subr.mxu0 0.0
  %1153 = vmatpush2.msra.mxu0 0.0
  %1154 = vmatprep.subr.mxu0 0.0
  %1155 = vmatpush2.msra.mxu0 0.0
  %1156 = vmatprep.mubr.f32.mxu0 0.0
  %1157 = vmatmul.mubr.f32.gmra.mxu0 %v1090
  %v1158 = vpop.f32.mrf.mxu0
  %v1159 = vadd.f32 0.0, %v1158
  %v1160 = vpop.f32.mrf.mxu0
  %1161 = vdwg.mxu0
  %v1162 = vadd.f32 %v1088, %v1159
  %v1163 = vtanh.pop %v1162
  %v1164 = vld [vmem:[%s629] sm:$0x3]
  %v1166 = vsel %vm93, %v1163, 0
  %1168 = vmatprep.subr.mxu0 0.0
  %1169 = vmatpush1.msra.mxu0 0.0
  %1170 = vmatprep.subr.mxu0 0.0
  %1171 = vmatpush1.msra.mxu0 0.0
  %1172 = vmatprep.subr.mxu0 0.0
  %1173 = vmatpush1.msra.mxu0 0.0
  %1174 = vmatprep.subr.mxu0 0.0
  %1175 = vmatpush1.msra.mxu0 0.0
  %1176 = vmatprep.subr.mxu0 0.0
  %1177 = vmatpush1.msra.mxu0 0.0
  %1178 = vmatprep.subr.mxu0 0.0
  %1179 = vmatpush1.msra.mxu0 0.0
  %1180 = vmatprep.subr.mxu0 0.0
  %1181 = vmatpush1.msra.mxu0 0.0
  %1182 = vmatprep.subr.mxu0 0.0
  %1183 = vmatpush1.msra.mxu0 0.0
  %1184 = vmatprep.subr.mxu0 0.0
  %1185 = vmatpush1.msra.mxu0 0.0
  %1186 = vmatprep.subr.mxu0 0.0
  %1187 = vmatpush1.msra.mxu0 0.0
  %1188 = vmatprep.subr.mxu0 0.0
  %1189 = vmatpush1.msra.mxu0 0.0
  %1190 = vmatprep.subr.mxu0 0.0
  %1191 = vmatpush1.msra.mxu0 0.0
  %1192 = vmatprep.subr.mxu0 0.0
  %1193 = vmatpush1.msra.mxu0 %v45
  %1194 = vmatprep.subr.mxu0 0.0
  %1195 = vmatpush1.msra.mxu0 %v44
  %1196 = vmatprep.subr.mxu0 0.0
  %1197 = vmatpush1.msra.mxu0 %v43
  %1198 = vmatprep.subr.mxu0 0.0
  %1199 = vmatpush1.msra.mxu0 %v42
  %1200 = vmatprep.subr.mxu0 0.0
  %1201 = vmatpush2.msra.mxu0 0.0
  %1202 = vmatprep.subr.mxu0 0.0
  %1203 = vmatpush2.msra.mxu0 0.0
  %1204 = vmatprep.subr.mxu0 0.0
  %1205 = vmatpush2.msra.mxu0 0.0
  %1206 = vmatprep.subr.mxu0 0.0
  %1207 = vmatpush2.msra.mxu0 0.0
  %1208 = vmatprep.subr.mxu0 0.0
  %1209 = vmatpush2.msra.mxu0 0.0
  %1210 = vmatprep.subr.mxu0 0.0
  %1211 = vmatpush2.msra.mxu0 0.0
  %1212 = vmatprep.subr.mxu0 0.0
  %1213 = vmatpush2.msra.mxu0 0.0
  %1214 = vmatprep.subr.mxu0 0.0
  %1215 = vmatpush2.msra.mxu0 0.0
  %1216 = vmatprep.subr.mxu0 0.0
  %1217 = vmatpush2.msra.mxu0 0.0
  %1218 = vmatprep.subr.mxu0 0.0
  %1219 = vmatpush2.msra.mxu0 0.0
  %1220 = vmatprep.subr.mxu0 0.0
  %1221 = vmatpush2.msra.mxu0 0.0
  %1222 = vmatprep.subr.mxu0 0.0
  %1223 = vmatpush2.msra.mxu0 0.0
  %1224 = vmatprep.subr.mxu0 0.0
  %1225 = vmatpush2.msra.mxu0 0.0
  %1226 = vmatprep.subr.mxu0 0.0
  %1227 = vmatpush2.msra.mxu0 0.0
  %1228 = vmatprep.subr.mxu0 0.0
  %1229 = vmatpush2.msra.mxu0 0.0
  %1230 = vmatprep.subr.mxu0 0.0
  %1231 = vmatpush2.msra.mxu0 0.0
  %1232 = vmatprep.mubr.f32.mxu0 0.0
  %1233 = vmatmul.mubr.f32.gmra.mxu0 %v1166
  %v1234 = vpop.f32.mrf.mxu0
  %v1235 = vadd.f32 0.0, %v1234
  %v1236 = vpop.f32.mrf.mxu0
  %1237 = vdwg.mxu0
  %v1238 = vadd.f32 %v1164, %v1235
  %v1239 = vtanh.pop %v1238
  %v1240 = vld [vmem:[%s706] sm:$0x3]
  %v1242 = vsel %vm93, %v1239, 0
  %1244 = vmatprep.subr.mxu0 0.0
  %1245 = vmatpush1.msra.mxu0 0.0
  %1246 = vmatprep.subr.mxu0 0.0
  %1247 = vmatpush1.msra.mxu0 0.0
  %1248 = vmatprep.subr.mxu0 0.0
  %1249 = vmatpush1.msra.mxu0 0.0
  %1250 = vmatprep.subr.mxu0 0.0
  %1251 = vmatpush1.msra.mxu0 0.0
  %1252 = vmatprep.subr.mxu0 0.0
  %1253 = vmatpush1.msra.mxu0 0.0
  %1254 = vmatprep.subr.mxu0 0.0
  %1255 = vmatpush1.msra.mxu0 0.0
  %1256 = vmatprep.subr.mxu0 0.0
  %1257 = vmatpush1.msra.mxu0 0.0
  %1258 = vmatprep.subr.mxu0 0.0
  %1259 = vmatpush1.msra.mxu0 0.0
  %1260 = vmatprep.subr.mxu0 0.0
  %1261 = vmatpush1.msra.mxu0 0.0
  %1262 = vmatprep.subr.mxu0 0.0
  %1263 = vmatpush1.msra.mxu0 0.0
  %1264 = vmatprep.subr.mxu0 0.0
  %1265 = vmatpush1.msra.mxu0 0.0
  %1266 = vmatprep.subr.mxu0 0.0
  %1267 = vmatpush1.msra.mxu0 0.0
  %1268 = vmatprep.subr.mxu0 0.0
  %1269 = vmatpush1.msra.mxu0 %v45
  %1270 = vmatprep.subr.mxu0 0.0
  %1271 = vmatpush1.msra.mxu0 %v44
  %1272 = vmatprep.subr.mxu0 0.0
  %1273 = vmatpush1.msra.mxu0 %v43
  %1274 = vmatprep.subr.mxu0 0.0
  %1275 = vmatpush1.msra.mxu0 %v42
  %1276 = vmatprep.subr.mxu0 0.0
  %1277 = vmatpush2.msra.mxu0 0.0
  %1278 = vmatprep.subr.mxu0 0.0
  %1279 = vmatpush2.msra.mxu0 0.0
  %1280 = vmatprep.subr.mxu0 0.0
  %1281 = vmatpush2.msra.mxu0 0.0
  %1282 = vmatprep.subr.mxu0 0.0
  %1283 = vmatpush2.msra.mxu0 0.0
  %1284 = vmatprep.subr.mxu0 0.0
  %1285 = vmatpush2.msra.mxu0 0.0
  %1286 = vmatprep.subr.mxu0 0.0
  %1287 = vmatpush2.msra.mxu0 0.0
  %1288 = vmatprep.subr.mxu0 0.0
  %1289 = vmatpush2.msra.mxu0 0.0
  %1290 = vmatprep.subr.mxu0 0.0
  %1291 = vmatpush2.msra.mxu0 0.0
  %1292 = vmatprep.subr.mxu0 0.0
  %1293 = vmatpush2.msra.mxu0 0.0
  %1294 = vmatprep.subr.mxu0 0.0
  %1295 = vmatpush2.msra.mxu0 0.0
  %1296 = vmatprep.subr.mxu0 0.0
  %1297 = vmatpush2.msra.mxu0 0.0
  %1298 = vmatprep.subr.mxu0 0.0
  %1299 = vmatpush2.msra.mxu0 0.0
  %1300 = vmatprep.subr.mxu0 0.0
  %1301 = vmatpush2.msra.mxu0 0.0
  %1302 = vmatprep.subr.mxu0 0.0
  %1303 = vmatpush2.msra.mxu0 0.0
  %1304 = vmatprep.subr.mxu0 0.0
  %1305 = vmatpush2.msra.mxu0 0.0
  %1306 = vmatprep.subr.mxu0 0.0
  %1307 = vmatpush2.msra.mxu0 0.0
  %1308 = vmatprep.mubr.f32.mxu0 0.0
  %1309 = vmatmul.mubr.f32.gmra.mxu0 %v1242
  %v1310 = vpop.f32.mrf.mxu0
  %v1311 = vadd.f32 0.0, %v1310
  %v1312 = vpop.f32.mrf.mxu0
  %1313 = vdwg.mxu0
  %v1314 = vadd.f32 %v1240, %v1311
  %v1315 = vtanh.pop %v1314
  %v1317 = vlaneseq
  %v1318 = vshrl.u32 %v1317, 7
  %v1319 = vsub.s32 0, %v1318
  %v1320 = vrot.slane %v59, %v1319
  %v1323 = vsel %vm93, %v1315, 0
  %1325 = vmatprep.subr.mxu0 0.0
  %1326 = vmatpush1.msra.mxu0 0.0
  %1327 = vmatprep.subr.mxu0 0.0
  %1328 = vmatpush1.msra.mxu0 0.0
  %1329 = vmatprep.subr.mxu0 0.0
  %1330 = vmatpush1.msra.mxu0 0.0
  %1331 = vmatprep.subr.mxu0 0.0
  %1332 = vmatpush1.msra.mxu0 0.0
  %1333 = vmatprep.subr.mxu0 0.0
  %1334 = vmatpush1.msra.mxu0 0.0
  %1335 = vmatprep.subr.mxu0 0.0
  %1336 = vmatpush1.msra.mxu0 0.0
  %1337 = vmatprep.subr.mxu0 0.0
  %1338 = vmatpush1.msra.mxu0 0.0
  %1339 = vmatprep.subr.mxu0 0.0
  %1340 = vmatpush1.msra.mxu0 0.0
  %1341 = vmatprep.subr.mxu0 0.0
  %1342 = vmatpush1.msra.mxu0 0.0
  %1343 = vmatprep.subr.mxu0 0.0
  %1344 = vmatpush1.msra.mxu0 0.0
  %1345 = vmatprep.subr.mxu0 0.0
  %1346 = vmatpush1.msra.mxu0 0.0
  %1347 = vmatprep.subr.mxu0 0.0
  %1348 = vmatpush1.msra.mxu0 0.0
  %1349 = vmatprep.subr.mxu0 0.0
  %1350 = vmatpush1.msra.mxu0 %v58
  %1351 = vmatprep.subr.mxu0 0.0
  %1352 = vmatpush1.msra.mxu0 %v57
  %1353 = vmatprep.subr.mxu0 0.0
  %1354 = vmatpush1.msra.mxu0 %v56
  %1355 = vmatprep.subr.mxu0 0.0
  %1356 = vmatpush1.msra.mxu0 %v55
  %1357 = vmatprep.subr.mxu0 0.0
  %1358 = vmatpush2.msra.mxu0 0.0
  %1359 = vmatprep.subr.mxu0 0.0
  %1360 = vmatpush2.msra.mxu0 0.0
  %1361 = vmatprep.subr.mxu0 0.0
  %1362 = vmatpush2.msra.mxu0 0.0
  %1363 = vmatprep.subr.mxu0 0.0
  %1364 = vmatpush2.msra.mxu0 0.0
  %1365 = vmatprep.subr.mxu0 0.0
  %1366 = vmatpush2.msra.mxu0 0.0
  %1367 = vmatprep.subr.mxu0 0.0
  %1368 = vmatpush2.msra.mxu0 0.0
  %1369 = vmatprep.subr.mxu0 0.0
  %1370 = vmatpush2.msra.mxu0 0.0
  %1371 = vmatprep.subr.mxu0 0.0
  %1372 = vmatpush2.msra.mxu0 0.0
  %1373 = vmatprep.subr.mxu0 0.0
  %1374 = vmatpush2.msra.mxu0 0.0
  %1375 = vmatprep.subr.mxu0 0.0
  %1376 = vmatpush2.msra.mxu0 0.0
  %1377 = vmatprep.subr.mxu0 0.0
  %1378 = vmatpush2.msra.mxu0 0.0
  %1379 = vmatprep.subr.mxu0 0.0
  %1380 = vmatpush2.msra.mxu0 0.0
  %1381 = vmatprep.subr.mxu0 0.0
  %1382 = vmatpush2.msra.mxu0 0.0
  %1383 = vmatprep.subr.mxu0 0.0
  %1384 = vmatpush2.msra.mxu0 0.0
  %1385 = vmatprep.subr.mxu0 0.0
  %1386 = vmatpush2.msra.mxu0 0.0
  %1387 = vmatprep.subr.mxu0 0.0
  %1388 = vmatpush2.msra.mxu0 0.0
  %1389 = vmatprep.mubr.f32.mxu0 0.0
  %1390 = vmatmul.mubr.f32.gmra.mxu0 %v1323
  %v1391 = vpop.f32.mrf.mxu0
  %v1392 = vadd.f32 %v1320, %v1391
  %v1393 = vpop.f32.mrf.mxu0
  %1394 = vdwg.mxu0
  %v1395 = vlaneseq
  %v1396 = vand.u32 %v1395, 127
  %vm1397 = vcmp.eq.s32.totalorder %v1396, 3
  %v1398 = vsel %vm1397, 1, 0
  %v1399 = vcvt.s32.f32 %v1398
  %1401 = vrot.lane.b32.xlu0 %v1392, 32
  %v1402 = vpop.permute.xlu0 %1401
  %v1404 = vsel %vm93, %v1399, %v1402
  %vm1405 = vcmask 523264
  %v1407 = vsel %vm1405, %v1404, 0
  %1409 = vmatprep.subr.mxu0 0.0
  %1410 = vmatpush1.msra.mxu0 0.0
  %1411 = vmatprep.subr.mxu0 0.0
  %1412 = vmatpush1.msra.mxu0 0.0
  %1413 = vmatprep.subr.mxu0 0.0
  %1414 = vmatpush1.msra.mxu0 0.0
  %1415 = vmatprep.subr.mxu0 0.0
  %1416 = vmatpush1.msra.mxu0 0.0
  %1417 = vmatprep.subr.mxu0 0.0
  %1418 = vmatpush1.msra.mxu0 0.0
  %1419 = vmatprep.subr.mxu0 0.0
  %1420 = vmatpush1.msra.mxu0 0.0
  %1421 = vmatprep.subr.mxu0 0.0
  %1422 = vmatpush1.msra.mxu0 0.0
  %1423 = vmatprep.subr.mxu0 0.0
  %1424 = vmatpush1.msra.mxu0 0.0
  %1425 = vmatprep.subr.mxu0 0.0
  %1426 = vmatpush1.msra.mxu0 %v54
  %1427 = vmatprep.subr.mxu0 0.0
  %1428 = vmatpush1.msra.mxu0 %v53
  %1429 = vmatprep.subr.mxu0 0.0
  %1430 = vmatpush1.msra.mxu0 %v52
  %1431 = vmatprep.subr.mxu0 0.0
  %1432 = vmatpush1.msra.mxu0 %v51
  %1433 = vmatprep.subr.mxu0 0.0
  %1434 = vmatpush1.msra.mxu0 %v50
  %1435 = vmatprep.subr.mxu0 0.0
  %1436 = vmatpush1.msra.mxu0 %v49
  %1437 = vmatprep.subr.mxu0 0.0
  %1438 = vmatpush1.msra.mxu0 %v48
  %1439 = vmatprep.subr.mxu0 0.0
  %1440 = vmatpush1.msra.mxu0 %v47
  %1441 = vmatprep.subr.mxu0 0.0
  %1442 = vmatpush2.msra.mxu0 0.0
  %1443 = vmatprep.subr.mxu0 0.0
  %1444 = vmatpush2.msra.mxu0 0.0
  %1445 = vmatprep.subr.mxu0 0.0
  %1446 = vmatpush2.msra.mxu0 0.0
  %1447 = vmatprep.subr.mxu0 0.0
  %1448 = vmatpush2.msra.mxu0 0.0
  %1449 = vmatprep.subr.mxu0 0.0
  %1450 = vmatpush2.msra.mxu0 0.0
  %1451 = vmatprep.subr.mxu0 0.0
  %1452 = vmatpush2.msra.mxu0 0.0
  %1453 = vmatprep.subr.mxu0 0.0
  %1454 = vmatpush2.msra.mxu0 0.0
  %1455 = vmatprep.subr.mxu0 0.0
  %1456 = vmatpush2.msra.mxu0 0.0
  %1457 = vmatprep.subr.mxu0 0.0
  %1458 = vmatpush2.msra.mxu0 0.0
  %1459 = vmatprep.subr.mxu0 0.0
  %1460 = vmatpush2.msra.mxu0 0.0
  %1461 = vmatprep.subr.mxu0 0.0
  %1462 = vmatpush2.msra.mxu0 0.0
  %1463 = vmatprep.subr.mxu0 0.0
  %1464 = vmatpush2.msra.mxu0 0.0
  %1465 = vmatprep.subr.mxu0 0.0
  %1466 = vmatpush2.msra.mxu0 0.0
  %1467 = vmatprep.subr.mxu0 0.0
  %1468 = vmatpush2.msra.mxu0 0.0
  %1469 = vmatprep.subr.mxu0 0.0
  %1470 = vmatpush2.msra.mxu0 0.0
  %1471 = vmatprep.subr.mxu0 0.0
  %1472 = vmatpush2.msra.mxu0 0.0
  %1473 = vmatprep.mubr.f32.mxu0 0.0
  %1474 = vmatmul.mubr.f32.gmra.mxu0 %v1407
  %v1475 = vpop.f32.mrf.mxu0
  %v1476 = vadd.f32 0.0, %v1475
  %v1477 = vpop.f32.mrf.mxu0
  %1478 = vdwg.mxu0
  %v1479 = vtanh.pop %v1476
  %v1480 = vsel %vm93, %v1479, %v1392
  %v1482 = vsel %vm1405, %v1480, 0
  %1484 = vmatprep.subr.mxu0 0.0
  %1485 = vmatpush1.msra.mxu0 0.0
  %1486 = vmatprep.subr.mxu0 0.0
  %1487 = vmatpush1.msra.mxu0 0.0
  %1488 = vmatprep.subr.mxu0 0.0
  %1489 = vmatpush1.msra.mxu0 0.0
  %1490 = vmatprep.subr.mxu0 0.0
  %1491 = vmatpush1.msra.mxu0 0.0
  %1492 = vmatprep.subr.mxu0 0.0
  %1493 = vmatpush1.msra.mxu0 0.0
  %1494 = vmatprep.subr.mxu0 0.0
  %1495 = vmatpush1.msra.mxu0 0.0
  %1496 = vmatprep.subr.mxu0 0.0
  %1497 = vmatpush1.msra.mxu0 0.0
  %1498 = vmatprep.subr.mxu0 0.0
  %1499 = vmatpush1.msra.mxu0 0.0
  %1500 = vmatprep.subr.mxu0 0.0
  %1501 = vmatpush1.msra.mxu0 %v72
  %1502 = vmatprep.subr.mxu0 0.0
  %1503 = vmatpush1.msra.mxu0 %v71
  %1504 = vmatprep.subr.mxu0 0.0
  %1505 = vmatpush1.msra.mxu0 %v70
  %1506 = vmatprep.subr.mxu0 0.0
  %1507 = vmatpush1.msra.mxu0 %v69
  %1508 = vmatprep.subr.mxu0 0.0
  %1509 = vmatpush1.msra.mxu0 %v68
  %1510 = vmatprep.subr.mxu0 0.0
  %1511 = vmatpush1.msra.mxu0 %v67
  %1512 = vmatprep.subr.mxu0 0.0
  %1513 = vmatpush1.msra.mxu0 %v66
  %1514 = vmatprep.subr.mxu0 0.0
  %1515 = vmatpush1.msra.mxu0 %v65
  %1516 = vmatprep.subr.mxu0 0.0
  %1517 = vmatpush2.msra.mxu0 0.0
  %1518 = vmatprep.subr.mxu0 0.0
  %1519 = vmatpush2.msra.mxu0 0.0
  %1520 = vmatprep.subr.mxu0 0.0
  %1521 = vmatpush2.msra.mxu0 0.0
  %1522 = vmatprep.subr.mxu0 0.0
  %1523 = vmatpush2.msra.mxu0 0.0
  %1524 = vmatprep.subr.mxu0 0.0
  %1525 = vmatpush2.msra.mxu0 0.0
  %1526 = vmatprep.subr.mxu0 0.0
  %1527 = vmatpush2.msra.mxu0 0.0
  %1528 = vmatprep.subr.mxu0 0.0
  %1529 = vmatpush2.msra.mxu0 0.0
  %1530 = vmatprep.subr.mxu0 0.0
  %1531 = vmatpush2.msra.mxu0 0.0
  %1532 = vmatprep.subr.mxu0 0.0
  %1533 = vmatpush2.msra.mxu0 0.0
  %1534 = vmatprep.subr.mxu0 0.0
  %1535 = vmatpush2.msra.mxu0 0.0
  %1536 = vmatprep.subr.mxu0 0.0
  %1537 = vmatpush2.msra.mxu0 0.0
  %1538 = vmatprep.subr.mxu0 0.0
  %1539 = vmatpush2.msra.mxu0 0.0
  %1540 = vmatprep.subr.mxu0 0.0
  %1541 = vmatpush2.msra.mxu0 0.0
  %1542 = vmatprep.subr.mxu0 0.0
  %1543 = vmatpush2.msra.mxu0 0.0
  %1544 = vmatprep.subr.mxu0 0.0
  %1545 = vmatpush2.msra.mxu0 0.0
  %1546 = vmatprep.subr.mxu0 0.0
  %1547 = vmatpush2.msra.mxu0 0.0
  %1548 = vmatprep.mubr.f32.mxu0 0.0
  %1549 = vmatmul.mubr.f32.gmra.mxu0 %v1482
  %v1550 = vpop.f32.mrf.mxu0
  %v1551 = vadd.f32 %v78, %v1550
  %v1552 = vpop.f32.mrf.mxu0
  %1553 = vdwg.mxu0
  %v1554 = vtanh.pop %v1551
  %v1556 = vsel %vm93, %v1554, 0
  %1558 = vmatprep.subr.mxu0 0.0
  %1559 = vmatpush1.msra.mxu0 0.0
  %1560 = vmatprep.subr.mxu0 0.0
  %1561 = vmatpush1.msra.mxu0 0.0
  %1562 = vmatprep.subr.mxu0 0.0
  %1563 = vmatpush1.msra.mxu0 0.0
  %1564 = vmatprep.subr.mxu0 0.0
  %1565 = vmatpush1.msra.mxu0 0.0
  %1566 = vmatprep.subr.mxu0 0.0
  %1567 = vmatpush1.msra.mxu0 0.0
  %1568 = vmatprep.subr.mxu0 0.0
  %1569 = vmatpush1.msra.mxu0 0.0
  %1570 = vmatprep.subr.mxu0 0.0
  %1571 = vmatpush1.msra.mxu0 0.0
  %1572 = vmatprep.subr.mxu0 0.0
  %1573 = vmatpush1.msra.mxu0 0.0
  %1574 = vmatprep.subr.mxu0 0.0
  %1575 = vmatpush1.msra.mxu0 0.0
  %1576 = vmatprep.subr.mxu0 0.0
  %1577 = vmatpush1.msra.mxu0 0.0
  %1578 = vmatprep.subr.mxu0 0.0
  %1579 = vmatpush1.msra.mxu0 0.0
  %1580 = vmatprep.subr.mxu0 0.0
  %1581 = vmatpush1.msra.mxu0 0.0
  %1582 = vmatprep.subr.mxu0 0.0
  %1583 = vmatpush1.msra.mxu0 %v63
  %1584 = vmatprep.subr.mxu0 0.0
  %1585 = vmatpush1.msra.mxu0 %v62
  %1586 = vmatprep.subr.mxu0 0.0
  %1587 = vmatpush1.msra.mxu0 %v61
  %1588 = vmatprep.subr.mxu0 0.0
  %1589 = vmatpush1.msra.mxu0 %v60
  %1590 = vmatprep.subr.mxu0 0.0
  %1591 = vmatpush2.msra.mxu0 0.0
  %1592 = vmatprep.subr.mxu0 0.0
  %1593 = vmatpush2.msra.mxu0 0.0
  %1594 = vmatprep.subr.mxu0 0.0
  %1595 = vmatpush2.msra.mxu0 0.0
  %1596 = vmatprep.subr.mxu0 0.0
  %1597 = vmatpush2.msra.mxu0 0.0
  %1598 = vmatprep.subr.mxu0 0.0
  %1599 = vmatpush2.msra.mxu0 0.0
  %1600 = vmatprep.subr.mxu0 0.0
  %1601 = vmatpush2.msra.mxu0 0.0
  %1602 = vmatprep.subr.mxu0 0.0
  %1603 = vmatpush2.msra.mxu0 0.0
  %1604 = vmatprep.subr.mxu0 0.0
  %1605 = vmatpush2.msra.mxu0 0.0
  %1606 = vmatprep.subr.mxu0 0.0
  %1607 = vmatpush2.msra.mxu0 0.0
  %1608 = vmatprep.subr.mxu0 0.0
  %1609 = vmatpush2.msra.mxu0 0.0
  %1610 = vmatprep.subr.mxu0 0.0
  %1611 = vmatpush2.msra.mxu0 0.0
  %1612 = vmatprep.subr.mxu0 0.0
  %1613 = vmatpush2.msra.mxu0 0.0
  %1614 = vmatprep.subr.mxu0 0.0
  %1615 = vmatpush2.msra.mxu0 0.0
  %1616 = vmatprep.subr.mxu0 0.0
  %1617 = vmatpush2.msra.mxu0 0.0
  %1618 = vmatprep.subr.mxu0 0.0
  %1619 = vmatpush2.msra.mxu0 0.0
  %1620 = vmatprep.subr.mxu0 0.0
  %1621 = vmatpush2.msra.mxu0 0.0
  %1622 = vmatprep.mubr.f32.mxu0 0.0
  %1623 = vmatmul.mubr.f32.gmra.mxu0 %v1556
  %v1624 = vpop.f32.mrf.mxu0
  %v1625 = vadd.f32 %v90, %v1624
  %v1626 = vpop.f32.mrf.mxu0
  %1627 = vdwg.mxu0
  %vm1628 = vcmask 123904
  %1629 = vst.msk [vmem:[%s11] sm:$0x3] %vm1628, %v1625
  %v1630 = vsel %vm1628, %v1625, -inf
  %1631 = vmax.xlane.f32.xlu0 %v1630
  %v1632 = vpop.xlane.xlu0 %1631
  %vm1633 = vcmp.eq.f32.partialorder %v1625, %v1632
  %v1634 = vsel %vm1633, %v1396, 16
  %v1635 = vsel %vm1628, %v1634, 2147483647
  %v1636 = vand.u32 %v1635, 65535
  %v1637 = vshra.s32 %v1635, 16
  %v1638 = vcvt.s32.f32 %v1636
  %v1639 = vcvt.s32.f32 %v1637
  %1640 = vmin.xlane.f32.xlu0 %v1639
  %v1641 = vpop.xlane.xlu0 %1640
  %vm1642 = vcmp.eq.f32.partialorder %v1639, %v1641
  %v1643 = vsel %vm1642, %v1638, inf
  %1644 = vmin.xlane.f32.xlu0 %v1643
  %v1645 = vpop.xlane.xlu0 %1644
  %v1646 = vcvt.f32.s32 %v1645
  %v1647 = vcvt.f32.s32 %v1641
  %v1648 = vshll.u32 %v1647, 16
  %v1649 = vadd.s32 %v1648, %v1646
  %vm1650 = vcmp.eq.s32.totalorder %v1396, %v1649
  %v1651 = vsel %vm1650, 1, 0
  %v1652 = vcvt.s32.f32 %v1651
  %1654 = vrot.lane.b32.xlu0 %v1479, 32
  %v1655 = vpop.permute.xlu0 %1654
  %v1657 = vsel %vm93, %v1652, %v1655
  %v1659 = vsel %vm1405, %v1657, 0
  %1661 = vmatprep.subr.mxu0 0.0
  %1662 = vmatpush1.msra.mxu0 0.0
  %1663 = vmatprep.subr.mxu0 0.0
  %1664 = vmatpush1.msra.mxu0 0.0
  %1665 = vmatprep.subr.mxu0 0.0
  %1666 = vmatpush1.msra.mxu0 0.0
  %1667 = vmatprep.subr.mxu0 0.0
  %1668 = vmatpush1.msra.mxu0 0.0
  %1669 = vmatprep.subr.mxu0 0.0
  %1670 = vmatpush1.msra.mxu0 0.0
  %1671 = vmatprep.subr.mxu0 0.0
  %1672 = vmatpush1.msra.mxu0 0.0
  %1673 = vmatprep.subr.mxu0 0.0
  %1674 = vmatpush1.msra.mxu0 0.0
  %1675 = vmatprep.subr.mxu0 0.0
  %1676 = vmatpush1.msra.mxu0 0.0
  %1677 = vmatprep.subr.mxu0 0.0
  %1678 = vmatpush1.msra.mxu0 %v54
  %1679 = vmatprep.subr.mxu0 0.0
  %1680 = vmatpush1.msra.mxu0 %v53
  %1681 = vmatprep.subr.mxu0 0.0
  %1682 = vmatpush1.msra.mxu0 %v52
  %1683 = vmatprep.subr.mxu0 0.0
  %1684 = vmatpush1.msra.mxu0 %v51
  %1685 = vmatprep.subr.mxu0 0.0
  %1686 = vmatpush1.msra.mxu0 %v50
  %1687 = vmatprep.subr.mxu0 0.0
  %1688 = vmatpush1.msra.mxu0 %v49
  %1689 = vmatprep.subr.mxu0 0.0
  %1690 = vmatpush1.msra.mxu0 %v48
  %1691 = vmatprep.subr.mxu0 0.0
  %1692 = vmatpush1.msra.mxu0 %v47
  %1693 = vmatprep.subr.mxu0 0.0
  %1694 = vmatpush2.msra.mxu0 0.0
  %1695 = vmatprep.subr.mxu0 0.0
  %1696 = vmatpush2.msra.mxu0 0.0
  %1697 = vmatprep.subr.mxu0 0.0
  %1698 = vmatpush2.msra.mxu0 0.0
  %1699 = vmatprep.subr.mxu0 0.0
  %1700 = vmatpush2.msra.mxu0 0.0
  %1701 = vmatprep.subr.mxu0 0.0
  %1702 = vmatpush2.msra.mxu0 0.0
  %1703 = vmatprep.subr.mxu0 0.0
  %1704 = vmatpush2.msra.mxu0 0.0
  %1705 = vmatprep.subr.mxu0 0.0
  %1706 = vmatpush2.msra.mxu0 0.0
  %1707 = vmatprep.subr.mxu0 0.0
  %1708 = vmatpush2.msra.mxu0 0.0
  %1709 = vmatprep.subr.mxu0 0.0
  %1710 = vmatpush2.msra.mxu0 0.0
  %1711 = vmatprep.subr.mxu0 0.0
  %1712 = vmatpush2.msra.mxu0 0.0
  %1713 = vmatprep.subr.mxu0 0.0
  %1714 = vmatpush2.msra.mxu0 0.0
  %1715 = vmatprep.subr.mxu0 0.0
  %1716 = vmatpush2.msra.mxu0 0.0
  %1717 = vmatprep.subr.mxu0 0.0
  %1718 = vmatpush2.msra.mxu0 0.0
  %1719 = vmatprep.subr.mxu0 0.0
  %1720 = vmatpush2.msra.mxu0 0.0
  %1721 = vmatprep.subr.mxu0 0.0
  %1722 = vmatpush2.msra.mxu0 0.0
  %1723 = vmatprep.subr.mxu0 0.0
  %1724 = vmatpush2.msra.mxu0 0.0
  %1725 = vmatprep.mubr.f32.mxu0 0.0
  %1726 = vmatmul.mubr.f32.gmra.mxu0 %v1659
  %v1727 = vpop.f32.mrf.mxu0
  %v1728 = vadd.f32 0.0, %v1727
  %v1729 = vpop.f32.mrf.mxu0
  %1730 = vdwg.mxu0
  %v1731 = vtanh.pop %v1728
  %1732 = vrot.lane.b32.xlu0 %v1554, 32
  %v1733 = vpop.permute.xlu0 %1732
  %v1735 = vsel %vm93, %v1731, %v1733
  %v1737 = vsel %vm1405, %v1735, 0
  %1739 = vmatprep.subr.mxu0 0.0
  %1740 = vmatpush1.msra.mxu0 0.0
  %1741 = vmatprep.subr.mxu0 0.0
  %1742 = vmatpush1.msra.mxu0 0.0
  %1743 = vmatprep.subr.mxu0 0.0
  %1744 = vmatpush1.msra.mxu0 0.0
  %1745 = vmatprep.subr.mxu0 0.0
  %1746 = vmatpush1.msra.mxu0 0.0
  %1747 = vmatprep.subr.mxu0 0.0
  %1748 = vmatpush1.msra.mxu0 0.0
  %1749 = vmatprep.subr.mxu0 0.0
  %1750 = vmatpush1.msra.mxu0 0.0
  %1751 = vmatprep.subr.mxu0 0.0
  %1752 = vmatpush1.msra.mxu0 0.0
  %1753 = vmatprep.subr.mxu0 0.0
  %1754 = vmatpush1.msra.mxu0 0.0
  %1755 = vmatprep.subr.mxu0 0.0
  %1756 = vmatpush1.msra.mxu0 %v72
  %1757 = vmatprep.subr.mxu0 0.0
  %1758 = vmatpush1.msra.mxu0 %v71
  %1759 = vmatprep.subr.mxu0 0.0
  %1760 = vmatpush1.msra.mxu0 %v70
  %1761 = vmatprep.subr.mxu0 0.0
  %1762 = vmatpush1.msra.mxu0 %v69
  %1763 = vmatprep.subr.mxu0 0.0
  %1764 = vmatpush1.msra.mxu0 %v68
  %1765 = vmatprep.subr.mxu0 0.0
  %1766 = vmatpush1.msra.mxu0 %v67
  %1767 = vmatprep.subr.mxu0 0.0
  %1768 = vmatpush1.msra.mxu0 %v66
  %1769 = vmatprep.subr.mxu0 0.0
  %1770 = vmatpush1.msra.mxu0 %v65
  %1771 = vmatprep.subr.mxu0 0.0
  %1772 = vmatpush2.msra.mxu0 0.0
  %1773 = vmatprep.subr.mxu0 0.0
  %1774 = vmatpush2.msra.mxu0 0.0
  %1775 = vmatprep.subr.mxu0 0.0
  %1776 = vmatpush2.msra.mxu0 0.0
  %1777 = vmatprep.subr.mxu0 0.0
  %1778 = vmatpush2.msra.mxu0 0.0
  %1779 = vmatprep.subr.mxu0 0.0
  %1780 = vmatpush2.msra.mxu0 0.0
  %1781 = vmatprep.subr.mxu0 0.0
  %1782 = vmatpush2.msra.mxu0 0.0
  %1783 = vmatprep.subr.mxu0 0.0
  %1784 = vmatpush2.msra.mxu0 0.0
  %1785 = vmatprep.subr.mxu0 0.0
  %1786 = vmatpush2.msra.mxu0 0.0
  %1787 = vmatprep.subr.mxu0 0.0
  %1788 = vmatpush2.msra.mxu0 0.0
  %1789 = vmatprep.subr.mxu0 0.0
  %1790 = vmatpush2.msra.mxu0 0.0
  %1791 = vmatprep.subr.mxu0 0.0
  %1792 = vmatpush2.msra.mxu0 0.0
  %1793 = vmatprep.subr.mxu0 0.0
  %1794 = vmatpush2.msra.mxu0 0.0
  %1795 = vmatprep.subr.mxu0 0.0
  %1796 = vmatpush2.msra.mxu0 0.0
  %1797 = vmatprep.subr.mxu0 0.0
  %1798 = vmatpush2.msra.mxu0 0.0
  %1799 = vmatprep.subr.mxu0 0.0
  %1800 = vmatpush2.msra.mxu0 0.0
  %1801 = vmatprep.subr.mxu0 0.0
  %1802 = vmatpush2.msra.mxu0 0.0
  %1803 = vmatprep.mubr.f32.mxu0 0.0
  %1804 = vmatmul.mubr.f32.gmra.mxu0 %v1737
  %v1805 = vpop.f32.mrf.mxu0
  %v1806 = vadd.f32 %v78, %v1805
  %v1807 = vpop.f32.mrf.mxu0
  %1808 = vdwg.mxu0
  %v1809 = vtanh.pop %v1806
  %v1811 = vsel %vm93, %v1809, 0
  %1813 = vmatprep.subr.mxu0 0.0
  %1814 = vmatpush1.msra.mxu0 0.0
  %1815 = vmatprep.subr.mxu0 0.0
  %1816 = vmatpush1.msra.mxu0 0.0
  %1817 = vmatprep.subr.mxu0 0.0
  %1818 = vmatpush1.msra.mxu0 0.0
  %1819 = vmatprep.subr.mxu0 0.0
  %1820 = vmatpush1.msra.mxu0 0.0
  %1821 = vmatprep.subr.mxu0 0.0
  %1822 = vmatpush1.msra.mxu0 0.0
  %1823 = vmatprep.subr.mxu0 0.0
  %1824 = vmatpush1.msra.mxu0 0.0
  %1825 = vmatprep.subr.mxu0 0.0
  %1826 = vmatpush1.msra.mxu0 0.0
  %1827 = vmatprep.subr.mxu0 0.0
  %1828 = vmatpush1.msra.mxu0 0.0
  %1829 = vmatprep.subr.mxu0 0.0
  %1830 = vmatpush1.msra.mxu0 0.0
  %1831 = vmatprep.subr.mxu0 0.0
  %1832 = vmatpush1.msra.mxu0 0.0
  %1833 = vmatprep.subr.mxu0 0.0
  %1834 = vmatpush1.msra.mxu0 0.0
  %1835 = vmatprep.subr.mxu0 0.0
  %1836 = vmatpush1.msra.mxu0 0.0
  %1837 = vmatprep.subr.mxu0 0.0
  %1838 = vmatpush1.msra.mxu0 %v63
  %1839 = vmatprep.subr.mxu0 0.0
  %1840 = vmatpush1.msra.mxu0 %v62
  %1841 = vmatprep.subr.mxu0 0.0
  %1842 = vmatpush1.msra.mxu0 %v61
  %1843 = vmatprep.subr.mxu0 0.0
  %1844 = vmatpush1.msra.mxu0 %v60
  %1845 = vmatprep.subr.mxu0 0.0
  %1846 = vmatpush2.msra.mxu0 0.0
  %1847 = vmatprep.subr.mxu0 0.0
  %1848 = vmatpush2.msra.mxu0 0.0
  %1849 = vmatprep.subr.mxu0 0.0
  %1850 = vmatpush2.msra.mxu0 0.0
  %1851 = vmatprep.subr.mxu0 0.0
  %1852 = vmatpush2.msra.mxu0 0.0
  %1853 = vmatprep.subr.mxu0 0.0
  %1854 = vmatpush2.msra.mxu0 0.0
  %1855 = vmatprep.subr.mxu0 0.0
  %1856 = vmatpush2.msra.mxu0 0.0
  %1857 = vmatprep.subr.mxu0 0.0
  %1858 = vmatpush2.msra.mxu0 0.0
  %1859 = vmatprep.subr.mxu0 0.0
  %1860 = vmatpush2.msra.mxu0 0.0
  %1861 = vmatprep.subr.mxu0 0.0
  %1862 = vmatpush2.msra.mxu0 0.0
  %1863 = vmatprep.subr.mxu0 0.0
  %1864 = vmatpush2.msra.mxu0 0.0
  %1865 = vmatprep.subr.mxu0 0.0
  %1866 = vmatpush2.msra.mxu0 0.0
  %1867 = vmatprep.subr.mxu0 0.0
  %1868 = vmatpush2.msra.mxu0 0.0
  %1869 = vmatprep.subr.mxu0 0.0
  %1870 = vmatpush2.msra.mxu0 0.0
  %1871 = vmatprep.subr.mxu0 0.0
  %1872 = vmatpush2.msra.mxu0 0.0
  %1873 = vmatprep.subr.mxu0 0.0
  %1874 = vmatpush2.msra.mxu0 0.0
  %1875 = vmatprep.subr.mxu0 0.0
  %1876 = vmatpush2.msra.mxu0 0.0
  %1877 = vmatprep.mubr.f32.mxu0 0.0
  %1878 = vmatmul.mubr.f32.gmra.mxu0 %v1811
  %v1879 = vpop.f32.mrf.mxu0
  %v1880 = vadd.f32 %v90, %v1879
  %v1881 = vpop.f32.mrf.mxu0
  %1882 = vdwg.mxu0
  %s1883 = scalar_lea.vmem %s11, 2
  %1884 = vst.msk [vmem:[%s1883] sm:$0x3] %vm1628, %v1880
  %v1885 = vsel %vm1628, %v1880, -inf
  %1886 = vmax.xlane.f32.xlu0 %v1885
  %v1887 = vpop.xlane.xlu0 %1886
  %vm1888 = vcmp.eq.f32.partialorder %v1880, %v1887
  %v1889 = vsel %vm1888, %v1396, 16
  %v1890 = vsel %vm1628, %v1889, 2147483647
  %v1891 = vand.u32 %v1890, 65535
  %v1892 = vshra.s32 %v1890, 16
  %v1893 = vcvt.s32.f32 %v1891
  %v1894 = vcvt.s32.f32 %v1892
  %1895 = vmin.xlane.f32.xlu0 %v1894
  %v1896 = vpop.xlane.xlu0 %1895
  %vm1897 = vcmp.eq.f32.partialorder %v1894, %v1896
  %v1898 = vsel %vm1897, %v1893, inf
  %1899 = vmin.xlane.f32.xlu0 %v1898
  %v1900 = vpop.xlane.xlu0 %1899
  %v1901 = vcvt.f32.s32 %v1900
  %v1902 = vcvt.f32.s32 %v1896
  %v1903 = vshll.u32 %v1902, 16
  %v1904 = vadd.s32 %v1903, %v1901
  %vm1905 = vcmp.eq.s32.totalorder %v1396, %v1904
  %v1906 = vsel %vm1905, 1, 0
  %v1907 = vcvt.s32.f32 %v1906
  %1909 = vrot.lane.b32.xlu0 %v1731, 32
  %v1910 = vpop.permute.xlu0 %1909
  %v1912 = vsel %vm93, %v1907, %v1910
  %v1914 = vsel %vm1405, %v1912, 0
  %1916 = vmatprep.subr.mxu0 0.0
  %1917 = vmatpush1.msra.mxu0 0.0
  %1918 = vmatprep.subr.mxu0 0.0
  %1919 = vmatpush1.msra.mxu0 0.0
  %1920 = vmatprep.subr.mxu0 0.0
  %1921 = vmatpush1.msra.mxu0 0.0
  %1922 = vmatprep.subr.mxu0 0.0
  %1923 = vmatpush1.msra.mxu0 0.0
  %1924 = vmatprep.subr.mxu0 0.0
  %1925 = vmatpush1.msra.mxu0 0.0
  %1926 = vmatprep.subr.mxu0 0.0
  %1927 = vmatpush1.msra.mxu0 0.0
  %1928 = vmatprep.subr.mxu0 0.0
  %1929 = vmatpush1.msra.mxu0 0.0
  %1930 = vmatprep.subr.mxu0 0.0
  %1931 = vmatpush1.msra.mxu0 0.0
  %1932 = vmatprep.subr.mxu0 0.0
  %1933 = vmatpush1.msra.mxu0 %v54
  %1934 = vmatprep.subr.mxu0 0.0
  %1935 = vmatpush1.msra.mxu0 %v53
  %1936 = vmatprep.subr.mxu0 0.0
  %1937 = vmatpush1.msra.mxu0 %v52
  %1938 = vmatprep.subr.mxu0 0.0
  %1939 = vmatpush1.msra.mxu0 %v51
  %1940 = vmatprep.subr.mxu0 0.0
  %1941 = vmatpush1.msra.mxu0 %v50
  %1942 = vmatprep.subr.mxu0 0.0
  %1943 = vmatpush1.msra.mxu0 %v49
  %1944 = vmatprep.subr.mxu0 0.0
  %1945 = vmatpush1.msra.mxu0 %v48
  %1946 = vmatprep.subr.mxu0 0.0
  %1947 = vmatpush1.msra.mxu0 %v47
  %1948 = vmatprep.subr.mxu0 0.0
  %1949 = vmatpush2.msra.mxu0 0.0
  %1950 = vmatprep.subr.mxu0 0.0
  %1951 = vmatpush2.msra.mxu0 0.0
  %1952 = vmatprep.subr.mxu0 0.0
  %1953 = vmatpush2.msra.mxu0 0.0
  %1954 = vmatprep.subr.mxu0 0.0
  %1955 = vmatpush2.msra.mxu0 0.0
  %1956 = vmatprep.subr.mxu0 0.0
  %1957 = vmatpush2.msra.mxu0 0.0
  %1958 = vmatprep.subr.mxu0 0.0
  %1959 = vmatpush2.msra.mxu0 0.0
  %1960 = vmatprep.subr.mxu0 0.0
  %1961 = vmatpush2.msra.mxu0 0.0
  %1962 = vmatprep.subr.mxu0 0.0
  %1963 = vmatpush2.msra.mxu0 0.0
  %1964 = vmatprep.subr.mxu0 0.0
  %1965 = vmatpush2.msra.mxu0 0.0
  %1966 = vmatprep.subr.mxu0 0.0
  %1967 = vmatpush2.msra.mxu0 0.0
  %1968 = vmatprep.subr.mxu0 0.0
  %1969 = vmatpush2.msra.mxu0 0.0
  %1970 = vmatprep.subr.mxu0 0.0
  %1971 = vmatpush2.msra.mxu0 0.0
  %1972 = vmatprep.subr.mxu0 0.0
  %1973 = vmatpush2.msra.mxu0 0.0
  %1974 = vmatprep.subr.mxu0 0.0
  %1975 = vmatpush2.msra.mxu0 0.0
  %1976 = vmatprep.subr.mxu0 0.0
  %1977 = vmatpush2.msra.mxu0 0.0
  %1978 = vmatprep.subr.mxu0 0.0
  %1979 = vmatpush2.msra.mxu0 0.0
  %1980 = vmatprep.mubr.f32.mxu0 0.0
  %1981 = vmatmul.mubr.f32.gmra.mxu0 %v1914
  %v1982 = vpop.f32.mrf.mxu0
  %v1983 = vadd.f32 0.0, %v1982
  %v1984 = vpop.f32.mrf.mxu0
  %1985 = vdwg.mxu0
  %v1986 = vtanh.pop %v1983
  %1987 = vrot.lane.b32.xlu0 %v1809, 32
  %v1988 = vpop.permute.xlu0 %1987
  %v1990 = vsel %vm93, %v1986, %v1988
  %v1992 = vsel %vm1405, %v1990, 0
  %1994 = vmatprep.subr.mxu0 0.0
  %1995 = vmatpush1.msra.mxu0 0.0
  %1996 = vmatprep.subr.mxu0 0.0
  %1997 = vmatpush1.msra.mxu0 0.0
  %1998 = vmatprep.subr.mxu0 0.0
  %1999 = vmatpush1.msra.mxu0 0.0
  %2000 = vmatprep.subr.mxu0 0.0
  %2001 = vmatpush1.msra.mxu0 0.0
  %2002 = vmatprep.subr.mxu0 0.0
  %2003 = vmatpush1.msra.mxu0 0.0
  %2004 = vmatprep.subr.mxu0 0.0
  %2005 = vmatpush1.msra.mxu0 0.0
  %2006 = vmatprep.subr.mxu0 0.0
  %2007 = vmatpush1.msra.mxu0 0.0
  %2008 = vmatprep.subr.mxu0 0.0
  %2009 = vmatpush1.msra.mxu0 0.0
  %2010 = vmatprep.subr.mxu0 0.0
  %2011 = vmatpush1.msra.mxu0 %v72
  %2012 = vmatprep.subr.mxu0 0.0
  %2013 = vmatpush1.msra.mxu0 %v71
  %2014 = vmatprep.subr.mxu0 0.0
  %2015 = vmatpush1.msra.mxu0 %v70
  %2016 = vmatprep.subr.mxu0 0.0
  %2017 = vmatpush1.msra.mxu0 %v69
  %2018 = vmatprep.subr.mxu0 0.0
  %2019 = vmatpush1.msra.mxu0 %v68
  %2020 = vmatprep.subr.mxu0 0.0
  %2021 = vmatpush1.msra.mxu0 %v67
  %2022 = vmatprep.subr.mxu0 0.0
  %2023 = vmatpush1.msra.mxu0 %v66
  %2024 = vmatprep.subr.mxu0 0.0
  %2025 = vmatpush1.msra.mxu0 %v65
  %2026 = vmatprep.subr.mxu0 0.0
  %2027 = vmatpush2.msra.mxu0 0.0
  %2028 = vmatprep.subr.mxu0 0.0
  %2029 = vmatpush2.msra.mxu0 0.0
  %2030 = vmatprep.subr.mxu0 0.0
  %2031 = vmatpush2.msra.mxu0 0.0
  %2032 = vmatprep.subr.mxu0 0.0
  %2033 = vmatpush2.msra.mxu0 0.0
  %2034 = vmatprep.subr.mxu0 0.0
  %2035 = vmatpush2.msra.mxu0 0.0
  %2036 = vmatprep.subr.mxu0 0.0
  %2037 = vmatpush2.msra.mxu0 0.0
  %2038 = vmatprep.subr.mxu0 0.0
  %2039 = vmatpush2.msra.mxu0 0.0
  %2040 = vmatprep.subr.mxu0 0.0
  %2041 = vmatpush2.msra.mxu0 0.0
  %2042 = vmatprep.subr.mxu0 0.0
  %2043 = vmatpush2.msra.mxu0 0.0
  %2044 = vmatprep.subr.mxu0 0.0
  %2045 = vmatpush2.msra.mxu0 0.0
  %2046 = vmatprep.subr.mxu0 0.0
  %2047 = vmatpush2.msra.mxu0 0.0
  %2048 = vmatprep.subr.mxu0 0.0
  %2049 = vmatpush2.msra.mxu0 0.0
  %2050 = vmatprep.subr.mxu0 0.0
  %2051 = vmatpush2.msra.mxu0 0.0
  %2052 = vmatprep.subr.mxu0 0.0
  %2053 = vmatpush2.msra.mxu0 0.0
  %2054 = vmatprep.subr.mxu0 0.0
  %2055 = vmatpush2.msra.mxu0 0.0
  %2056 = vmatprep.subr.mxu0 0.0
  %2057 = vmatpush2.msra.mxu0 0.0
  %2058 = vmatprep.mubr.f32.mxu0 0.0
  %2059 = vmatmul.mubr.f32.gmra.mxu0 %v1992
  %v2060 = vpop.f32.mrf.mxu0
  %v2061 = vadd.f32 %v78, %v2060
  %v2062 = vpop.f32.mrf.mxu0
  %2063 = vdwg.mxu0
  %v2064 = vtanh.pop %v2061
  %v2066 = vsel %vm93, %v2064, 0
  %2068 = vmatprep.subr.mxu0 0.0
  %2069 = vmatpush1.msra.mxu0 0.0
  %2070 = vmatprep.subr.mxu0 0.0
  %2071 = vmatpush1.msra.mxu0 0.0
  %2072 = vmatprep.subr.mxu0 0.0
  %2073 = vmatpush1.msra.mxu0 0.0
  %2074 = vmatprep.subr.mxu0 0.0
  %2075 = vmatpush1.msra.mxu0 0.0
  %2076 = vmatprep.subr.mxu0 0.0
  %2077 = vmatpush1.msra.mxu0 0.0
  %2078 = vmatprep.subr.mxu0 0.0
  %2079 = vmatpush1.msra.mxu0 0.0
  %2080 = vmatprep.subr.mxu0 0.0
  %2081 = vmatpush1.msra.mxu0 0.0
  %2082 = vmatprep.subr.mxu0 0.0
  %2083 = vmatpush1.msra.mxu0 0.0
  %2084 = vmatprep.subr.mxu0 0.0
  %2085 = vmatpush1.msra.mxu0 0.0
  %2086 = vmatprep.subr.mxu0 0.0
  %2087 = vmatpush1.msra.mxu0 0.0
  %2088 = vmatprep.subr.mxu0 0.0
  %2089 = vmatpush1.msra.mxu0 0.0
  %2090 = vmatprep.subr.mxu0 0.0
  %2091 = vmatpush1.msra.mxu0 0.0
  %2092 = vmatprep.subr.mxu0 0.0
  %2093 = vmatpush1.msra.mxu0 %v63
  %2094 = vmatprep.subr.mxu0 0.0
  %2095 = vmatpush1.msra.mxu0 %v62
  %2096 = vmatprep.subr.mxu0 0.0
  %2097 = vmatpush1.msra.mxu0 %v61
  %2098 = vmatprep.subr.mxu0 0.0
  %2099 = vmatpush1.msra.mxu0 %v60
  %2100 = vmatprep.subr.mxu0 0.0
  %2101 = vmatpush2.msra.mxu0 0.0
  %2102 = vmatprep.subr.mxu0 0.0
  %2103 = vmatpush2.msra.mxu0 0.0
  %2104 = vmatprep.subr.mxu0 0.0
  %2105 = vmatpush2.msra.mxu0 0.0
  %2106 = vmatprep.subr.mxu0 0.0
  %2107 = vmatpush2.msra.mxu0 0.0
  %2108 = vmatprep.subr.mxu0 0.0
  %2109 = vmatpush2.msra.mxu0 0.0
  %2110 = vmatprep.subr.mxu0 0.0
  %2111 = vmatpush2.msra.mxu0 0.0
  %2112 = vmatprep.subr.mxu0 0.0
  %2113 = vmatpush2.msra.mxu0 0.0
  %2114 = vmatprep.subr.mxu0 0.0
  %2115 = vmatpush2.msra.mxu0 0.0
  %2116 = vmatprep.subr.mxu0 0.0
  %2117 = vmatpush2.msra.mxu0 0.0
  %2118 = vmatprep.subr.mxu0 0.0
  %2119 = vmatpush2.msra.mxu0 0.0
  %2120 = vmatprep.subr.mxu0 0.0
  %2121 = vmatpush2.msra.mxu0 0.0
  %2122 = vmatprep.subr.mxu0 0.0
  %2123 = vmatpush2.msra.mxu0 0.0
  %2124 = vmatprep.subr.mxu0 0.0
  %2125 = vmatpush2.msra.mxu0 0.0
  %2126 = vmatprep.subr.mxu0 0.0
  %2127 = vmatpush2.msra.mxu0 0.0
  %2128 = vmatprep.subr.mxu0 0.0
  %2129 = vmatpush2.msra.mxu0 0.0
  %2130 = vmatprep.subr.mxu0 0.0
  %2131 = vmatpush2.msra.mxu0 0.0
  %2132 = vmatprep.mubr.f32.mxu0 0.0
  %2133 = vmatmul.mubr.f32.gmra.mxu0 %v2066
  %v2134 = vpop.f32.mrf.mxu0
  %v2135 = vadd.f32 %v90, %v2134
  %v2136 = vpop.f32.mrf.mxu0
  %2137 = vdwg.mxu0
  %s2138 = scalar_lea.vmem %s11, 4
  %2139 = vst.msk [vmem:[%s2138] sm:$0x3] %vm1628, %v2135
  %v2140 = vsel %vm1628, %v2135, -inf
  %2141 = vmax.xlane.f32.xlu0 %v2140
  %v2142 = vpop.xlane.xlu0 %2141
  %vm2143 = vcmp.eq.f32.partialorder %v2135, %v2142
  %v2144 = vsel %vm2143, %v1396, 16
  %v2145 = vsel %vm1628, %v2144, 2147483647
  %v2146 = vand.u32 %v2145, 65535
  %v2147 = vshra.s32 %v2145, 16
  %v2148 = vcvt.s32.f32 %v2146
  %v2149 = vcvt.s32.f32 %v2147
  %2150 = vmin.xlane.f32.xlu0 %v2149
  %v2151 = vpop.xlane.xlu0 %2150
  %vm2152 = vcmp.eq.f32.partialorder %v2149, %v2151
  %v2153 = vsel %vm2152, %v2148, inf
  %2154 = vmin.xlane.f32.xlu0 %v2153
  %v2155 = vpop.xlane.xlu0 %2154
  %v2156 = vcvt.f32.s32 %v2155
  %v2157 = vcvt.f32.s32 %v2151
  %v2158 = vshll.u32 %v2157, 16
  %v2159 = vadd.s32 %v2158, %v2156
  %vm2160 = vcmp.eq.s32.totalorder %v1396, %v2159
  %v2161 = vsel %vm2160, 1, 0
  %v2162 = vcvt.s32.f32 %v2161
  %2164 = vrot.lane.b32.xlu0 %v1986, 32
  %v2165 = vpop.permute.xlu0 %2164
  %v2167 = vsel %vm93, %v2162, %v2165
  %v2169 = vsel %vm1405, %v2167, 0
  %2171 = vmatprep.subr.mxu0 0.0
  %2172 = vmatpush1.msra.mxu0 0.0
  %2173 = vmatprep.subr.mxu0 0.0
  %2174 = vmatpush1.msra.mxu0 0.0
  %2175 = vmatprep.subr.mxu0 0.0
  %2176 = vmatpush1.msra.mxu0 0.0
  %2177 = vmatprep.subr.mxu0 0.0
  %2178 = vmatpush1.msra.mxu0 0.0
  %2179 = vmatprep.subr.mxu0 0.0
  %2180 = vmatpush1.msra.mxu0 0.0
  %2181 = vmatprep.subr.mxu0 0.0
  %2182 = vmatpush1.msra.mxu0 0.0
  %2183 = vmatprep.subr.mxu0 0.0
  %2184 = vmatpush1.msra.mxu0 0.0
  %2185 = vmatprep.subr.mxu0 0.0
  %2186 = vmatpush1.msra.mxu0 0.0
  %2187 = vmatprep.subr.mxu0 0.0
  %2188 = vmatpush1.msra.mxu0 %v54
  %2189 = vmatprep.subr.mxu0 0.0
  %2190 = vmatpush1.msra.mxu0 %v53
  %2191 = vmatprep.subr.mxu0 0.0
  %2192 = vmatpush1.msra.mxu0 %v52
  %2193 = vmatprep.subr.mxu0 0.0
  %2194 = vmatpush1.msra.mxu0 %v51
  %2195 = vmatprep.subr.mxu0 0.0
  %2196 = vmatpush1.msra.mxu0 %v50
  %2197 = vmatprep.subr.mxu0 0.0
  %2198 = vmatpush1.msra.mxu0 %v49
  %2199 = vmatprep.subr.mxu0 0.0
  %2200 = vmatpush1.msra.mxu0 %v48
  %2201 = vmatprep.subr.mxu0 0.0
  %2202 = vmatpush1.msra.mxu0 %v47
  %2203 = vmatprep.subr.mxu0 0.0
  %2204 = vmatpush2.msra.mxu0 0.0
  %2205 = vmatprep.subr.mxu0 0.0
  %2206 = vmatpush2.msra.mxu0 0.0
  %2207 = vmatprep.subr.mxu0 0.0
  %2208 = vmatpush2.msra.mxu0 0.0
  %2209 = vmatprep.subr.mxu0 0.0
  %2210 = vmatpush2.msra.mxu0 0.0
  %2211 = vmatprep.subr.mxu0 0.0
  %2212 = vmatpush2.msra.mxu0 0.0
  %2213 = vmatprep.subr.mxu0 0.0
  %2214 = vmatpush2.msra.mxu0 0.0
  %2215 = vmatprep.subr.mxu0 0.0
  %2216 = vmatpush2.msra.mxu0 0.0
  %2217 = vmatprep.subr.mxu0 0.0
  %2218 = vmatpush2.msra.mxu0 0.0
  %2219 = vmatprep.subr.mxu0 0.0
  %2220 = vmatpush2.msra.mxu0 0.0
  %2221 = vmatprep.subr.mxu0 0.0
  %2222 = vmatpush2.msra.mxu0 0.0
  %2223 = vmatprep.subr.mxu0 0.0
  %2224 = vmatpush2.msra.mxu0 0.0
  %2225 = vmatprep.subr.mxu0 0.0
  %2226 = vmatpush2.msra.mxu0 0.0
  %2227 = vmatprep.subr.mxu0 0.0
  %2228 = vmatpush2.msra.mxu0 0.0
  %2229 = vmatprep.subr.mxu0 0.0
  %2230 = vmatpush2.msra.mxu0 0.0
  %2231 = vmatprep.subr.mxu0 0.0
  %2232 = vmatpush2.msra.mxu0 0.0
  %2233 = vmatprep.subr.mxu0 0.0
  %2234 = vmatpush2.msra.mxu0 0.0
  %2235 = vmatprep.mubr.f32.mxu0 0.0
  %2236 = vmatmul.mubr.f32.gmra.mxu0 %v2169
  %v2237 = vpop.f32.mrf.mxu0
  %v2238 = vadd.f32 0.0, %v2237
  %v2239 = vpop.f32.mrf.mxu0
  %2240 = vdwg.mxu0
  %v2241 = vtanh.pop %v2238
  %2242 = vrot.lane.b32.xlu0 %v2064, 32
  %v2243 = vpop.permute.xlu0 %2242
  %v2245 = vsel %vm93, %v2241, %v2243
  %v2247 = vsel %vm1405, %v2245, 0
  %2249 = vmatprep.subr.mxu0 0.0
  %2250 = vmatpush1.msra.mxu0 0.0
  %2251 = vmatprep.subr.mxu0 0.0
  %2252 = vmatpush1.msra.mxu0 0.0
  %2253 = vmatprep.subr.mxu0 0.0
  %2254 = vmatpush1.msra.mxu0 0.0
  %2255 = vmatprep.subr.mxu0 0.0
  %2256 = vmatpush1.msra.mxu0 0.0
  %2257 = vmatprep.subr.mxu0 0.0
  %2258 = vmatpush1.msra.mxu0 0.0
  %2259 = vmatprep.subr.mxu0 0.0
  %2260 = vmatpush1.msra.mxu0 0.0
  %2261 = vmatprep.subr.mxu0 0.0
  %2262 = vmatpush1.msra.mxu0 0.0
  %2263 = vmatprep.subr.mxu0 0.0
  %2264 = vmatpush1.msra.mxu0 0.0
  %2265 = vmatprep.subr.mxu0 0.0
  %2266 = vmatpush1.msra.mxu0 %v72
  %2267 = vmatprep.subr.mxu0 0.0
  %2268 = vmatpush1.msra.mxu0 %v71
  %2269 = vmatprep.subr.mxu0 0.0
  %2270 = vmatpush1.msra.mxu0 %v70
  %2271 = vmatprep.subr.mxu0 0.0
  %2272 = vmatpush1.msra.mxu0 %v69
  %2273 = vmatprep.subr.mxu0 0.0
  %2274 = vmatpush1.msra.mxu0 %v68
  %2275 = vmatprep.subr.mxu0 0.0
  %2276 = vmatpush1.msra.mxu0 %v67
  %2277 = vmatprep.subr.mxu0 0.0
  %2278 = vmatpush1.msra.mxu0 %v66
  %2279 = vmatprep.subr.mxu0 0.0
  %2280 = vmatpush1.msra.mxu0 %v65
  %2281 = vmatprep.subr.mxu0 0.0
  %2282 = vmatpush2.msra.mxu0 0.0
  %2283 = vmatprep.subr.mxu0 0.0
  %2284 = vmatpush2.msra.mxu0 0.0
  %2285 = vmatprep.subr.mxu0 0.0
  %2286 = vmatpush2.msra.mxu0 0.0
  %2287 = vmatprep.subr.mxu0 0.0
  %2288 = vmatpush2.msra.mxu0 0.0
  %2289 = vmatprep.subr.mxu0 0.0
  %2290 = vmatpush2.msra.mxu0 0.0
  %2291 = vmatprep.subr.mxu0 0.0
  %2292 = vmatpush2.msra.mxu0 0.0
  %2293 = vmatprep.subr.mxu0 0.0
  %2294 = vmatpush2.msra.mxu0 0.0
  %2295 = vmatprep.subr.mxu0 0.0
  %2296 = vmatpush2.msra.mxu0 0.0
  %2297 = vmatprep.subr.mxu0 0.0
  %2298 = vmatpush2.msra.mxu0 0.0
  %2299 = vmatprep.subr.mxu0 0.0
  %2300 = vmatpush2.msra.mxu0 0.0
  %2301 = vmatprep.subr.mxu0 0.0
  %2302 = vmatpush2.msra.mxu0 0.0
  %2303 = vmatprep.subr.mxu0 0.0
  %2304 = vmatpush2.msra.mxu0 0.0
  %2305 = vmatprep.subr.mxu0 0.0
  %2306 = vmatpush2.msra.mxu0 0.0
  %2307 = vmatprep.subr.mxu0 0.0
  %2308 = vmatpush2.msra.mxu0 0.0
  %2309 = vmatprep.subr.mxu0 0.0
  %2310 = vmatpush2.msra.mxu0 0.0
  %2311 = vmatprep.subr.mxu0 0.0
  %2312 = vmatpush2.msra.mxu0 0.0
  %2313 = vmatprep.mubr.f32.mxu0 0.0
  %2314 = vmatmul.mubr.f32.gmra.mxu0 %v2247
  %v2315 = vpop.f32.mrf.mxu0
  %v2316 = vadd.f32 %v78, %v2315
  %v2317 = vpop.f32.mrf.mxu0
  %2318 = vdwg.mxu0
  %v2319 = vtanh.pop %v2316
  %v2321 = vsel %vm93, %v2319, 0
  %2323 = vmatprep.subr.mxu0 0.0
  %2324 = vmatpush1.msra.mxu0 0.0
  %2325 = vmatprep.subr.mxu0 0.0
  %2326 = vmatpush1.msra.mxu0 0.0
  %2327 = vmatprep.subr.mxu0 0.0
  %2328 = vmatpush1.msra.mxu0 0.0
  %2329 = vmatprep.subr.mxu0 0.0
  %2330 = vmatpush1.msra.mxu0 0.0
  %2331 = vmatprep.subr.mxu0 0.0
  %2332 = vmatpush1.msra.mxu0 0.0
  %2333 = vmatprep.subr.mxu0 0.0
  %2334 = vmatpush1.msra.mxu0 0.0
  %2335 = vmatprep.subr.mxu0 0.0
  %2336 = vmatpush1.msra.mxu0 0.0
  %2337 = vmatprep.subr.mxu0 0.0
  %2338 = vmatpush1.msra.mxu0 0.0
  %2339 = vmatprep.subr.mxu0 0.0
  %2340 = vmatpush1.msra.mxu0 0.0
  %2341 = vmatprep.subr.mxu0 0.0
  %2342 = vmatpush1.msra.mxu0 0.0
  %2343 = vmatprep.subr.mxu0 0.0
  %2344 = vmatpush1.msra.mxu0 0.0
  %2345 = vmatprep.subr.mxu0 0.0
  %2346 = vmatpush1.msra.mxu0 0.0
  %2347 = vmatprep.subr.mxu0 0.0
  %2348 = vmatpush1.msra.mxu0 %v63
  %2349 = vmatprep.subr.mxu0 0.0
  %2350 = vmatpush1.msra.mxu0 %v62
  %2351 = vmatprep.subr.mxu0 0.0
  %2352 = vmatpush1.msra.mxu0 %v61
  %2353 = vmatprep.subr.mxu0 0.0
  %2354 = vmatpush1.msra.mxu0 %v60
  %2355 = vmatprep.subr.mxu0 0.0
  %2356 = vmatpush2.msra.mxu0 0.0
  %2357 = vmatprep.subr.mxu0 0.0
  %2358 = vmatpush2.msra.mxu0 0.0
  %2359 = vmatprep.subr.mxu0 0.0
  %2360 = vmatpush2.msra.mxu0 0.0
  %2361 = vmatprep.subr.mxu0 0.0
  %2362 = vmatpush2.msra.mxu0 0.0
  %2363 = vmatprep.subr.mxu0 0.0
  %2364 = vmatpush2.msra.mxu0 0.0
  %2365 = vmatprep.subr.mxu0 0.0
  %2366 = vmatpush2.msra.mxu0 0.0
  %2367 = vmatprep.subr.mxu0 0.0
  %2368 = vmatpush2.msra.mxu0 0.0
  %2369 = vmatprep.subr.mxu0 0.0
  %2370 = vmatpush2.msra.mxu0 0.0
  %2371 = vmatprep.subr.mxu0 0.0
  %2372 = vmatpush2.msra.mxu0 0.0
  %2373 = vmatprep.subr.mxu0 0.0
  %2374 = vmatpush2.msra.mxu0 0.0
  %2375 = vmatprep.subr.mxu0 0.0
  %2376 = vmatpush2.msra.mxu0 0.0
  %2377 = vmatprep.subr.mxu0 0.0
  %2378 = vmatpush2.msra.mxu0 0.0
  %2379 = vmatprep.subr.mxu0 0.0
  %2380 = vmatpush2.msra.mxu0 0.0
  %2381 = vmatprep.subr.mxu0 0.0
  %2382 = vmatpush2.msra.mxu0 0.0
  %2383 = vmatprep.subr.mxu0 0.0
  %2384 = vmatpush2.msra.mxu0 0.0
  %2385 = vmatprep.subr.mxu0 0.0
  %2386 = vmatpush2.msra.mxu0 0.0
  %2387 = vmatprep.mubr.f32.mxu0 0.0
  %2388 = vmatmul.mubr.f32.gmra.mxu0 %v2321
  %v2389 = vpop.f32.mrf.mxu0
  %v2390 = vadd.f32 %v90, %v2389
  %v2391 = vpop.f32.mrf.mxu0
  %2392 = vdwg.mxu0
  %s2393 = scalar_lea.vmem %s11, 6
  %2394 = vst.msk [vmem:[%s2393] sm:$0x3] %vm1628, %v2390
  %v2395 = vsel %vm1628, %v2390, -inf
  %2396 = vmax.xlane.f32.xlu0 %v2395
  %v2397 = vpop.xlane.xlu0 %2396
  %vm2398 = vcmp.eq.f32.partialorder %v2390, %v2397
  %v2399 = vsel %vm2398, %v1396, 16
  %v2400 = vsel %vm1628, %v2399, 2147483647
  %v2401 = vand.u32 %v2400, 65535
  %v2402 = vshra.s32 %v2400, 16
  %v2403 = vcvt.s32.f32 %v2401
  %v2404 = vcvt.s32.f32 %v2402
  %2405 = vmin.xlane.f32.xlu0 %v2404
  %v2406 = vpop.xlane.xlu0 %2405
  %vm2407 = vcmp.eq.f32.partialorder %v2404, %v2406
  %v2408 = vsel %vm2407, %v2403, inf
  %2409 = vmin.xlane.f32.xlu0 %v2408
  %v2410 = vpop.xlane.xlu0 %2409
  %v2411 = vcvt.f32.s32 %v2410
  %v2412 = vcvt.f32.s32 %v2406
  %v2413 = vshll.u32 %v2412, 16
  %v2414 = vadd.s32 %v2413, %v2411
  %vm2415 = vcmp.eq.s32.totalorder %v1396, %v2414
  %v2416 = vsel %vm2415, 1, 0
  %v2417 = vcvt.s32.f32 %v2416
  %2419 = vrot.lane.b32.xlu0 %v2241, 32
  %v2420 = vpop.permute.xlu0 %2419
  %v2422 = vsel %vm93, %v2417, %v2420
  %v2424 = vsel %vm1405, %v2422, 0
  %2426 = vmatprep.subr.mxu0 0.0
  %2427 = vmatpush1.msra.mxu0 0.0
  %2428 = vmatprep.subr.mxu0 0.0
  %2429 = vmatpush1.msra.mxu0 0.0
  %2430 = vmatprep.subr.mxu0 0.0
  %2431 = vmatpush1.msra.mxu0 0.0
  %2432 = vmatprep.subr.mxu0 0.0
  %2433 = vmatpush1.msra.mxu0 0.0
  %2434 = vmatprep.subr.mxu0 0.0
  %2435 = vmatpush1.msra.mxu0 0.0
  %2436 = vmatprep.subr.mxu0 0.0
  %2437 = vmatpush1.msra.mxu0 0.0
  %2438 = vmatprep.subr.mxu0 0.0
  %2439 = vmatpush1.msra.mxu0 0.0
  %2440 = vmatprep.subr.mxu0 0.0
  %2441 = vmatpush1.msra.mxu0 0.0
  %2442 = vmatprep.subr.mxu0 0.0
  %2443 = vmatpush1.msra.mxu0 %v54
  %2444 = vmatprep.subr.mxu0 0.0
  %2445 = vmatpush1.msra.mxu0 %v53
  %2446 = vmatprep.subr.mxu0 0.0
  %2447 = vmatpush1.msra.mxu0 %v52
  %2448 = vmatprep.subr.mxu0 0.0
  %2449 = vmatpush1.msra.mxu0 %v51
  %2450 = vmatprep.subr.mxu0 0.0
  %2451 = vmatpush1.msra.mxu0 %v50
  %2452 = vmatprep.subr.mxu0 0.0
  %2453 = vmatpush1.msra.mxu0 %v49
  %2454 = vmatprep.subr.mxu0 0.0
  %2455 = vmatpush1.msra.mxu0 %v48
  %2456 = vmatprep.subr.mxu0 0.0
  %2457 = vmatpush1.msra.mxu0 %v47
  %2458 = vmatprep.subr.mxu0 0.0
  %2459 = vmatpush2.msra.mxu0 0.0
  %2460 = vmatprep.subr.mxu0 0.0
  %2461 = vmatpush2.msra.mxu0 0.0
  %2462 = vmatprep.subr.mxu0 0.0
  %2463 = vmatpush2.msra.mxu0 0.0
  %2464 = vmatprep.subr.mxu0 0.0
  %2465 = vmatpush2.msra.mxu0 0.0
  %2466 = vmatprep.subr.mxu0 0.0
  %2467 = vmatpush2.msra.mxu0 0.0
  %2468 = vmatprep.subr.mxu0 0.0
  %2469 = vmatpush2.msra.mxu0 0.0
  %2470 = vmatprep.subr.mxu0 0.0
  %2471 = vmatpush2.msra.mxu0 0.0
  %2472 = vmatprep.subr.mxu0 0.0
  %2473 = vmatpush2.msra.mxu0 0.0
  %2474 = vmatprep.subr.mxu0 0.0
  %2475 = vmatpush2.msra.mxu0 0.0
  %2476 = vmatprep.subr.mxu0 0.0
  %2477 = vmatpush2.msra.mxu0 0.0
  %2478 = vmatprep.subr.mxu0 0.0
  %2479 = vmatpush2.msra.mxu0 0.0
  %2480 = vmatprep.subr.mxu0 0.0
  %2481 = vmatpush2.msra.mxu0 0.0
  %2482 = vmatprep.subr.mxu0 0.0
  %2483 = vmatpush2.msra.mxu0 0.0
  %2484 = vmatprep.subr.mxu0 0.0
  %2485 = vmatpush2.msra.mxu0 0.0
  %2486 = vmatprep.subr.mxu0 0.0
  %2487 = vmatpush2.msra.mxu0 0.0
  %2488 = vmatprep.subr.mxu0 0.0
  %2489 = vmatpush2.msra.mxu0 0.0
  %2490 = vmatprep.mubr.f32.mxu0 0.0
  %2491 = vmatmul.mubr.f32.gmra.mxu0 %v2424
  %v2492 = vpop.f32.mrf.mxu0
  %v2493 = vadd.f32 0.0, %v2492
  %v2494 = vpop.f32.mrf.mxu0
  %2495 = vdwg.mxu0
  %v2496 = vtanh.pop %v2493
  %2497 = vrot.lane.b32.xlu0 %v2319, 32
  %v2498 = vpop.permute.xlu0 %2497
  %v2500 = vsel %vm93, %v2496, %v2498
  %v2502 = vsel %vm1405, %v2500, 0
  %2504 = vmatprep.subr.mxu0 0.0
  %2505 = vmatpush1.msra.mxu0 0.0
  %2506 = vmatprep.subr.mxu0 0.0
  %2507 = vmatpush1.msra.mxu0 0.0
  %2508 = vmatprep.subr.mxu0 0.0
  %2509 = vmatpush1.msra.mxu0 0.0
  %2510 = vmatprep.subr.mxu0 0.0
  %2511 = vmatpush1.msra.mxu0 0.0
  %2512 = vmatprep.subr.mxu0 0.0
  %2513 = vmatpush1.msra.mxu0 0.0
  %2514 = vmatprep.subr.mxu0 0.0
  %2515 = vmatpush1.msra.mxu0 0.0
  %2516 = vmatprep.subr.mxu0 0.0
  %2517 = vmatpush1.msra.mxu0 0.0
  %2518 = vmatprep.subr.mxu0 0.0
  %2519 = vmatpush1.msra.mxu0 0.0
  %2520 = vmatprep.subr.mxu0 0.0
  %2521 = vmatpush1.msra.mxu0 %v72
  %2522 = vmatprep.subr.mxu0 0.0
  %2523 = vmatpush1.msra.mxu0 %v71
  %2524 = vmatprep.subr.mxu0 0.0
  %2525 = vmatpush1.msra.mxu0 %v70
  %2526 = vmatprep.subr.mxu0 0.0
  %2527 = vmatpush1.msra.mxu0 %v69
  %2528 = vmatprep.subr.mxu0 0.0
  %2529 = vmatpush1.msra.mxu0 %v68
  %2530 = vmatprep.subr.mxu0 0.0
  %2531 = vmatpush1.msra.mxu0 %v67
  %2532 = vmatprep.subr.mxu0 0.0
  %2533 = vmatpush1.msra.mxu0 %v66
  %2534 = vmatprep.subr.mxu0 0.0
  %2535 = vmatpush1.msra.mxu0 %v65
  %2536 = vmatprep.subr.mxu0 0.0
  %2537 = vmatpush2.msra.mxu0 0.0
  %2538 = vmatprep.subr.mxu0 0.0
  %2539 = vmatpush2.msra.mxu0 0.0
  %2540 = vmatprep.subr.mxu0 0.0
  %2541 = vmatpush2.msra.mxu0 0.0
  %2542 = vmatprep.subr.mxu0 0.0
  %2543 = vmatpush2.msra.mxu0 0.0
  %2544 = vmatprep.subr.mxu0 0.0
  %2545 = vmatpush2.msra.mxu0 0.0
  %2546 = vmatprep.subr.mxu0 0.0
  %2547 = vmatpush2.msra.mxu0 0.0
  %2548 = vmatprep.subr.mxu0 0.0
  %2549 = vmatpush2.msra.mxu0 0.0
  %2550 = vmatprep.subr.mxu0 0.0
  %2551 = vmatpush2.msra.mxu0 0.0
  %2552 = vmatprep.subr.mxu0 0.0
  %2553 = vmatpush2.msra.mxu0 0.0
  %2554 = vmatprep.subr.mxu0 0.0
  %2555 = vmatpush2.msra.mxu0 0.0
  %2556 = vmatprep.subr.mxu0 0.0
  %2557 = vmatpush2.msra.mxu0 0.0
  %2558 = vmatprep.subr.mxu0 0.0
  %2559 = vmatpush2.msra.mxu0 0.0
  %2560 = vmatprep.subr.mxu0 0.0
  %2561 = vmatpush2.msra.mxu0 0.0
  %2562 = vmatprep.subr.mxu0 0.0
  %2563 = vmatpush2.msra.mxu0 0.0
  %2564 = vmatprep.subr.mxu0 0.0
  %2565 = vmatpush2.msra.mxu0 0.0
  %2566 = vmatprep.subr.mxu0 0.0
  %2567 = vmatpush2.msra.mxu0 0.0
  %2568 = vmatprep.mubr.f32.mxu0 0.0
  %2569 = vmatmul.mubr.f32.gmra.mxu0 %v2502
  %v2570 = vpop.f32.mrf.mxu0
  %v2571 = vadd.f32 %v78, %v2570
  %v2572 = vpop.f32.mrf.mxu0
  %2573 = vdwg.mxu0
  %v2574 = vtanh.pop %v2571
  %v2576 = vsel %vm93, %v2574, 0
  %2578 = vmatprep.subr.mxu0 0.0
  %2579 = vmatpush1.msra.mxu0 0.0
  %2580 = vmatprep.subr.mxu0 0.0
  %2581 = vmatpush1.msra.mxu0 0.0
  %2582 = vmatprep.subr.mxu0 0.0
  %2583 = vmatpush1.msra.mxu0 0.0
  %2584 = vmatprep.subr.mxu0 0.0
  %2585 = vmatpush1.msra.mxu0 0.0
  %2586 = vmatprep.subr.mxu0 0.0
  %2587 = vmatpush1.msra.mxu0 0.0
  %2588 = vmatprep.subr.mxu0 0.0
  %2589 = vmatpush1.msra.mxu0 0.0
  %2590 = vmatprep.subr.mxu0 0.0
  %2591 = vmatpush1.msra.mxu0 0.0
  %2592 = vmatprep.subr.mxu0 0.0
  %2593 = vmatpush1.msra.mxu0 0.0
  %2594 = vmatprep.subr.mxu0 0.0
  %2595 = vmatpush1.msra.mxu0 0.0
  %2596 = vmatprep.subr.mxu0 0.0
  %2597 = vmatpush1.msra.mxu0 0.0
  %2598 = vmatprep.subr.mxu0 0.0
  %2599 = vmatpush1.msra.mxu0 0.0
  %2600 = vmatprep.subr.mxu0 0.0
  %2601 = vmatpush1.msra.mxu0 0.0
  %2602 = vmatprep.subr.mxu0 0.0
  %2603 = vmatpush1.msra.mxu0 %v63
  %2604 = vmatprep.subr.mxu0 0.0
  %2605 = vmatpush1.msra.mxu0 %v62
  %2606 = vmatprep.subr.mxu0 0.0
  %2607 = vmatpush1.msra.mxu0 %v61
  %2608 = vmatprep.subr.mxu0 0.0
  %2609 = vmatpush1.msra.mxu0 %v60
  %2610 = vmatprep.subr.mxu0 0.0
  %2611 = vmatpush2.msra.mxu0 0.0
  %2612 = vmatprep.subr.mxu0 0.0
  %2613 = vmatpush2.msra.mxu0 0.0
  %2614 = vmatprep.subr.mxu0 0.0
  %2615 = vmatpush2.msra.mxu0 0.0
  %2616 = vmatprep.subr.mxu0 0.0
  %2617 = vmatpush2.msra.mxu0 0.0
  %2618 = vmatprep.subr.mxu0 0.0
  %2619 = vmatpush2.msra.mxu0 0.0
  %2620 = vmatprep.subr.mxu0 0.0
  %2621 = vmatpush2.msra.mxu0 0.0
  %2622 = vmatprep.subr.mxu0 0.0
  %2623 = vmatpush2.msra.mxu0 0.0
  %2624 = vmatprep.subr.mxu0 0.0
  %2625 = vmatpush2.msra.mxu0 0.0
  %2626 = vmatprep.subr.mxu0 0.0
  %2627 = vmatpush2.msra.mxu0 0.0
  %2628 = vmatprep.subr.mxu0 0.0
  %2629 = vmatpush2.msra.mxu0 0.0
  %2630 = vmatprep.subr.mxu0 0.0
  %2631 = vmatpush2.msra.mxu0 0.0
  %2632 = vmatprep.subr.mxu0 0.0
  %2633 = vmatpush2.msra.mxu0 0.0
  %2634 = vmatprep.subr.mxu0 0.0
  %2635 = vmatpush2.msra.mxu0 0.0
  %2636 = vmatprep.subr.mxu0 0.0
  %2637 = vmatpush2.msra.mxu0 0.0
  %2638 = vmatprep.subr.mxu0 0.0
  %2639 = vmatpush2.msra.mxu0 0.0
  %2640 = vmatprep.subr.mxu0 0.0
  %2641 = vmatpush2.msra.mxu0 0.0
  %2642 = vmatprep.mubr.f32.mxu0 0.0
  %2643 = vmatmul.mubr.f32.gmra.mxu0 %v2576
  %v2644 = vpop.f32.mrf.mxu0
  %v2645 = vadd.f32 %v90, %v2644
  %v2646 = vpop.f32.mrf.mxu0
  %2647 = vdwg.mxu0
  %s2648 = scalar_lea.vmem %s11, 8
  %2649 = vst.msk [vmem:[%s2648] sm:$0x3] %vm1628, %v2645
  %v2650 = vsel %vm1628, %v2645, -inf
  %2651 = vmax.xlane.f32.xlu0 %v2650
  %v2652 = vpop.xlane.xlu0 %2651
  %vm2653 = vcmp.eq.f32.partialorder %v2645, %v2652
  %v2654 = vsel %vm2653, %v1396, 16
  %v2655 = vsel %vm1628, %v2654, 2147483647
  %v2656 = vand.u32 %v2655, 65535
  %v2657 = vshra.s32 %v2655, 16
  %v2658 = vcvt.s32.f32 %v2656
  %v2659 = vcvt.s32.f32 %v2657
  %2660 = vmin.xlane.f32.xlu0 %v2659
  %v2661 = vpop.xlane.xlu0 %2660
  %vm2662 = vcmp.eq.f32.partialorder %v2659, %v2661
  %v2663 = vsel %vm2662, %v2658, inf
  %2664 = vmin.xlane.f32.xlu0 %v2663
  %v2665 = vpop.xlane.xlu0 %2664
  %v2666 = vcvt.f32.s32 %v2665
  %v2667 = vcvt.f32.s32 %v2661
  %v2668 = vshll.u32 %v2667, 16
  %v2669 = vadd.s32 %v2668, %v2666
  %vm2670 = vcmp.eq.s32.totalorder %v1396, %v2669
  %v2671 = vsel %vm2670, 1, 0
  %v2672 = vcvt.s32.f32 %v2671
  %2674 = vrot.lane.b32.xlu0 %v2496, 32
  %v2675 = vpop.permute.xlu0 %2674
  %v2677 = vsel %vm93, %v2672, %v2675
  %v2679 = vsel %vm1405, %v2677, 0
  %2681 = vmatprep.subr.mxu0 0.0
  %2682 = vmatpush1.msra.mxu0 0.0
  %2683 = vmatprep.subr.mxu0 0.0
  %2684 = vmatpush1.msra.mxu0 0.0
  %2685 = vmatprep.subr.mxu0 0.0
  %2686 = vmatpush1.msra.mxu0 0.0
  %2687 = vmatprep.subr.mxu0 0.0
  %2688 = vmatpush1.msra.mxu0 0.0
  %2689 = vmatprep.subr.mxu0 0.0
  %2690 = vmatpush1.msra.mxu0 0.0
  %2691 = vmatprep.subr.mxu0 0.0
  %2692 = vmatpush1.msra.mxu0 0.0
  %2693 = vmatprep.subr.mxu0 0.0
  %2694 = vmatpush1.msra.mxu0 0.0
  %2695 = vmatprep.subr.mxu0 0.0
  %2696 = vmatpush1.msra.mxu0 0.0
  %2697 = vmatprep.subr.mxu0 0.0
  %2698 = vmatpush1.msra.mxu0 %v54
  %2699 = vmatprep.subr.mxu0 0.0
  %2700 = vmatpush1.msra.mxu0 %v53
  %2701 = vmatprep.subr.mxu0 0.0
  %2702 = vmatpush1.msra.mxu0 %v52
  %2703 = vmatprep.subr.mxu0 0.0
  %2704 = vmatpush1.msra.mxu0 %v51
  %2705 = vmatprep.subr.mxu0 0.0
  %2706 = vmatpush1.msra.mxu0 %v50
  %2707 = vmatprep.subr.mxu0 0.0
  %2708 = vmatpush1.msra.mxu0 %v49
  %2709 = vmatprep.subr.mxu0 0.0
  %2710 = vmatpush1.msra.mxu0 %v48
  %2711 = vmatprep.subr.mxu0 0.0
  %2712 = vmatpush1.msra.mxu0 %v47
  %2713 = vmatprep.subr.mxu0 0.0
  %2714 = vmatpush2.msra.mxu0 0.0
  %2715 = vmatprep.subr.mxu0 0.0
  %2716 = vmatpush2.msra.mxu0 0.0
  %2717 = vmatprep.subr.mxu0 0.0
  %2718 = vmatpush2.msra.mxu0 0.0
  %2719 = vmatprep.subr.mxu0 0.0
  %2720 = vmatpush2.msra.mxu0 0.0
  %2721 = vmatprep.subr.mxu0 0.0
  %2722 = vmatpush2.msra.mxu0 0.0
  %2723 = vmatprep.subr.mxu0 0.0
  %2724 = vmatpush2.msra.mxu0 0.0
  %2725 = vmatprep.subr.mxu0 0.0
  %2726 = vmatpush2.msra.mxu0 0.0
  %2727 = vmatprep.subr.mxu0 0.0
  %2728 = vmatpush2.msra.mxu0 0.0
  %2729 = vmatprep.subr.mxu0 0.0
  %2730 = vmatpush2.msra.mxu0 0.0
  %2731 = vmatprep.subr.mxu0 0.0
  %2732 = vmatpush2.msra.mxu0 0.0
  %2733 = vmatprep.subr.mxu0 0.0
  %2734 = vmatpush2.msra.mxu0 0.0
  %2735 = vmatprep.subr.mxu0 0.0
  %2736 = vmatpush2.msra.mxu0 0.0
  %2737 = vmatprep.subr.mxu0 0.0
  %2738 = vmatpush2.msra.mxu0 0.0
  %2739 = vmatprep.subr.mxu0 0.0
  %2740 = vmatpush2.msra.mxu0 0.0
  %2741 = vmatprep.subr.mxu0 0.0
  %2742 = vmatpush2.msra.mxu0 0.0
  %2743 = vmatprep.subr.mxu0 0.0
  %2744 = vmatpush2.msra.mxu0 0.0
  %2745 = vmatprep.mubr.f32.mxu0 0.0
  %2746 = vmatmul.mubr.f32.gmra.mxu0 %v2679
  %v2747 = vpop.f32.mrf.mxu0
  %v2748 = vadd.f32 0.0, %v2747
  %v2749 = vpop.f32.mrf.mxu0
  %2750 = vdwg.mxu0
  %v2751 = vtanh.pop %v2748
  %2752 = vrot.lane.b32.xlu0 %v2574, 32
  %v2753 = vpop.permute.xlu0 %2752
  %v2755 = vsel %vm93, %v2751, %v2753
  %v2757 = vsel %vm1405, %v2755, 0
  %2759 = vmatprep.subr.mxu0 0.0
  %2760 = vmatpush1.msra.mxu0 0.0
  %2761 = vmatprep.subr.mxu0 0.0
  %2762 = vmatpush1.msra.mxu0 0.0
  %2763 = vmatprep.subr.mxu0 0.0
  %2764 = vmatpush1.msra.mxu0 0.0
  %2765 = vmatprep.subr.mxu0 0.0
  %2766 = vmatpush1.msra.mxu0 0.0
  %2767 = vmatprep.subr.mxu0 0.0
  %2768 = vmatpush1.msra.mxu0 0.0
  %2769 = vmatprep.subr.mxu0 0.0
  %2770 = vmatpush1.msra.mxu0 0.0
  %2771 = vmatprep.subr.mxu0 0.0
  %2772 = vmatpush1.msra.mxu0 0.0
  %2773 = vmatprep.subr.mxu0 0.0
  %2774 = vmatpush1.msra.mxu0 0.0
  %2775 = vmatprep.subr.mxu0 0.0
  %2776 = vmatpush1.msra.mxu0 %v72
  %2777 = vmatprep.subr.mxu0 0.0
  %2778 = vmatpush1.msra.mxu0 %v71
  %2779 = vmatprep.subr.mxu0 0.0
  %2780 = vmatpush1.msra.mxu0 %v70
  %2781 = vmatprep.subr.mxu0 0.0
  %2782 = vmatpush1.msra.mxu0 %v69
  %2783 = vmatprep.subr.mxu0 0.0
  %2784 = vmatpush1.msra.mxu0 %v68
  %2785 = vmatprep.subr.mxu0 0.0
  %2786 = vmatpush1.msra.mxu0 %v67
  %2787 = vmatprep.subr.mxu0 0.0
  %2788 = vmatpush1.msra.mxu0 %v66
  %2789 = vmatprep.subr.mxu0 0.0
  %2790 = vmatpush1.msra.mxu0 %v65
  %2791 = vmatprep.subr.mxu0 0.0
  %2792 = vmatpush2.msra.mxu0 0.0
  %2793 = vmatprep.subr.mxu0 0.0
  %2794 = vmatpush2.msra.mxu0 0.0
  %2795 = vmatprep.subr.mxu0 0.0
  %2796 = vmatpush2.msra.mxu0 0.0
  %2797 = vmatprep.subr.mxu0 0.0
  %2798 = vmatpush2.msra.mxu0 0.0
  %2799 = vmatprep.subr.mxu0 0.0
  %2800 = vmatpush2.msra.mxu0 0.0
  %2801 = vmatprep.subr.mxu0 0.0
  %2802 = vmatpush2.msra.mxu0 0.0
  %2803 = vmatprep.subr.mxu0 0.0
  %2804 = vmatpush2.msra.mxu0 0.0
  %2805 = vmatprep.subr.mxu0 0.0
  %2806 = vmatpush2.msra.mxu0 0.0
  %2807 = vmatprep.subr.mxu0 0.0
  %2808 = vmatpush2.msra.mxu0 0.0
  %2809 = vmatprep.subr.mxu0 0.0
  %2810 = vmatpush2.msra.mxu0 0.0
  %2811 = vmatprep.subr.mxu0 0.0
  %2812 = vmatpush2.msra.mxu0 0.0
  %2813 = vmatprep.subr.mxu0 0.0
  %2814 = vmatpush2.msra.mxu0 0.0
  %2815 = vmatprep.subr.mxu0 0.0
  %2816 = vmatpush2.msra.mxu0 0.0
  %2817 = vmatprep.subr.mxu0 0.0
  %2818 = vmatpush2.msra.mxu0 0.0
  %2819 = vmatprep.subr.mxu0 0.0
  %2820 = vmatpush2.msra.mxu0 0.0
  %2821 = vmatprep.subr.mxu0 0.0
  %2822 = vmatpush2.msra.mxu0 0.0
  %2823 = vmatprep.mubr.f32.mxu0 0.0
  %2824 = vmatmul.mubr.f32.gmra.mxu0 %v2757
  %v2825 = vpop.f32.mrf.mxu0
  %v2826 = vadd.f32 %v78, %v2825
  %v2827 = vpop.f32.mrf.mxu0
  %2828 = vdwg.mxu0
  %v2829 = vtanh.pop %v2826
  %v2831 = vsel %vm93, %v2829, 0
  %2833 = vmatprep.subr.mxu0 0.0
  %2834 = vmatpush1.msra.mxu0 0.0
  %2835 = vmatprep.subr.mxu0 0.0
  %2836 = vmatpush1.msra.mxu0 0.0
  %2837 = vmatprep.subr.mxu0 0.0
  %2838 = vmatpush1.msra.mxu0 0.0
  %2839 = vmatprep.subr.mxu0 0.0
  %2840 = vmatpush1.msra.mxu0 0.0
  %2841 = vmatprep.subr.mxu0 0.0
  %2842 = vmatpush1.msra.mxu0 0.0
  %2843 = vmatprep.subr.mxu0 0.0
  %2844 = vmatpush1.msra.mxu0 0.0
  %2845 = vmatprep.subr.mxu0 0.0
  %2846 = vmatpush1.msra.mxu0 0.0
  %2847 = vmatprep.subr.mxu0 0.0
  %2848 = vmatpush1.msra.mxu0 0.0
  %2849 = vmatprep.subr.mxu0 0.0
  %2850 = vmatpush1.msra.mxu0 0.0
  %2851 = vmatprep.subr.mxu0 0.0
  %2852 = vmatpush1.msra.mxu0 0.0
  %2853 = vmatprep.subr.mxu0 0.0
  %2854 = vmatpush1.msra.mxu0 0.0
  %2855 = vmatprep.subr.mxu0 0.0
  %2856 = vmatpush1.msra.mxu0 0.0
  %2857 = vmatprep.subr.mxu0 0.0
  %2858 = vmatpush1.msra.mxu0 %v63
  %2859 = vmatprep.subr.mxu0 0.0
  %2860 = vmatpush1.msra.mxu0 %v62
  %2861 = vmatprep.subr.mxu0 0.0
  %2862 = vmatpush1.msra.mxu0 %v61
  %2863 = vmatprep.subr.mxu0 0.0
  %2864 = vmatpush1.msra.mxu0 %v60
  %2865 = vmatprep.subr.mxu0 0.0
  %2866 = vmatpush2.msra.mxu0 0.0
  %2867 = vmatprep.subr.mxu0 0.0
  %2868 = vmatpush2.msra.mxu0 0.0
  %2869 = vmatprep.subr.mxu0 0.0
  %2870 = vmatpush2.msra.mxu0 0.0
  %2871 = vmatprep.subr.mxu0 0.0
  %2872 = vmatpush2.msra.mxu0 0.0
  %2873 = vmatprep.subr.mxu0 0.0
  %2874 = vmatpush2.msra.mxu0 0.0
  %2875 = vmatprep.subr.mxu0 0.0
  %2876 = vmatpush2.msra.mxu0 0.0
  %2877 = vmatprep.subr.mxu0 0.0
  %2878 = vmatpush2.msra.mxu0 0.0
  %2879 = vmatprep.subr.mxu0 0.0
  %2880 = vmatpush2.msra.mxu0 0.0
  %2881 = vmatprep.subr.mxu0 0.0
  %2882 = vmatpush2.msra.mxu0 0.0
  %2883 = vmatprep.subr.mxu0 0.0
  %2884 = vmatpush2.msra.mxu0 0.0
  %2885 = vmatprep.subr.mxu0 0.0
  %2886 = vmatpush2.msra.mxu0 0.0
  %2887 = vmatprep.subr.mxu0 0.0
  %2888 = vmatpush2.msra.mxu0 0.0
  %2889 = vmatprep.subr.mxu0 0.0
  %2890 = vmatpush2.msra.mxu0 0.0
  %2891 = vmatprep.subr.mxu0 0.0
  %2892 = vmatpush2.msra.mxu0 0.0
  %2893 = vmatprep.subr.mxu0 0.0
  %2894 = vmatpush2.msra.mxu0 0.0
  %2895 = vmatprep.subr.mxu0 0.0
  %2896 = vmatpush2.msra.mxu0 0.0
  %2897 = vmatprep.mubr.f32.mxu0 0.0
  %2898 = vmatmul.mubr.f32.gmra.mxu0 %v2831
  %v2899 = vpop.f32.mrf.mxu0
  %v2900 = vadd.f32 %v90, %v2899
  %v2901 = vpop.f32.mrf.mxu0
  %2902 = vdwg.mxu0
  %s2903 = scalar_lea.vmem %s11, 10
  %2904 = vst.msk [vmem:[%s2903] sm:$0x3] %vm1628, %v2900
  %v2905 = vsel %vm1628, %v2900, -inf
  %2906 = vmax.xlane.f32.xlu0 %v2905
  %v2907 = vpop.xlane.xlu0 %2906
  %vm2908 = vcmp.eq.f32.partialorder %v2900, %v2907
  %v2909 = vsel %vm2908, %v1396, 16
  %v2910 = vsel %vm1628, %v2909, 2147483647
  %v2911 = vand.u32 %v2910, 65535
  %v2912 = vshra.s32 %v2910, 16
  %v2913 = vcvt.s32.f32 %v2911
  %v2914 = vcvt.s32.f32 %v2912
  %2915 = vmin.xlane.f32.xlu0 %v2914
  %v2916 = vpop.xlane.xlu0 %2915
  %vm2917 = vcmp.eq.f32.partialorder %v2914, %v2916
  %v2918 = vsel %vm2917, %v2913, inf
  %2919 = vmin.xlane.f32.xlu0 %v2918
  %v2920 = vpop.xlane.xlu0 %2919
  %v2921 = vcvt.f32.s32 %v2920
  %v2922 = vcvt.f32.s32 %v2916
  %v2923 = vshll.u32 %v2922, 16
  %v2924 = vadd.s32 %v2923, %v2921
  %vm2925 = vcmp.eq.s32.totalorder %v1396, %v2924
  %v2926 = vsel %vm2925, 1, 0
  %v2927 = vcvt.s32.f32 %v2926
  %2929 = vrot.lane.b32.xlu0 %v2751, 32
  %v2930 = vpop.permute.xlu0 %2929
  %v2932 = vsel %vm93, %v2927, %v2930
  %v2934 = vsel %vm1405, %v2932, 0
  %2936 = vmatprep.subr.mxu0 0.0
  %2937 = vmatpush1.msra.mxu0 0.0
  %2938 = vmatprep.subr.mxu0 0.0
  %2939 = vmatpush1.msra.mxu0 0.0
  %2940 = vmatprep.subr.mxu0 0.0
  %2941 = vmatpush1.msra.mxu0 0.0
  %2942 = vmatprep.subr.mxu0 0.0
  %2943 = vmatpush1.msra.mxu0 0.0
  %2944 = vmatprep.subr.mxu0 0.0
  %2945 = vmatpush1.msra.mxu0 0.0
  %2946 = vmatprep.subr.mxu0 0.0
  %2947 = vmatpush1.msra.mxu0 0.0
  %2948 = vmatprep.subr.mxu0 0.0
  %2949 = vmatpush1.msra.mxu0 0.0
  %2950 = vmatprep.subr.mxu0 0.0
  %2951 = vmatpush1.msra.mxu0 0.0
  %2952 = vmatprep.subr.mxu0 0.0
  %2953 = vmatpush1.msra.mxu0 %v54
  %2954 = vmatprep.subr.mxu0 0.0
  %2955 = vmatpush1.msra.mxu0 %v53
  %2956 = vmatprep.subr.mxu0 0.0
  %2957 = vmatpush1.msra.mxu0 %v52
  %2958 = vmatprep.subr.mxu0 0.0
  %2959 = vmatpush1.msra.mxu0 %v51
  %2960 = vmatprep.subr.mxu0 0.0
  %2961 = vmatpush1.msra.mxu0 %v50
  %2962 = vmatprep.subr.mxu0 0.0
  %2963 = vmatpush1.msra.mxu0 %v49
  %2964 = vmatprep.subr.mxu0 0.0
  %2965 = vmatpush1.msra.mxu0 %v48
  %2966 = vmatprep.subr.mxu0 0.0
  %2967 = vmatpush1.msra.mxu0 %v47
  %2968 = vmatprep.subr.mxu0 0.0
  %2969 = vmatpush2.msra.mxu0 0.0
  %2970 = vmatprep.subr.mxu0 0.0
  %2971 = vmatpush2.msra.mxu0 0.0
  %2972 = vmatprep.subr.mxu0 0.0
  %2973 = vmatpush2.msra.mxu0 0.0
  %2974 = vmatprep.subr.mxu0 0.0
  %2975 = vmatpush2.msra.mxu0 0.0
  %2976 = vmatprep.subr.mxu0 0.0
  %2977 = vmatpush2.msra.mxu0 0.0
  %2978 = vmatprep.subr.mxu0 0.0
  %2979 = vmatpush2.msra.mxu0 0.0
  %2980 = vmatprep.subr.mxu0 0.0
  %2981 = vmatpush2.msra.mxu0 0.0
  %2982 = vmatprep.subr.mxu0 0.0
  %2983 = vmatpush2.msra.mxu0 0.0
  %2984 = vmatprep.subr.mxu0 0.0
  %2985 = vmatpush2.msra.mxu0 0.0
  %2986 = vmatprep.subr.mxu0 0.0
  %2987 = vmatpush2.msra.mxu0 0.0
  %2988 = vmatprep.subr.mxu0 0.0
  %2989 = vmatpush2.msra.mxu0 0.0
  %2990 = vmatprep.subr.mxu0 0.0
  %2991 = vmatpush2.msra.mxu0 0.0
  %2992 = vmatprep.subr.mxu0 0.0
  %2993 = vmatpush2.msra.mxu0 0.0
  %2994 = vmatprep.subr.mxu0 0.0
  %2995 = vmatpush2.msra.mxu0 0.0
  %2996 = vmatprep.subr.mxu0 0.0
  %2997 = vmatpush2.msra.mxu0 0.0
  %2998 = vmatprep.subr.mxu0 0.0
  %2999 = vmatpush2.msra.mxu0 0.0
  %3000 = vmatprep.mubr.f32.mxu0 0.0
  %3001 = vmatmul.mubr.f32.gmra.mxu0 %v2934
  %v3002 = vpop.f32.mrf.mxu0
  %v3003 = vadd.f32 0.0, %v3002
  %v3004 = vpop.f32.mrf.mxu0
  %3005 = vdwg.mxu0
  %v3006 = vtanh.pop %v3003
  %3007 = vrot.lane.b32.xlu0 %v2829, 32
  %v3008 = vpop.permute.xlu0 %3007
  %v3010 = vsel %vm93, %v3006, %v3008
  %v3012 = vsel %vm1405, %v3010, 0
  %3014 = vmatprep.subr.mxu0 0.0
  %3015 = vmatpush1.msra.mxu0 0.0
  %3016 = vmatprep.subr.mxu0 0.0
  %3017 = vmatpush1.msra.mxu0 0.0
  %3018 = vmatprep.subr.mxu0 0.0
  %3019 = vmatpush1.msra.mxu0 0.0
  %3020 = vmatprep.subr.mxu0 0.0
  %3021 = vmatpush1.msra.mxu0 0.0
  %3022 = vmatprep.subr.mxu0 0.0
  %3023 = vmatpush1.msra.mxu0 0.0
  %3024 = vmatprep.subr.mxu0 0.0
  %3025 = vmatpush1.msra.mxu0 0.0
  %3026 = vmatprep.subr.mxu0 0.0
  %3027 = vmatpush1.msra.mxu0 0.0
  %3028 = vmatprep.subr.mxu0 0.0
  %3029 = vmatpush1.msra.mxu0 0.0
  %3030 = vmatprep.subr.mxu0 0.0
  %3031 = vmatpush1.msra.mxu0 %v72
  %3032 = vmatprep.subr.mxu0 0.0
  %3033 = vmatpush1.msra.mxu0 %v71
  %3034 = vmatprep.subr.mxu0 0.0
  %3035 = vmatpush1.msra.mxu0 %v70
  %3036 = vmatprep.subr.mxu0 0.0
  %3037 = vmatpush1.msra.mxu0 %v69
  %3038 = vmatprep.subr.mxu0 0.0
  %3039 = vmatpush1.msra.mxu0 %v68
  %3040 = vmatprep.subr.mxu0 0.0
  %3041 = vmatpush1.msra.mxu0 %v67
  %3042 = vmatprep.subr.mxu0 0.0
  %3043 = vmatpush1.msra.mxu0 %v66
  %3044 = vmatprep.subr.mxu0 0.0
  %3045 = vmatpush1.msra.mxu0 %v65
  %3046 = vmatprep.subr.mxu0 0.0
  %3047 = vmatpush2.msra.mxu0 0.0
  %3048 = vmatprep.subr.mxu0 0.0
  %3049 = vmatpush2.msra.mxu0 0.0
  %3050 = vmatprep.subr.mxu0 0.0
  %3051 = vmatpush2.msra.mxu0 0.0
  %3052 = vmatprep.subr.mxu0 0.0
  %3053 = vmatpush2.msra.mxu0 0.0
  %3054 = vmatprep.subr.mxu0 0.0
  %3055 = vmatpush2.msra.mxu0 0.0
  %3056 = vmatprep.subr.mxu0 0.0
  %3057 = vmatpush2.msra.mxu0 0.0
  %3058 = vmatprep.subr.mxu0 0.0
  %3059 = vmatpush2.msra.mxu0 0.0
  %3060 = vmatprep.subr.mxu0 0.0
  %3061 = vmatpush2.msra.mxu0 0.0
  %3062 = vmatprep.subr.mxu0 0.0
  %3063 = vmatpush2.msra.mxu0 0.0
  %3064 = vmatprep.subr.mxu0 0.0
  %3065 = vmatpush2.msra.mxu0 0.0
  %3066 = vmatprep.subr.mxu0 0.0
  %3067 = vmatpush2.msra.mxu0 0.0
  %3068 = vmatprep.subr.mxu0 0.0
  %3069 = vmatpush2.msra.mxu0 0.0
  %3070 = vmatprep.subr.mxu0 0.0
  %3071 = vmatpush2.msra.mxu0 0.0
  %3072 = vmatprep.subr.mxu0 0.0
  %3073 = vmatpush2.msra.mxu0 0.0
  %3074 = vmatprep.subr.mxu0 0.0
  %3075 = vmatpush2.msra.mxu0 0.0
  %3076 = vmatprep.subr.mxu0 0.0
  %3077 = vmatpush2.msra.mxu0 0.0
  %3078 = vmatprep.mubr.f32.mxu0 0.0
  %3079 = vmatmul.mubr.f32.gmra.mxu0 %v3012
  %v3080 = vpop.f32.mrf.mxu0
  %v3081 = vadd.f32 %v78, %v3080
  %v3082 = vpop.f32.mrf.mxu0
  %3083 = vdwg.mxu0
  %v3084 = vtanh.pop %v3081
  %v3086 = vsel %vm93, %v3084, 0
  %3088 = vmatprep.subr.mxu0 0.0
  %3089 = vmatpush1.msra.mxu0 0.0
  %3090 = vmatprep.subr.mxu0 0.0
  %3091 = vmatpush1.msra.mxu0 0.0
  %3092 = vmatprep.subr.mxu0 0.0
  %3093 = vmatpush1.msra.mxu0 0.0
  %3094 = vmatprep.subr.mxu0 0.0
  %3095 = vmatpush1.msra.mxu0 0.0
  %3096 = vmatprep.subr.mxu0 0.0
  %3097 = vmatpush1.msra.mxu0 0.0
  %3098 = vmatprep.subr.mxu0 0.0
  %3099 = vmatpush1.msra.mxu0 0.0
  %3100 = vmatprep.subr.mxu0 0.0
  %3101 = vmatpush1.msra.mxu0 0.0
  %3102 = vmatprep.subr.mxu0 0.0
  %3103 = vmatpush1.msra.mxu0 0.0
  %3104 = vmatprep.subr.mxu0 0.0
  %3105 = vmatpush1.msra.mxu0 0.0
  %3106 = vmatprep.subr.mxu0 0.0
  %3107 = vmatpush1.msra.mxu0 0.0
  %3108 = vmatprep.subr.mxu0 0.0
  %3109 = vmatpush1.msra.mxu0 0.0
  %3110 = vmatprep.subr.mxu0 0.0
  %3111 = vmatpush1.msra.mxu0 0.0
  %3112 = vmatprep.subr.mxu0 0.0
  %3113 = vmatpush1.msra.mxu0 %v63
  %3114 = vmatprep.subr.mxu0 0.0
  %3115 = vmatpush1.msra.mxu0 %v62
  %3116 = vmatprep.subr.mxu0 0.0
  %3117 = vmatpush1.msra.mxu0 %v61
  %3118 = vmatprep.subr.mxu0 0.0
  %3119 = vmatpush1.msra.mxu0 %v60
  %3120 = vmatprep.subr.mxu0 0.0
  %3121 = vmatpush2.msra.mxu0 0.0
  %3122 = vmatprep.subr.mxu0 0.0
  %3123 = vmatpush2.msra.mxu0 0.0
  %3124 = vmatprep.subr.mxu0 0.0
  %3125 = vmatpush2.msra.mxu0 0.0
  %3126 = vmatprep.subr.mxu0 0.0
  %3127 = vmatpush2.msra.mxu0 0.0
  %3128 = vmatprep.subr.mxu0 0.0
  %3129 = vmatpush2.msra.mxu0 0.0
  %3130 = vmatprep.subr.mxu0 0.0
  %3131 = vmatpush2.msra.mxu0 0.0
  %3132 = vmatprep.subr.mxu0 0.0
  %3133 = vmatpush2.msra.mxu0 0.0
  %3134 = vmatprep.subr.mxu0 0.0
  %3135 = vmatpush2.msra.mxu0 0.0
  %3136 = vmatprep.subr.mxu0 0.0
  %3137 = vmatpush2.msra.mxu0 0.0
  %3138 = vmatprep.subr.mxu0 0.0
  %3139 = vmatpush2.msra.mxu0 0.0
  %3140 = vmatprep.subr.mxu0 0.0
  %3141 = vmatpush2.msra.mxu0 0.0
  %3142 = vmatprep.subr.mxu0 0.0
  %3143 = vmatpush2.msra.mxu0 0.0
  %3144 = vmatprep.subr.mxu0 0.0
  %3145 = vmatpush2.msra.mxu0 0.0
  %3146 = vmatprep.subr.mxu0 0.0
  %3147 = vmatpush2.msra.mxu0 0.0
  %3148 = vmatprep.subr.mxu0 0.0
  %3149 = vmatpush2.msra.mxu0 0.0
  %3150 = vmatprep.subr.mxu0 0.0
  %3151 = vmatpush2.msra.mxu0 0.0
  %3152 = vmatprep.mubr.f32.mxu0 0.0
  %3153 = vmatmul.mubr.f32.gmra.mxu0 %v3086
  %v3154 = vpop.f32.mrf.mxu0
  %v3155 = vadd.f32 %v90, %v3154
  %v3156 = vpop.f32.mrf.mxu0
  %3157 = vdwg.mxu0
  %s3158 = scalar_lea.vmem %s11, 12
  %3159 = vst.msk [vmem:[%s3158] sm:$0x3] %vm1628, %v3155
  %v3160 = vsel %vm1628, %v3155, -inf
  %3161 = vmax.xlane.f32.xlu0 %v3160
  %v3162 = vpop.xlane.xlu0 %3161
  %vm3163 = vcmp.eq.f32.partialorder %v3155, %v3162
  %v3164 = vsel %vm3163, %v1396, 16
  %v3165 = vsel %vm1628, %v3164, 2147483647
  %v3166 = vand.u32 %v3165, 65535
  %v3167 = vshra.s32 %v3165, 16
  %v3168 = vcvt.s32.f32 %v3166
  %v3169 = vcvt.s32.f32 %v3167
  %3170 = vmin.xlane.f32.xlu0 %v3169
  %v3171 = vpop.xlane.xlu0 %3170
  %vm3172 = vcmp.eq.f32.partialorder %v3169, %v3171
  %v3173 = vsel %vm3172, %v3168, inf
  %3174 = vmin.xlane.f32.xlu0 %v3173
  %v3175 = vpop.xlane.xlu0 %3174
  %v3176 = vcvt.f32.s32 %v3175
  %v3177 = vcvt.f32.s32 %v3171
  %v3178 = vshll.u32 %v3177, 16
  %v3179 = vadd.s32 %v3178, %v3176
  %vm3180 = vcmp.eq.s32.totalorder %v1396, %v3179
  %v3181 = vsel %vm3180, 1, 0
  %v3182 = vcvt.s32.f32 %v3181
  %3184 = vrot.lane.b32.xlu0 %v3006, 32
  %v3185 = vpop.permute.xlu0 %3184
  %v3187 = vsel %vm93, %v3182, %v3185
  %v3189 = vsel %vm1405, %v3187, 0
  %3191 = vmatprep.subr.mxu0 0.0
  %3192 = vmatpush1.msra.mxu0 0.0
  %3193 = vmatprep.subr.mxu0 0.0
  %3194 = vmatpush1.msra.mxu0 0.0
  %3195 = vmatprep.subr.mxu0 0.0
  %3196 = vmatpush1.msra.mxu0 0.0
  %3197 = vmatprep.subr.mxu0 0.0
  %3198 = vmatpush1.msra.mxu0 0.0
  %3199 = vmatprep.subr.mxu0 0.0
  %3200 = vmatpush1.msra.mxu0 0.0
  %3201 = vmatprep.subr.mxu0 0.0
  %3202 = vmatpush1.msra.mxu0 0.0
  %3203 = vmatprep.subr.mxu0 0.0
  %3204 = vmatpush1.msra.mxu0 0.0
  %3205 = vmatprep.subr.mxu0 0.0
  %3206 = vmatpush1.msra.mxu0 0.0
  %3207 = vmatprep.subr.mxu0 0.0
  %3208 = vmatpush1.msra.mxu0 %v54
  %3209 = vmatprep.subr.mxu0 0.0
  %3210 = vmatpush1.msra.mxu0 %v53
  %3211 = vmatprep.subr.mxu0 0.0
  %3212 = vmatpush1.msra.mxu0 %v52
  %3213 = vmatprep.subr.mxu0 0.0
  %3214 = vmatpush1.msra.mxu0 %v51
  %3215 = vmatprep.subr.mxu0 0.0
  %3216 = vmatpush1.msra.mxu0 %v50
  %3217 = vmatprep.subr.mxu0 0.0
  %3218 = vmatpush1.msra.mxu0 %v49
  %3219 = vmatprep.subr.mxu0 0.0
  %3220 = vmatpush1.msra.mxu0 %v48
  %3221 = vmatprep.subr.mxu0 0.0
  %3222 = vmatpush1.msra.mxu0 %v47
  %3223 = vmatprep.subr.mxu0 0.0
  %3224 = vmatpush2.msra.mxu0 0.0
  %3225 = vmatprep.subr.mxu0 0.0
  %3226 = vmatpush2.msra.mxu0 0.0
  %3227 = vmatprep.subr.mxu0 0.0
  %3228 = vmatpush2.msra.mxu0 0.0
  %3229 = vmatprep.subr.mxu0 0.0
  %3230 = vmatpush2.msra.mxu0 0.0
  %3231 = vmatprep.subr.mxu0 0.0
  %3232 = vmatpush2.msra.mxu0 0.0
  %3233 = vmatprep.subr.mxu0 0.0
  %3234 = vmatpush2.msra.mxu0 0.0
  %3235 = vmatprep.subr.mxu0 0.0
  %3236 = vmatpush2.msra.mxu0 0.0
  %3237 = vmatprep.subr.mxu0 0.0
  %3238 = vmatpush2.msra.mxu0 0.0
  %3239 = vmatprep.subr.mxu0 0.0
  %3240 = vmatpush2.msra.mxu0 0.0
  %3241 = vmatprep.subr.mxu0 0.0
  %3242 = vmatpush2.msra.mxu0 0.0
  %3243 = vmatprep.subr.mxu0 0.0
  %3244 = vmatpush2.msra.mxu0 0.0
  %3245 = vmatprep.subr.mxu0 0.0
  %3246 = vmatpush2.msra.mxu0 0.0
  %3247 = vmatprep.subr.mxu0 0.0
  %3248 = vmatpush2.msra.mxu0 0.0
  %3249 = vmatprep.subr.mxu0 0.0
  %3250 = vmatpush2.msra.mxu0 0.0
  %3251 = vmatprep.subr.mxu0 0.0
  %3252 = vmatpush2.msra.mxu0 0.0
  %3253 = vmatprep.subr.mxu0 0.0
  %3254 = vmatpush2.msra.mxu0 0.0
  %3255 = vmatprep.mubr.f32.mxu0 0.0
  %3256 = vmatmul.mubr.f32.gmra.mxu0 %v3189
  %v3257 = vpop.f32.mrf.mxu0
  %v3258 = vadd.f32 0.0, %v3257
  %v3259 = vpop.f32.mrf.mxu0
  %3260 = vdwg.mxu0
  %v3261 = vtanh.pop %v3258
  %3262 = vrot.lane.b32.xlu0 %v3084, 32
  %v3263 = vpop.permute.xlu0 %3262
  %v3265 = vsel %vm93, %v3261, %v3263
  %v3267 = vsel %vm1405, %v3265, 0
  %3269 = vmatprep.subr.mxu0 0.0
  %3270 = vmatpush1.msra.mxu0 0.0
  %3271 = vmatprep.subr.mxu0 0.0
  %3272 = vmatpush1.msra.mxu0 0.0
  %3273 = vmatprep.subr.mxu0 0.0
  %3274 = vmatpush1.msra.mxu0 0.0
  %3275 = vmatprep.subr.mxu0 0.0
  %3276 = vmatpush1.msra.mxu0 0.0
  %3277 = vmatprep.subr.mxu0 0.0
  %3278 = vmatpush1.msra.mxu0 0.0
  %3279 = vmatprep.subr.mxu0 0.0
  %3280 = vmatpush1.msra.mxu0 0.0
  %3281 = vmatprep.subr.mxu0 0.0
  %3282 = vmatpush1.msra.mxu0 0.0
  %3283 = vmatprep.subr.mxu0 0.0
  %3284 = vmatpush1.msra.mxu0 0.0
  %3285 = vmatprep.subr.mxu0 0.0
  %3286 = vmatpush1.msra.mxu0 %v72
  %3287 = vmatprep.subr.mxu0 0.0
  %3288 = vmatpush1.msra.mxu0 %v71
  %3289 = vmatprep.subr.mxu0 0.0
  %3290 = vmatpush1.msra.mxu0 %v70
  %3291 = vmatprep.subr.mxu0 0.0
  %3292 = vmatpush1.msra.mxu0 %v69
  %3293 = vmatprep.subr.mxu0 0.0
  %3294 = vmatpush1.msra.mxu0 %v68
  %3295 = vmatprep.subr.mxu0 0.0
  %3296 = vmatpush1.msra.mxu0 %v67
  %3297 = vmatprep.subr.mxu0 0.0
  %3298 = vmatpush1.msra.mxu0 %v66
  %3299 = vmatprep.subr.mxu0 0.0
  %3300 = vmatpush1.msra.mxu0 %v65
  %3301 = vmatprep.subr.mxu0 0.0
  %3302 = vmatpush2.msra.mxu0 0.0
  %3303 = vmatprep.subr.mxu0 0.0
  %3304 = vmatpush2.msra.mxu0 0.0
  %3305 = vmatprep.subr.mxu0 0.0
  %3306 = vmatpush2.msra.mxu0 0.0
  %3307 = vmatprep.subr.mxu0 0.0
  %3308 = vmatpush2.msra.mxu0 0.0
  %3309 = vmatprep.subr.mxu0 0.0
  %3310 = vmatpush2.msra.mxu0 0.0
  %3311 = vmatprep.subr.mxu0 0.0
  %3312 = vmatpush2.msra.mxu0 0.0
  %3313 = vmatprep.subr.mxu0 0.0
  %3314 = vmatpush2.msra.mxu0 0.0
  %3315 = vmatprep.subr.mxu0 0.0
  %3316 = vmatpush2.msra.mxu0 0.0
  %3317 = vmatprep.subr.mxu0 0.0
  %3318 = vmatpush2.msra.mxu0 0.0
  %3319 = vmatprep.subr.mxu0 0.0
  %3320 = vmatpush2.msra.mxu0 0.0
  %3321 = vmatprep.subr.mxu0 0.0
  %3322 = vmatpush2.msra.mxu0 0.0
  %3323 = vmatprep.subr.mxu0 0.0
  %3324 = vmatpush2.msra.mxu0 0.0
  %3325 = vmatprep.subr.mxu0 0.0
  %3326 = vmatpush2.msra.mxu0 0.0
  %3327 = vmatprep.subr.mxu0 0.0
  %3328 = vmatpush2.msra.mxu0 0.0
  %3329 = vmatprep.subr.mxu0 0.0
  %3330 = vmatpush2.msra.mxu0 0.0
  %3331 = vmatprep.subr.mxu0 0.0
  %3332 = vmatpush2.msra.mxu0 0.0
  %3333 = vmatprep.mubr.f32.mxu0 0.0
  %3334 = vmatmul.mubr.f32.gmra.mxu0 %v3267
  %v3335 = vpop.f32.mrf.mxu0
  %v3336 = vadd.f32 %v78, %v3335
  %v3337 = vpop.f32.mrf.mxu0
  %3338 = vdwg.mxu0
  %v3339 = vtanh.pop %v3336
  %v3341 = vsel %vm93, %v3339, 0
  %3343 = vmatprep.subr.mxu0 0.0
  %3344 = vmatpush1.msra.mxu0 0.0
  %3345 = vmatprep.subr.mxu0 0.0
  %3346 = vmatpush1.msra.mxu0 0.0
  %3347 = vmatprep.subr.mxu0 0.0
  %3348 = vmatpush1.msra.mxu0 0.0
  %3349 = vmatprep.subr.mxu0 0.0
  %3350 = vmatpush1.msra.mxu0 0.0
  %3351 = vmatprep.subr.mxu0 0.0
  %3352 = vmatpush1.msra.mxu0 0.0
  %3353 = vmatprep.subr.mxu0 0.0
  %3354 = vmatpush1.msra.mxu0 0.0
  %3355 = vmatprep.subr.mxu0 0.0
  %3356 = vmatpush1.msra.mxu0 0.0
  %3357 = vmatprep.subr.mxu0 0.0
  %3358 = vmatpush1.msra.mxu0 0.0
  %3359 = vmatprep.subr.mxu0 0.0
  %3360 = vmatpush1.msra.mxu0 0.0
  %3361 = vmatprep.subr.mxu0 0.0
  %3362 = vmatpush1.msra.mxu0 0.0
  %3363 = vmatprep.subr.mxu0 0.0
  %3364 = vmatpush1.msra.mxu0 0.0
  %3365 = vmatprep.subr.mxu0 0.0
  %3366 = vmatpush1.msra.mxu0 0.0
  %3367 = vmatprep.subr.mxu0 0.0
  %3368 = vmatpush1.msra.mxu0 %v63
  %3369 = vmatprep.subr.mxu0 0.0
  %3370 = vmatpush1.msra.mxu0 %v62
  %3371 = vmatprep.subr.mxu0 0.0
  %3372 = vmatpush1.msra.mxu0 %v61
  %3373 = vmatprep.subr.mxu0 0.0
  %3374 = vmatpush1.msra.mxu0 %v60
  %3375 = vmatprep.subr.mxu0 0.0
  %3376 = vmatpush2.msra.mxu0 0.0
  %3377 = vmatprep.subr.mxu0 0.0
  %3378 = vmatpush2.msra.mxu0 0.0
  %3379 = vmatprep.subr.mxu0 0.0
  %3380 = vmatpush2.msra.mxu0 0.0
  %3381 = vmatprep.subr.mxu0 0.0
  %3382 = vmatpush2.msra.mxu0 0.0
  %3383 = vmatprep.subr.mxu0 0.0
  %3384 = vmatpush2.msra.mxu0 0.0
  %3385 = vmatprep.subr.mxu0 0.0
  %3386 = vmatpush2.msra.mxu0 0.0
  %3387 = vmatprep.subr.mxu0 0.0
  %3388 = vmatpush2.msra.mxu0 0.0
  %3389 = vmatprep.subr.mxu0 0.0
  %3390 = vmatpush2.msra.mxu0 0.0
  %3391 = vmatprep.subr.mxu0 0.0
  %3392 = vmatpush2.msra.mxu0 0.0
  %3393 = vmatprep.subr.mxu0 0.0
  %3394 = vmatpush2.msra.mxu0 0.0
  %3395 = vmatprep.subr.mxu0 0.0
  %3396 = vmatpush2.msra.mxu0 0.0
  %3397 = vmatprep.subr.mxu0 0.0
  %3398 = vmatpush2.msra.mxu0 0.0
  %3399 = vmatprep.subr.mxu0 0.0
  %3400 = vmatpush2.msra.mxu0 0.0
  %3401 = vmatprep.subr.mxu0 0.0
  %3402 = vmatpush2.msra.mxu0 0.0
  %3403 = vmatprep.subr.mxu0 0.0
  %3404 = vmatpush2.msra.mxu0 0.0
  %3405 = vmatprep.subr.mxu0 0.0
  %3406 = vmatpush2.msra.mxu0 0.0
  %3407 = vmatprep.mubr.f32.mxu0 0.0
  %3408 = vmatmul.mubr.f32.gmra.mxu0 %v3341
  %v3409 = vpop.f32.mrf.mxu0
  %v3410 = vadd.f32 %v90, %v3409
  %v3411 = vpop.f32.mrf.mxu0
  %3412 = vdwg.mxu0
  %s3413 = scalar_lea.vmem %s11, 14
  %3414 = vst.msk [vmem:[%s3413] sm:$0x3] %vm1628, %v3410
  %v3415 = vsel %vm1628, %v3410, -inf
  %3416 = vmax.xlane.f32.xlu0 %v3415
  %v3417 = vpop.xlane.xlu0 %3416
  %vm3418 = vcmp.eq.f32.partialorder %v3410, %v3417
  %v3419 = vsel %vm3418, %v1396, 16
  %v3420 = vsel %vm1628, %v3419, 2147483647
  %v3421 = vand.u32 %v3420, 65535
  %v3422 = vshra.s32 %v3420, 16
  %v3423 = vcvt.s32.f32 %v3421
  %v3424 = vcvt.s32.f32 %v3422
  %3425 = vmin.xlane.f32.xlu0 %v3424
  %v3426 = vpop.xlane.xlu0 %3425
  %vm3427 = vcmp.eq.f32.partialorder %v3424, %v3426
  %v3428 = vsel %vm3427, %v3423, inf
  %3429 = vmin.xlane.f32.xlu0 %v3428
  %v3430 = vpop.xlane.xlu0 %3429
  %v3431 = vcvt.f32.s32 %v3430
  %v3432 = vcvt.f32.s32 %v3426
  %v3433 = vshll.u32 %v3432, 16
  %v3434 = vadd.s32 %v3433, %v3431
  %vm3435 = vcmp.eq.s32.totalorder %v1396, %v3434
  %v3436 = vsel %vm3435, 1, 0
  %v3437 = vcvt.s32.f32 %v3436
  %3439 = vrot.lane.b32.xlu0 %v3261, 32
  %v3440 = vpop.permute.xlu0 %3439
  %v3442 = vsel %vm93, %v3437, %v3440
  %v3444 = vsel %vm1405, %v3442, 0
  %3446 = vmatprep.subr.mxu0 0.0
  %3447 = vmatpush1.msra.mxu0 0.0
  %3448 = vmatprep.subr.mxu0 0.0
  %3449 = vmatpush1.msra.mxu0 0.0
  %3450 = vmatprep.subr.mxu0 0.0
  %3451 = vmatpush1.msra.mxu0 0.0
  %3452 = vmatprep.subr.mxu0 0.0
  %3453 = vmatpush1.msra.mxu0 0.0
  %3454 = vmatprep.subr.mxu0 0.0
  %3455 = vmatpush1.msra.mxu0 0.0
  %3456 = vmatprep.subr.mxu0 0.0
  %3457 = vmatpush1.msra.mxu0 0.0
  %3458 = vmatprep.subr.mxu0 0.0
  %3459 = vmatpush1.msra.mxu0 0.0
  %3460 = vmatprep.subr.mxu0 0.0
  %3461 = vmatpush1.msra.mxu0 0.0
  %3462 = vmatprep.subr.mxu0 0.0
  %3463 = vmatpush1.msra.mxu0 %v54
  %3464 = vmatprep.subr.mxu0 0.0
  %3465 = vmatpush1.msra.mxu0 %v53
  %3466 = vmatprep.subr.mxu0 0.0
  %3467 = vmatpush1.msra.mxu0 %v52
  %3468 = vmatprep.subr.mxu0 0.0
  %3469 = vmatpush1.msra.mxu0 %v51
  %3470 = vmatprep.subr.mxu0 0.0
  %3471 = vmatpush1.msra.mxu0 %v50
  %3472 = vmatprep.subr.mxu0 0.0
  %3473 = vmatpush1.msra.mxu0 %v49
  %3474 = vmatprep.subr.mxu0 0.0
  %3475 = vmatpush1.msra.mxu0 %v48
  %3476 = vmatprep.subr.mxu0 0.0
  %3477 = vmatpush1.msra.mxu0 %v47
  %3478 = vmatprep.subr.mxu0 0.0
  %3479 = vmatpush2.msra.mxu0 0.0
  %3480 = vmatprep.subr.mxu0 0.0
  %3481 = vmatpush2.msra.mxu0 0.0
  %3482 = vmatprep.subr.mxu0 0.0
  %3483 = vmatpush2.msra.mxu0 0.0
  %3484 = vmatprep.subr.mxu0 0.0
  %3485 = vmatpush2.msra.mxu0 0.0
  %3486 = vmatprep.subr.mxu0 0.0
  %3487 = vmatpush2.msra.mxu0 0.0
  %3488 = vmatprep.subr.mxu0 0.0
  %3489 = vmatpush2.msra.mxu0 0.0
  %3490 = vmatprep.subr.mxu0 0.0
  %3491 = vmatpush2.msra.mxu0 0.0
  %3492 = vmatprep.subr.mxu0 0.0
  %3493 = vmatpush2.msra.mxu0 0.0
  %3494 = vmatprep.subr.mxu0 0.0
  %3495 = vmatpush2.msra.mxu0 0.0
  %3496 = vmatprep.subr.mxu0 0.0
  %3497 = vmatpush2.msra.mxu0 0.0
  %3498 = vmatprep.subr.mxu0 0.0
  %3499 = vmatpush2.msra.mxu0 0.0
  %3500 = vmatprep.subr.mxu0 0.0
  %3501 = vmatpush2.msra.mxu0 0.0
  %3502 = vmatprep.subr.mxu0 0.0
  %3503 = vmatpush2.msra.mxu0 0.0
  %3504 = vmatprep.subr.mxu0 0.0
  %3505 = vmatpush2.msra.mxu0 0.0
  %3506 = vmatprep.subr.mxu0 0.0
  %3507 = vmatpush2.msra.mxu0 0.0
  %3508 = vmatprep.subr.mxu0 0.0
  %3509 = vmatpush2.msra.mxu0 0.0
  %3510 = vmatprep.mubr.f32.mxu0 0.0
  %3511 = vmatmul.mubr.f32.gmra.mxu0 %v3444
  %v3512 = vpop.f32.mrf.mxu0
  %v3513 = vadd.f32 0.0, %v3512
  %v3514 = vpop.f32.mrf.mxu0
  %3515 = vdwg.mxu0
  %v3516 = vtanh.pop %v3513
  %3517 = vrot.lane.b32.xlu0 %v3339, 32
  %v3518 = vpop.permute.xlu0 %3517
  %v3520 = vsel %vm93, %v3516, %v3518
  %v3522 = vsel %vm1405, %v3520, 0
  %3524 = vmatprep.subr.mxu0 0.0
  %3525 = vmatpush1.msra.mxu0 0.0
  %3526 = vmatprep.subr.mxu0 0.0
  %3527 = vmatpush1.msra.mxu0 0.0
  %3528 = vmatprep.subr.mxu0 0.0
  %3529 = vmatpush1.msra.mxu0 0.0
  %3530 = vmatprep.subr.mxu0 0.0
  %3531 = vmatpush1.msra.mxu0 0.0
  %3532 = vmatprep.subr.mxu0 0.0
  %3533 = vmatpush1.msra.mxu0 0.0
  %3534 = vmatprep.subr.mxu0 0.0
  %3535 = vmatpush1.msra.mxu0 0.0
  %3536 = vmatprep.subr.mxu0 0.0
  %3537 = vmatpush1.msra.mxu0 0.0
  %3538 = vmatprep.subr.mxu0 0.0
  %3539 = vmatpush1.msra.mxu0 0.0
  %3540 = vmatprep.subr.mxu0 0.0
  %3541 = vmatpush1.msra.mxu0 %v72
  %3542 = vmatprep.subr.mxu0 0.0
  %3543 = vmatpush1.msra.mxu0 %v71
  %3544 = vmatprep.subr.mxu0 0.0
  %3545 = vmatpush1.msra.mxu0 %v70
  %3546 = vmatprep.subr.mxu0 0.0
  %3547 = vmatpush1.msra.mxu0 %v69
  %3548 = vmatprep.subr.mxu0 0.0
  %3549 = vmatpush1.msra.mxu0 %v68
  %3550 = vmatprep.subr.mxu0 0.0
  %3551 = vmatpush1.msra.mxu0 %v67
  %3552 = vmatprep.subr.mxu0 0.0
  %3553 = vmatpush1.msra.mxu0 %v66
  %3554 = vmatprep.subr.mxu0 0.0
  %3555 = vmatpush1.msra.mxu0 %v65
  %3556 = vmatprep.subr.mxu0 0.0
  %3557 = vmatpush2.msra.mxu0 0.0
  %3558 = vmatprep.subr.mxu0 0.0
  %3559 = vmatpush2.msra.mxu0 0.0
  %3560 = vmatprep.subr.mxu0 0.0
  %3561 = vmatpush2.msra.mxu0 0.0
  %3562 = vmatprep.subr.mxu0 0.0
  %3563 = vmatpush2.msra.mxu0 0.0
  %3564 = vmatprep.subr.mxu0 0.0
  %3565 = vmatpush2.msra.mxu0 0.0
  %3566 = vmatprep.subr.mxu0 0.0
  %3567 = vmatpush2.msra.mxu0 0.0
  %3568 = vmatprep.subr.mxu0 0.0
  %3569 = vmatpush2.msra.mxu0 0.0
  %3570 = vmatprep.subr.mxu0 0.0
  %3571 = vmatpush2.msra.mxu0 0.0
  %3572 = vmatprep.subr.mxu0 0.0
  %3573 = vmatpush2.msra.mxu0 0.0
  %3574 = vmatprep.subr.mxu0 0.0
  %3575 = vmatpush2.msra.mxu0 0.0
  %3576 = vmatprep.subr.mxu0 0.0
  %3577 = vmatpush2.msra.mxu0 0.0
  %3578 = vmatprep.subr.mxu0 0.0
  %3579 = vmatpush2.msra.mxu0 0.0
  %3580 = vmatprep.subr.mxu0 0.0
  %3581 = vmatpush2.msra.mxu0 0.0
  %3582 = vmatprep.subr.mxu0 0.0
  %3583 = vmatpush2.msra.mxu0 0.0
  %3584 = vmatprep.subr.mxu0 0.0
  %3585 = vmatpush2.msra.mxu0 0.0
  %3586 = vmatprep.subr.mxu0 0.0
  %3587 = vmatpush2.msra.mxu0 0.0
  %3588 = vmatprep.mubr.f32.mxu0 0.0
  %3589 = vmatmul.mubr.f32.gmra.mxu0 %v3522
  %v3590 = vpop.f32.mrf.mxu0
  %v3591 = vadd.f32 %v78, %v3590
  %v3592 = vpop.f32.mrf.mxu0
  %3593 = vdwg.mxu0
  %v3594 = vtanh.pop %v3591
  %v3596 = vsel %vm93, %v3594, 0
  %3598 = vmatprep.subr.mxu0 0.0
  %3599 = vmatpush1.msra.mxu0 0.0
  %3600 = vmatprep.subr.mxu0 0.0
  %3601 = vmatpush1.msra.mxu0 0.0
  %3602 = vmatprep.subr.mxu0 0.0
  %3603 = vmatpush1.msra.mxu0 0.0
  %3604 = vmatprep.subr.mxu0 0.0
  %3605 = vmatpush1.msra.mxu0 0.0
  %3606 = vmatprep.subr.mxu0 0.0
  %3607 = vmatpush1.msra.mxu0 0.0
  %3608 = vmatprep.subr.mxu0 0.0
  %3609 = vmatpush1.msra.mxu0 0.0
  %3610 = vmatprep.subr.mxu0 0.0
  %3611 = vmatpush1.msra.mxu0 0.0
  %3612 = vmatprep.subr.mxu0 0.0
  %3613 = vmatpush1.msra.mxu0 0.0
  %3614 = vmatprep.subr.mxu0 0.0
  %3615 = vmatpush1.msra.mxu0 0.0
  %3616 = vmatprep.subr.mxu0 0.0
  %3617 = vmatpush1.msra.mxu0 0.0
  %3618 = vmatprep.subr.mxu0 0.0
  %3619 = vmatpush1.msra.mxu0 0.0
  %3620 = vmatprep.subr.mxu0 0.0
  %3621 = vmatpush1.msra.mxu0 0.0
  %3622 = vmatprep.subr.mxu0 0.0
  %3623 = vmatpush1.msra.mxu0 %v63
  %3624 = vmatprep.subr.mxu0 0.0
  %3625 = vmatpush1.msra.mxu0 %v62
  %3626 = vmatprep.subr.mxu0 0.0
  %3627 = vmatpush1.msra.mxu0 %v61
  %3628 = vmatprep.subr.mxu0 0.0
  %3629 = vmatpush1.msra.mxu0 %v60
  %3630 = vmatprep.subr.mxu0 0.0
  %3631 = vmatpush2.msra.mxu0 0.0
  %3632 = vmatprep.subr.mxu0 0.0
  %3633 = vmatpush2.msra.mxu0 0.0
  %3634 = vmatprep.subr.mxu0 0.0
  %3635 = vmatpush2.msra.mxu0 0.0
  %3636 = vmatprep.subr.mxu0 0.0
  %3637 = vmatpush2.msra.mxu0 0.0
  %3638 = vmatprep.subr.mxu0 0.0
  %3639 = vmatpush2.msra.mxu0 0.0
  %3640 = vmatprep.subr.mxu0 0.0
  %3641 = vmatpush2.msra.mxu0 0.0
  %3642 = vmatprep.subr.mxu0 0.0
  %3643 = vmatpush2.msra.mxu0 0.0
  %3644 = vmatprep.subr.mxu0 0.0
  %3645 = vmatpush2.msra.mxu0 0.0
  %3646 = vmatprep.subr.mxu0 0.0
  %3647 = vmatpush2.msra.mxu0 0.0
  %3648 = vmatprep.subr.mxu0 0.0
  %3649 = vmatpush2.msra.mxu0 0.0
  %3650 = vmatprep.subr.mxu0 0.0
  %3651 = vmatpush2.msra.mxu0 0.0
  %3652 = vmatprep.subr.mxu0 0.0
  %3653 = vmatpush2.msra.mxu0 0.0
  %3654 = vmatprep.subr.mxu0 0.0
  %3655 = vmatpush2.msra.mxu0 0.0
  %3656 = vmatprep.subr.mxu0 0.0
  %3657 = vmatpush2.msra.mxu0 0.0
  %3658 = vmatprep.subr.mxu0 0.0
  %3659 = vmatpush2.msra.mxu0 0.0
  %3660 = vmatprep.subr.mxu0 0.0
  %3661 = vmatpush2.msra.mxu0 0.0
  %3662 = vmatprep.mubr.f32.mxu0 0.0
  %3663 = vmatmul.mubr.f32.gmra.mxu0 %v3596
  %v3664 = vpop.f32.mrf.mxu0
  %v3665 = vadd.f32 %v90, %v3664
  %v3666 = vpop.f32.mrf.mxu0
  %3667 = vdwg.mxu0
  %s3668 = scalar_lea.vmem %s11, 16
  %3669 = vst.msk [vmem:[%s3668] sm:$0x3] %vm1628, %v3665
  %v3670 = vsel %vm1628, %v3665, -inf
  %3671 = vmax.xlane.f32.xlu0 %v3670
  %v3672 = vpop.xlane.xlu0 %3671
  %vm3673 = vcmp.eq.f32.partialorder %v3665, %v3672
  %v3674 = vsel %vm3673, %v1396, 16
  %v3675 = vsel %vm1628, %v3674, 2147483647
  %v3676 = vand.u32 %v3675, 65535
  %v3677 = vshra.s32 %v3675, 16
  %v3678 = vcvt.s32.f32 %v3676
  %v3679 = vcvt.s32.f32 %v3677
  %3680 = vmin.xlane.f32.xlu0 %v3679
  %v3681 = vpop.xlane.xlu0 %3680
  %vm3682 = vcmp.eq.f32.partialorder %v3679, %v3681
  %v3683 = vsel %vm3682, %v3678, inf
  %3684 = vmin.xlane.f32.xlu0 %v3683
  %v3685 = vpop.xlane.xlu0 %3684
  %v3686 = vcvt.f32.s32 %v3685
  %v3687 = vcvt.f32.s32 %v3681
  %v3688 = vshll.u32 %v3687, 16
  %v3689 = vadd.s32 %v3688, %v3686
  %vm3690 = vcmp.eq.s32.totalorder %v1396, %v3689
  %v3691 = vsel %vm3690, 1, 0
  %v3692 = vcvt.s32.f32 %v3691
  %3694 = vrot.lane.b32.xlu0 %v3516, 32
  %v3695 = vpop.permute.xlu0 %3694
  %v3697 = vsel %vm93, %v3692, %v3695
  %v3699 = vsel %vm1405, %v3697, 0
  %3701 = vmatprep.subr.mxu0 0.0
  %3702 = vmatpush1.msra.mxu0 0.0
  %3703 = vmatprep.subr.mxu0 0.0
  %3704 = vmatpush1.msra.mxu0 0.0
  %3705 = vmatprep.subr.mxu0 0.0
  %3706 = vmatpush1.msra.mxu0 0.0
  %3707 = vmatprep.subr.mxu0 0.0
  %3708 = vmatpush1.msra.mxu0 0.0
  %3709 = vmatprep.subr.mxu0 0.0
  %3710 = vmatpush1.msra.mxu0 0.0
  %3711 = vmatprep.subr.mxu0 0.0
  %3712 = vmatpush1.msra.mxu0 0.0
  %3713 = vmatprep.subr.mxu0 0.0
  %3714 = vmatpush1.msra.mxu0 0.0
  %3715 = vmatprep.subr.mxu0 0.0
  %3716 = vmatpush1.msra.mxu0 0.0
  %3717 = vmatprep.subr.mxu0 0.0
  %3718 = vmatpush1.msra.mxu0 %v54
  %3719 = vmatprep.subr.mxu0 0.0
  %3720 = vmatpush1.msra.mxu0 %v53
  %3721 = vmatprep.subr.mxu0 0.0
  %3722 = vmatpush1.msra.mxu0 %v52
  %3723 = vmatprep.subr.mxu0 0.0
  %3724 = vmatpush1.msra.mxu0 %v51
  %3725 = vmatprep.subr.mxu0 0.0
  %3726 = vmatpush1.msra.mxu0 %v50
  %3727 = vmatprep.subr.mxu0 0.0
  %3728 = vmatpush1.msra.mxu0 %v49
  %3729 = vmatprep.subr.mxu0 0.0
  %3730 = vmatpush1.msra.mxu0 %v48
  %3731 = vmatprep.subr.mxu0 0.0
  %3732 = vmatpush1.msra.mxu0 %v47
  %3733 = vmatprep.subr.mxu0 0.0
  %3734 = vmatpush2.msra.mxu0 0.0
  %3735 = vmatprep.subr.mxu0 0.0
  %3736 = vmatpush2.msra.mxu0 0.0
  %3737 = vmatprep.subr.mxu0 0.0
  %3738 = vmatpush2.msra.mxu0 0.0
  %3739 = vmatprep.subr.mxu0 0.0
  %3740 = vmatpush2.msra.mxu0 0.0
  %3741 = vmatprep.subr.mxu0 0.0
  %3742 = vmatpush2.msra.mxu0 0.0
  %3743 = vmatprep.subr.mxu0 0.0
  %3744 = vmatpush2.msra.mxu0 0.0
  %3745 = vmatprep.subr.mxu0 0.0
  %3746 = vmatpush2.msra.mxu0 0.0
  %3747 = vmatprep.subr.mxu0 0.0
  %3748 = vmatpush2.msra.mxu0 0.0
  %3749 = vmatprep.subr.mxu0 0.0
  %3750 = vmatpush2.msra.mxu0 0.0
  %3751 = vmatprep.subr.mxu0 0.0
  %3752 = vmatpush2.msra.mxu0 0.0
  %3753 = vmatprep.subr.mxu0 0.0
  %3754 = vmatpush2.msra.mxu0 0.0
  %3755 = vmatprep.subr.mxu0 0.0
  %3756 = vmatpush2.msra.mxu0 0.0
  %3757 = vmatprep.subr.mxu0 0.0
  %3758 = vmatpush2.msra.mxu0 0.0
  %3759 = vmatprep.subr.mxu0 0.0
  %3760 = vmatpush2.msra.mxu0 0.0
  %3761 = vmatprep.subr.mxu0 0.0
  %3762 = vmatpush2.msra.mxu0 0.0
  %3763 = vmatprep.subr.mxu0 0.0
  %3764 = vmatpush2.msra.mxu0 0.0
  %3765 = vmatprep.mubr.f32.mxu0 0.0
  %3766 = vmatmul.mubr.f32.gmra.mxu0 %v3699
  %v3767 = vpop.f32.mrf.mxu0
  %v3768 = vadd.f32 0.0, %v3767
  %v3769 = vpop.f32.mrf.mxu0
  %3770 = vdwg.mxu0
  %v3771 = vtanh.pop %v3768
  %3772 = vrot.lane.b32.xlu0 %v3594, 32
  %v3773 = vpop.permute.xlu0 %3772
  %v3775 = vsel %vm93, %v3771, %v3773
  %v3777 = vsel %vm1405, %v3775, 0
  %3779 = vmatprep.subr.mxu0 0.0
  %3780 = vmatpush1.msra.mxu0 0.0
  %3781 = vmatprep.subr.mxu0 0.0
  %3782 = vmatpush1.msra.mxu0 0.0
  %3783 = vmatprep.subr.mxu0 0.0
  %3784 = vmatpush1.msra.mxu0 0.0
  %3785 = vmatprep.subr.mxu0 0.0
  %3786 = vmatpush1.msra.mxu0 0.0
  %3787 = vmatprep.subr.mxu0 0.0
  %3788 = vmatpush1.msra.mxu0 0.0
  %3789 = vmatprep.subr.mxu0 0.0
  %3790 = vmatpush1.msra.mxu0 0.0
  %3791 = vmatprep.subr.mxu0 0.0
  %3792 = vmatpush1.msra.mxu0 0.0
  %3793 = vmatprep.subr.mxu0 0.0
  %3794 = vmatpush1.msra.mxu0 0.0
  %3795 = vmatprep.subr.mxu0 0.0
  %3796 = vmatpush1.msra.mxu0 %v72
  %3797 = vmatprep.subr.mxu0 0.0
  %3798 = vmatpush1.msra.mxu0 %v71
  %3799 = vmatprep.subr.mxu0 0.0
  %3800 = vmatpush1.msra.mxu0 %v70
  %3801 = vmatprep.subr.mxu0 0.0
  %3802 = vmatpush1.msra.mxu0 %v69
  %3803 = vmatprep.subr.mxu0 0.0
  %3804 = vmatpush1.msra.mxu0 %v68
  %3805 = vmatprep.subr.mxu0 0.0
  %3806 = vmatpush1.msra.mxu0 %v67
  %3807 = vmatprep.subr.mxu0 0.0
  %3808 = vmatpush1.msra.mxu0 %v66
  %3809 = vmatprep.subr.mxu0 0.0
  %3810 = vmatpush1.msra.mxu0 %v65
  %3811 = vmatprep.subr.mxu0 0.0
  %3812 = vmatpush2.msra.mxu0 0.0
  %3813 = vmatprep.subr.mxu0 0.0
  %3814 = vmatpush2.msra.mxu0 0.0
  %3815 = vmatprep.subr.mxu0 0.0
  %3816 = vmatpush2.msra.mxu0 0.0
  %3817 = vmatprep.subr.mxu0 0.0
  %3818 = vmatpush2.msra.mxu0 0.0
  %3819 = vmatprep.subr.mxu0 0.0
  %3820 = vmatpush2.msra.mxu0 0.0
  %3821 = vmatprep.subr.mxu0 0.0
  %3822 = vmatpush2.msra.mxu0 0.0
  %3823 = vmatprep.subr.mxu0 0.0
  %3824 = vmatpush2.msra.mxu0 0.0
  %3825 = vmatprep.subr.mxu0 0.0
  %3826 = vmatpush2.msra.mxu0 0.0
  %3827 = vmatprep.subr.mxu0 0.0
  %3828 = vmatpush2.msra.mxu0 0.0
  %3829 = vmatprep.subr.mxu0 0.0
  %3830 = vmatpush2.msra.mxu0 0.0
  %3831 = vmatprep.subr.mxu0 0.0
  %3832 = vmatpush2.msra.mxu0 0.0
  %3833 = vmatprep.subr.mxu0 0.0
  %3834 = vmatpush2.msra.mxu0 0.0
  %3835 = vmatprep.subr.mxu0 0.0
  %3836 = vmatpush2.msra.mxu0 0.0
  %3837 = vmatprep.subr.mxu0 0.0
  %3838 = vmatpush2.msra.mxu0 0.0
  %3839 = vmatprep.subr.mxu0 0.0
  %3840 = vmatpush2.msra.mxu0 0.0
  %3841 = vmatprep.subr.mxu0 0.0
  %3842 = vmatpush2.msra.mxu0 0.0
  %3843 = vmatprep.mubr.f32.mxu0 0.0
  %3844 = vmatmul.mubr.f32.gmra.mxu0 %v3777
  %v3845 = vpop.f32.mrf.mxu0
  %v3846 = vadd.f32 %v78, %v3845
  %v3847 = vpop.f32.mrf.mxu0
  %3848 = vdwg.mxu0
  %v3849 = vtanh.pop %v3846
  %v3851 = vsel %vm93, %v3849, 0
  %3853 = vmatprep.subr.mxu0 0.0
  %3854 = vmatpush1.msra.mxu0 0.0
  %3855 = vmatprep.subr.mxu0 0.0
  %3856 = vmatpush1.msra.mxu0 0.0
  %3857 = vmatprep.subr.mxu0 0.0
  %3858 = vmatpush1.msra.mxu0 0.0
  %3859 = vmatprep.subr.mxu0 0.0
  %3860 = vmatpush1.msra.mxu0 0.0
  %3861 = vmatprep.subr.mxu0 0.0
  %3862 = vmatpush1.msra.mxu0 0.0
  %3863 = vmatprep.subr.mxu0 0.0
  %3864 = vmatpush1.msra.mxu0 0.0
  %3865 = vmatprep.subr.mxu0 0.0
  %3866 = vmatpush1.msra.mxu0 0.0
  %3867 = vmatprep.subr.mxu0 0.0
  %3868 = vmatpush1.msra.mxu0 0.0
  %3869 = vmatprep.subr.mxu0 0.0
  %3870 = vmatpush1.msra.mxu0 0.0
  %3871 = vmatprep.subr.mxu0 0.0
  %3872 = vmatpush1.msra.mxu0 0.0
  %3873 = vmatprep.subr.mxu0 0.0
  %3874 = vmatpush1.msra.mxu0 0.0
  %3875 = vmatprep.subr.mxu0 0.0
  %3876 = vmatpush1.msra.mxu0 0.0
  %3877 = vmatprep.subr.mxu0 0.0
  %3878 = vmatpush1.msra.mxu0 %v63
  %3879 = vmatprep.subr.mxu0 0.0
  %3880 = vmatpush1.msra.mxu0 %v62
  %3881 = vmatprep.subr.mxu0 0.0
  %3882 = vmatpush1.msra.mxu0 %v61
  %3883 = vmatprep.subr.mxu0 0.0
  %3884 = vmatpush1.msra.mxu0 %v60
  %3885 = vmatprep.subr.mxu0 0.0
  %3886 = vmatpush2.msra.mxu0 0.0
  %3887 = vmatprep.subr.mxu0 0.0
  %3888 = vmatpush2.msra.mxu0 0.0
  %3889 = vmatprep.subr.mxu0 0.0
  %3890 = vmatpush2.msra.mxu0 0.0
  %3891 = vmatprep.subr.mxu0 0.0
  %3892 = vmatpush2.msra.mxu0 0.0
  %3893 = vmatprep.subr.mxu0 0.0
  %3894 = vmatpush2.msra.mxu0 0.0
  %3895 = vmatprep.subr.mxu0 0.0
  %3896 = vmatpush2.msra.mxu0 0.0
  %3897 = vmatprep.subr.mxu0 0.0
  %3898 = vmatpush2.msra.mxu0 0.0
  %3899 = vmatprep.subr.mxu0 0.0
  %3900 = vmatpush2.msra.mxu0 0.0
  %3901 = vmatprep.subr.mxu0 0.0
  %3902 = vmatpush2.msra.mxu0 0.0
  %3903 = vmatprep.subr.mxu0 0.0
  %3904 = vmatpush2.msra.mxu0 0.0
  %3905 = vmatprep.subr.mxu0 0.0
  %3906 = vmatpush2.msra.mxu0 0.0
  %3907 = vmatprep.subr.mxu0 0.0
  %3908 = vmatpush2.msra.mxu0 0.0
  %3909 = vmatprep.subr.mxu0 0.0
  %3910 = vmatpush2.msra.mxu0 0.0
  %3911 = vmatprep.subr.mxu0 0.0
  %3912 = vmatpush2.msra.mxu0 0.0
  %3913 = vmatprep.subr.mxu0 0.0
  %3914 = vmatpush2.msra.mxu0 0.0
  %3915 = vmatprep.subr.mxu0 0.0
  %3916 = vmatpush2.msra.mxu0 0.0
  %3917 = vmatprep.mubr.f32.mxu0 0.0
  %3918 = vmatmul.mubr.f32.gmra.mxu0 %v3851
  %v3919 = vpop.f32.mrf.mxu0
  %v3920 = vadd.f32 %v90, %v3919
  %v3921 = vpop.f32.mrf.mxu0
  %3922 = vdwg.mxu0
  %s3923 = scalar_lea.vmem %s11, 18
  %3924 = vst.msk [vmem:[%s3923] sm:$0x3] %vm1628, %v3920
  %v3925 = vsel %vm1628, %v3920, -inf
  %3926 = vmax.xlane.f32.xlu0 %v3925
  %v3927 = vpop.xlane.xlu0 %3926
  %vm3928 = vcmp.eq.f32.partialorder %v3920, %v3927
  %v3929 = vsel %vm3928, %v1396, 16
  %v3930 = vsel %vm1628, %v3929, 2147483647
  %v3931 = vand.u32 %v3930, 65535
  %v3932 = vshra.s32 %v3930, 16
  %v3933 = vcvt.s32.f32 %v3931
  %v3934 = vcvt.s32.f32 %v3932
  %3935 = vmin.xlane.f32.xlu0 %v3934
  %v3936 = vpop.xlane.xlu0 %3935
  %vm3937 = vcmp.eq.f32.partialorder %v3934, %v3936
  %v3938 = vsel %vm3937, %v3933, inf
  %3939 = vmin.xlane.f32.xlu0 %v3938
  %v3940 = vpop.xlane.xlu0 %3939
  %v3941 = vcvt.f32.s32 %v3940
  %v3942 = vcvt.f32.s32 %v3936
  %v3943 = vshll.u32 %v3942, 16
  %v3944 = vadd.s32 %v3943, %v3941
  %vm3945 = vcmp.eq.s32.totalorder %v1396, %v3944
  %v3946 = vsel %vm3945, 1, 0
  %v3947 = vcvt.s32.f32 %v3946
  %3949 = vrot.lane.b32.xlu0 %v3771, 32
  %v3950 = vpop.permute.xlu0 %3949
  %v3952 = vsel %vm93, %v3947, %v3950
  %v3954 = vsel %vm1405, %v3952, 0
  %3956 = vmatprep.subr.mxu0 0.0
  %3957 = vmatpush1.msra.mxu0 0.0
  %3958 = vmatprep.subr.mxu0 0.0
  %3959 = vmatpush1.msra.mxu0 0.0
  %3960 = vmatprep.subr.mxu0 0.0
  %3961 = vmatpush1.msra.mxu0 0.0
  %3962 = vmatprep.subr.mxu0 0.0
  %3963 = vmatpush1.msra.mxu0 0.0
  %3964 = vmatprep.subr.mxu0 0.0
  %3965 = vmatpush1.msra.mxu0 0.0
  %3966 = vmatprep.subr.mxu0 0.0
  %3967 = vmatpush1.msra.mxu0 0.0
  %3968 = vmatprep.subr.mxu0 0.0
  %3969 = vmatpush1.msra.mxu0 0.0
  %3970 = vmatprep.subr.mxu0 0.0
  %3971 = vmatpush1.msra.mxu0 0.0
  %3972 = vmatprep.subr.mxu0 0.0
  %3973 = vmatpush1.msra.mxu0 %v54
  %3974 = vmatprep.subr.mxu0 0.0
  %3975 = vmatpush1.msra.mxu0 %v53
  %3976 = vmatprep.subr.mxu0 0.0
  %3977 = vmatpush1.msra.mxu0 %v52
  %3978 = vmatprep.subr.mxu0 0.0
  %3979 = vmatpush1.msra.mxu0 %v51
  %3980 = vmatprep.subr.mxu0 0.0
  %3981 = vmatpush1.msra.mxu0 %v50
  %3982 = vmatprep.subr.mxu0 0.0
  %3983 = vmatpush1.msra.mxu0 %v49
  %3984 = vmatprep.subr.mxu0 0.0
  %3985 = vmatpush1.msra.mxu0 %v48
  %3986 = vmatprep.subr.mxu0 0.0
  %3987 = vmatpush1.msra.mxu0 %v47
  %3988 = vmatprep.subr.mxu0 0.0
  %3989 = vmatpush2.msra.mxu0 0.0
  %3990 = vmatprep.subr.mxu0 0.0
  %3991 = vmatpush2.msra.mxu0 0.0
  %3992 = vmatprep.subr.mxu0 0.0
  %3993 = vmatpush2.msra.mxu0 0.0
  %3994 = vmatprep.subr.mxu0 0.0
  %3995 = vmatpush2.msra.mxu0 0.0
  %3996 = vmatprep.subr.mxu0 0.0
  %3997 = vmatpush2.msra.mxu0 0.0
  %3998 = vmatprep.subr.mxu0 0.0
  %3999 = vmatpush2.msra.mxu0 0.0
  %4000 = vmatprep.subr.mxu0 0.0
  %4001 = vmatpush2.msra.mxu0 0.0
  %4002 = vmatprep.subr.mxu0 0.0
  %4003 = vmatpush2.msra.mxu0 0.0
  %4004 = vmatprep.subr.mxu0 0.0
  %4005 = vmatpush2.msra.mxu0 0.0
  %4006 = vmatprep.subr.mxu0 0.0
  %4007 = vmatpush2.msra.mxu0 0.0
  %4008 = vmatprep.subr.mxu0 0.0
  %4009 = vmatpush2.msra.mxu0 0.0
  %4010 = vmatprep.subr.mxu0 0.0
  %4011 = vmatpush2.msra.mxu0 0.0
  %4012 = vmatprep.subr.mxu0 0.0
  %4013 = vmatpush2.msra.mxu0 0.0
  %4014 = vmatprep.subr.mxu0 0.0
  %4015 = vmatpush2.msra.mxu0 0.0
  %4016 = vmatprep.subr.mxu0 0.0
  %4017 = vmatpush2.msra.mxu0 0.0
  %4018 = vmatprep.subr.mxu0 0.0
  %4019 = vmatpush2.msra.mxu0 0.0
  %4020 = vmatprep.mubr.f32.mxu0 0.0
  %4021 = vmatmul.mubr.f32.gmra.mxu0 %v3954
  %v4022 = vpop.f32.mrf.mxu0
  %v4023 = vadd.f32 0.0, %v4022
  %v4024 = vpop.f32.mrf.mxu0
  %4025 = vdwg.mxu0
  %v4026 = vtanh.pop %v4023
  %4027 = vrot.lane.b32.xlu0 %v3849, 32
  %v4028 = vpop.permute.xlu0 %4027
  %v4030 = vsel %vm93, %v4026, %v4028
  %v4032 = vsel %vm1405, %v4030, 0
  %4034 = vmatprep.subr.mxu0 0.0
  %4035 = vmatpush1.msra.mxu0 0.0
  %4036 = vmatprep.subr.mxu0 0.0
  %4037 = vmatpush1.msra.mxu0 0.0
  %4038 = vmatprep.subr.mxu0 0.0
  %4039 = vmatpush1.msra.mxu0 0.0
  %4040 = vmatprep.subr.mxu0 0.0
  %4041 = vmatpush1.msra.mxu0 0.0
  %4042 = vmatprep.subr.mxu0 0.0
  %4043 = vmatpush1.msra.mxu0 0.0
  %4044 = vmatprep.subr.mxu0 0.0
  %4045 = vmatpush1.msra.mxu0 0.0
  %4046 = vmatprep.subr.mxu0 0.0
  %4047 = vmatpush1.msra.mxu0 0.0
  %4048 = vmatprep.subr.mxu0 0.0
  %4049 = vmatpush1.msra.mxu0 0.0
  %4050 = vmatprep.subr.mxu0 0.0
  %4051 = vmatpush1.msra.mxu0 %v72
  %4052 = vmatprep.subr.mxu0 0.0
  %4053 = vmatpush1.msra.mxu0 %v71
  %4054 = vmatprep.subr.mxu0 0.0
  %4055 = vmatpush1.msra.mxu0 %v70
  %4056 = vmatprep.subr.mxu0 0.0
  %4057 = vmatpush1.msra.mxu0 %v69
  %4058 = vmatprep.subr.mxu0 0.0
  %4059 = vmatpush1.msra.mxu0 %v68
  %4060 = vmatprep.subr.mxu0 0.0
  %4061 = vmatpush1.msra.mxu0 %v67
  %4062 = vmatprep.subr.mxu0 0.0
  %4063 = vmatpush1.msra.mxu0 %v66
  %4064 = vmatprep.subr.mxu0 0.0
  %4065 = vmatpush1.msra.mxu0 %v65
  %4066 = vmatprep.subr.mxu0 0.0
  %4067 = vmatpush2.msra.mxu0 0.0
  %4068 = vmatprep.subr.mxu0 0.0
  %4069 = vmatpush2.msra.mxu0 0.0
  %4070 = vmatprep.subr.mxu0 0.0
  %4071 = vmatpush2.msra.mxu0 0.0
  %4072 = vmatprep.subr.mxu0 0.0
  %4073 = vmatpush2.msra.mxu0 0.0
  %4074 = vmatprep.subr.mxu0 0.0
  %4075 = vmatpush2.msra.mxu0 0.0
  %4076 = vmatprep.subr.mxu0 0.0
  %4077 = vmatpush2.msra.mxu0 0.0
  %4078 = vmatprep.subr.mxu0 0.0
  %4079 = vmatpush2.msra.mxu0 0.0
  %4080 = vmatprep.subr.mxu0 0.0
  %4081 = vmatpush2.msra.mxu0 0.0
  %4082 = vmatprep.subr.mxu0 0.0
  %4083 = vmatpush2.msra.mxu0 0.0
  %4084 = vmatprep.subr.mxu0 0.0
  %4085 = vmatpush2.msra.mxu0 0.0
  %4086 = vmatprep.subr.mxu0 0.0
  %4087 = vmatpush2.msra.mxu0 0.0
  %4088 = vmatprep.subr.mxu0 0.0
  %4089 = vmatpush2.msra.mxu0 0.0
  %4090 = vmatprep.subr.mxu0 0.0
  %4091 = vmatpush2.msra.mxu0 0.0
  %4092 = vmatprep.subr.mxu0 0.0
  %4093 = vmatpush2.msra.mxu0 0.0
  %4094 = vmatprep.subr.mxu0 0.0
  %4095 = vmatpush2.msra.mxu0 0.0
  %4096 = vmatprep.subr.mxu0 0.0
  %4097 = vmatpush2.msra.mxu0 0.0
  %4098 = vmatprep.mubr.f32.mxu0 0.0
  %4099 = vmatmul.mubr.f32.gmra.mxu0 %v4032
  %v4100 = vpop.f32.mrf.mxu0
  %v4101 = vadd.f32 %v78, %v4100
  %v4102 = vpop.f32.mrf.mxu0
  %4103 = vdwg.mxu0
  %v4104 = vtanh.pop %v4101
  %v4106 = vsel %vm93, %v4104, 0
  %4108 = vmatprep.subr.mxu0 0.0
  %4109 = vmatpush1.msra.mxu0 0.0
  %4110 = vmatprep.subr.mxu0 0.0
  %4111 = vmatpush1.msra.mxu0 0.0
  %4112 = vmatprep.subr.mxu0 0.0
  %4113 = vmatpush1.msra.mxu0 0.0
  %4114 = vmatprep.subr.mxu0 0.0
  %4115 = vmatpush1.msra.mxu0 0.0
  %4116 = vmatprep.subr.mxu0 0.0
  %4117 = vmatpush1.msra.mxu0 0.0
  %4118 = vmatprep.subr.mxu0 0.0
  %4119 = vmatpush1.msra.mxu0 0.0
  %4120 = vmatprep.subr.mxu0 0.0
  %4121 = vmatpush1.msra.mxu0 0.0
  %4122 = vmatprep.subr.mxu0 0.0
  %4123 = vmatpush1.msra.mxu0 0.0
  %4124 = vmatprep.subr.mxu0 0.0
  %4125 = vmatpush1.msra.mxu0 0.0
  %4126 = vmatprep.subr.mxu0 0.0
  %4127 = vmatpush1.msra.mxu0 0.0
  %4128 = vmatprep.subr.mxu0 0.0
  %4129 = vmatpush1.msra.mxu0 0.0
  %4130 = vmatprep.subr.mxu0 0.0
  %4131 = vmatpush1.msra.mxu0 0.0
  %4132 = vmatprep.subr.mxu0 0.0
  %4133 = vmatpush1.msra.mxu0 %v63
  %4134 = vmatprep.subr.mxu0 0.0
  %4135 = vmatpush1.msra.mxu0 %v62
  %4136 = vmatprep.subr.mxu0 0.0
  %4137 = vmatpush1.msra.mxu0 %v61
  %4138 = vmatprep.subr.mxu0 0.0
  %4139 = vmatpush1.msra.mxu0 %v60
  %4140 = vmatprep.subr.mxu0 0.0
  %4141 = vmatpush2.msra.mxu0 0.0
  %4142 = vmatprep.subr.mxu0 0.0
  %4143 = vmatpush2.msra.mxu0 0.0
  %4144 = vmatprep.subr.mxu0 0.0
  %4145 = vmatpush2.msra.mxu0 0.0
  %4146 = vmatprep.subr.mxu0 0.0
  %4147 = vmatpush2.msra.mxu0 0.0
  %4148 = vmatprep.subr.mxu0 0.0
  %4149 = vmatpush2.msra.mxu0 0.0
  %4150 = vmatprep.subr.mxu0 0.0
  %4151 = vmatpush2.msra.mxu0 0.0
  %4152 = vmatprep.subr.mxu0 0.0
  %4153 = vmatpush2.msra.mxu0 0.0
  %4154 = vmatprep.subr.mxu0 0.0
  %4155 = vmatpush2.msra.mxu0 0.0
  %4156 = vmatprep.subr.mxu0 0.0
  %4157 = vmatpush2.msra.mxu0 0.0
  %4158 = vmatprep.subr.mxu0 0.0
  %4159 = vmatpush2.msra.mxu0 0.0
  %4160 = vmatprep.subr.mxu0 0.0
  %4161 = vmatpush2.msra.mxu0 0.0
  %4162 = vmatprep.subr.mxu0 0.0
  %4163 = vmatpush2.msra.mxu0 0.0
  %4164 = vmatprep.subr.mxu0 0.0
  %4165 = vmatpush2.msra.mxu0 0.0
  %4166 = vmatprep.subr.mxu0 0.0
  %4167 = vmatpush2.msra.mxu0 0.0
  %4168 = vmatprep.subr.mxu0 0.0
  %4169 = vmatpush2.msra.mxu0 0.0
  %4170 = vmatprep.subr.mxu0 0.0
  %4171 = vmatpush2.msra.mxu0 0.0
  %4172 = vmatprep.mubr.f32.mxu0 0.0
  %4173 = vmatmul.mubr.f32.gmra.mxu0 %v4106
  %v4174 = vpop.f32.mrf.mxu0
  %v4175 = vadd.f32 %v90, %v4174
  %v4176 = vpop.f32.mrf.mxu0
  %4177 = vdwg.mxu0
  %s4178 = scalar_lea.vmem %s11, 20
  %4179 = vst.msk [vmem:[%s4178] sm:$0x3] %vm1628, %v4175
  %v4180 = vsel %vm1628, %v4175, -inf
  %4181 = vmax.xlane.f32.xlu0 %v4180
  %v4182 = vpop.xlane.xlu0 %4181
  %vm4183 = vcmp.eq.f32.partialorder %v4175, %v4182
  %v4184 = vsel %vm4183, %v1396, 16
  %v4185 = vsel %vm1628, %v4184, 2147483647
  %v4186 = vand.u32 %v4185, 65535
  %v4187 = vshra.s32 %v4185, 16
  %v4188 = vcvt.s32.f32 %v4186
  %v4189 = vcvt.s32.f32 %v4187
  %4190 = vmin.xlane.f32.xlu0 %v4189
  %v4191 = vpop.xlane.xlu0 %4190
  %vm4192 = vcmp.eq.f32.partialorder %v4189, %v4191
  %v4193 = vsel %vm4192, %v4188, inf
  %4194 = vmin.xlane.f32.xlu0 %v4193
  %v4195 = vpop.xlane.xlu0 %4194
  %v4196 = vcvt.f32.s32 %v4195
  %v4197 = vcvt.f32.s32 %v4191
  %v4198 = vshll.u32 %v4197, 16
  %v4199 = vadd.s32 %v4198, %v4196
  %vm4200 = vcmp.eq.s32.totalorder %v1396, %v4199
  %v4201 = vsel %vm4200, 1, 0
  %v4202 = vcvt.s32.f32 %v4201
  %4204 = vrot.lane.b32.xlu0 %v4026, 32
  %v4205 = vpop.permute.xlu0 %4204
  %v4207 = vsel %vm93, %v4202, %v4205
  %v4209 = vsel %vm1405, %v4207, 0
  %4211 = vmatprep.subr.mxu0 0.0
  %4212 = vmatpush1.msra.mxu0 0.0
  %4213 = vmatprep.subr.mxu0 0.0
  %4214 = vmatpush1.msra.mxu0 0.0
  %4215 = vmatprep.subr.mxu0 0.0
  %4216 = vmatpush1.msra.mxu0 0.0
  %4217 = vmatprep.subr.mxu0 0.0
  %4218 = vmatpush1.msra.mxu0 0.0
  %4219 = vmatprep.subr.mxu0 0.0
  %4220 = vmatpush1.msra.mxu0 0.0
  %4221 = vmatprep.subr.mxu0 0.0
  %4222 = vmatpush1.msra.mxu0 0.0
  %4223 = vmatprep.subr.mxu0 0.0
  %4224 = vmatpush1.msra.mxu0 0.0
  %4225 = vmatprep.subr.mxu0 0.0
  %4226 = vmatpush1.msra.mxu0 0.0
  %4227 = vmatprep.subr.mxu0 0.0
  %4228 = vmatpush1.msra.mxu0 %v54
  %4229 = vmatprep.subr.mxu0 0.0
  %4230 = vmatpush1.msra.mxu0 %v53
  %4231 = vmatprep.subr.mxu0 0.0
  %4232 = vmatpush1.msra.mxu0 %v52
  %4233 = vmatprep.subr.mxu0 0.0
  %4234 = vmatpush1.msra.mxu0 %v51
  %4235 = vmatprep.subr.mxu0 0.0
  %4236 = vmatpush1.msra.mxu0 %v50
  %4237 = vmatprep.subr.mxu0 0.0
  %4238 = vmatpush1.msra.mxu0 %v49
  %4239 = vmatprep.subr.mxu0 0.0
  %4240 = vmatpush1.msra.mxu0 %v48
  %4241 = vmatprep.subr.mxu0 0.0
  %4242 = vmatpush1.msra.mxu0 %v47
  %4243 = vmatprep.subr.mxu0 0.0
  %4244 = vmatpush2.msra.mxu0 0.0
  %4245 = vmatprep.subr.mxu0 0.0
  %4246 = vmatpush2.msra.mxu0 0.0
  %4247 = vmatprep.subr.mxu0 0.0
  %4248 = vmatpush2.msra.mxu0 0.0
  %4249 = vmatprep.subr.mxu0 0.0
  %4250 = vmatpush2.msra.mxu0 0.0
  %4251 = vmatprep.subr.mxu0 0.0
  %4252 = vmatpush2.msra.mxu0 0.0
  %4253 = vmatprep.subr.mxu0 0.0
  %4254 = vmatpush2.msra.mxu0 0.0
  %4255 = vmatprep.subr.mxu0 0.0
  %4256 = vmatpush2.msra.mxu0 0.0
  %4257 = vmatprep.subr.mxu0 0.0
  %4258 = vmatpush2.msra.mxu0 0.0
  %4259 = vmatprep.subr.mxu0 0.0
  %4260 = vmatpush2.msra.mxu0 0.0
  %4261 = vmatprep.subr.mxu0 0.0
  %4262 = vmatpush2.msra.mxu0 0.0
  %4263 = vmatprep.subr.mxu0 0.0
  %4264 = vmatpush2.msra.mxu0 0.0
  %4265 = vmatprep.subr.mxu0 0.0
  %4266 = vmatpush2.msra.mxu0 0.0
  %4267 = vmatprep.subr.mxu0 0.0
  %4268 = vmatpush2.msra.mxu0 0.0
  %4269 = vmatprep.subr.mxu0 0.0
  %4270 = vmatpush2.msra.mxu0 0.0
  %4271 = vmatprep.subr.mxu0 0.0
  %4272 = vmatpush2.msra.mxu0 0.0
  %4273 = vmatprep.subr.mxu0 0.0
  %4274 = vmatpush2.msra.mxu0 0.0
  %4275 = vmatprep.mubr.f32.mxu0 0.0
  %4276 = vmatmul.mubr.f32.gmra.mxu0 %v4209
  %v4277 = vpop.f32.mrf.mxu0
  %v4278 = vadd.f32 0.0, %v4277
  %v4279 = vpop.f32.mrf.mxu0
  %4280 = vdwg.mxu0
  %v4281 = vtanh.pop %v4278
  %4282 = vrot.lane.b32.xlu0 %v4104, 32
  %v4283 = vpop.permute.xlu0 %4282
  %v4285 = vsel %vm93, %v4281, %v4283
  %v4287 = vsel %vm1405, %v4285, 0
  %4289 = vmatprep.subr.mxu0 0.0
  %4290 = vmatpush1.msra.mxu0 0.0
  %4291 = vmatprep.subr.mxu0 0.0
  %4292 = vmatpush1.msra.mxu0 0.0
  %4293 = vmatprep.subr.mxu0 0.0
  %4294 = vmatpush1.msra.mxu0 0.0
  %4295 = vmatprep.subr.mxu0 0.0
  %4296 = vmatpush1.msra.mxu0 0.0
  %4297 = vmatprep.subr.mxu0 0.0
  %4298 = vmatpush1.msra.mxu0 0.0
  %4299 = vmatprep.subr.mxu0 0.0
  %4300 = vmatpush1.msra.mxu0 0.0
  %4301 = vmatprep.subr.mxu0 0.0
  %4302 = vmatpush1.msra.mxu0 0.0
  %4303 = vmatprep.subr.mxu0 0.0
  %4304 = vmatpush1.msra.mxu0 0.0
  %4305 = vmatprep.subr.mxu0 0.0
  %4306 = vmatpush1.msra.mxu0 %v72
  %4307 = vmatprep.subr.mxu0 0.0
  %4308 = vmatpush1.msra.mxu0 %v71
  %4309 = vmatprep.subr.mxu0 0.0
  %4310 = vmatpush1.msra.mxu0 %v70
  %4311 = vmatprep.subr.mxu0 0.0
  %4312 = vmatpush1.msra.mxu0 %v69
  %4313 = vmatprep.subr.mxu0 0.0
  %4314 = vmatpush1.msra.mxu0 %v68
  %4315 = vmatprep.subr.mxu0 0.0
  %4316 = vmatpush1.msra.mxu0 %v67
  %4317 = vmatprep.subr.mxu0 0.0
  %4318 = vmatpush1.msra.mxu0 %v66
  %4319 = vmatprep.subr.mxu0 0.0
  %4320 = vmatpush1.msra.mxu0 %v65
  %4321 = vmatprep.subr.mxu0 0.0
  %4322 = vmatpush2.msra.mxu0 0.0
  %4323 = vmatprep.subr.mxu0 0.0
  %4324 = vmatpush2.msra.mxu0 0.0
  %4325 = vmatprep.subr.mxu0 0.0
  %4326 = vmatpush2.msra.mxu0 0.0
  %4327 = vmatprep.subr.mxu0 0.0
  %4328 = vmatpush2.msra.mxu0 0.0
  %4329 = vmatprep.subr.mxu0 0.0
  %4330 = vmatpush2.msra.mxu0 0.0
  %4331 = vmatprep.subr.mxu0 0.0
  %4332 = vmatpush2.msra.mxu0 0.0
  %4333 = vmatprep.subr.mxu0 0.0
  %4334 = vmatpush2.msra.mxu0 0.0
  %4335 = vmatprep.subr.mxu0 0.0
  %4336 = vmatpush2.msra.mxu0 0.0
  %4337 = vmatprep.subr.mxu0 0.0
  %4338 = vmatpush2.msra.mxu0 0.0
  %4339 = vmatprep.subr.mxu0 0.0
  %4340 = vmatpush2.msra.mxu0 0.0
  %4341 = vmatprep.subr.mxu0 0.0
  %4342 = vmatpush2.msra.mxu0 0.0
  %4343 = vmatprep.subr.mxu0 0.0
  %4344 = vmatpush2.msra.mxu0 0.0
  %4345 = vmatprep.subr.mxu0 0.0
  %4346 = vmatpush2.msra.mxu0 0.0
  %4347 = vmatprep.subr.mxu0 0.0
  %4348 = vmatpush2.msra.mxu0 0.0
  %4349 = vmatprep.subr.mxu0 0.0
  %4350 = vmatpush2.msra.mxu0 0.0
  %4351 = vmatprep.subr.mxu0 0.0
  %4352 = vmatpush2.msra.mxu0 0.0
  %4353 = vmatprep.mubr.f32.mxu0 0.0
  %4354 = vmatmul.mubr.f32.gmra.mxu0 %v4287
  %v4355 = vpop.f32.mrf.mxu0
  %v4356 = vadd.f32 %v78, %v4355
  %v4357 = vpop.f32.mrf.mxu0
  %4358 = vdwg.mxu0
  %v4359 = vtanh.pop %v4356
  %v4361 = vsel %vm93, %v4359, 0
  %4363 = vmatprep.subr.mxu0 0.0
  %4364 = vmatpush1.msra.mxu0 0.0
  %4365 = vmatprep.subr.mxu0 0.0
  %4366 = vmatpush1.msra.mxu0 0.0
  %4367 = vmatprep.subr.mxu0 0.0
  %4368 = vmatpush1.msra.mxu0 0.0
  %4369 = vmatprep.subr.mxu0 0.0
  %4370 = vmatpush1.msra.mxu0 0.0
  %4371 = vmatprep.subr.mxu0 0.0
  %4372 = vmatpush1.msra.mxu0 0.0
  %4373 = vmatprep.subr.mxu0 0.0
  %4374 = vmatpush1.msra.mxu0 0.0
  %4375 = vmatprep.subr.mxu0 0.0
  %4376 = vmatpush1.msra.mxu0 0.0
  %4377 = vmatprep.subr.mxu0 0.0
  %4378 = vmatpush1.msra.mxu0 0.0
  %4379 = vmatprep.subr.mxu0 0.0
  %4380 = vmatpush1.msra.mxu0 0.0
  %4381 = vmatprep.subr.mxu0 0.0
  %4382 = vmatpush1.msra.mxu0 0.0
  %4383 = vmatprep.subr.mxu0 0.0
  %4384 = vmatpush1.msra.mxu0 0.0
  %4385 = vmatprep.subr.mxu0 0.0
  %4386 = vmatpush1.msra.mxu0 0.0
  %4387 = vmatprep.subr.mxu0 0.0
  %4388 = vmatpush1.msra.mxu0 %v63
  %4389 = vmatprep.subr.mxu0 0.0
  %4390 = vmatpush1.msra.mxu0 %v62
  %4391 = vmatprep.subr.mxu0 0.0
  %4392 = vmatpush1.msra.mxu0 %v61
  %4393 = vmatprep.subr.mxu0 0.0
  %4394 = vmatpush1.msra.mxu0 %v60
  %4395 = vmatprep.subr.mxu0 0.0
  %4396 = vmatpush2.msra.mxu0 0.0
  %4397 = vmatprep.subr.mxu0 0.0
  %4398 = vmatpush2.msra.mxu0 0.0
  %4399 = vmatprep.subr.mxu0 0.0
  %4400 = vmatpush2.msra.mxu0 0.0
  %4401 = vmatprep.subr.mxu0 0.0
  %4402 = vmatpush2.msra.mxu0 0.0
  %4403 = vmatprep.subr.mxu0 0.0
  %4404 = vmatpush2.msra.mxu0 0.0
  %4405 = vmatprep.subr.mxu0 0.0
  %4406 = vmatpush2.msra.mxu0 0.0
  %4407 = vmatprep.subr.mxu0 0.0
  %4408 = vmatpush2.msra.mxu0 0.0
  %4409 = vmatprep.subr.mxu0 0.0
  %4410 = vmatpush2.msra.mxu0 0.0
  %4411 = vmatprep.subr.mxu0 0.0
  %4412 = vmatpush2.msra.mxu0 0.0
  %4413 = vmatprep.subr.mxu0 0.0
  %4414 = vmatpush2.msra.mxu0 0.0
  %4415 = vmatprep.subr.mxu0 0.0
  %4416 = vmatpush2.msra.mxu0 0.0
  %4417 = vmatprep.subr.mxu0 0.0
  %4418 = vmatpush2.msra.mxu0 0.0
  %4419 = vmatprep.subr.mxu0 0.0
  %4420 = vmatpush2.msra.mxu0 0.0
  %4421 = vmatprep.subr.mxu0 0.0
  %4422 = vmatpush2.msra.mxu0 0.0
  %4423 = vmatprep.subr.mxu0 0.0
  %4424 = vmatpush2.msra.mxu0 0.0
  %4425 = vmatprep.subr.mxu0 0.0
  %4426 = vmatpush2.msra.mxu0 0.0
  %4427 = vmatprep.mubr.f32.mxu0 0.0
  %4428 = vmatmul.mubr.f32.gmra.mxu0 %v4361
  %v4429 = vpop.f32.mrf.mxu0
  %v4430 = vadd.f32 %v90, %v4429
  %v4431 = vpop.f32.mrf.mxu0
  %4432 = vdwg.mxu0
  %s4433 = scalar_lea.vmem %s11, 22
  %4434 = vst.msk [vmem:[%s4433] sm:$0x3] %vm1628, %v4430
  %v4435 = vsel %vm1628, %v4430, -inf
  %4436 = vmax.xlane.f32.xlu0 %v4435
  %v4437 = vpop.xlane.xlu0 %4436
  %vm4438 = vcmp.eq.f32.partialorder %v4430, %v4437
  %v4439 = vsel %vm4438, %v1396, 16
  %v4440 = vsel %vm1628, %v4439, 2147483647
  %v4441 = vand.u32 %v4440, 65535
  %v4442 = vshra.s32 %v4440, 16
  %v4443 = vcvt.s32.f32 %v4441
  %v4444 = vcvt.s32.f32 %v4442
  %4445 = vmin.xlane.f32.xlu0 %v4444
  %v4446 = vpop.xlane.xlu0 %4445
  %vm4447 = vcmp.eq.f32.partialorder %v4444, %v4446
  %v4448 = vsel %vm4447, %v4443, inf
  %4449 = vmin.xlane.f32.xlu0 %v4448
  %v4450 = vpop.xlane.xlu0 %4449
  %v4451 = vcvt.f32.s32 %v4450
  %v4452 = vcvt.f32.s32 %v4446
  %v4453 = vshll.u32 %v4452, 16
  %v4454 = vadd.s32 %v4453, %v4451
  %vm4455 = vcmp.eq.s32.totalorder %v1396, %v4454
  %v4456 = vsel %vm4455, 1, 0
  %v4457 = vcvt.s32.f32 %v4456
  %4459 = vrot.lane.b32.xlu0 %v4281, 32
  %v4460 = vpop.permute.xlu0 %4459
  %v4462 = vsel %vm93, %v4457, %v4460
  %v4464 = vsel %vm1405, %v4462, 0
  %4466 = vmatprep.subr.mxu0 0.0
  %4467 = vmatpush1.msra.mxu0 0.0
  %4468 = vmatprep.subr.mxu0 0.0
  %4469 = vmatpush1.msra.mxu0 0.0
  %4470 = vmatprep.subr.mxu0 0.0
  %4471 = vmatpush1.msra.mxu0 0.0
  %4472 = vmatprep.subr.mxu0 0.0
  %4473 = vmatpush1.msra.mxu0 0.0
  %4474 = vmatprep.subr.mxu0 0.0
  %4475 = vmatpush1.msra.mxu0 0.0
  %4476 = vmatprep.subr.mxu0 0.0
  %4477 = vmatpush1.msra.mxu0 0.0
  %4478 = vmatprep.subr.mxu0 0.0
  %4479 = vmatpush1.msra.mxu0 0.0
  %4480 = vmatprep.subr.mxu0 0.0
  %4481 = vmatpush1.msra.mxu0 0.0
  %4482 = vmatprep.subr.mxu0 0.0
  %4483 = vmatpush1.msra.mxu0 %v54
  %4484 = vmatprep.subr.mxu0 0.0
  %4485 = vmatpush1.msra.mxu0 %v53
  %4486 = vmatprep.subr.mxu0 0.0
  %4487 = vmatpush1.msra.mxu0 %v52
  %4488 = vmatprep.subr.mxu0 0.0
  %4489 = vmatpush1.msra.mxu0 %v51
  %4490 = vmatprep.subr.mxu0 0.0
  %4491 = vmatpush1.msra.mxu0 %v50
  %4492 = vmatprep.subr.mxu0 0.0
  %4493 = vmatpush1.msra.mxu0 %v49
  %4494 = vmatprep.subr.mxu0 0.0
  %4495 = vmatpush1.msra.mxu0 %v48
  %4496 = vmatprep.subr.mxu0 0.0
  %4497 = vmatpush1.msra.mxu0 %v47
  %4498 = vmatprep.subr.mxu0 0.0
  %4499 = vmatpush2.msra.mxu0 0.0
  %4500 = vmatprep.subr.mxu0 0.0
  %4501 = vmatpush2.msra.mxu0 0.0
  %4502 = vmatprep.subr.mxu0 0.0
  %4503 = vmatpush2.msra.mxu0 0.0
  %4504 = vmatprep.subr.mxu0 0.0
  %4505 = vmatpush2.msra.mxu0 0.0
  %4506 = vmatprep.subr.mxu0 0.0
  %4507 = vmatpush2.msra.mxu0 0.0
  %4508 = vmatprep.subr.mxu0 0.0
  %4509 = vmatpush2.msra.mxu0 0.0
  %4510 = vmatprep.subr.mxu0 0.0
  %4511 = vmatpush2.msra.mxu0 0.0
  %4512 = vmatprep.subr.mxu0 0.0
  %4513 = vmatpush2.msra.mxu0 0.0
  %4514 = vmatprep.subr.mxu0 0.0
  %4515 = vmatpush2.msra.mxu0 0.0
  %4516 = vmatprep.subr.mxu0 0.0
  %4517 = vmatpush2.msra.mxu0 0.0
  %4518 = vmatprep.subr.mxu0 0.0
  %4519 = vmatpush2.msra.mxu0 0.0
  %4520 = vmatprep.subr.mxu0 0.0
  %4521 = vmatpush2.msra.mxu0 0.0
  %4522 = vmatprep.subr.mxu0 0.0
  %4523 = vmatpush2.msra.mxu0 0.0
  %4524 = vmatprep.subr.mxu0 0.0
  %4525 = vmatpush2.msra.mxu0 0.0
  %4526 = vmatprep.subr.mxu0 0.0
  %4527 = vmatpush2.msra.mxu0 0.0
  %4528 = vmatprep.subr.mxu0 0.0
  %4529 = vmatpush2.msra.mxu0 0.0
  %4530 = vmatprep.mubr.f32.mxu0 0.0
  %4531 = vmatmul.mubr.f32.gmra.mxu0 %v4464
  %v4532 = vpop.f32.mrf.mxu0
  %v4533 = vadd.f32 0.0, %v4532
  %v4534 = vpop.f32.mrf.mxu0
  %4535 = vdwg.mxu0
  %v4536 = vtanh.pop %v4533
  %4537 = vrot.lane.b32.xlu0 %v4359, 32
  %v4538 = vpop.permute.xlu0 %4537
  %v4540 = vsel %vm93, %v4536, %v4538
  %v4542 = vsel %vm1405, %v4540, 0
  %4544 = vmatprep.subr.mxu0 0.0
  %4545 = vmatpush1.msra.mxu0 0.0
  %4546 = vmatprep.subr.mxu0 0.0
  %4547 = vmatpush1.msra.mxu0 0.0
  %4548 = vmatprep.subr.mxu0 0.0
  %4549 = vmatpush1.msra.mxu0 0.0
  %4550 = vmatprep.subr.mxu0 0.0
  %4551 = vmatpush1.msra.mxu0 0.0
  %4552 = vmatprep.subr.mxu0 0.0
  %4553 = vmatpush1.msra.mxu0 0.0
  %4554 = vmatprep.subr.mxu0 0.0
  %4555 = vmatpush1.msra.mxu0 0.0
  %4556 = vmatprep.subr.mxu0 0.0
  %4557 = vmatpush1.msra.mxu0 0.0
  %4558 = vmatprep.subr.mxu0 0.0
  %4559 = vmatpush1.msra.mxu0 0.0
  %4560 = vmatprep.subr.mxu0 0.0
  %4561 = vmatpush1.msra.mxu0 %v72
  %4562 = vmatprep.subr.mxu0 0.0
  %4563 = vmatpush1.msra.mxu0 %v71
  %4564 = vmatprep.subr.mxu0 0.0
  %4565 = vmatpush1.msra.mxu0 %v70
  %4566 = vmatprep.subr.mxu0 0.0
  %4567 = vmatpush1.msra.mxu0 %v69
  %4568 = vmatprep.subr.mxu0 0.0
  %4569 = vmatpush1.msra.mxu0 %v68
  %4570 = vmatprep.subr.mxu0 0.0
  %4571 = vmatpush1.msra.mxu0 %v67
  %4572 = vmatprep.subr.mxu0 0.0
  %4573 = vmatpush1.msra.mxu0 %v66
  %4574 = vmatprep.subr.mxu0 0.0
  %4575 = vmatpush1.msra.mxu0 %v65
  %4576 = vmatprep.subr.mxu0 0.0
  %4577 = vmatpush2.msra.mxu0 0.0
  %4578 = vmatprep.subr.mxu0 0.0
  %4579 = vmatpush2.msra.mxu0 0.0
  %4580 = vmatprep.subr.mxu0 0.0
  %4581 = vmatpush2.msra.mxu0 0.0
  %4582 = vmatprep.subr.mxu0 0.0
  %4583 = vmatpush2.msra.mxu0 0.0
  %4584 = vmatprep.subr.mxu0 0.0
  %4585 = vmatpush2.msra.mxu0 0.0
  %4586 = vmatprep.subr.mxu0 0.0
  %4587 = vmatpush2.msra.mxu0 0.0
  %4588 = vmatprep.subr.mxu0 0.0
  %4589 = vmatpush2.msra.mxu0 0.0
  %4590 = vmatprep.subr.mxu0 0.0
  %4591 = vmatpush2.msra.mxu0 0.0
  %4592 = vmatprep.subr.mxu0 0.0
  %4593 = vmatpush2.msra.mxu0 0.0
  %4594 = vmatprep.subr.mxu0 0.0
  %4595 = vmatpush2.msra.mxu0 0.0
  %4596 = vmatprep.subr.mxu0 0.0
  %4597 = vmatpush2.msra.mxu0 0.0
  %4598 = vmatprep.subr.mxu0 0.0
  %4599 = vmatpush2.msra.mxu0 0.0
  %4600 = vmatprep.subr.mxu0 0.0
  %4601 = vmatpush2.msra.mxu0 0.0
  %4602 = vmatprep.subr.mxu0 0.0
  %4603 = vmatpush2.msra.mxu0 0.0
  %4604 = vmatprep.subr.mxu0 0.0
  %4605 = vmatpush2.msra.mxu0 0.0
  %4606 = vmatprep.subr.mxu0 0.0
  %4607 = vmatpush2.msra.mxu0 0.0
  %4608 = vmatprep.mubr.f32.mxu0 0.0
  %4609 = vmatmul.mubr.f32.gmra.mxu0 %v4542
  %v4610 = vpop.f32.mrf.mxu0
  %v4611 = vadd.f32 %v78, %v4610
  %v4612 = vpop.f32.mrf.mxu0
  %4613 = vdwg.mxu0
  %v4614 = vtanh.pop %v4611
  %v4616 = vsel %vm93, %v4614, 0
  %4618 = vmatprep.subr.mxu0 0.0
  %4619 = vmatpush1.msra.mxu0 0.0
  %4620 = vmatprep.subr.mxu0 0.0
  %4621 = vmatpush1.msra.mxu0 0.0
  %4622 = vmatprep.subr.mxu0 0.0
  %4623 = vmatpush1.msra.mxu0 0.0
  %4624 = vmatprep.subr.mxu0 0.0
  %4625 = vmatpush1.msra.mxu0 0.0
  %4626 = vmatprep.subr.mxu0 0.0
  %4627 = vmatpush1.msra.mxu0 0.0
  %4628 = vmatprep.subr.mxu0 0.0
  %4629 = vmatpush1.msra.mxu0 0.0
  %4630 = vmatprep.subr.mxu0 0.0
  %4631 = vmatpush1.msra.mxu0 0.0
  %4632 = vmatprep.subr.mxu0 0.0
  %4633 = vmatpush1.msra.mxu0 0.0
  %4634 = vmatprep.subr.mxu0 0.0
  %4635 = vmatpush1.msra.mxu0 0.0
  %4636 = vmatprep.subr.mxu0 0.0
  %4637 = vmatpush1.msra.mxu0 0.0
  %4638 = vmatprep.subr.mxu0 0.0
  %4639 = vmatpush1.msra.mxu0 0.0
  %4640 = vmatprep.subr.mxu0 0.0
  %4641 = vmatpush1.msra.mxu0 0.0
  %4642 = vmatprep.subr.mxu0 0.0
  %4643 = vmatpush1.msra.mxu0 %v63
  %4644 = vmatprep.subr.mxu0 0.0
  %4645 = vmatpush1.msra.mxu0 %v62
  %4646 = vmatprep.subr.mxu0 0.0
  %4647 = vmatpush1.msra.mxu0 %v61
  %4648 = vmatprep.subr.mxu0 0.0
  %4649 = vmatpush1.msra.mxu0 %v60
  %4650 = vmatprep.subr.mxu0 0.0
  %4651 = vmatpush2.msra.mxu0 0.0
  %4652 = vmatprep.subr.mxu0 0.0
  %4653 = vmatpush2.msra.mxu0 0.0
  %4654 = vmatprep.subr.mxu0 0.0
  %4655 = vmatpush2.msra.mxu0 0.0
  %4656 = vmatprep.subr.mxu0 0.0
  %4657 = vmatpush2.msra.mxu0 0.0
  %4658 = vmatprep.subr.mxu0 0.0
  %4659 = vmatpush2.msra.mxu0 0.0
  %4660 = vmatprep.subr.mxu0 0.0
  %4661 = vmatpush2.msra.mxu0 0.0
  %4662 = vmatprep.subr.mxu0 0.0
  %4663 = vmatpush2.msra.mxu0 0.0
  %4664 = vmatprep.subr.mxu0 0.0
  %4665 = vmatpush2.msra.mxu0 0.0
  %4666 = vmatprep.subr.mxu0 0.0
  %4667 = vmatpush2.msra.mxu0 0.0
  %4668 = vmatprep.subr.mxu0 0.0
  %4669 = vmatpush2.msra.mxu0 0.0
  %4670 = vmatprep.subr.mxu0 0.0
  %4671 = vmatpush2.msra.mxu0 0.0
  %4672 = vmatprep.subr.mxu0 0.0
  %4673 = vmatpush2.msra.mxu0 0.0
  %4674 = vmatprep.subr.mxu0 0.0
  %4675 = vmatpush2.msra.mxu0 0.0
  %4676 = vmatprep.subr.mxu0 0.0
  %4677 = vmatpush2.msra.mxu0 0.0
  %4678 = vmatprep.subr.mxu0 0.0
  %4679 = vmatpush2.msra.mxu0 0.0
  %4680 = vmatprep.subr.mxu0 0.0
  %4681 = vmatpush2.msra.mxu0 0.0
  %4682 = vmatprep.mubr.f32.mxu0 0.0
  %4683 = vmatmul.mubr.f32.gmra.mxu0 %v4616
  %v4684 = vpop.f32.mrf.mxu0
  %v4685 = vadd.f32 %v90, %v4684
  %v4686 = vpop.f32.mrf.mxu0
  %4687 = vdwg.mxu0
  %s4688 = scalar_lea.vmem %s11, 24
  %4689 = vst.msk [vmem:[%s4688] sm:$0x3] %vm1628, %v4685
  %v4690 = vsel %vm1628, %v4685, -inf
  %4691 = vmax.xlane.f32.xlu0 %v4690
  %v4692 = vpop.xlane.xlu0 %4691
  %vm4693 = vcmp.eq.f32.partialorder %v4685, %v4692
  %v4694 = vsel %vm4693, %v1396, 16
  %v4695 = vsel %vm1628, %v4694, 2147483647
  %v4696 = vand.u32 %v4695, 65535
  %v4697 = vshra.s32 %v4695, 16
  %v4698 = vcvt.s32.f32 %v4696
  %v4699 = vcvt.s32.f32 %v4697
  %4700 = vmin.xlane.f32.xlu0 %v4699
  %v4701 = vpop.xlane.xlu0 %4700
  %vm4702 = vcmp.eq.f32.partialorder %v4699, %v4701
  %v4703 = vsel %vm4702, %v4698, inf
  %4704 = vmin.xlane.f32.xlu0 %v4703
  %v4705 = vpop.xlane.xlu0 %4704
  %v4706 = vcvt.f32.s32 %v4705
  %v4707 = vcvt.f32.s32 %v4701
  %v4708 = vshll.u32 %v4707, 16
  %v4709 = vadd.s32 %v4708, %v4706
  %vm4710 = vcmp.eq.s32.totalorder %v1396, %v4709
  %v4711 = vsel %vm4710, 1, 0
  %v4712 = vcvt.s32.f32 %v4711
  %4714 = vrot.lane.b32.xlu0 %v4536, 32
  %v4715 = vpop.permute.xlu0 %4714
  %v4717 = vsel %vm93, %v4712, %v4715
  %v4719 = vsel %vm1405, %v4717, 0
  %4721 = vmatprep.subr.mxu0 0.0
  %4722 = vmatpush1.msra.mxu0 0.0
  %4723 = vmatprep.subr.mxu0 0.0
  %4724 = vmatpush1.msra.mxu0 0.0
  %4725 = vmatprep.subr.mxu0 0.0
  %4726 = vmatpush1.msra.mxu0 0.0
  %4727 = vmatprep.subr.mxu0 0.0
  %4728 = vmatpush1.msra.mxu0 0.0
  %4729 = vmatprep.subr.mxu0 0.0
  %4730 = vmatpush1.msra.mxu0 0.0
  %4731 = vmatprep.subr.mxu0 0.0
  %4732 = vmatpush1.msra.mxu0 0.0
  %4733 = vmatprep.subr.mxu0 0.0
  %4734 = vmatpush1.msra.mxu0 0.0
  %4735 = vmatprep.subr.mxu0 0.0
  %4736 = vmatpush1.msra.mxu0 0.0
  %4737 = vmatprep.subr.mxu0 0.0
  %4738 = vmatpush1.msra.mxu0 %v54
  %4739 = vmatprep.subr.mxu0 0.0
  %4740 = vmatpush1.msra.mxu0 %v53
  %4741 = vmatprep.subr.mxu0 0.0
  %4742 = vmatpush1.msra.mxu0 %v52
  %4743 = vmatprep.subr.mxu0 0.0
  %4744 = vmatpush1.msra.mxu0 %v51
  %4745 = vmatprep.subr.mxu0 0.0
  %4746 = vmatpush1.msra.mxu0 %v50
  %4747 = vmatprep.subr.mxu0 0.0
  %4748 = vmatpush1.msra.mxu0 %v49
  %4749 = vmatprep.subr.mxu0 0.0
  %4750 = vmatpush1.msra.mxu0 %v48
  %4751 = vmatprep.subr.mxu0 0.0
  %4752 = vmatpush1.msra.mxu0 %v47
  %4753 = vmatprep.subr.mxu0 0.0
  %4754 = vmatpush2.msra.mxu0 0.0
  %4755 = vmatprep.subr.mxu0 0.0
  %4756 = vmatpush2.msra.mxu0 0.0
  %4757 = vmatprep.subr.mxu0 0.0
  %4758 = vmatpush2.msra.mxu0 0.0
  %4759 = vmatprep.subr.mxu0 0.0
  %4760 = vmatpush2.msra.mxu0 0.0
  %4761 = vmatprep.subr.mxu0 0.0
  %4762 = vmatpush2.msra.mxu0 0.0
  %4763 = vmatprep.subr.mxu0 0.0
  %4764 = vmatpush2.msra.mxu0 0.0
  %4765 = vmatprep.subr.mxu0 0.0
  %4766 = vmatpush2.msra.mxu0 0.0
  %4767 = vmatprep.subr.mxu0 0.0
  %4768 = vmatpush2.msra.mxu0 0.0
  %4769 = vmatprep.subr.mxu0 0.0
  %4770 = vmatpush2.msra.mxu0 0.0
  %4771 = vmatprep.subr.mxu0 0.0
  %4772 = vmatpush2.msra.mxu0 0.0
  %4773 = vmatprep.subr.mxu0 0.0
  %4774 = vmatpush2.msra.mxu0 0.0
  %4775 = vmatprep.subr.mxu0 0.0
  %4776 = vmatpush2.msra.mxu0 0.0
  %4777 = vmatprep.subr.mxu0 0.0
  %4778 = vmatpush2.msra.mxu0 0.0
  %4779 = vmatprep.subr.mxu0 0.0
  %4780 = vmatpush2.msra.mxu0 0.0
  %4781 = vmatprep.subr.mxu0 0.0
  %4782 = vmatpush2.msra.mxu0 0.0
  %4783 = vmatprep.subr.mxu0 0.0
  %4784 = vmatpush2.msra.mxu0 0.0
  %4785 = vmatprep.mubr.f32.mxu0 0.0
  %4786 = vmatmul.mubr.f32.gmra.mxu0 %v4719
  %v4787 = vpop.f32.mrf.mxu0
  %v4788 = vadd.f32 0.0, %v4787
  %v4789 = vpop.f32.mrf.mxu0
  %4790 = vdwg.mxu0
  %v4791 = vtanh.pop %v4788
  %4792 = vrot.lane.b32.xlu0 %v4614, 32
  %v4793 = vpop.permute.xlu0 %4792
  %v4795 = vsel %vm93, %v4791, %v4793
  %v4797 = vsel %vm1405, %v4795, 0
  %4799 = vmatprep.subr.mxu0 0.0
  %4800 = vmatpush1.msra.mxu0 0.0
  %4801 = vmatprep.subr.mxu0 0.0
  %4802 = vmatpush1.msra.mxu0 0.0
  %4803 = vmatprep.subr.mxu0 0.0
  %4804 = vmatpush1.msra.mxu0 0.0
  %4805 = vmatprep.subr.mxu0 0.0
  %4806 = vmatpush1.msra.mxu0 0.0
  %4807 = vmatprep.subr.mxu0 0.0
  %4808 = vmatpush1.msra.mxu0 0.0
  %4809 = vmatprep.subr.mxu0 0.0
  %4810 = vmatpush1.msra.mxu0 0.0
  %4811 = vmatprep.subr.mxu0 0.0
  %4812 = vmatpush1.msra.mxu0 0.0
  %4813 = vmatprep.subr.mxu0 0.0
  %4814 = vmatpush1.msra.mxu0 0.0
  %4815 = vmatprep.subr.mxu0 0.0
  %4816 = vmatpush1.msra.mxu0 %v72
  %4817 = vmatprep.subr.mxu0 0.0
  %4818 = vmatpush1.msra.mxu0 %v71
  %4819 = vmatprep.subr.mxu0 0.0
  %4820 = vmatpush1.msra.mxu0 %v70
  %4821 = vmatprep.subr.mxu0 0.0
  %4822 = vmatpush1.msra.mxu0 %v69
  %4823 = vmatprep.subr.mxu0 0.0
  %4824 = vmatpush1.msra.mxu0 %v68
  %4825 = vmatprep.subr.mxu0 0.0
  %4826 = vmatpush1.msra.mxu0 %v67
  %4827 = vmatprep.subr.mxu0 0.0
  %4828 = vmatpush1.msra.mxu0 %v66
  %4829 = vmatprep.subr.mxu0 0.0
  %4830 = vmatpush1.msra.mxu0 %v65
  %4831 = vmatprep.subr.mxu0 0.0
  %4832 = vmatpush2.msra.mxu0 0.0
  %4833 = vmatprep.subr.mxu0 0.0
  %4834 = vmatpush2.msra.mxu0 0.0
  %4835 = vmatprep.subr.mxu0 0.0
  %4836 = vmatpush2.msra.mxu0 0.0
  %4837 = vmatprep.subr.mxu0 0.0
  %4838 = vmatpush2.msra.mxu0 0.0
  %4839 = vmatprep.subr.mxu0 0.0
  %4840 = vmatpush2.msra.mxu0 0.0
  %4841 = vmatprep.subr.mxu0 0.0
  %4842 = vmatpush2.msra.mxu0 0.0
  %4843 = vmatprep.subr.mxu0 0.0
  %4844 = vmatpush2.msra.mxu0 0.0
  %4845 = vmatprep.subr.mxu0 0.0
  %4846 = vmatpush2.msra.mxu0 0.0
  %4847 = vmatprep.subr.mxu0 0.0
  %4848 = vmatpush2.msra.mxu0 0.0
  %4849 = vmatprep.subr.mxu0 0.0
  %4850 = vmatpush2.msra.mxu0 0.0
  %4851 = vmatprep.subr.mxu0 0.0
  %4852 = vmatpush2.msra.mxu0 0.0
  %4853 = vmatprep.subr.mxu0 0.0
  %4854 = vmatpush2.msra.mxu0 0.0
  %4855 = vmatprep.subr.mxu0 0.0
  %4856 = vmatpush2.msra.mxu0 0.0
  %4857 = vmatprep.subr.mxu0 0.0
  %4858 = vmatpush2.msra.mxu0 0.0
  %4859 = vmatprep.subr.mxu0 0.0
  %4860 = vmatpush2.msra.mxu0 0.0
  %4861 = vmatprep.subr.mxu0 0.0
  %4862 = vmatpush2.msra.mxu0 0.0
  %4863 = vmatprep.mubr.f32.mxu0 0.0
  %4864 = vmatmul.mubr.f32.gmra.mxu0 %v4797
  %v4865 = vpop.f32.mrf.mxu0
  %v4866 = vadd.f32 %v78, %v4865
  %v4867 = vpop.f32.mrf.mxu0
  %4868 = vdwg.mxu0
  %v4869 = vtanh.pop %v4866
  %v4871 = vsel %vm93, %v4869, 0
  %4873 = vmatprep.subr.mxu0 0.0
  %4874 = vmatpush1.msra.mxu0 0.0
  %4875 = vmatprep.subr.mxu0 0.0
  %4876 = vmatpush1.msra.mxu0 0.0
  %4877 = vmatprep.subr.mxu0 0.0
  %4878 = vmatpush1.msra.mxu0 0.0
  %4879 = vmatprep.subr.mxu0 0.0
  %4880 = vmatpush1.msra.mxu0 0.0
  %4881 = vmatprep.subr.mxu0 0.0
  %4882 = vmatpush1.msra.mxu0 0.0
  %4883 = vmatprep.subr.mxu0 0.0
  %4884 = vmatpush1.msra.mxu0 0.0
  %4885 = vmatprep.subr.mxu0 0.0
  %4886 = vmatpush1.msra.mxu0 0.0
  %4887 = vmatprep.subr.mxu0 0.0
  %4888 = vmatpush1.msra.mxu0 0.0
  %4889 = vmatprep.subr.mxu0 0.0
  %4890 = vmatpush1.msra.mxu0 0.0
  %4891 = vmatprep.subr.mxu0 0.0
  %4892 = vmatpush1.msra.mxu0 0.0
  %4893 = vmatprep.subr.mxu0 0.0
  %4894 = vmatpush1.msra.mxu0 0.0
  %4895 = vmatprep.subr.mxu0 0.0
  %4896 = vmatpush1.msra.mxu0 0.0
  %4897 = vmatprep.subr.mxu0 0.0
  %4898 = vmatpush1.msra.mxu0 %v63
  %4899 = vmatprep.subr.mxu0 0.0
  %4900 = vmatpush1.msra.mxu0 %v62
  %4901 = vmatprep.subr.mxu0 0.0
  %4902 = vmatpush1.msra.mxu0 %v61
  %4903 = vmatprep.subr.mxu0 0.0
  %4904 = vmatpush1.msra.mxu0 %v60
  %4905 = vmatprep.subr.mxu0 0.0
  %4906 = vmatpush2.msra.mxu0 0.0
  %4907 = vmatprep.subr.mxu0 0.0
  %4908 = vmatpush2.msra.mxu0 0.0
  %4909 = vmatprep.subr.mxu0 0.0
  %4910 = vmatpush2.msra.mxu0 0.0
  %4911 = vmatprep.subr.mxu0 0.0
  %4912 = vmatpush2.msra.mxu0 0.0
  %4913 = vmatprep.subr.mxu0 0.0
  %4914 = vmatpush2.msra.mxu0 0.0
  %4915 = vmatprep.subr.mxu0 0.0
  %4916 = vmatpush2.msra.mxu0 0.0
  %4917 = vmatprep.subr.mxu0 0.0
  %4918 = vmatpush2.msra.mxu0 0.0
  %4919 = vmatprep.subr.mxu0 0.0
  %4920 = vmatpush2.msra.mxu0 0.0
  %4921 = vmatprep.subr.mxu0 0.0
  %4922 = vmatpush2.msra.mxu0 0.0
  %4923 = vmatprep.subr.mxu0 0.0
  %4924 = vmatpush2.msra.mxu0 0.0
  %4925 = vmatprep.subr.mxu0 0.0
  %4926 = vmatpush2.msra.mxu0 0.0
  %4927 = vmatprep.subr.mxu0 0.0
  %4928 = vmatpush2.msra.mxu0 0.0
  %4929 = vmatprep.subr.mxu0 0.0
  %4930 = vmatpush2.msra.mxu0 0.0
  %4931 = vmatprep.subr.mxu0 0.0
  %4932 = vmatpush2.msra.mxu0 0.0
  %4933 = vmatprep.subr.mxu0 0.0
  %4934 = vmatpush2.msra.mxu0 0.0
  %4935 = vmatprep.subr.mxu0 0.0
  %4936 = vmatpush2.msra.mxu0 0.0
  %4937 = vmatprep.mubr.f32.mxu0 0.0
  %4938 = vmatmul.mubr.f32.gmra.mxu0 %v4871
  %v4939 = vpop.f32.mrf.mxu0
  %v4940 = vadd.f32 %v90, %v4939
  %v4941 = vpop.f32.mrf.mxu0
  %4942 = vdwg.mxu0
  %s4943 = scalar_lea.vmem %s11, 26
  %4944 = vst.msk [vmem:[%s4943] sm:$0x3] %vm1628, %v4940
  %v4945 = vsel %vm1628, %v4940, -inf
  %4946 = vmax.xlane.f32.xlu0 %v4945
  %v4947 = vpop.xlane.xlu0 %4946
  %vm4948 = vcmp.eq.f32.partialorder %v4940, %v4947
  %v4949 = vsel %vm4948, %v1396, 16
  %v4950 = vsel %vm1628, %v4949, 2147483647
  %v4951 = vand.u32 %v4950, 65535
  %v4952 = vshra.s32 %v4950, 16
  %v4953 = vcvt.s32.f32 %v4951
  %v4954 = vcvt.s32.f32 %v4952
  %4955 = vmin.xlane.f32.xlu0 %v4954
  %v4956 = vpop.xlane.xlu0 %4955
  %vm4957 = vcmp.eq.f32.partialorder %v4954, %v4956
  %v4958 = vsel %vm4957, %v4953, inf
  %4959 = vmin.xlane.f32.xlu0 %v4958
  %v4960 = vpop.xlane.xlu0 %4959
  %v4961 = vcvt.f32.s32 %v4960
  %v4962 = vcvt.f32.s32 %v4956
  %v4963 = vshll.u32 %v4962, 16
  %v4964 = vadd.s32 %v4963, %v4961
  %vm4965 = vcmp.eq.s32.totalorder %v1396, %v4964
  %v4966 = vsel %vm4965, 1, 0
  %v4967 = vcvt.s32.f32 %v4966
  %4969 = vrot.lane.b32.xlu0 %v4791, 32
  %v4970 = vpop.permute.xlu0 %4969
  %v4972 = vsel %vm93, %v4967, %v4970
  %v4974 = vsel %vm1405, %v4972, 0
  %4976 = vmatprep.subr.mxu0 0.0
  %4977 = vmatpush1.msra.mxu0 0.0
  %4978 = vmatprep.subr.mxu0 0.0
  %4979 = vmatpush1.msra.mxu0 0.0
  %4980 = vmatprep.subr.mxu0 0.0
  %4981 = vmatpush1.msra.mxu0 0.0
  %4982 = vmatprep.subr.mxu0 0.0
  %4983 = vmatpush1.msra.mxu0 0.0
  %4984 = vmatprep.subr.mxu0 0.0
  %4985 = vmatpush1.msra.mxu0 0.0
  %4986 = vmatprep.subr.mxu0 0.0
  %4987 = vmatpush1.msra.mxu0 0.0
  %4988 = vmatprep.subr.mxu0 0.0
  %4989 = vmatpush1.msra.mxu0 0.0
  %4990 = vmatprep.subr.mxu0 0.0
  %4991 = vmatpush1.msra.mxu0 0.0
  %4992 = vmatprep.subr.mxu0 0.0
  %4993 = vmatpush1.msra.mxu0 %v54
  %4994 = vmatprep.subr.mxu0 0.0
  %4995 = vmatpush1.msra.mxu0 %v53
  %4996 = vmatprep.subr.mxu0 0.0
  %4997 = vmatpush1.msra.mxu0 %v52
  %4998 = vmatprep.subr.mxu0 0.0
  %4999 = vmatpush1.msra.mxu0 %v51
  %5000 = vmatprep.subr.mxu0 0.0
  %5001 = vmatpush1.msra.mxu0 %v50
  %5002 = vmatprep.subr.mxu0 0.0
  %5003 = vmatpush1.msra.mxu0 %v49
  %5004 = vmatprep.subr.mxu0 0.0
  %5005 = vmatpush1.msra.mxu0 %v48
  %5006 = vmatprep.subr.mxu0 0.0
  %5007 = vmatpush1.msra.mxu0 %v47
  %5008 = vmatprep.subr.mxu0 0.0
  %5009 = vmatpush2.msra.mxu0 0.0
  %5010 = vmatprep.subr.mxu0 0.0
  %5011 = vmatpush2.msra.mxu0 0.0
  %5012 = vmatprep.subr.mxu0 0.0
  %5013 = vmatpush2.msra.mxu0 0.0
  %5014 = vmatprep.subr.mxu0 0.0
  %5015 = vmatpush2.msra.mxu0 0.0
  %5016 = vmatprep.subr.mxu0 0.0
  %5017 = vmatpush2.msra.mxu0 0.0
  %5018 = vmatprep.subr.mxu0 0.0
  %5019 = vmatpush2.msra.mxu0 0.0
  %5020 = vmatprep.subr.mxu0 0.0
  %5021 = vmatpush2.msra.mxu0 0.0
  %5022 = vmatprep.subr.mxu0 0.0
  %5023 = vmatpush2.msra.mxu0 0.0
  %5024 = vmatprep.subr.mxu0 0.0
  %5025 = vmatpush2.msra.mxu0 0.0
  %5026 = vmatprep.subr.mxu0 0.0
  %5027 = vmatpush2.msra.mxu0 0.0
  %5028 = vmatprep.subr.mxu0 0.0
  %5029 = vmatpush2.msra.mxu0 0.0
  %5030 = vmatprep.subr.mxu0 0.0
  %5031 = vmatpush2.msra.mxu0 0.0
  %5032 = vmatprep.subr.mxu0 0.0
  %5033 = vmatpush2.msra.mxu0 0.0
  %5034 = vmatprep.subr.mxu0 0.0
  %5035 = vmatpush2.msra.mxu0 0.0
  %5036 = vmatprep.subr.mxu0 0.0
  %5037 = vmatpush2.msra.mxu0 0.0
  %5038 = vmatprep.subr.mxu0 0.0
  %5039 = vmatpush2.msra.mxu0 0.0
  %5040 = vmatprep.mubr.f32.mxu0 0.0
  %5041 = vmatmul.mubr.f32.gmra.mxu0 %v4974
  %v5042 = vpop.f32.mrf.mxu0
  %v5043 = vadd.f32 0.0, %v5042
  %v5044 = vpop.f32.mrf.mxu0
  %5045 = vdwg.mxu0
  %v5046 = vtanh.pop %v5043
  %5047 = vrot.lane.b32.xlu0 %v4869, 32
  %v5048 = vpop.permute.xlu0 %5047
  %v5050 = vsel %vm93, %v5046, %v5048
  %v5052 = vsel %vm1405, %v5050, 0
  %5054 = vmatprep.subr.mxu0 0.0
  %5055 = vmatpush1.msra.mxu0 0.0
  %5056 = vmatprep.subr.mxu0 0.0
  %5057 = vmatpush1.msra.mxu0 0.0
  %5058 = vmatprep.subr.mxu0 0.0
  %5059 = vmatpush1.msra.mxu0 0.0
  %5060 = vmatprep.subr.mxu0 0.0
  %5061 = vmatpush1.msra.mxu0 0.0
  %5062 = vmatprep.subr.mxu0 0.0
  %5063 = vmatpush1.msra.mxu0 0.0
  %5064 = vmatprep.subr.mxu0 0.0
  %5065 = vmatpush1.msra.mxu0 0.0
  %5066 = vmatprep.subr.mxu0 0.0
  %5067 = vmatpush1.msra.mxu0 0.0
  %5068 = vmatprep.subr.mxu0 0.0
  %5069 = vmatpush1.msra.mxu0 0.0
  %5070 = vmatprep.subr.mxu0 0.0
  %5071 = vmatpush1.msra.mxu0 %v72
  %5072 = vmatprep.subr.mxu0 0.0
  %5073 = vmatpush1.msra.mxu0 %v71
  %5074 = vmatprep.subr.mxu0 0.0
  %5075 = vmatpush1.msra.mxu0 %v70
  %5076 = vmatprep.subr.mxu0 0.0
  %5077 = vmatpush1.msra.mxu0 %v69
  %5078 = vmatprep.subr.mxu0 0.0
  %5079 = vmatpush1.msra.mxu0 %v68
  %5080 = vmatprep.subr.mxu0 0.0
  %5081 = vmatpush1.msra.mxu0 %v67
  %5082 = vmatprep.subr.mxu0 0.0
  %5083 = vmatpush1.msra.mxu0 %v66
  %5084 = vmatprep.subr.mxu0 0.0
  %5085 = vmatpush1.msra.mxu0 %v65
  %5086 = vmatprep.subr.mxu0 0.0
  %5087 = vmatpush2.msra.mxu0 0.0
  %5088 = vmatprep.subr.mxu0 0.0
  %5089 = vmatpush2.msra.mxu0 0.0
  %5090 = vmatprep.subr.mxu0 0.0
  %5091 = vmatpush2.msra.mxu0 0.0
  %5092 = vmatprep.subr.mxu0 0.0
  %5093 = vmatpush2.msra.mxu0 0.0
  %5094 = vmatprep.subr.mxu0 0.0
  %5095 = vmatpush2.msra.mxu0 0.0
  %5096 = vmatprep.subr.mxu0 0.0
  %5097 = vmatpush2.msra.mxu0 0.0
  %5098 = vmatprep.subr.mxu0 0.0
  %5099 = vmatpush2.msra.mxu0 0.0
  %5100 = vmatprep.subr.mxu0 0.0
  %5101 = vmatpush2.msra.mxu0 0.0
  %5102 = vmatprep.subr.mxu0 0.0
  %5103 = vmatpush2.msra.mxu0 0.0
  %5104 = vmatprep.subr.mxu0 0.0
  %5105 = vmatpush2.msra.mxu0 0.0
  %5106 = vmatprep.subr.mxu0 0.0
  %5107 = vmatpush2.msra.mxu0 0.0
  %5108 = vmatprep.subr.mxu0 0.0
  %5109 = vmatpush2.msra.mxu0 0.0
  %5110 = vmatprep.subr.mxu0 0.0
  %5111 = vmatpush2.msra.mxu0 0.0
  %5112 = vmatprep.subr.mxu0 0.0
  %5113 = vmatpush2.msra.mxu0 0.0
  %5114 = vmatprep.subr.mxu0 0.0
  %5115 = vmatpush2.msra.mxu0 0.0
  %5116 = vmatprep.subr.mxu0 0.0
  %5117 = vmatpush2.msra.mxu0 0.0
  %5118 = vmatprep.mubr.f32.mxu0 0.0
  %5119 = vmatmul.mubr.f32.gmra.mxu0 %v5052
  %v5120 = vpop.f32.mrf.mxu0
  %v5121 = vadd.f32 %v78, %v5120
  %v5122 = vpop.f32.mrf.mxu0
  %5123 = vdwg.mxu0
  %v5124 = vtanh.pop %v5121
  %v5126 = vsel %vm93, %v5124, 0
  %5128 = vmatprep.subr.mxu0 0.0
  %5129 = vmatpush1.msra.mxu0 0.0
  %5130 = vmatprep.subr.mxu0 0.0
  %5131 = vmatpush1.msra.mxu0 0.0
  %5132 = vmatprep.subr.mxu0 0.0
  %5133 = vmatpush1.msra.mxu0 0.0
  %5134 = vmatprep.subr.mxu0 0.0
  %5135 = vmatpush1.msra.mxu0 0.0
  %5136 = vmatprep.subr.mxu0 0.0
  %5137 = vmatpush1.msra.mxu0 0.0
  %5138 = vmatprep.subr.mxu0 0.0
  %5139 = vmatpush1.msra.mxu0 0.0
  %5140 = vmatprep.subr.mxu0 0.0
  %5141 = vmatpush1.msra.mxu0 0.0
  %5142 = vmatprep.subr.mxu0 0.0
  %5143 = vmatpush1.msra.mxu0 0.0
  %5144 = vmatprep.subr.mxu0 0.0
  %5145 = vmatpush1.msra.mxu0 0.0
  %5146 = vmatprep.subr.mxu0 0.0
  %5147 = vmatpush1.msra.mxu0 0.0
  %5148 = vmatprep.subr.mxu0 0.0
  %5149 = vmatpush1.msra.mxu0 0.0
  %5150 = vmatprep.subr.mxu0 0.0
  %5151 = vmatpush1.msra.mxu0 0.0
  %5152 = vmatprep.subr.mxu0 0.0
  %5153 = vmatpush1.msra.mxu0 %v63
  %5154 = vmatprep.subr.mxu0 0.0
  %5155 = vmatpush1.msra.mxu0 %v62
  %5156 = vmatprep.subr.mxu0 0.0
  %5157 = vmatpush1.msra.mxu0 %v61
  %5158 = vmatprep.subr.mxu0 0.0
  %5159 = vmatpush1.msra.mxu0 %v60
  %5160 = vmatprep.subr.mxu0 0.0
  %5161 = vmatpush2.msra.mxu0 0.0
  %5162 = vmatprep.subr.mxu0 0.0
  %5163 = vmatpush2.msra.mxu0 0.0
  %5164 = vmatprep.subr.mxu0 0.0
  %5165 = vmatpush2.msra.mxu0 0.0
  %5166 = vmatprep.subr.mxu0 0.0
  %5167 = vmatpush2.msra.mxu0 0.0
  %5168 = vmatprep.subr.mxu0 0.0
  %5169 = vmatpush2.msra.mxu0 0.0
  %5170 = vmatprep.subr.mxu0 0.0
  %5171 = vmatpush2.msra.mxu0 0.0
  %5172 = vmatprep.subr.mxu0 0.0
  %5173 = vmatpush2.msra.mxu0 0.0
  %5174 = vmatprep.subr.mxu0 0.0
  %5175 = vmatpush2.msra.mxu0 0.0
  %5176 = vmatprep.subr.mxu0 0.0
  %5177 = vmatpush2.msra.mxu0 0.0
  %5178 = vmatprep.subr.mxu0 0.0
  %5179 = vmatpush2.msra.mxu0 0.0
  %5180 = vmatprep.subr.mxu0 0.0
  %5181 = vmatpush2.msra.mxu0 0.0
  %5182 = vmatprep.subr.mxu0 0.0
  %5183 = vmatpush2.msra.mxu0 0.0
  %5184 = vmatprep.subr.mxu0 0.0
  %5185 = vmatpush2.msra.mxu0 0.0
  %5186 = vmatprep.subr.mxu0 0.0
  %5187 = vmatpush2.msra.mxu0 0.0
  %5188 = vmatprep.subr.mxu0 0.0
  %5189 = vmatpush2.msra.mxu0 0.0
  %5190 = vmatprep.subr.mxu0 0.0
  %5191 = vmatpush2.msra.mxu0 0.0
  %5192 = vmatprep.mubr.f32.mxu0 0.0
  %5193 = vmatmul.mubr.f32.gmra.mxu0 %v5126
  %v5194 = vpop.f32.mrf.mxu0
  %v5195 = vadd.f32 %v90, %v5194
  %v5196 = vpop.f32.mrf.mxu0
  %5197 = vdwg.mxu0
  %s5198 = scalar_lea.vmem %s11, 28
  %5199 = vst.msk [vmem:[%s5198] sm:$0x3] %vm1628, %v5195
  %v5200 = vsel %vm1628, %v5195, -inf
  %5201 = vmax.xlane.f32.xlu0 %v5200
  %v5202 = vpop.xlane.xlu0 %5201
  %vm5203 = vcmp.eq.f32.partialorder %v5195, %v5202
  %v5204 = vsel %vm5203, %v1396, 16
  %v5205 = vsel %vm1628, %v5204, 2147483647
  %v5206 = vand.u32 %v5205, 65535
  %v5207 = vshra.s32 %v5205, 16
  %v5208 = vcvt.s32.f32 %v5206
  %v5209 = vcvt.s32.f32 %v5207
  %5210 = vmin.xlane.f32.xlu0 %v5209
  %v5211 = vpop.xlane.xlu0 %5210
  %vm5212 = vcmp.eq.f32.partialorder %v5209, %v5211
  %v5213 = vsel %vm5212, %v5208, inf
  %5214 = vmin.xlane.f32.xlu0 %v5213
  %v5215 = vpop.xlane.xlu0 %5214
  %v5216 = vcvt.f32.s32 %v5215
  %v5217 = vcvt.f32.s32 %v5211
  %v5218 = vshll.u32 %v5217, 16
  %v5219 = vadd.s32 %v5218, %v5216
  %vm5220 = vcmp.eq.s32.totalorder %v1396, %v5219
  %v5221 = vsel %vm5220, 1, 0
  %v5222 = vcvt.s32.f32 %v5221
  %5224 = vrot.lane.b32.xlu0 %v5046, 32
  %v5225 = vpop.permute.xlu0 %5224
  %v5227 = vsel %vm93, %v5222, %v5225
  %v5229 = vsel %vm1405, %v5227, 0
  %5231 = vmatprep.subr.mxu0 0.0
  %5232 = vmatpush1.msra.mxu0 0.0
  %5233 = vmatprep.subr.mxu0 0.0
  %5234 = vmatpush1.msra.mxu0 0.0
  %5235 = vmatprep.subr.mxu0 0.0
  %5236 = vmatpush1.msra.mxu0 0.0
  %5237 = vmatprep.subr.mxu0 0.0
  %5238 = vmatpush1.msra.mxu0 0.0
  %5239 = vmatprep.subr.mxu0 0.0
  %5240 = vmatpush1.msra.mxu0 0.0
  %5241 = vmatprep.subr.mxu0 0.0
  %5242 = vmatpush1.msra.mxu0 0.0
  %5243 = vmatprep.subr.mxu0 0.0
  %5244 = vmatpush1.msra.mxu0 0.0
  %5245 = vmatprep.subr.mxu0 0.0
  %5246 = vmatpush1.msra.mxu0 0.0
  %5247 = vmatprep.subr.mxu0 0.0
  %5248 = vmatpush1.msra.mxu0 %v54
  %5249 = vmatprep.subr.mxu0 0.0
  %5250 = vmatpush1.msra.mxu0 %v53
  %5251 = vmatprep.subr.mxu0 0.0
  %5252 = vmatpush1.msra.mxu0 %v52
  %5253 = vmatprep.subr.mxu0 0.0
  %5254 = vmatpush1.msra.mxu0 %v51
  %5255 = vmatprep.subr.mxu0 0.0
  %5256 = vmatpush1.msra.mxu0 %v50
  %5257 = vmatprep.subr.mxu0 0.0
  %5258 = vmatpush1.msra.mxu0 %v49
  %5259 = vmatprep.subr.mxu0 0.0
  %5260 = vmatpush1.msra.mxu0 %v48
  %5261 = vmatprep.subr.mxu0 0.0
  %5262 = vmatpush1.msra.mxu0 %v47
  %5263 = vmatprep.subr.mxu0 0.0
  %5264 = vmatpush2.msra.mxu0 0.0
  %5265 = vmatprep.subr.mxu0 0.0
  %5266 = vmatpush2.msra.mxu0 0.0
  %5267 = vmatprep.subr.mxu0 0.0
  %5268 = vmatpush2.msra.mxu0 0.0
  %5269 = vmatprep.subr.mxu0 0.0
  %5270 = vmatpush2.msra.mxu0 0.0
  %5271 = vmatprep.subr.mxu0 0.0
  %5272 = vmatpush2.msra.mxu0 0.0
  %5273 = vmatprep.subr.mxu0 0.0
  %5274 = vmatpush2.msra.mxu0 0.0
  %5275 = vmatprep.subr.mxu0 0.0
  %5276 = vmatpush2.msra.mxu0 0.0
  %5277 = vmatprep.subr.mxu0 0.0
  %5278 = vmatpush2.msra.mxu0 0.0
  %5279 = vmatprep.subr.mxu0 0.0
  %5280 = vmatpush2.msra.mxu0 0.0
  %5281 = vmatprep.subr.mxu0 0.0
  %5282 = vmatpush2.msra.mxu0 0.0
  %5283 = vmatprep.subr.mxu0 0.0
  %5284 = vmatpush2.msra.mxu0 0.0
  %5285 = vmatprep.subr.mxu0 0.0
  %5286 = vmatpush2.msra.mxu0 0.0
  %5287 = vmatprep.subr.mxu0 0.0
  %5288 = vmatpush2.msra.mxu0 0.0
  %5289 = vmatprep.subr.mxu0 0.0
  %5290 = vmatpush2.msra.mxu0 0.0
  %5291 = vmatprep.subr.mxu0 0.0
  %5292 = vmatpush2.msra.mxu0 0.0
  %5293 = vmatprep.subr.mxu0 0.0
  %5294 = vmatpush2.msra.mxu0 0.0
  %5295 = vmatprep.mubr.f32.mxu0 0.0
  %5296 = vmatmul.mubr.f32.gmra.mxu0 %v5229
  %v5297 = vpop.f32.mrf.mxu0
  %v5298 = vadd.f32 0.0, %v5297
  %v5299 = vpop.f32.mrf.mxu0
  %5300 = vdwg.mxu0
  %v5301 = vtanh.pop %v5298
  %5302 = vrot.lane.b32.xlu0 %v5124, 32
  %v5303 = vpop.permute.xlu0 %5302
  %v5305 = vsel %vm93, %v5301, %v5303
  %v5307 = vsel %vm1405, %v5305, 0
  %5309 = vmatprep.subr.mxu0 0.0
  %5310 = vmatpush1.msra.mxu0 0.0
  %5311 = vmatprep.subr.mxu0 0.0
  %5312 = vmatpush1.msra.mxu0 0.0
  %5313 = vmatprep.subr.mxu0 0.0
  %5314 = vmatpush1.msra.mxu0 0.0
  %5315 = vmatprep.subr.mxu0 0.0
  %5316 = vmatpush1.msra.mxu0 0.0
  %5317 = vmatprep.subr.mxu0 0.0
  %5318 = vmatpush1.msra.mxu0 0.0
  %5319 = vmatprep.subr.mxu0 0.0
  %5320 = vmatpush1.msra.mxu0 0.0
  %5321 = vmatprep.subr.mxu0 0.0
  %5322 = vmatpush1.msra.mxu0 0.0
  %5323 = vmatprep.subr.mxu0 0.0
  %5324 = vmatpush1.msra.mxu0 0.0
  %5325 = vmatprep.subr.mxu0 0.0
  %5326 = vmatpush1.msra.mxu0 %v72
  %5327 = vmatprep.subr.mxu0 0.0
  %5328 = vmatpush1.msra.mxu0 %v71
  %5329 = vmatprep.subr.mxu0 0.0
  %5330 = vmatpush1.msra.mxu0 %v70
  %5331 = vmatprep.subr.mxu0 0.0
  %5332 = vmatpush1.msra.mxu0 %v69
  %5333 = vmatprep.subr.mxu0 0.0
  %5334 = vmatpush1.msra.mxu0 %v68
  %5335 = vmatprep.subr.mxu0 0.0
  %5336 = vmatpush1.msra.mxu0 %v67
  %5337 = vmatprep.subr.mxu0 0.0
  %5338 = vmatpush1.msra.mxu0 %v66
  %5339 = vmatprep.subr.mxu0 0.0
  %5340 = vmatpush1.msra.mxu0 %v65
  %5341 = vmatprep.subr.mxu0 0.0
  %5342 = vmatpush2.msra.mxu0 0.0
  %5343 = vmatprep.subr.mxu0 0.0
  %5344 = vmatpush2.msra.mxu0 0.0
  %5345 = vmatprep.subr.mxu0 0.0
  %5346 = vmatpush2.msra.mxu0 0.0
  %5347 = vmatprep.subr.mxu0 0.0
  %5348 = vmatpush2.msra.mxu0 0.0
  %5349 = vmatprep.subr.mxu0 0.0
  %5350 = vmatpush2.msra.mxu0 0.0
  %5351 = vmatprep.subr.mxu0 0.0
  %5352 = vmatpush2.msra.mxu0 0.0
  %5353 = vmatprep.subr.mxu0 0.0
  %5354 = vmatpush2.msra.mxu0 0.0
  %5355 = vmatprep.subr.mxu0 0.0
  %5356 = vmatpush2.msra.mxu0 0.0
  %5357 = vmatprep.subr.mxu0 0.0
  %5358 = vmatpush2.msra.mxu0 0.0
  %5359 = vmatprep.subr.mxu0 0.0
  %5360 = vmatpush2.msra.mxu0 0.0
  %5361 = vmatprep.subr.mxu0 0.0
  %5362 = vmatpush2.msra.mxu0 0.0
  %5363 = vmatprep.subr.mxu0 0.0
  %5364 = vmatpush2.msra.mxu0 0.0
  %5365 = vmatprep.subr.mxu0 0.0
  %5366 = vmatpush2.msra.mxu0 0.0
  %5367 = vmatprep.subr.mxu0 0.0
  %5368 = vmatpush2.msra.mxu0 0.0
  %5369 = vmatprep.subr.mxu0 0.0
  %5370 = vmatpush2.msra.mxu0 0.0
  %5371 = vmatprep.subr.mxu0 0.0
  %5372 = vmatpush2.msra.mxu0 0.0
  %5373 = vmatprep.mubr.f32.mxu0 0.0
  %5374 = vmatmul.mubr.f32.gmra.mxu0 %v5307
  %v5375 = vpop.f32.mrf.mxu0
  %v5376 = vadd.f32 %v78, %v5375
  %v5377 = vpop.f32.mrf.mxu0
  %5378 = vdwg.mxu0
  %v5379 = vtanh.pop %v5376
  %v5381 = vsel %vm93, %v5379, 0
  %5383 = vmatprep.subr.mxu0 0.0
  %5384 = vmatpush1.msra.mxu0 0.0
  %5385 = vmatprep.subr.mxu0 0.0
  %5386 = vmatpush1.msra.mxu0 0.0
  %5387 = vmatprep.subr.mxu0 0.0
  %5388 = vmatpush1.msra.mxu0 0.0
  %5389 = vmatprep.subr.mxu0 0.0
  %5390 = vmatpush1.msra.mxu0 0.0
  %5391 = vmatprep.subr.mxu0 0.0
  %5392 = vmatpush1.msra.mxu0 0.0
  %5393 = vmatprep.subr.mxu0 0.0
  %5394 = vmatpush1.msra.mxu0 0.0
  %5395 = vmatprep.subr.mxu0 0.0
  %5396 = vmatpush1.msra.mxu0 0.0
  %5397 = vmatprep.subr.mxu0 0.0
  %5398 = vmatpush1.msra.mxu0 0.0
  %5399 = vmatprep.subr.mxu0 0.0
  %5400 = vmatpush1.msra.mxu0 0.0
  %5401 = vmatprep.subr.mxu0 0.0
  %5402 = vmatpush1.msra.mxu0 0.0
  %5403 = vmatprep.subr.mxu0 0.0
  %5404 = vmatpush1.msra.mxu0 0.0
  %5405 = vmatprep.subr.mxu0 0.0
  %5406 = vmatpush1.msra.mxu0 0.0
  %5407 = vmatprep.subr.mxu0 0.0
  %5408 = vmatpush1.msra.mxu0 %v63
  %5409 = vmatprep.subr.mxu0 0.0
  %5410 = vmatpush1.msra.mxu0 %v62
  %5411 = vmatprep.subr.mxu0 0.0
  %5412 = vmatpush1.msra.mxu0 %v61
  %5413 = vmatprep.subr.mxu0 0.0
  %5414 = vmatpush1.msra.mxu0 %v60
  %5415 = vmatprep.subr.mxu0 0.0
  %5416 = vmatpush2.msra.mxu0 0.0
  %5417 = vmatprep.subr.mxu0 0.0
  %5418 = vmatpush2.msra.mxu0 0.0
  %5419 = vmatprep.subr.mxu0 0.0
  %5420 = vmatpush2.msra.mxu0 0.0
  %5421 = vmatprep.subr.mxu0 0.0
  %5422 = vmatpush2.msra.mxu0 0.0
  %5423 = vmatprep.subr.mxu0 0.0
  %5424 = vmatpush2.msra.mxu0 0.0
  %5425 = vmatprep.subr.mxu0 0.0
  %5426 = vmatpush2.msra.mxu0 0.0
  %5427 = vmatprep.subr.mxu0 0.0
  %5428 = vmatpush2.msra.mxu0 0.0
  %5429 = vmatprep.subr.mxu0 0.0
  %5430 = vmatpush2.msra.mxu0 0.0
  %5431 = vmatprep.subr.mxu0 0.0
  %5432 = vmatpush2.msra.mxu0 0.0
  %5433 = vmatprep.subr.mxu0 0.0
  %5434 = vmatpush2.msra.mxu0 0.0
  %5435 = vmatprep.subr.mxu0 0.0
  %5436 = vmatpush2.msra.mxu0 0.0
  %5437 = vmatprep.subr.mxu0 0.0
  %5438 = vmatpush2.msra.mxu0 0.0
  %5439 = vmatprep.subr.mxu0 0.0
  %5440 = vmatpush2.msra.mxu0 0.0
  %5441 = vmatprep.subr.mxu0 0.0
  %5442 = vmatpush2.msra.mxu0 0.0
  %5443 = vmatprep.subr.mxu0 0.0
  %5444 = vmatpush2.msra.mxu0 0.0
  %5445 = vmatprep.subr.mxu0 0.0
  %5446 = vmatpush2.msra.mxu0 0.0
  %5447 = vmatprep.mubr.f32.mxu0 0.0
  %5448 = vmatmul.mubr.f32.gmra.mxu0 %v5381
  %v5449 = vpop.f32.mrf.mxu0
  %v5450 = vadd.f32 %v90, %v5449
  %v5451 = vpop.f32.mrf.mxu0
  %5452 = vdwg.mxu0
  %s5453 = scalar_lea.vmem %s11, 30
  %5454 = vst.msk [vmem:[%s5453] sm:$0x3] %vm1628, %v5450
  %v5455 = vsel %vm1628, %v5450, -inf
  %5456 = vmax.xlane.f32.xlu0 %v5455
  %v5457 = vpop.xlane.xlu0 %5456
  %vm5458 = vcmp.eq.f32.partialorder %v5450, %v5457
  %v5459 = vsel %vm5458, %v1396, 16
  %v5460 = vsel %vm1628, %v5459, 2147483647
  %v5461 = vand.u32 %v5460, 65535
  %v5462 = vshra.s32 %v5460, 16
  %v5463 = vcvt.s32.f32 %v5461
  %v5464 = vcvt.s32.f32 %v5462
  %5465 = vmin.xlane.f32.xlu0 %v5464
  %v5466 = vpop.xlane.xlu0 %5465
  %vm5467 = vcmp.eq.f32.partialorder %v5464, %v5466
  %v5468 = vsel %vm5467, %v5463, inf
  %5469 = vmin.xlane.f32.xlu0 %v5468
  %v5470 = vpop.xlane.xlu0 %5469
  %v5471 = vcvt.f32.s32 %v5470
  %v5472 = vcvt.f32.s32 %v5466
  %v5473 = vshll.u32 %v5472, 16
  %v5474 = vadd.s32 %v5473, %v5471
  %vm5475 = vcmp.eq.s32.totalorder %v1396, %v5474
  %v5476 = vsel %vm5475, 1, 0
  %v5477 = vcvt.s32.f32 %v5476
  %5479 = vrot.lane.b32.xlu0 %v5301, 32
  %v5480 = vpop.permute.xlu0 %5479
  %v5482 = vsel %vm93, %v5477, %v5480
  %v5484 = vsel %vm1405, %v5482, 0
  %5486 = vmatprep.subr.mxu0 0.0
  %5487 = vmatpush1.msra.mxu0 0.0
  %5488 = vmatprep.subr.mxu0 0.0
  %5489 = vmatpush1.msra.mxu0 0.0
  %5490 = vmatprep.subr.mxu0 0.0
  %5491 = vmatpush1.msra.mxu0 0.0
  %5492 = vmatprep.subr.mxu0 0.0
  %5493 = vmatpush1.msra.mxu0 0.0
  %5494 = vmatprep.subr.mxu0 0.0
  %5495 = vmatpush1.msra.mxu0 0.0
  %5496 = vmatprep.subr.mxu0 0.0
  %5497 = vmatpush1.msra.mxu0 0.0
  %5498 = vmatprep.subr.mxu0 0.0
  %5499 = vmatpush1.msra.mxu0 0.0
  %5500 = vmatprep.subr.mxu0 0.0
  %5501 = vmatpush1.msra.mxu0 0.0
  %5502 = vmatprep.subr.mxu0 0.0
  %5503 = vmatpush1.msra.mxu0 %v54
  %5504 = vmatprep.subr.mxu0 0.0
  %5505 = vmatpush1.msra.mxu0 %v53
  %5506 = vmatprep.subr.mxu0 0.0
  %5507 = vmatpush1.msra.mxu0 %v52
  %5508 = vmatprep.subr.mxu0 0.0
  %5509 = vmatpush1.msra.mxu0 %v51
  %5510 = vmatprep.subr.mxu0 0.0
  %5511 = vmatpush1.msra.mxu0 %v50
  %5512 = vmatprep.subr.mxu0 0.0
  %5513 = vmatpush1.msra.mxu0 %v49
  %5514 = vmatprep.subr.mxu0 0.0
  %5515 = vmatpush1.msra.mxu0 %v48
  %5516 = vmatprep.subr.mxu0 0.0
  %5517 = vmatpush1.msra.mxu0 %v47
  %5518 = vmatprep.subr.mxu0 0.0
  %5519 = vmatpush2.msra.mxu0 0.0
  %5520 = vmatprep.subr.mxu0 0.0
  %5521 = vmatpush2.msra.mxu0 0.0
  %5522 = vmatprep.subr.mxu0 0.0
  %5523 = vmatpush2.msra.mxu0 0.0
  %5524 = vmatprep.subr.mxu0 0.0
  %5525 = vmatpush2.msra.mxu0 0.0
  %5526 = vmatprep.subr.mxu0 0.0
  %5527 = vmatpush2.msra.mxu0 0.0
  %5528 = vmatprep.subr.mxu0 0.0
  %5529 = vmatpush2.msra.mxu0 0.0
  %5530 = vmatprep.subr.mxu0 0.0
  %5531 = vmatpush2.msra.mxu0 0.0
  %5532 = vmatprep.subr.mxu0 0.0
  %5533 = vmatpush2.msra.mxu0 0.0
  %5534 = vmatprep.subr.mxu0 0.0
  %5535 = vmatpush2.msra.mxu0 0.0
  %5536 = vmatprep.subr.mxu0 0.0
  %5537 = vmatpush2.msra.mxu0 0.0
  %5538 = vmatprep.subr.mxu0 0.0
  %5539 = vmatpush2.msra.mxu0 0.0
  %5540 = vmatprep.subr.mxu0 0.0
  %5541 = vmatpush2.msra.mxu0 0.0
  %5542 = vmatprep.subr.mxu0 0.0
  %5543 = vmatpush2.msra.mxu0 0.0
  %5544 = vmatprep.subr.mxu0 0.0
  %5545 = vmatpush2.msra.mxu0 0.0
  %5546 = vmatprep.subr.mxu0 0.0
  %5547 = vmatpush2.msra.mxu0 0.0
  %5548 = vmatprep.subr.mxu0 0.0
  %5549 = vmatpush2.msra.mxu0 0.0
  %5550 = vmatprep.mubr.f32.mxu0 0.0
  %5551 = vmatmul.mubr.f32.gmra.mxu0 %v5484
  %v5552 = vpop.f32.mrf.mxu0
  %v5553 = vadd.f32 0.0, %v5552
  %v5554 = vpop.f32.mrf.mxu0
  %5555 = vdwg.mxu0
  %v5556 = vtanh.pop %v5553
  %5557 = vrot.lane.b32.xlu0 %v5379, 32
  %v5558 = vpop.permute.xlu0 %5557
  %v5560 = vsel %vm93, %v5556, %v5558
  %v5562 = vsel %vm1405, %v5560, 0
  %5564 = vmatprep.subr.mxu0 0.0
  %5565 = vmatpush1.msra.mxu0 0.0
  %5566 = vmatprep.subr.mxu0 0.0
  %5567 = vmatpush1.msra.mxu0 0.0
  %5568 = vmatprep.subr.mxu0 0.0
  %5569 = vmatpush1.msra.mxu0 0.0
  %5570 = vmatprep.subr.mxu0 0.0
  %5571 = vmatpush1.msra.mxu0 0.0
  %5572 = vmatprep.subr.mxu0 0.0
  %5573 = vmatpush1.msra.mxu0 0.0
  %5574 = vmatprep.subr.mxu0 0.0
  %5575 = vmatpush1.msra.mxu0 0.0
  %5576 = vmatprep.subr.mxu0 0.0
  %5577 = vmatpush1.msra.mxu0 0.0
  %5578 = vmatprep.subr.mxu0 0.0
  %5579 = vmatpush1.msra.mxu0 0.0
  %5580 = vmatprep.subr.mxu0 0.0
  %5581 = vmatpush1.msra.mxu0 %v72
  %5582 = vmatprep.subr.mxu0 0.0
  %5583 = vmatpush1.msra.mxu0 %v71
  %5584 = vmatprep.subr.mxu0 0.0
  %5585 = vmatpush1.msra.mxu0 %v70
  %5586 = vmatprep.subr.mxu0 0.0
  %5587 = vmatpush1.msra.mxu0 %v69
  %5588 = vmatprep.subr.mxu0 0.0
  %5589 = vmatpush1.msra.mxu0 %v68
  %5590 = vmatprep.subr.mxu0 0.0
  %5591 = vmatpush1.msra.mxu0 %v67
  %5592 = vmatprep.subr.mxu0 0.0
  %5593 = vmatpush1.msra.mxu0 %v66
  %5594 = vmatprep.subr.mxu0 0.0
  %5595 = vmatpush1.msra.mxu0 %v65
  %5596 = vmatprep.subr.mxu0 0.0
  %5597 = vmatpush2.msra.mxu0 0.0
  %5598 = vmatprep.subr.mxu0 0.0
  %5599 = vmatpush2.msra.mxu0 0.0
  %5600 = vmatprep.subr.mxu0 0.0
  %5601 = vmatpush2.msra.mxu0 0.0
  %5602 = vmatprep.subr.mxu0 0.0
  %5603 = vmatpush2.msra.mxu0 0.0
  %5604 = vmatprep.subr.mxu0 0.0
  %5605 = vmatpush2.msra.mxu0 0.0
  %5606 = vmatprep.subr.mxu0 0.0
  %5607 = vmatpush2.msra.mxu0 0.0
  %5608 = vmatprep.subr.mxu0 0.0
  %5609 = vmatpush2.msra.mxu0 0.0
  %5610 = vmatprep.subr.mxu0 0.0
  %5611 = vmatpush2.msra.mxu0 0.0
  %5612 = vmatprep.subr.mxu0 0.0
  %5613 = vmatpush2.msra.mxu0 0.0
  %5614 = vmatprep.subr.mxu0 0.0
  %5615 = vmatpush2.msra.mxu0 0.0
  %5616 = vmatprep.subr.mxu0 0.0
  %5617 = vmatpush2.msra.mxu0 0.0
  %5618 = vmatprep.subr.mxu0 0.0
  %5619 = vmatpush2.msra.mxu0 0.0
  %5620 = vmatprep.subr.mxu0 0.0
  %5621 = vmatpush2.msra.mxu0 0.0
  %5622 = vmatprep.subr.mxu0 0.0
  %5623 = vmatpush2.msra.mxu0 0.0
  %5624 = vmatprep.subr.mxu0 0.0
  %5625 = vmatpush2.msra.mxu0 0.0
  %5626 = vmatprep.subr.mxu0 0.0
  %5627 = vmatpush2.msra.mxu0 0.0
  %5628 = vmatprep.mubr.f32.mxu0 0.0
  %5629 = vmatmul.mubr.f32.gmra.mxu0 %v5562
  %v5630 = vpop.f32.mrf.mxu0
  %v5631 = vadd.f32 %v78, %v5630
  %v5632 = vpop.f32.mrf.mxu0
  %5633 = vdwg.mxu0
  %v5634 = vtanh.pop %v5631
  %v5636 = vsel %vm93, %v5634, 0
  %5638 = vmatprep.subr.mxu0 0.0
  %5639 = vmatpush1.msra.mxu0 0.0
  %5640 = vmatprep.subr.mxu0 0.0
  %5641 = vmatpush1.msra.mxu0 0.0
  %5642 = vmatprep.subr.mxu0 0.0
  %5643 = vmatpush1.msra.mxu0 0.0
  %5644 = vmatprep.subr.mxu0 0.0
  %5645 = vmatpush1.msra.mxu0 0.0
  %5646 = vmatprep.subr.mxu0 0.0
  %5647 = vmatpush1.msra.mxu0 0.0
  %5648 = vmatprep.subr.mxu0 0.0
  %5649 = vmatpush1.msra.mxu0 0.0
  %5650 = vmatprep.subr.mxu0 0.0
  %5651 = vmatpush1.msra.mxu0 0.0
  %5652 = vmatprep.subr.mxu0 0.0
  %5653 = vmatpush1.msra.mxu0 0.0
  %5654 = vmatprep.subr.mxu0 0.0
  %5655 = vmatpush1.msra.mxu0 0.0
  %5656 = vmatprep.subr.mxu0 0.0
  %5657 = vmatpush1.msra.mxu0 0.0
  %5658 = vmatprep.subr.mxu0 0.0
  %5659 = vmatpush1.msra.mxu0 0.0
  %5660 = vmatprep.subr.mxu0 0.0
  %5661 = vmatpush1.msra.mxu0 0.0
  %5662 = vmatprep.subr.mxu0 0.0
  %5663 = vmatpush1.msra.mxu0 %v63
  %5664 = vmatprep.subr.mxu0 0.0
  %5665 = vmatpush1.msra.mxu0 %v62
  %5666 = vmatprep.subr.mxu0 0.0
  %5667 = vmatpush1.msra.mxu0 %v61
  %5668 = vmatprep.subr.mxu0 0.0
  %5669 = vmatpush1.msra.mxu0 %v60
  %5670 = vmatprep.subr.mxu0 0.0
  %5671 = vmatpush2.msra.mxu0 0.0
  %5672 = vmatprep.subr.mxu0 0.0
  %5673 = vmatpush2.msra.mxu0 0.0
  %5674 = vmatprep.subr.mxu0 0.0
  %5675 = vmatpush2.msra.mxu0 0.0
  %5676 = vmatprep.subr.mxu0 0.0
  %5677 = vmatpush2.msra.mxu0 0.0
  %5678 = vmatprep.subr.mxu0 0.0
  %5679 = vmatpush2.msra.mxu0 0.0
  %5680 = vmatprep.subr.mxu0 0.0
  %5681 = vmatpush2.msra.mxu0 0.0
  %5682 = vmatprep.subr.mxu0 0.0
  %5683 = vmatpush2.msra.mxu0 0.0
  %5684 = vmatprep.subr.mxu0 0.0
  %5685 = vmatpush2.msra.mxu0 0.0
  %5686 = vmatprep.subr.mxu0 0.0
  %5687 = vmatpush2.msra.mxu0 0.0
  %5688 = vmatprep.subr.mxu0 0.0
  %5689 = vmatpush2.msra.mxu0 0.0
  %5690 = vmatprep.subr.mxu0 0.0
  %5691 = vmatpush2.msra.mxu0 0.0
  %5692 = vmatprep.subr.mxu0 0.0
  %5693 = vmatpush2.msra.mxu0 0.0
  %5694 = vmatprep.subr.mxu0 0.0
  %5695 = vmatpush2.msra.mxu0 0.0
  %5696 = vmatprep.subr.mxu0 0.0
  %5697 = vmatpush2.msra.mxu0 0.0
  %5698 = vmatprep.subr.mxu0 0.0
  %5699 = vmatpush2.msra.mxu0 0.0
  %5700 = vmatprep.subr.mxu0 0.0
  %5701 = vmatpush2.msra.mxu0 0.0
  %5702 = vmatprep.mubr.f32.mxu0 0.0
  %5703 = vmatmul.mubr.f32.gmra.mxu0 %v5636
  %v5704 = vpop.f32.mrf.mxu0
  %v5705 = vadd.f32 %v90, %v5704
  %v5706 = vpop.f32.mrf.mxu0
  %5707 = vdwg.mxu0
  %s5708 = scalar_lea.vmem %s11, 32
  %5709 = vst.msk [vmem:[%s5708] sm:$0x3] %vm1628, %v5705
  %v5710 = vsel %vm1628, %v5705, -inf
  %5711 = vmax.xlane.f32.xlu0 %v5710
  %v5712 = vpop.xlane.xlu0 %5711
  %vm5713 = vcmp.eq.f32.partialorder %v5705, %v5712
  %v5714 = vsel %vm5713, %v1396, 16
  %v5715 = vsel %vm1628, %v5714, 2147483647
  %v5716 = vand.u32 %v5715, 65535
  %v5717 = vshra.s32 %v5715, 16
  %v5718 = vcvt.s32.f32 %v5716
  %v5719 = vcvt.s32.f32 %v5717
  %5720 = vmin.xlane.f32.xlu0 %v5719
  %v5721 = vpop.xlane.xlu0 %5720
  %vm5722 = vcmp.eq.f32.partialorder %v5719, %v5721
  %v5723 = vsel %vm5722, %v5718, inf
  %5724 = vmin.xlane.f32.xlu0 %v5723
  %v5725 = vpop.xlane.xlu0 %5724
  %v5726 = vcvt.f32.s32 %v5725
  %v5727 = vcvt.f32.s32 %v5721
  %v5728 = vshll.u32 %v5727, 16
  %v5729 = vadd.s32 %v5728, %v5726
  %vm5730 = vcmp.eq.s32.totalorder %v1396, %v5729
  %v5731 = vsel %vm5730, 1, 0
  %v5732 = vcvt.s32.f32 %v5731
  %5734 = vrot.lane.b32.xlu0 %v5556, 32
  %v5735 = vpop.permute.xlu0 %5734
  %v5737 = vsel %vm93, %v5732, %v5735
  %v5739 = vsel %vm1405, %v5737, 0
  %5741 = vmatprep.subr.mxu0 0.0
  %5742 = vmatpush1.msra.mxu0 0.0
  %5743 = vmatprep.subr.mxu0 0.0
  %5744 = vmatpush1.msra.mxu0 0.0
  %5745 = vmatprep.subr.mxu0 0.0
  %5746 = vmatpush1.msra.mxu0 0.0
  %5747 = vmatprep.subr.mxu0 0.0
  %5748 = vmatpush1.msra.mxu0 0.0
  %5749 = vmatprep.subr.mxu0 0.0
  %5750 = vmatpush1.msra.mxu0 0.0
  %5751 = vmatprep.subr.mxu0 0.0
  %5752 = vmatpush1.msra.mxu0 0.0
  %5753 = vmatprep.subr.mxu0 0.0
  %5754 = vmatpush1.msra.mxu0 0.0
  %5755 = vmatprep.subr.mxu0 0.0
  %5756 = vmatpush1.msra.mxu0 0.0
  %5757 = vmatprep.subr.mxu0 0.0
  %5758 = vmatpush1.msra.mxu0 %v54
  %5759 = vmatprep.subr.mxu0 0.0
  %5760 = vmatpush1.msra.mxu0 %v53
  %5761 = vmatprep.subr.mxu0 0.0
  %5762 = vmatpush1.msra.mxu0 %v52
  %5763 = vmatprep.subr.mxu0 0.0
  %5764 = vmatpush1.msra.mxu0 %v51
  %5765 = vmatprep.subr.mxu0 0.0
  %5766 = vmatpush1.msra.mxu0 %v50
  %5767 = vmatprep.subr.mxu0 0.0
  %5768 = vmatpush1.msra.mxu0 %v49
  %5769 = vmatprep.subr.mxu0 0.0
  %5770 = vmatpush1.msra.mxu0 %v48
  %5771 = vmatprep.subr.mxu0 0.0
  %5772 = vmatpush1.msra.mxu0 %v47
  %5773 = vmatprep.subr.mxu0 0.0
  %5774 = vmatpush2.msra.mxu0 0.0
  %5775 = vmatprep.subr.mxu0 0.0
  %5776 = vmatpush2.msra.mxu0 0.0
  %5777 = vmatprep.subr.mxu0 0.0
  %5778 = vmatpush2.msra.mxu0 0.0
  %5779 = vmatprep.subr.mxu0 0.0
  %5780 = vmatpush2.msra.mxu0 0.0
  %5781 = vmatprep.subr.mxu0 0.0
  %5782 = vmatpush2.msra.mxu0 0.0
  %5783 = vmatprep.subr.mxu0 0.0
  %5784 = vmatpush2.msra.mxu0 0.0
  %5785 = vmatprep.subr.mxu0 0.0
  %5786 = vmatpush2.msra.mxu0 0.0
  %5787 = vmatprep.subr.mxu0 0.0
  %5788 = vmatpush2.msra.mxu0 0.0
  %5789 = vmatprep.subr.mxu0 0.0
  %5790 = vmatpush2.msra.mxu0 0.0
  %5791 = vmatprep.subr.mxu0 0.0
  %5792 = vmatpush2.msra.mxu0 0.0
  %5793 = vmatprep.subr.mxu0 0.0
  %5794 = vmatpush2.msra.mxu0 0.0
  %5795 = vmatprep.subr.mxu0 0.0
  %5796 = vmatpush2.msra.mxu0 0.0
  %5797 = vmatprep.subr.mxu0 0.0
  %5798 = vmatpush2.msra.mxu0 0.0
  %5799 = vmatprep.subr.mxu0 0.0
  %5800 = vmatpush2.msra.mxu0 0.0
  %5801 = vmatprep.subr.mxu0 0.0
  %5802 = vmatpush2.msra.mxu0 0.0
  %5803 = vmatprep.subr.mxu0 0.0
  %5804 = vmatpush2.msra.mxu0 0.0
  %5805 = vmatprep.mubr.f32.mxu0 0.0
  %5806 = vmatmul.mubr.f32.gmra.mxu0 %v5739
  %v5807 = vpop.f32.mrf.mxu0
  %v5808 = vadd.f32 0.0, %v5807
  %v5809 = vpop.f32.mrf.mxu0
  %5810 = vdwg.mxu0
  %v5811 = vtanh.pop %v5808
  %5812 = vrot.lane.b32.xlu0 %v5634, 32
  %v5813 = vpop.permute.xlu0 %5812
  %v5815 = vsel %vm93, %v5811, %v5813
  %v5817 = vsel %vm1405, %v5815, 0
  %5819 = vmatprep.subr.mxu0 0.0
  %5820 = vmatpush1.msra.mxu0 0.0
  %5821 = vmatprep.subr.mxu0 0.0
  %5822 = vmatpush1.msra.mxu0 0.0
  %5823 = vmatprep.subr.mxu0 0.0
  %5824 = vmatpush1.msra.mxu0 0.0
  %5825 = vmatprep.subr.mxu0 0.0
  %5826 = vmatpush1.msra.mxu0 0.0
  %5827 = vmatprep.subr.mxu0 0.0
  %5828 = vmatpush1.msra.mxu0 0.0
  %5829 = vmatprep.subr.mxu0 0.0
  %5830 = vmatpush1.msra.mxu0 0.0
  %5831 = vmatprep.subr.mxu0 0.0
  %5832 = vmatpush1.msra.mxu0 0.0
  %5833 = vmatprep.subr.mxu0 0.0
  %5834 = vmatpush1.msra.mxu0 0.0
  %5835 = vmatprep.subr.mxu0 0.0
  %5836 = vmatpush1.msra.mxu0 %v72
  %5837 = vmatprep.subr.mxu0 0.0
  %5838 = vmatpush1.msra.mxu0 %v71
  %5839 = vmatprep.subr.mxu0 0.0
  %5840 = vmatpush1.msra.mxu0 %v70
  %5841 = vmatprep.subr.mxu0 0.0
  %5842 = vmatpush1.msra.mxu0 %v69
  %5843 = vmatprep.subr.mxu0 0.0
  %5844 = vmatpush1.msra.mxu0 %v68
  %5845 = vmatprep.subr.mxu0 0.0
  %5846 = vmatpush1.msra.mxu0 %v67
  %5847 = vmatprep.subr.mxu0 0.0
  %5848 = vmatpush1.msra.mxu0 %v66
  %5849 = vmatprep.subr.mxu0 0.0
  %5850 = vmatpush1.msra.mxu0 %v65
  %5851 = vmatprep.subr.mxu0 0.0
  %5852 = vmatpush2.msra.mxu0 0.0
  %5853 = vmatprep.subr.mxu0 0.0
  %5854 = vmatpush2.msra.mxu0 0.0
  %5855 = vmatprep.subr.mxu0 0.0
  %5856 = vmatpush2.msra.mxu0 0.0
  %5857 = vmatprep.subr.mxu0 0.0
  %5858 = vmatpush2.msra.mxu0 0.0
  %5859 = vmatprep.subr.mxu0 0.0
  %5860 = vmatpush2.msra.mxu0 0.0
  %5861 = vmatprep.subr.mxu0 0.0
  %5862 = vmatpush2.msra.mxu0 0.0
  %5863 = vmatprep.subr.mxu0 0.0
  %5864 = vmatpush2.msra.mxu0 0.0
  %5865 = vmatprep.subr.mxu0 0.0
  %5866 = vmatpush2.msra.mxu0 0.0
  %5867 = vmatprep.subr.mxu0 0.0
  %5868 = vmatpush2.msra.mxu0 0.0
  %5869 = vmatprep.subr.mxu0 0.0
  %5870 = vmatpush2.msra.mxu0 0.0
  %5871 = vmatprep.subr.mxu0 0.0
  %5872 = vmatpush2.msra.mxu0 0.0
  %5873 = vmatprep.subr.mxu0 0.0
  %5874 = vmatpush2.msra.mxu0 0.0
  %5875 = vmatprep.subr.mxu0 0.0
  %5876 = vmatpush2.msra.mxu0 0.0
  %5877 = vmatprep.subr.mxu0 0.0
  %5878 = vmatpush2.msra.mxu0 0.0
  %5879 = vmatprep.subr.mxu0 0.0
  %5880 = vmatpush2.msra.mxu0 0.0
  %5881 = vmatprep.subr.mxu0 0.0
  %5882 = vmatpush2.msra.mxu0 0.0
  %5883 = vmatprep.mubr.f32.mxu0 0.0
  %5884 = vmatmul.mubr.f32.gmra.mxu0 %v5817
  %v5885 = vpop.f32.mrf.mxu0
  %v5886 = vadd.f32 %v78, %v5885
  %v5887 = vpop.f32.mrf.mxu0
  %5888 = vdwg.mxu0
  %v5889 = vtanh.pop %v5886
  %v5891 = vsel %vm93, %v5889, 0
  %5893 = vmatprep.subr.mxu0 0.0
  %5894 = vmatpush1.msra.mxu0 0.0
  %5895 = vmatprep.subr.mxu0 0.0
  %5896 = vmatpush1.msra.mxu0 0.0
  %5897 = vmatprep.subr.mxu0 0.0
  %5898 = vmatpush1.msra.mxu0 0.0
  %5899 = vmatprep.subr.mxu0 0.0
  %5900 = vmatpush1.msra.mxu0 0.0
  %5901 = vmatprep.subr.mxu0 0.0
  %5902 = vmatpush1.msra.mxu0 0.0
  %5903 = vmatprep.subr.mxu0 0.0
  %5904 = vmatpush1.msra.mxu0 0.0
  %5905 = vmatprep.subr.mxu0 0.0
  %5906 = vmatpush1.msra.mxu0 0.0
  %5907 = vmatprep.subr.mxu0 0.0
  %5908 = vmatpush1.msra.mxu0 0.0
  %5909 = vmatprep.subr.mxu0 0.0
  %5910 = vmatpush1.msra.mxu0 0.0
  %5911 = vmatprep.subr.mxu0 0.0
  %5912 = vmatpush1.msra.mxu0 0.0
  %5913 = vmatprep.subr.mxu0 0.0
  %5914 = vmatpush1.msra.mxu0 0.0
  %5915 = vmatprep.subr.mxu0 0.0
  %5916 = vmatpush1.msra.mxu0 0.0
  %5917 = vmatprep.subr.mxu0 0.0
  %5918 = vmatpush1.msra.mxu0 %v63
  %5919 = vmatprep.subr.mxu0 0.0
  %5920 = vmatpush1.msra.mxu0 %v62
  %5921 = vmatprep.subr.mxu0 0.0
  %5922 = vmatpush1.msra.mxu0 %v61
  %5923 = vmatprep.subr.mxu0 0.0
  %5924 = vmatpush1.msra.mxu0 %v60
  %5925 = vmatprep.subr.mxu0 0.0
  %5926 = vmatpush2.msra.mxu0 0.0
  %5927 = vmatprep.subr.mxu0 0.0
  %5928 = vmatpush2.msra.mxu0 0.0
  %5929 = vmatprep.subr.mxu0 0.0
  %5930 = vmatpush2.msra.mxu0 0.0
  %5931 = vmatprep.subr.mxu0 0.0
  %5932 = vmatpush2.msra.mxu0 0.0
  %5933 = vmatprep.subr.mxu0 0.0
  %5934 = vmatpush2.msra.mxu0 0.0
  %5935 = vmatprep.subr.mxu0 0.0
  %5936 = vmatpush2.msra.mxu0 0.0
  %5937 = vmatprep.subr.mxu0 0.0
  %5938 = vmatpush2.msra.mxu0 0.0
  %5939 = vmatprep.subr.mxu0 0.0
  %5940 = vmatpush2.msra.mxu0 0.0
  %5941 = vmatprep.subr.mxu0 0.0
  %5942 = vmatpush2.msra.mxu0 0.0
  %5943 = vmatprep.subr.mxu0 0.0
  %5944 = vmatpush2.msra.mxu0 0.0
  %5945 = vmatprep.subr.mxu0 0.0
  %5946 = vmatpush2.msra.mxu0 0.0
  %5947 = vmatprep.subr.mxu0 0.0
  %5948 = vmatpush2.msra.mxu0 0.0
  %5949 = vmatprep.subr.mxu0 0.0
  %5950 = vmatpush2.msra.mxu0 0.0
  %5951 = vmatprep.subr.mxu0 0.0
  %5952 = vmatpush2.msra.mxu0 0.0
  %5953 = vmatprep.subr.mxu0 0.0
  %5954 = vmatpush2.msra.mxu0 0.0
  %5955 = vmatprep.subr.mxu0 0.0
  %5956 = vmatpush2.msra.mxu0 0.0
  %5957 = vmatprep.mubr.f32.mxu0 0.0
  %5958 = vmatmul.mubr.f32.gmra.mxu0 %v5891
  %v5959 = vpop.f32.mrf.mxu0
  %v5960 = vadd.f32 %v90, %v5959
  %v5961 = vpop.f32.mrf.mxu0
  %5962 = vdwg.mxu0
  %s5963 = scalar_lea.vmem %s11, 34
  %5964 = vst.msk [vmem:[%s5963] sm:$0x3] %vm1628, %v5960
  %v5965 = vsel %vm1628, %v5960, -inf
  %5966 = vmax.xlane.f32.xlu0 %v5965
  %v5967 = vpop.xlane.xlu0 %5966
  %vm5968 = vcmp.eq.f32.partialorder %v5960, %v5967
  %v5969 = vsel %vm5968, %v1396, 16
  %v5970 = vsel %vm1628, %v5969, 2147483647
  %v5971 = vand.u32 %v5970, 65535
  %v5972 = vshra.s32 %v5970, 16
  %v5973 = vcvt.s32.f32 %v5971
  %v5974 = vcvt.s32.f32 %v5972
  %5975 = vmin.xlane.f32.xlu0 %v5974
  %v5976 = vpop.xlane.xlu0 %5975
  %vm5977 = vcmp.eq.f32.partialorder %v5974, %v5976
  %v5978 = vsel %vm5977, %v5973, inf
  %5979 = vmin.xlane.f32.xlu0 %v5978
  %v5980 = vpop.xlane.xlu0 %5979
  %v5981 = vcvt.f32.s32 %v5980
  %v5982 = vcvt.f32.s32 %v5976
  %v5983 = vshll.u32 %v5982, 16
  %v5984 = vadd.s32 %v5983, %v5981
  %vm5985 = vcmp.eq.s32.totalorder %v1396, %v5984
  %v5986 = vsel %vm5985, 1, 0
  %v5987 = vcvt.s32.f32 %v5986
  %5989 = vrot.lane.b32.xlu0 %v5811, 32
  %v5990 = vpop.permute.xlu0 %5989
  %v5992 = vsel %vm93, %v5987, %v5990
  %v5994 = vsel %vm1405, %v5992, 0
  %5996 = vmatprep.subr.mxu0 0.0
  %5997 = vmatpush1.msra.mxu0 0.0
  %5998 = vmatprep.subr.mxu0 0.0
  %5999 = vmatpush1.msra.mxu0 0.0
  %6000 = vmatprep.subr.mxu0 0.0
  %6001 = vmatpush1.msra.mxu0 0.0
  %6002 = vmatprep.subr.mxu0 0.0
  %6003 = vmatpush1.msra.mxu0 0.0
  %6004 = vmatprep.subr.mxu0 0.0
  %6005 = vmatpush1.msra.mxu0 0.0
  %6006 = vmatprep.subr.mxu0 0.0
  %6007 = vmatpush1.msra.mxu0 0.0
  %6008 = vmatprep.subr.mxu0 0.0
  %6009 = vmatpush1.msra.mxu0 0.0
  %6010 = vmatprep.subr.mxu0 0.0
  %6011 = vmatpush1.msra.mxu0 0.0
  %6012 = vmatprep.subr.mxu0 0.0
  %6013 = vmatpush1.msra.mxu0 %v54
  %6014 = vmatprep.subr.mxu0 0.0
  %6015 = vmatpush1.msra.mxu0 %v53
  %6016 = vmatprep.subr.mxu0 0.0
  %6017 = vmatpush1.msra.mxu0 %v52
  %6018 = vmatprep.subr.mxu0 0.0
  %6019 = vmatpush1.msra.mxu0 %v51
  %6020 = vmatprep.subr.mxu0 0.0
  %6021 = vmatpush1.msra.mxu0 %v50
  %6022 = vmatprep.subr.mxu0 0.0
  %6023 = vmatpush1.msra.mxu0 %v49
  %6024 = vmatprep.subr.mxu0 0.0
  %6025 = vmatpush1.msra.mxu0 %v48
  %6026 = vmatprep.subr.mxu0 0.0
  %6027 = vmatpush1.msra.mxu0 %v47
  %6028 = vmatprep.subr.mxu0 0.0
  %6029 = vmatpush2.msra.mxu0 0.0
  %6030 = vmatprep.subr.mxu0 0.0
  %6031 = vmatpush2.msra.mxu0 0.0
  %6032 = vmatprep.subr.mxu0 0.0
  %6033 = vmatpush2.msra.mxu0 0.0
  %6034 = vmatprep.subr.mxu0 0.0
  %6035 = vmatpush2.msra.mxu0 0.0
  %6036 = vmatprep.subr.mxu0 0.0
  %6037 = vmatpush2.msra.mxu0 0.0
  %6038 = vmatprep.subr.mxu0 0.0
  %6039 = vmatpush2.msra.mxu0 0.0
  %6040 = vmatprep.subr.mxu0 0.0
  %6041 = vmatpush2.msra.mxu0 0.0
  %6042 = vmatprep.subr.mxu0 0.0
  %6043 = vmatpush2.msra.mxu0 0.0
  %6044 = vmatprep.subr.mxu0 0.0
  %6045 = vmatpush2.msra.mxu0 0.0
  %6046 = vmatprep.subr.mxu0 0.0
  %6047 = vmatpush2.msra.mxu0 0.0
  %6048 = vmatprep.subr.mxu0 0.0
  %6049 = vmatpush2.msra.mxu0 0.0
  %6050 = vmatprep.subr.mxu0 0.0
  %6051 = vmatpush2.msra.mxu0 0.0
  %6052 = vmatprep.subr.mxu0 0.0
  %6053 = vmatpush2.msra.mxu0 0.0
  %6054 = vmatprep.subr.mxu0 0.0
  %6055 = vmatpush2.msra.mxu0 0.0
  %6056 = vmatprep.subr.mxu0 0.0
  %6057 = vmatpush2.msra.mxu0 0.0
  %6058 = vmatprep.subr.mxu0 0.0
  %6059 = vmatpush2.msra.mxu0 0.0
  %6060 = vmatprep.mubr.f32.mxu0 0.0
  %6061 = vmatmul.mubr.f32.gmra.mxu0 %v5994
  %v6062 = vpop.f32.mrf.mxu0
  %v6063 = vadd.f32 0.0, %v6062
  %v6064 = vpop.f32.mrf.mxu0
  %6065 = vdwg.mxu0
  %v6066 = vtanh.pop %v6063
  %6067 = vrot.lane.b32.xlu0 %v5889, 32
  %v6068 = vpop.permute.xlu0 %6067
  %v6070 = vsel %vm93, %v6066, %v6068
  %v6072 = vsel %vm1405, %v6070, 0
  %6074 = vmatprep.subr.mxu0 0.0
  %6075 = vmatpush1.msra.mxu0 0.0
  %6076 = vmatprep.subr.mxu0 0.0
  %6077 = vmatpush1.msra.mxu0 0.0
  %6078 = vmatprep.subr.mxu0 0.0
  %6079 = vmatpush1.msra.mxu0 0.0
  %6080 = vmatprep.subr.mxu0 0.0
  %6081 = vmatpush1.msra.mxu0 0.0
  %6082 = vmatprep.subr.mxu0 0.0
  %6083 = vmatpush1.msra.mxu0 0.0
  %6084 = vmatprep.subr.mxu0 0.0
  %6085 = vmatpush1.msra.mxu0 0.0
  %6086 = vmatprep.subr.mxu0 0.0
  %6087 = vmatpush1.msra.mxu0 0.0
  %6088 = vmatprep.subr.mxu0 0.0
  %6089 = vmatpush1.msra.mxu0 0.0
  %6090 = vmatprep.subr.mxu0 0.0
  %6091 = vmatpush1.msra.mxu0 %v72
  %6092 = vmatprep.subr.mxu0 0.0
  %6093 = vmatpush1.msra.mxu0 %v71
  %6094 = vmatprep.subr.mxu0 0.0
  %6095 = vmatpush1.msra.mxu0 %v70
  %6096 = vmatprep.subr.mxu0 0.0
  %6097 = vmatpush1.msra.mxu0 %v69
  %6098 = vmatprep.subr.mxu0 0.0
  %6099 = vmatpush1.msra.mxu0 %v68
  %6100 = vmatprep.subr.mxu0 0.0
  %6101 = vmatpush1.msra.mxu0 %v67
  %6102 = vmatprep.subr.mxu0 0.0
  %6103 = vmatpush1.msra.mxu0 %v66
  %6104 = vmatprep.subr.mxu0 0.0
  %6105 = vmatpush1.msra.mxu0 %v65
  %6106 = vmatprep.subr.mxu0 0.0
  %6107 = vmatpush2.msra.mxu0 0.0
  %6108 = vmatprep.subr.mxu0 0.0
  %6109 = vmatpush2.msra.mxu0 0.0
  %6110 = vmatprep.subr.mxu0 0.0
  %6111 = vmatpush2.msra.mxu0 0.0
  %6112 = vmatprep.subr.mxu0 0.0
  %6113 = vmatpush2.msra.mxu0 0.0
  %6114 = vmatprep.subr.mxu0 0.0
  %6115 = vmatpush2.msra.mxu0 0.0
  %6116 = vmatprep.subr.mxu0 0.0
  %6117 = vmatpush2.msra.mxu0 0.0
  %6118 = vmatprep.subr.mxu0 0.0
  %6119 = vmatpush2.msra.mxu0 0.0
  %6120 = vmatprep.subr.mxu0 0.0
  %6121 = vmatpush2.msra.mxu0 0.0
  %6122 = vmatprep.subr.mxu0 0.0
  %6123 = vmatpush2.msra.mxu0 0.0
  %6124 = vmatprep.subr.mxu0 0.0
  %6125 = vmatpush2.msra.mxu0 0.0
  %6126 = vmatprep.subr.mxu0 0.0
  %6127 = vmatpush2.msra.mxu0 0.0
  %6128 = vmatprep.subr.mxu0 0.0
  %6129 = vmatpush2.msra.mxu0 0.0
  %6130 = vmatprep.subr.mxu0 0.0
  %6131 = vmatpush2.msra.mxu0 0.0
  %6132 = vmatprep.subr.mxu0 0.0
  %6133 = vmatpush2.msra.mxu0 0.0
  %6134 = vmatprep.subr.mxu0 0.0
  %6135 = vmatpush2.msra.mxu0 0.0
  %6136 = vmatprep.subr.mxu0 0.0
  %6137 = vmatpush2.msra.mxu0 0.0
  %6138 = vmatprep.mubr.f32.mxu0 0.0
  %6139 = vmatmul.mubr.f32.gmra.mxu0 %v6072
  %v6140 = vpop.f32.mrf.mxu0
  %v6141 = vadd.f32 %v78, %v6140
  %v6142 = vpop.f32.mrf.mxu0
  %6143 = vdwg.mxu0
  %v6144 = vtanh.pop %v6141
  %v6146 = vsel %vm93, %v6144, 0
  %6148 = vmatprep.subr.mxu0 0.0
  %6149 = vmatpush1.msra.mxu0 0.0
  %6150 = vmatprep.subr.mxu0 0.0
  %6151 = vmatpush1.msra.mxu0 0.0
  %6152 = vmatprep.subr.mxu0 0.0
  %6153 = vmatpush1.msra.mxu0 0.0
  %6154 = vmatprep.subr.mxu0 0.0
  %6155 = vmatpush1.msra.mxu0 0.0
  %6156 = vmatprep.subr.mxu0 0.0
  %6157 = vmatpush1.msra.mxu0 0.0
  %6158 = vmatprep.subr.mxu0 0.0
  %6159 = vmatpush1.msra.mxu0 0.0
  %6160 = vmatprep.subr.mxu0 0.0
  %6161 = vmatpush1.msra.mxu0 0.0
  %6162 = vmatprep.subr.mxu0 0.0
  %6163 = vmatpush1.msra.mxu0 0.0
  %6164 = vmatprep.subr.mxu0 0.0
  %6165 = vmatpush1.msra.mxu0 0.0
  %6166 = vmatprep.subr.mxu0 0.0
  %6167 = vmatpush1.msra.mxu0 0.0
  %6168 = vmatprep.subr.mxu0 0.0
  %6169 = vmatpush1.msra.mxu0 0.0
  %6170 = vmatprep.subr.mxu0 0.0
  %6171 = vmatpush1.msra.mxu0 0.0
  %6172 = vmatprep.subr.mxu0 0.0
  %6173 = vmatpush1.msra.mxu0 %v63
  %6174 = vmatprep.subr.mxu0 0.0
  %6175 = vmatpush1.msra.mxu0 %v62
  %6176 = vmatprep.subr.mxu0 0.0
  %6177 = vmatpush1.msra.mxu0 %v61
  %6178 = vmatprep.subr.mxu0 0.0
  %6179 = vmatpush1.msra.mxu0 %v60
  %6180 = vmatprep.subr.mxu0 0.0
  %6181 = vmatpush2.msra.mxu0 0.0
  %6182 = vmatprep.subr.mxu0 0.0
  %6183 = vmatpush2.msra.mxu0 0.0
  %6184 = vmatprep.subr.mxu0 0.0
  %6185 = vmatpush2.msra.mxu0 0.0
  %6186 = vmatprep.subr.mxu0 0.0
  %6187 = vmatpush2.msra.mxu0 0.0
  %6188 = vmatprep.subr.mxu0 0.0
  %6189 = vmatpush2.msra.mxu0 0.0
  %6190 = vmatprep.subr.mxu0 0.0
  %6191 = vmatpush2.msra.mxu0 0.0
  %6192 = vmatprep.subr.mxu0 0.0
  %6193 = vmatpush2.msra.mxu0 0.0
  %6194 = vmatprep.subr.mxu0 0.0
  %6195 = vmatpush2.msra.mxu0 0.0
  %6196 = vmatprep.subr.mxu0 0.0
  %6197 = vmatpush2.msra.mxu0 0.0
  %6198 = vmatprep.subr.mxu0 0.0
  %6199 = vmatpush2.msra.mxu0 0.0
  %6200 = vmatprep.subr.mxu0 0.0
  %6201 = vmatpush2.msra.mxu0 0.0
  %6202 = vmatprep.subr.mxu0 0.0
  %6203 = vmatpush2.msra.mxu0 0.0
  %6204 = vmatprep.subr.mxu0 0.0
  %6205 = vmatpush2.msra.mxu0 0.0
  %6206 = vmatprep.subr.mxu0 0.0
  %6207 = vmatpush2.msra.mxu0 0.0
  %6208 = vmatprep.subr.mxu0 0.0
  %6209 = vmatpush2.msra.mxu0 0.0
  %6210 = vmatprep.subr.mxu0 0.0
  %6211 = vmatpush2.msra.mxu0 0.0
  %6212 = vmatprep.mubr.f32.mxu0 0.0
  %6213 = vmatmul.mubr.f32.gmra.mxu0 %v6146
  %v6214 = vpop.f32.mrf.mxu0
  %v6215 = vadd.f32 %v90, %v6214
  %v6216 = vpop.f32.mrf.mxu0
  %6217 = vdwg.mxu0
  %s6218 = scalar_lea.vmem %s11, 36
  %6219 = vst.msk [vmem:[%s6218] sm:$0x3] %vm1628, %v6215
  %v6220 = vsel %vm1628, %v6215, -inf
  %6221 = vmax.xlane.f32.xlu0 %v6220
  %v6222 = vpop.xlane.xlu0 %6221
  %vm6223 = vcmp.eq.f32.partialorder %v6215, %v6222
  %v6224 = vsel %vm6223, %v1396, 16
  %v6225 = vsel %vm1628, %v6224, 2147483647
  %v6226 = vand.u32 %v6225, 65535
  %v6227 = vshra.s32 %v6225, 16
  %v6228 = vcvt.s32.f32 %v6226
  %v6229 = vcvt.s32.f32 %v6227
  %6230 = vmin.xlane.f32.xlu0 %v6229
  %v6231 = vpop.xlane.xlu0 %6230
  %vm6232 = vcmp.eq.f32.partialorder %v6229, %v6231
  %v6233 = vsel %vm6232, %v6228, inf
  %6234 = vmin.xlane.f32.xlu0 %v6233
  %v6235 = vpop.xlane.xlu0 %6234
  %v6236 = vcvt.f32.s32 %v6235
  %v6237 = vcvt.f32.s32 %v6231
  %v6238 = vshll.u32 %v6237, 16
  %v6239 = vadd.s32 %v6238, %v6236
  %vm6240 = vcmp.eq.s32.totalorder %v1396, %v6239
  %v6241 = vsel %vm6240, 1, 0
  %v6242 = vcvt.s32.f32 %v6241
  %6244 = vrot.lane.b32.xlu0 %v6066, 32
  %v6245 = vpop.permute.xlu0 %6244
  %v6247 = vsel %vm93, %v6242, %v6245
  %v6249 = vsel %vm1405, %v6247, 0
  %6251 = vmatprep.subr.mxu0 0.0
  %6252 = vmatpush1.msra.mxu0 0.0
  %6253 = vmatprep.subr.mxu0 0.0
  %6254 = vmatpush1.msra.mxu0 0.0
  %6255 = vmatprep.subr.mxu0 0.0
  %6256 = vmatpush1.msra.mxu0 0.0
  %6257 = vmatprep.subr.mxu0 0.0
  %6258 = vmatpush1.msra.mxu0 0.0
  %6259 = vmatprep.subr.mxu0 0.0
  %6260 = vmatpush1.msra.mxu0 0.0
  %6261 = vmatprep.subr.mxu0 0.0
  %6262 = vmatpush1.msra.mxu0 0.0
  %6263 = vmatprep.subr.mxu0 0.0
  %6264 = vmatpush1.msra.mxu0 0.0
  %6265 = vmatprep.subr.mxu0 0.0
  %6266 = vmatpush1.msra.mxu0 0.0
  %6267 = vmatprep.subr.mxu0 0.0
  %6268 = vmatpush1.msra.mxu0 %v54
  %6269 = vmatprep.subr.mxu0 0.0
  %6270 = vmatpush1.msra.mxu0 %v53
  %6271 = vmatprep.subr.mxu0 0.0
  %6272 = vmatpush1.msra.mxu0 %v52
  %6273 = vmatprep.subr.mxu0 0.0
  %6274 = vmatpush1.msra.mxu0 %v51
  %6275 = vmatprep.subr.mxu0 0.0
  %6276 = vmatpush1.msra.mxu0 %v50
  %6277 = vmatprep.subr.mxu0 0.0
  %6278 = vmatpush1.msra.mxu0 %v49
  %6279 = vmatprep.subr.mxu0 0.0
  %6280 = vmatpush1.msra.mxu0 %v48
  %6281 = vmatprep.subr.mxu0 0.0
  %6282 = vmatpush1.msra.mxu0 %v47
  %6283 = vmatprep.subr.mxu0 0.0
  %6284 = vmatpush2.msra.mxu0 0.0
  %6285 = vmatprep.subr.mxu0 0.0
  %6286 = vmatpush2.msra.mxu0 0.0
  %6287 = vmatprep.subr.mxu0 0.0
  %6288 = vmatpush2.msra.mxu0 0.0
  %6289 = vmatprep.subr.mxu0 0.0
  %6290 = vmatpush2.msra.mxu0 0.0
  %6291 = vmatprep.subr.mxu0 0.0
  %6292 = vmatpush2.msra.mxu0 0.0
  %6293 = vmatprep.subr.mxu0 0.0
  %6294 = vmatpush2.msra.mxu0 0.0
  %6295 = vmatprep.subr.mxu0 0.0
  %6296 = vmatpush2.msra.mxu0 0.0
  %6297 = vmatprep.subr.mxu0 0.0
  %6298 = vmatpush2.msra.mxu0 0.0
  %6299 = vmatprep.subr.mxu0 0.0
  %6300 = vmatpush2.msra.mxu0 0.0
  %6301 = vmatprep.subr.mxu0 0.0
  %6302 = vmatpush2.msra.mxu0 0.0
  %6303 = vmatprep.subr.mxu0 0.0
  %6304 = vmatpush2.msra.mxu0 0.0
  %6305 = vmatprep.subr.mxu0 0.0
  %6306 = vmatpush2.msra.mxu0 0.0
  %6307 = vmatprep.subr.mxu0 0.0
  %6308 = vmatpush2.msra.mxu0 0.0
  %6309 = vmatprep.subr.mxu0 0.0
  %6310 = vmatpush2.msra.mxu0 0.0
  %6311 = vmatprep.subr.mxu0 0.0
  %6312 = vmatpush2.msra.mxu0 0.0
  %6313 = vmatprep.subr.mxu0 0.0
  %6314 = vmatpush2.msra.mxu0 0.0
  %6315 = vmatprep.mubr.f32.mxu0 0.0
  %6316 = vmatmul.mubr.f32.gmra.mxu0 %v6249
  %v6317 = vpop.f32.mrf.mxu0
  %v6318 = vadd.f32 0.0, %v6317
  %v6319 = vpop.f32.mrf.mxu0
  %6320 = vdwg.mxu0
  %v6321 = vtanh.pop %v6318
  %6322 = vrot.lane.b32.xlu0 %v6144, 32
  %v6323 = vpop.permute.xlu0 %6322
  %v6325 = vsel %vm93, %v6321, %v6323
  %v6327 = vsel %vm1405, %v6325, 0
  %6329 = vmatprep.subr.mxu0 0.0
  %6330 = vmatpush1.msra.mxu0 0.0
  %6331 = vmatprep.subr.mxu0 0.0
  %6332 = vmatpush1.msra.mxu0 0.0
  %6333 = vmatprep.subr.mxu0 0.0
  %6334 = vmatpush1.msra.mxu0 0.0
  %6335 = vmatprep.subr.mxu0 0.0
  %6336 = vmatpush1.msra.mxu0 0.0
  %6337 = vmatprep.subr.mxu0 0.0
  %6338 = vmatpush1.msra.mxu0 0.0
  %6339 = vmatprep.subr.mxu0 0.0
  %6340 = vmatpush1.msra.mxu0 0.0
  %6341 = vmatprep.subr.mxu0 0.0
  %6342 = vmatpush1.msra.mxu0 0.0
  %6343 = vmatprep.subr.mxu0 0.0
  %6344 = vmatpush1.msra.mxu0 0.0
  %6345 = vmatprep.subr.mxu0 0.0
  %6346 = vmatpush1.msra.mxu0 %v72
  %6347 = vmatprep.subr.mxu0 0.0
  %6348 = vmatpush1.msra.mxu0 %v71
  %6349 = vmatprep.subr.mxu0 0.0
  %6350 = vmatpush1.msra.mxu0 %v70
  %6351 = vmatprep.subr.mxu0 0.0
  %6352 = vmatpush1.msra.mxu0 %v69
  %6353 = vmatprep.subr.mxu0 0.0
  %6354 = vmatpush1.msra.mxu0 %v68
  %6355 = vmatprep.subr.mxu0 0.0
  %6356 = vmatpush1.msra.mxu0 %v67
  %6357 = vmatprep.subr.mxu0 0.0
  %6358 = vmatpush1.msra.mxu0 %v66
  %6359 = vmatprep.subr.mxu0 0.0
  %6360 = vmatpush1.msra.mxu0 %v65
  %6361 = vmatprep.subr.mxu0 0.0
  %6362 = vmatpush2.msra.mxu0 0.0
  %6363 = vmatprep.subr.mxu0 0.0
  %6364 = vmatpush2.msra.mxu0 0.0
  %6365 = vmatprep.subr.mxu0 0.0
  %6366 = vmatpush2.msra.mxu0 0.0
  %6367 = vmatprep.subr.mxu0 0.0
  %6368 = vmatpush2.msra.mxu0 0.0
  %6369 = vmatprep.subr.mxu0 0.0
  %6370 = vmatpush2.msra.mxu0 0.0
  %6371 = vmatprep.subr.mxu0 0.0
  %6372 = vmatpush2.msra.mxu0 0.0
  %6373 = vmatprep.subr.mxu0 0.0
  %6374 = vmatpush2.msra.mxu0 0.0
  %6375 = vmatprep.subr.mxu0 0.0
  %6376 = vmatpush2.msra.mxu0 0.0
  %6377 = vmatprep.subr.mxu0 0.0
  %6378 = vmatpush2.msra.mxu0 0.0
  %6379 = vmatprep.subr.mxu0 0.0
  %6380 = vmatpush2.msra.mxu0 0.0
  %6381 = vmatprep.subr.mxu0 0.0
  %6382 = vmatpush2.msra.mxu0 0.0
  %6383 = vmatprep.subr.mxu0 0.0
  %6384 = vmatpush2.msra.mxu0 0.0
  %6385 = vmatprep.subr.mxu0 0.0
  %6386 = vmatpush2.msra.mxu0 0.0
  %6387 = vmatprep.subr.mxu0 0.0
  %6388 = vmatpush2.msra.mxu0 0.0
  %6389 = vmatprep.subr.mxu0 0.0
  %6390 = vmatpush2.msra.mxu0 0.0
  %6391 = vmatprep.subr.mxu0 0.0
  %6392 = vmatpush2.msra.mxu0 0.0
  %6393 = vmatprep.mubr.f32.mxu0 0.0
  %6394 = vmatmul.mubr.f32.gmra.mxu0 %v6327
  %v6395 = vpop.f32.mrf.mxu0
  %v6396 = vadd.f32 %v78, %v6395
  %v6397 = vpop.f32.mrf.mxu0
  %6398 = vdwg.mxu0
  %v6399 = vtanh.pop %v6396
  %v6401 = vsel %vm93, %v6399, 0
  %6403 = vmatprep.subr.mxu0 0.0
  %6404 = vmatpush1.msra.mxu0 0.0
  %6405 = vmatprep.subr.mxu0 0.0
  %6406 = vmatpush1.msra.mxu0 0.0
  %6407 = vmatprep.subr.mxu0 0.0
  %6408 = vmatpush1.msra.mxu0 0.0
  %6409 = vmatprep.subr.mxu0 0.0
  %6410 = vmatpush1.msra.mxu0 0.0
  %6411 = vmatprep.subr.mxu0 0.0
  %6412 = vmatpush1.msra.mxu0 0.0
  %6413 = vmatprep.subr.mxu0 0.0
  %6414 = vmatpush1.msra.mxu0 0.0
  %6415 = vmatprep.subr.mxu0 0.0
  %6416 = vmatpush1.msra.mxu0 0.0
  %6417 = vmatprep.subr.mxu0 0.0
  %6418 = vmatpush1.msra.mxu0 0.0
  %6419 = vmatprep.subr.mxu0 0.0
  %6420 = vmatpush1.msra.mxu0 0.0
  %6421 = vmatprep.subr.mxu0 0.0
  %6422 = vmatpush1.msra.mxu0 0.0
  %6423 = vmatprep.subr.mxu0 0.0
  %6424 = vmatpush1.msra.mxu0 0.0
  %6425 = vmatprep.subr.mxu0 0.0
  %6426 = vmatpush1.msra.mxu0 0.0
  %6427 = vmatprep.subr.mxu0 0.0
  %6428 = vmatpush1.msra.mxu0 %v63
  %6429 = vmatprep.subr.mxu0 0.0
  %6430 = vmatpush1.msra.mxu0 %v62
  %6431 = vmatprep.subr.mxu0 0.0
  %6432 = vmatpush1.msra.mxu0 %v61
  %6433 = vmatprep.subr.mxu0 0.0
  %6434 = vmatpush1.msra.mxu0 %v60
  %6435 = vmatprep.subr.mxu0 0.0
  %6436 = vmatpush2.msra.mxu0 0.0
  %6437 = vmatprep.subr.mxu0 0.0
  %6438 = vmatpush2.msra.mxu0 0.0
  %6439 = vmatprep.subr.mxu0 0.0
  %6440 = vmatpush2.msra.mxu0 0.0
  %6441 = vmatprep.subr.mxu0 0.0
  %6442 = vmatpush2.msra.mxu0 0.0
  %6443 = vmatprep.subr.mxu0 0.0
  %6444 = vmatpush2.msra.mxu0 0.0
  %6445 = vmatprep.subr.mxu0 0.0
  %6446 = vmatpush2.msra.mxu0 0.0
  %6447 = vmatprep.subr.mxu0 0.0
  %6448 = vmatpush2.msra.mxu0 0.0
  %6449 = vmatprep.subr.mxu0 0.0
  %6450 = vmatpush2.msra.mxu0 0.0
  %6451 = vmatprep.subr.mxu0 0.0
  %6452 = vmatpush2.msra.mxu0 0.0
  %6453 = vmatprep.subr.mxu0 0.0
  %6454 = vmatpush2.msra.mxu0 0.0
  %6455 = vmatprep.subr.mxu0 0.0
  %6456 = vmatpush2.msra.mxu0 0.0
  %6457 = vmatprep.subr.mxu0 0.0
  %6458 = vmatpush2.msra.mxu0 0.0
  %6459 = vmatprep.subr.mxu0 0.0
  %6460 = vmatpush2.msra.mxu0 0.0
  %6461 = vmatprep.subr.mxu0 0.0
  %6462 = vmatpush2.msra.mxu0 0.0
  %6463 = vmatprep.subr.mxu0 0.0
  %6464 = vmatpush2.msra.mxu0 0.0
  %6465 = vmatprep.subr.mxu0 0.0
  %6466 = vmatpush2.msra.mxu0 0.0
  %6467 = vmatprep.mubr.f32.mxu0 0.0
  %6468 = vmatmul.mubr.f32.gmra.mxu0 %v6401
  %v6469 = vpop.f32.mrf.mxu0
  %v6470 = vadd.f32 %v90, %v6469
  %v6471 = vpop.f32.mrf.mxu0
  %6472 = vdwg.mxu0
  %s6473 = scalar_lea.vmem %s11, 38
  %6474 = vst.msk [vmem:[%s6473] sm:$0x3] %vm1628, %v6470
  // Predicated region
  $region46: #{tpu_custom_call.1} parent=0 // pred_check
    _
  $region47: #{tpu_custom_call.1} parent=0 // pred_check_branch
    %6476 = sbr.rel (0) target = $region49
  $region48: #{tpu_custom_call.1} parent=0 // pred_region
    _
  $region49: #{tpu_custom_call.1} parent=0 // pred_fallthru
    _
  // Predicated region
  $region50: #{tpu_custom_call.1} parent=0 // pred_check
    _
  $region51: #{tpu_custom_call.1} parent=0 // pred_check_branch
    %6478 = sbr.rel (0) target = $region53
  $region52: #{tpu_custom_call.1} parent=0 // pred_region
    _
  $region53: #{tpu_custom_call.1} parent=0 // pred_fallthru
    _

</llo_original>
